<compile_context>
chip_gen: v7x
topology: tpu7x:2x2x1
jax: 0.10.0
libtpu: 0.0.40
codegen_flags: <defaults>
</compile_context>

<pallas_src>
import functools

import jax
import jax.numpy as jnp
from jax.experimental import pallas as pl
from jax.experimental.pallas import tpu as pltpu

LANE = 128
SUBLANE = 8


def _round_up(v, m):
    return (v + m - 1) // m * m


# -----------------------------------------------------------------------------
# Fused kernel: [conv(K,D) for K in Ks] + bias + ReLU + max-pool(time) + Linear
# -----------------------------------------------------------------------------
def cnn_text_kernel(x_ref, *args, kernel_sizes, l_outs, seq_len):
    """One batch tile.

    x_ref : (tile_n*seq_len, D) f32 (flattened sequences)
    args  : w_0..w_{nb-1} (K_i, D, co_pad) bf16, b_all (nb, co_pad) f32,
            fc_w_t (nb*co_pad, c_pad) f32, fc_b (1, c_pad) f32,
            o_ref (tile_n, c_pad) f32
    """
    nb = len(kernel_sizes)
    w_refs = args[:nb]
    b_ref, fcw_ref, fcb_ref, o_ref = args[nb:]

    M, _ = x_ref.shape
    L = seq_len
    tile_n = M // L
    co_pad = w_refs[0].shape[2]
    k_max = max(kernel_sizes)

    x_f32 = x_ref[...]                        # (M, D) f32 -- read x once
    b_all = b_ref[...]                        # (nb, co_pad) f32

    # Tap 0 initializes every branch accumulator (no zeros + add pass).
    xb = x_f32.astype(jnp.bfloat16)
    accs = [jnp.dot(xb, w_refs[i][0], preferred_element_type=jnp.float32)
            for i in range(nb)]

    # Taps k >= 1: shift the input rows up by one more row each tap (XLU roll
    # overlaps the MXU) and only multiply against branches with K > k, so no
    # zero-weight taps ever hit the MXU.
    x_shift = x_f32
    for k in range(1, k_max):                 # k_max is small & static
        x_shift = pltpu.roll(x_shift, shift=M - 1, axis=0)   # row t <- row t+k
        xb_k = x_shift.astype(jnp.bfloat16)
        for i, K in enumerate(kernel_sizes):
            if k < K:
                accs[i] = accs[i] + jnp.dot(
                    xb_k, w_refs[i][k], preferred_element_type=jnp.float32)

    # Per-sequence time index (in-kernel iota; no (L, F) mask operand).
    t_idx = jax.lax.broadcasted_iota(jnp.int32, (L, 1), 0)

    pooled = []
    for i in range(nb):
        a = jnp.maximum(accs[i] + b_all[i:i + 1, :], 0.0)     # bias + ReLU
        a = a.reshape(tile_n, L, co_pad)
        # Rows t >= l_out hold partial / roll-contaminated windows (including
        # roll wrap across sequences and unspecified ragged-tile rows).  Safe
        # to zero them post-ReLU: valid post-ReLU values are >= 0, so the
        # pooled max over valid rows is unchanged.  Requires K <= L.
        a = jnp.where(t_idx < l_outs[i], a, 0.0)
        pooled.append(jnp.max(a, axis=1))                     # (tile_n, co_pad)
    feats = jnp.concatenate(pooled, axis=1)                   # (tile_n, nb*co_pad)

    # Dropout is identity in eval mode.
    # TODO(synk): training-mode dropout (stochastic masking) not implemented.
    o_ref[...] = (
        jnp.dot(feats, fcw_ref[...], preferred_element_type=jnp.float32)
        + fcb_ref[...])


def cnn_text_forward(x, packed, *, tile_n=None,
                     vmem_limit_bytes=48 * 1024 * 1024, interpret=False):
    """x: (N, L, D) float32.  Returns logits (N, num_classes) float32."""
    N, L, D = x.shape
    Ks = packed["kernel_sizes"]
    nb = len(Ks)
    co_pad = packed["co_pad"]
    c_pad = packed["fc_w_t"].shape[1]
    C = packed["num_classes"]
    k_max = max(Ks)
    assert L >= k_max, "sequence length must be >= max kernel size"

    # Valid conv output length per branch (from the ORIGINAL L).
    l_outs = tuple(L - K + 1 for K in Ks)

    # Pad time to a sublane multiple so the in-kernel (M, co)->(tile_n, L, co)
    # reshape is layout-preserving.  Padded time rows fall in the masked
    # t >= l_out region, so they never affect the max-pool.  (Producers should
    # ideally emit L % 8 == 0 so this copy is skipped -- it is at demo shapes.)
    L_pad = _round_up(L, SUBLANE)
    if L_pad != L:
        x = jnp.pad(x, ((0, 0), (0, L_pad - L), (0, 0)))

    # Batch tile: M = tile_n * L_pad >= ~512 rows/step for a full MXU, while
    # keeping >= 2 grid steps when the batch allows it (v7x has 2 TCs and the
    # "parallel" axis is sharded across them).  Size tile_n down on v7x
    # (64 MiB VMEM) / up on v5e+v6e (128 MiB) via the tile_n argument.
    if tile_n is None:
        tile_n = _round_up(max(1, 512 // L_pad), SUBLANE)
        while tile_n > SUBLANE and pl.cdiv(N, tile_n) < 2:
            tile_n -= SUBLANE
    assert tile_n % SUBLANE == 0

    # No batch pad, no wrapper-side bf16 cast: x goes straight from HBM as f32
    # (the kernel casts to bf16 right before the MXU).  Ragged last tile is
    # handled by Pallas partial-block semantics.
    x2 = x.reshape(N * L_pad, D)              # free row-major metadata reshape
    M = tile_n * L_pad
    grid = (pl.cdiv(N, tile_n),)

    # Grid-invariant operands: constant index maps -> DMA'd once.  (At
    # production scale on v7x, their second pipeline buffer can additionally
    # be dropped to reclaim VMEM.)
    const2 = lambda n: (0, 0)
    in_specs = [pl.BlockSpec((M, D), lambda n: (n, 0))]                     # x
    in_specs += [pl.BlockSpec((K, D, co_pad), lambda n: (0, 0, 0))          # conv W_i
                 for K in Ks]
    in_specs += [
        pl.BlockSpec((nb, co_pad), const2),                                 # conv b
        pl.BlockSpec((nb * co_pad, c_pad), const2),                         # fc W^T
        pl.BlockSpec((1, c_pad), const2),                                   # fc b
    ]

    out = pl.pallas_call(
        functools.partial(cnn_text_kernel, kernel_sizes=tuple(Ks),
                          l_outs=l_outs, seq_len=L_pad),
        out_shape=jax.ShapeDtypeStruct((N, c_pad), jnp.float32),
        grid=grid,
        in_specs=in_specs,
        out_specs=pl.BlockSpec((tile_n, c_pad), lambda n: (n, 0)),
        compiler_params=pltpu.CompilerParams(
            dimension_semantics=("parallel",),      # shard batch tiles over TCs
            vmem_limit_bytes=vmem_limit_bytes,
        ),
        interpret=interpret,
    )(x2, *packed["conv_w"], packed["b_all"], packed["fc_w_t"], packed["fc_b"])
    return out[:, :C]


# -----------------------------------------------------------------------------
# Parameter packing: PyTorch-layout weights -> padded / transposed operands
# -----------------------------------------------------------------------------
def pack_params(conv_ws, conv_bs, fc_w, fc_b, kernel_sizes, *, co_align=LANE):
    """conv_ws[i]: (Co, 1, K_i, D); conv_bs[i]: (Co,);
       fc_w: (C, len(Ks)*Co); fc_b: (C,)."""
    Ks = list(kernel_sizes)
    nb = len(Ks)
    Co = conv_ws[0].shape[0]
    C = fc_w.shape[0]
    # Lane-dense conv output channels.  On v6e/v7x consider co_align=256 so
    # each per-branch matmul is a whole number of 256-wide MXU passes
    # (Co=190 at production scale already rounds to 256 either way).
    co_pad = _round_up(Co, co_align)
    c_pad = _round_up(C, LANE)          # lane-dense logits (sliced afterwards)

    conv_w = []
    b_all = jnp.zeros((nb, co_pad), jnp.float32)
    fc_w_t = jnp.zeros((nb * co_pad, c_pad), jnp.float32)
    for i, (K, w, b) in enumerate(zip(Ks, conv_ws, conv_bs)):
        w_kdc = jnp.transpose(w[:, 0, :, :], (1, 2, 0))      # (K, D, Co)
        D = w_kdc.shape[1]
        w_pad = jnp.zeros((K, D, co_pad), jnp.float32).at[:, :, :Co].set(w_kdc)
        conv_w.append(w_pad.astype(jnp.bfloat16))            # MXU is bf16-native
        b_all = b_all.at[i, :Co].set(b)
        fc_w_t = fc_w_t.at[i * co_pad:i * co_pad + Co, :C].set(
            fc_w[:, i * Co:(i + 1) * Co].T)

    fc_b_pad = jnp.zeros((1, c_pad), jnp.float32).at[0, :C].set(fc_b)

    return dict(
        conv_w=conv_w,          # list of per-branch (K_i, D, co_pad) bf16
        b_all=b_all,            # (nb, co_pad) f32
        fc_w_t=fc_w_t,          # (nb*co_pad, c_pad) f32
        fc_b=fc_b_pad,          # (1, c_pad) f32
        kernel_sizes=tuple(Ks),
        co_pad=co_pad,
        num_classes=C,
    )


# -----------------------------------------------------------------------------
# Pure-JAX reference (PyTorch semantics; inputs rounded to bf16 like the kernel)
# -----------------------------------------------------------------------------
def cnn_text_reference(x, conv_ws, conv_bs, fc_w, fc_b, kernel_sizes):
    xb = x.astype(jnp.bfloat16).astype(jnp.float32)
    N, L, _ = x.shape
    pooled = []
    for K, w, b in zip(kernel_sizes, conv_ws, conv_bs):
        wb = w.astype(jnp.bfloat16).astype(jnp.float32)
        w_kdc = jnp.transpose(wb[:, 0, :, :], (1, 2, 0))     # (K, D, Co)
        l_out = L - K + 1
        acc = jnp.zeros((N, l_out, w.shape[0]), jnp.float32)
        for k in range(K):
            acc = acc + jnp.einsum("nld,dc->nlc", xb[:, k:k + l_out, :],
                                   w_kdc[k])
        acc = jnp.maximum(acc + b[None, None, :], 0.0)
        pooled.append(jnp.max(acc, axis=1))
    feats = jnp.concatenate(pooled, axis=1)
    return feats @ fc_w.T + fc_b[None, :]


if __name__ == "__main__":
    # Small shapes consistent with the module's forward semantics.
    N = 64           # batch: default tile_n=32 -> M=512 rows/step, 2-step grid
    L = 16           # sequence length (multiple of 8 sublanes)
    D = 128          # embedding_dim (small stand-in for 1024)
    Co = 32          # kernel_num (small stand-in for 190; padded to 128 lanes)
    Ks = [4, 5, 6]   # kernel_sizes
    C = 2            # output_size

    key = jax.random.PRNGKey(0)
    keys = jax.random.split(key, 2 * len(Ks) + 3)

    conv_ws, conv_bs = [], []
    for i, K in enumerate(Ks):
        bound = 1.0 / jnp.sqrt(jnp.float32(K * D))  # PyTorch fan_in-style init
        conv_ws.append(jax.random.uniform(keys[2 * i], (Co, 1, K, D),
                                          jnp.float32, -bound, bound))
        conv_bs.append(jax.random.uniform(keys[2 * i + 1], (Co,),
                                          jnp.float32, -bound, bound))
    Fdim = len(Ks) * Co
    bound = 1.0 / jnp.sqrt(jnp.float32(Fdim))
    fc_w = jax.random.uniform(keys[-3], (C, Fdim), jnp.float32, -bound, bound)
    fc_b = jax.random.uniform(keys[-2], (C,), jnp.float32, -bound, bound)
    x = jax.random.normal(keys[-1], (N, L, D), jnp.float32)

    packed = pack_params(conv_ws, conv_bs, fc_w, fc_b, Ks)
    logits = cnn_text_forward(x, packed)
    logits = jax.block_until_ready(logits)

    ref = cnn_text_reference(x, conv_ws, conv_bs, fc_w, fc_b, Ks)
    assert logits.shape == (N, C)
    err = float(jnp.max(jnp.abs(logits - ref)))
    assert jnp.allclose(logits, ref, atol=2e-3, rtol=2e-3), err

    print("KERNEL_OK")
</pallas_src>

<mosaic_0001>
module attributes {stable_mosaic.version = 11 : i64} {
  func.func @cnn_text_kernel(%arg0: i32, %arg1: memref<512x128xf32, #tpu.memory_space<vmem>>, %arg2: memref<4x128x128xbf16, #tpu.memory_space<vmem>>, %arg3: memref<5x128x128xbf16, #tpu.memory_space<vmem>>, %arg4: memref<6x128x128xbf16, #tpu.memory_space<vmem>>, %arg5: memref<3x128xf32, #tpu.memory_space<vmem>>, %arg6: memref<384x128xf32, #tpu.memory_space<vmem>>, %arg7: memref<1x128xf32, #tpu.memory_space<vmem>>, %arg8: memref<32x128xf32, #tpu.memory_space<vmem>>) attributes {dimension_semantics = [#tpu.dimension_semantics<parallel>], iteration_bounds = array<i64: 2>, scalar_prefetch = 0 : i64, scratch_operands = 0 : i64, tpu.core_type = #tpu.core_type<tc>, window_params = [{transform_indices = @transform_0, window_bounds = array<i64: 512, 128>}, {pipeline_mode = #tpu.pipeline_mode<synchronous>, transform_indices = @transform_1, window_bounds = array<i64: 4, 128, 128>}, {pipeline_mode = #tpu.pipeline_mode<synchronous>, transform_indices = @transform_2, window_bounds = array<i64: 5, 128, 128>}, {pipeline_mode = #tpu.pipeline_mode<synchronous>, transform_indices = @transform_3, window_bounds = array<i64: 6, 128, 128>}, {pipeline_mode = #tpu.pipeline_mode<synchronous>, transform_indices = @transform_4, window_bounds = array<i64: 3, 128>}, {pipeline_mode = #tpu.pipeline_mode<synchronous>, transform_indices = @transform_5, window_bounds = array<i64: 384, 128>}, {pipeline_mode = #tpu.pipeline_mode<synchronous>, transform_indices = @transform_6, window_bounds = array<i64: 1, 128>}, {transform_indices = @transform_7, window_bounds = array<i64: 32, 128>}]} {
    %c0 = arith.constant 0 : index
    %c0_0 = arith.constant 0 : index
    %0 = vector.load %arg1[%c0, %c0_0] : memref<512x128xf32, #tpu.memory_space<vmem>>, vector<512x128xf32>
    %c0_1 = arith.constant 0 : index
    %c0_2 = arith.constant 0 : index
    %1 = vector.load %arg5[%c0_1, %c0_2] : memref<3x128xf32, #tpu.memory_space<vmem>>, vector<3x128xf32>
    %2 = arith.truncf %0 : vector<512x128xf32> to vector<512x128xbf16>
    %c0_3 = arith.constant 0 : index
    %c0_4 = arith.constant 0 : index
    %c0_5 = arith.constant 0 : index
    %3 = vector.load %arg2[%c0_3, %c0_4, %c0_5] : memref<4x128x128xbf16, #tpu.memory_space<vmem>>, vector<1x128x128xbf16>
    %4 = vector.shape_cast %3 : vector<1x128x128xbf16> to vector<128x128xbf16>
    %cst = arith.constant dense<0.000000e+00> : vector<512x128xf32>
    %5 = tpu.matmul %2, %4, %cst {dimension_numbers = #tpu.dot_dimension_numbers<[1], [0], [0], [1], [0, 0, 1, 1], [], []>} : vector<512x128xbf16>, vector<128x128xbf16>, vector<512x128xf32> -> vector<512x128xf32>
    %c0_6 = arith.constant 0 : index
    %c0_7 = arith.constant 0 : index
    %c0_8 = arith.constant 0 : index
    %6 = vector.load %arg3[%c0_6, %c0_7, %c0_8] : memref<5x128x128xbf16, #tpu.memory_space<vmem>>, vector<1x128x128xbf16>
    %7 = vector.shape_cast %6 : vector<1x128x128xbf16> to vector<128x128xbf16>
    %cst_9 = arith.constant dense<0.000000e+00> : vector<512x128xf32>
    %8 = tpu.matmul %2, %7, %cst_9 {dimension_numbers = #tpu.dot_dimension_numbers<[1], [0], [0], [1], [0, 0, 1, 1], [], []>} : vector<512x128xbf16>, vector<128x128xbf16>, vector<512x128xf32> -> vector<512x128xf32>
    %c0_10 = arith.constant 0 : index
    %c0_11 = arith.constant 0 : index
    %c0_12 = arith.constant 0 : index
    %9 = vector.load %arg4[%c0_10, %c0_11, %c0_12] : memref<6x128x128xbf16, #tpu.memory_space<vmem>>, vector<1x128x128xbf16>
    %10 = vector.shape_cast %9 : vector<1x128x128xbf16> to vector<128x128xbf16>
    %cst_13 = arith.constant dense<0.000000e+00> : vector<512x128xf32>
    %11 = tpu.matmul %2, %10, %cst_13 {dimension_numbers = #tpu.dot_dimension_numbers<[1], [0], [0], [1], [0, 0, 1, 1], [], []>} : vector<512x128xbf16>, vector<128x128xbf16>, vector<512x128xf32> -> vector<512x128xf32>
    %c511_i32 = arith.constant 511 : i32
    %12 = tpu.dynamic_rotate %0 by %c511_i32 dim 0 : vector<512x128xf32>, i32 -> vector<512x128xf32>
    %13 = arith.truncf %12 : vector<512x128xf32> to vector<512x128xbf16>
    %c1 = arith.constant 1 : index
    %c0_14 = arith.constant 0 : index
    %c0_15 = arith.constant 0 : index
    %14 = vector.load %arg2[%c1, %c0_14, %c0_15] : memref<4x128x128xbf16, #tpu.memory_space<vmem>>, vector<1x128x128xbf16>
    %15 = vector.shape_cast %14 : vector<1x128x128xbf16> to vector<128x128xbf16>
    %cst_16 = arith.constant dense<0.000000e+00> : vector<512x128xf32>
    %16 = tpu.matmul %13, %15, %cst_16 {dimension_numbers = #tpu.dot_dimension_numbers<[1], [0], [0], [1], [0, 0, 1, 1], [], []>} : vector<512x128xbf16>, vector<128x128xbf16>, vector<512x128xf32> -> vector<512x128xf32>
    %17 = arith.addf %5, %16 : vector<512x128xf32>
    %c1_17 = arith.constant 1 : index
    %c0_18 = arith.constant 0 : index
    %c0_19 = arith.constant 0 : index
    %18 = vector.load %arg3[%c1_17, %c0_18, %c0_19] : memref<5x128x128xbf16, #tpu.memory_space<vmem>>, vector<1x128x128xbf16>
    %19 = vector.shape_cast %18 : vector<1x128x128xbf16> to vector<128x128xbf16>
    %cst_20 = arith.constant dense<0.000000e+00> : vector<512x128xf32>
    %20 = tpu.matmul %13, %19, %cst_20 {dimension_numbers = #tpu.dot_dimension_numbers<[1], [0], [0], [1], [0, 0, 1, 1], [], []>} : vector<512x128xbf16>, vector<128x128xbf16>, vector<512x128xf32> -> vector<512x128xf32>
    %21 = arith.addf %8, %20 : vector<512x128xf32>
    %c1_21 = arith.constant 1 : index
    %c0_22 = arith.constant 0 : index
    %c0_23 = arith.constant 0 : index
    %22 = vector.load %arg4[%c1_21, %c0_22, %c0_23] : memref<6x128x128xbf16, #tpu.memory_space<vmem>>, vector<1x128x128xbf16>
    %23 = vector.shape_cast %22 : vector<1x128x128xbf16> to vector<128x128xbf16>
    %cst_24 = arith.constant dense<0.000000e+00> : vector<512x128xf32>
    %24 = tpu.matmul %13, %23, %cst_24 {dimension_numbers = #tpu.dot_dimension_numbers<[1], [0], [0], [1], [0, 0, 1, 1], [], []>} : vector<512x128xbf16>, vector<128x128xbf16>, vector<512x128xf32> -> vector<512x128xf32>
    %25 = arith.addf %11, %24 : vector<512x128xf32>
    %c511_i32_25 = arith.constant 511 : i32
    %26 = tpu.dynamic_rotate %12 by %c511_i32_25 dim 0 : vector<512x128xf32>, i32 -> vector<512x128xf32>
    %27 = arith.truncf %26 : vector<512x128xf32> to vector<512x128xbf16>
    %c2 = arith.constant 2 : index
    %c0_26 = arith.constant 0 : index
    %c0_27 = arith.constant 0 : index
    %28 = vector.load %arg2[%c2, %c0_26, %c0_27] : memref<4x128x128xbf16, #tpu.memory_space<vmem>>, vector<1x128x128xbf16>
    %29 = vector.shape_cast %28 : vector<1x128x128xbf16> to vector<128x128xbf16>
    %cst_28 = arith.constant dense<0.000000e+00> : vector<512x128xf32>
    %30 = tpu.matmul %27, %29, %cst_28 {dimension_numbers = #tpu.dot_dimension_numbers<[1], [0], [0], [1], [0, 0, 1, 1], [], []>} : vector<512x128xbf16>, vector<128x128xbf16>, vector<512x128xf32> -> vector<512x128xf32>
    %31 = arith.addf %17, %30 : vector<512x128xf32>
    %c2_29 = arith.constant 2 : index
    %c0_30 = arith.constant 0 : index
    %c0_31 = arith.constant 0 : index
    %32 = vector.load %arg3[%c2_29, %c0_30, %c0_31] : memref<5x128x128xbf16, #tpu.memory_space<vmem>>, vector<1x128x128xbf16>
    %33 = vector.shape_cast %32 : vector<1x128x128xbf16> to vector<128x128xbf16>
    %cst_32 = arith.constant dense<0.000000e+00> : vector<512x128xf32>
    %34 = tpu.matmul %27, %33, %cst_32 {dimension_numbers = #tpu.dot_dimension_numbers<[1], [0], [0], [1], [0, 0, 1, 1], [], []>} : vector<512x128xbf16>, vector<128x128xbf16>, vector<512x128xf32> -> vector<512x128xf32>
    %35 = arith.addf %21, %34 : vector<512x128xf32>
    %c2_33 = arith.constant 2 : index
    %c0_34 = arith.constant 0 : index
    %c0_35 = arith.constant 0 : index
    %36 = vector.load %arg4[%c2_33, %c0_34, %c0_35] : memref<6x128x128xbf16, #tpu.memory_space<vmem>>, vector<1x128x128xbf16>
    %37 = vector.shape_cast %36 : vector<1x128x128xbf16> to vector<128x128xbf16>
    %cst_36 = arith.constant dense<0.000000e+00> : vector<512x128xf32>
    %38 = tpu.matmul %27, %37, %cst_36 {dimension_numbers = #tpu.dot_dimension_numbers<[1], [0], [0], [1], [0, 0, 1, 1], [], []>} : vector<512x128xbf16>, vector<128x128xbf16>, vector<512x128xf32> -> vector<512x128xf32>
    %39 = arith.addf %25, %38 : vector<512x128xf32>
    %c511_i32_37 = arith.constant 511 : i32
    %40 = tpu.dynamic_rotate %26 by %c511_i32_37 dim 0 : vector<512x128xf32>, i32 -> vector<512x128xf32>
    %41 = arith.truncf %40 : vector<512x128xf32> to vector<512x128xbf16>
    %c3 = arith.constant 3 : index
    %c0_38 = arith.constant 0 : index
    %c0_39 = arith.constant 0 : index
    %42 = vector.load %arg2[%c3, %c0_38, %c0_39] : memref<4x128x128xbf16, #tpu.memory_space<vmem>>, vector<1x128x128xbf16>
    %43 = vector.shape_cast %42 : vector<1x128x128xbf16> to vector<128x128xbf16>
    %cst_40 = arith.constant dense<0.000000e+00> : vector<512x128xf32>
    %44 = tpu.matmul %41, %43, %cst_40 {dimension_numbers = #tpu.dot_dimension_numbers<[1], [0], [0], [1], [0, 0, 1, 1], [], []>} : vector<512x128xbf16>, vector<128x128xbf16>, vector<512x128xf32> -> vector<512x128xf32>
    %45 = arith.addf %31, %44 : vector<512x128xf32>
    %c3_41 = arith.constant 3 : index
    %c0_42 = arith.constant 0 : index
    %c0_43 = arith.constant 0 : index
    %46 = vector.load %arg3[%c3_41, %c0_42, %c0_43] : memref<5x128x128xbf16, #tpu.memory_space<vmem>>, vector<1x128x128xbf16>
    %47 = vector.shape_cast %46 : vector<1x128x128xbf16> to vector<128x128xbf16>
    %cst_44 = arith.constant dense<0.000000e+00> : vector<512x128xf32>
    %48 = tpu.matmul %41, %47, %cst_44 {dimension_numbers = #tpu.dot_dimension_numbers<[1], [0], [0], [1], [0, 0, 1, 1], [], []>} : vector<512x128xbf16>, vector<128x128xbf16>, vector<512x128xf32> -> vector<512x128xf32>
    %49 = arith.addf %35, %48 : vector<512x128xf32>
    %c3_45 = arith.constant 3 : index
    %c0_46 = arith.constant 0 : index
    %c0_47 = arith.constant 0 : index
    %50 = vector.load %arg4[%c3_45, %c0_46, %c0_47] : memref<6x128x128xbf16, #tpu.memory_space<vmem>>, vector<1x128x128xbf16>
    %51 = vector.shape_cast %50 : vector<1x128x128xbf16> to vector<128x128xbf16>
    %cst_48 = arith.constant dense<0.000000e+00> : vector<512x128xf32>
    %52 = tpu.matmul %41, %51, %cst_48 {dimension_numbers = #tpu.dot_dimension_numbers<[1], [0], [0], [1], [0, 0, 1, 1], [], []>} : vector<512x128xbf16>, vector<128x128xbf16>, vector<512x128xf32> -> vector<512x128xf32>
    %53 = arith.addf %39, %52 : vector<512x128xf32>
    %c511_i32_49 = arith.constant 511 : i32
    %54 = tpu.dynamic_rotate %40 by %c511_i32_49 dim 0 : vector<512x128xf32>, i32 -> vector<512x128xf32>
    %55 = arith.truncf %54 : vector<512x128xf32> to vector<512x128xbf16>
    %c4 = arith.constant 4 : index
    %c0_50 = arith.constant 0 : index
    %c0_51 = arith.constant 0 : index
    %56 = vector.load %arg3[%c4, %c0_50, %c0_51] : memref<5x128x128xbf16, #tpu.memory_space<vmem>>, vector<1x128x128xbf16>
    %57 = vector.shape_cast %56 : vector<1x128x128xbf16> to vector<128x128xbf16>
    %cst_52 = arith.constant dense<0.000000e+00> : vector<512x128xf32>
    %58 = tpu.matmul %55, %57, %cst_52 {dimension_numbers = #tpu.dot_dimension_numbers<[1], [0], [0], [1], [0, 0, 1, 1], [], []>} : vector<512x128xbf16>, vector<128x128xbf16>, vector<512x128xf32> -> vector<512x128xf32>
    %59 = arith.addf %49, %58 : vector<512x128xf32>
    %c4_53 = arith.constant 4 : index
    %c0_54 = arith.constant 0 : index
    %c0_55 = arith.constant 0 : index
    %60 = vector.load %arg4[%c4_53, %c0_54, %c0_55] : memref<6x128x128xbf16, #tpu.memory_space<vmem>>, vector<1x128x128xbf16>
    %61 = vector.shape_cast %60 : vector<1x128x128xbf16> to vector<128x128xbf16>
    %cst_56 = arith.constant dense<0.000000e+00> : vector<512x128xf32>
    %62 = tpu.matmul %55, %61, %cst_56 {dimension_numbers = #tpu.dot_dimension_numbers<[1], [0], [0], [1], [0, 0, 1, 1], [], []>} : vector<512x128xbf16>, vector<128x128xbf16>, vector<512x128xf32> -> vector<512x128xf32>
    %63 = arith.addf %53, %62 : vector<512x128xf32>
    %c511_i32_57 = arith.constant 511 : i32
    %64 = tpu.dynamic_rotate %54 by %c511_i32_57 dim 0 : vector<512x128xf32>, i32 -> vector<512x128xf32>
    %65 = arith.truncf %64 : vector<512x128xf32> to vector<512x128xbf16>
    %c5 = arith.constant 5 : index
    %c0_58 = arith.constant 0 : index
    %c0_59 = arith.constant 0 : index
    %66 = vector.load %arg4[%c5, %c0_58, %c0_59] : memref<6x128x128xbf16, #tpu.memory_space<vmem>>, vector<1x128x128xbf16>
    %67 = vector.shape_cast %66 : vector<1x128x128xbf16> to vector<128x128xbf16>
    %cst_60 = arith.constant dense<0.000000e+00> : vector<512x128xf32>
    %68 = tpu.matmul %65, %67, %cst_60 {dimension_numbers = #tpu.dot_dimension_numbers<[1], [0], [0], [1], [0, 0, 1, 1], [], []>} : vector<512x128xbf16>, vector<128x128xbf16>, vector<512x128xf32> -> vector<512x128xf32>
    %69 = arith.addf %63, %68 : vector<512x128xf32>
    %70 = tpu.iota {dimensions = array<i32: 0>} : vector<16x1xi32>
    %71 = vector.extract_strided_slice %1 {offsets = [0, 0], sizes = [1, 128], strides = [1, 1]} : vector<3x128xf32> to vector<1x128xf32>
    %72 = vector.broadcast %71 : vector<1x128xf32> to vector<512x128xf32>
    %73 = arith.addf %45, %72 : vector<512x128xf32>
    %cst_61 = arith.constant 0.000000e+00 : f32
    %74 = vector.broadcast %cst_61 : f32 to vector<512x128xf32>
    %75 = arith.maximumf %73, %74 : vector<512x128xf32>
    %76 = vector.shape_cast %75 : vector<512x128xf32> to vector<32x16x128xf32>
    %c13_i32 = arith.constant 13 : i32
    %77 = vector.broadcast %c13_i32 : i32 to vector<16x1xi32>
    %78 = arith.cmpi slt, %70, %77 : vector<16x1xi32>
    %cst_62 = arith.constant 0.000000e+00 : f32
    %79 = vector.shape_cast %78 : vector<16x1xi1> to vector<1x16x1xi1>
    %80 = vector.broadcast %79 : vector<1x16x1xi1> to vector<32x16x128xi1>
    %81 = vector.broadcast %cst_62 : f32 to vector<32x16x128xf32>
    %82 = arith.select %80, %76, %81 : vector<32x16x128xi1>, vector<32x16x128xf32>
    %cst_63 = arith.constant dense<0xFF800000> : vector<32x128xf32>
    %83 = vector.multi_reduction <maximumf>, %82, %cst_63 [1] : vector<32x16x128xf32> to vector<32x128xf32>
    %84 = vector.extract_strided_slice %1 {offsets = [1, 0], sizes = [1, 128], strides = [1, 1]} : vector<3x128xf32> to vector<1x128xf32>
    %85 = vector.broadcast %84 : vector<1x128xf32> to vector<512x128xf32>
    %86 = arith.addf %59, %85 : vector<512x128xf32>
    %cst_64 = arith.constant 0.000000e+00 : f32
    %87 = vector.broadcast %cst_64 : f32 to vector<512x128xf32>
    %88 = arith.maximumf %86, %87 : vector<512x128xf32>
    %89 = vector.shape_cast %88 : vector<512x128xf32> to vector<32x16x128xf32>
    %c12_i32 = arith.constant 12 : i32
    %90 = vector.broadcast %c12_i32 : i32 to vector<16x1xi32>
    %91 = arith.cmpi slt, %70, %90 : vector<16x1xi32>
    %cst_65 = arith.constant 0.000000e+00 : f32
    %92 = vector.shape_cast %91 : vector<16x1xi1> to vector<1x16x1xi1>
    %93 = vector.broadcast %92 : vector<1x16x1xi1> to vector<32x16x128xi1>
    %94 = vector.broadcast %cst_65 : f32 to vector<32x16x128xf32>
    %95 = arith.select %93, %89, %94 : vector<32x16x128xi1>, vector<32x16x128xf32>
    %cst_66 = arith.constant dense<0xFF800000> : vector<32x128xf32>
    %96 = vector.multi_reduction <maximumf>, %95, %cst_66 [1] : vector<32x16x128xf32> to vector<32x128xf32>
    %97 = vector.extract_strided_slice %1 {offsets = [2, 0], sizes = [1, 128], strides = [1, 1]} : vector<3x128xf32> to vector<1x128xf32>
    %98 = vector.broadcast %97 : vector<1x128xf32> to vector<512x128xf32>
    %99 = arith.addf %69, %98 : vector<512x128xf32>
    %cst_67 = arith.constant 0.000000e+00 : f32
    %100 = vector.broadcast %cst_67 : f32 to vector<512x128xf32>
    %101 = arith.maximumf %99, %100 : vector<512x128xf32>
    %102 = vector.shape_cast %101 : vector<512x128xf32> to vector<32x16x128xf32>
    %c11_i32 = arith.constant 11 : i32
    %103 = vector.broadcast %c11_i32 : i32 to vector<16x1xi32>
    %104 = arith.cmpi slt, %70, %103 : vector<16x1xi32>
    %cst_68 = arith.constant 0.000000e+00 : f32
    %105 = vector.shape_cast %104 : vector<16x1xi1> to vector<1x16x1xi1>
    %106 = vector.broadcast %105 : vector<1x16x1xi1> to vector<32x16x128xi1>
    %107 = vector.broadcast %cst_68 : f32 to vector<32x16x128xf32>
    %108 = arith.select %106, %102, %107 : vector<32x16x128xi1>, vector<32x16x128xf32>
    %cst_69 = arith.constant dense<0xFF800000> : vector<32x128xf32>
    %109 = vector.multi_reduction <maximumf>, %108, %cst_69 [1] : vector<32x16x128xf32> to vector<32x128xf32>
    %110 = tpu.concatenate %83, %96, %109 in 1 : vector<32x128xf32>, vector<32x128xf32>, vector<32x128xf32> -> vector<32x384xf32>
    %c0_70 = arith.constant 0 : index
    %c0_71 = arith.constant 0 : index
    %111 = vector.load %arg6[%c0_70, %c0_71] : memref<384x128xf32, #tpu.memory_space<vmem>>, vector<384x128xf32>
    %cst_72 = arith.constant dense<0.000000e+00> : vector<32x128xf32>
    %112 = tpu.matmul %110, %111, %cst_72 {dimension_numbers = #tpu.dot_dimension_numbers<[1], [0], [0], [1], [0, 0, 1, 1], [], []>} : vector<32x384xf32>, vector<384x128xf32>, vector<32x128xf32> -> vector<32x128xf32>
    %c0_73 = arith.constant 0 : index
    %c0_74 = arith.constant 0 : index
    %113 = vector.load %arg7[%c0_73, %c0_74] : memref<1x128xf32, #tpu.memory_space<vmem>>, vector<1x128xf32>
    %114 = vector.broadcast %113 : vector<1x128xf32> to vector<32x128xf32>
    %115 = arith.addf %112, %114 : vector<32x128xf32>
    %c0_75 = arith.constant 0 : index
    %c0_76 = arith.constant 0 : index
    %116 = vector.load %arg8[%c0_75, %c0_76] : memref<32x128xf32, #tpu.memory_space<vmem>>, vector<32x128xf32>
    tpu.vector_store %arg8[%c0_75, %c0_76], %115 {strides = array<i32>} : memref<32x128xf32, #tpu.memory_space<vmem>>, vector<32x128xf32>,
    return
  }
  func.func @transform_0(%arg0: i32) -> (i32, i32) {
    %c0_i32 = arith.constant 0 : i32
    %c0_i32_0 = arith.constant 0 : i32
    return %arg0, %c0_i32 : i32, i32
  }
  func.func @transform_1(%arg0: i32) -> (i32, i32, i32) {
    %c0_i32 = arith.constant 0 : i32
    %c0_i32_0 = arith.constant 0 : i32
    %c0_i32_1 = arith.constant 0 : i32
    %c0_i32_2 = arith.constant 0 : i32
    return %c0_i32, %c0_i32_0, %c0_i32_1 : i32, i32, i32
  }
  func.func @transform_2(%arg0: i32) -> (i32, i32, i32) {
    %c0_i32 = arith.constant 0 : i32
    %c0_i32_0 = arith.constant 0 : i32
    %c0_i32_1 = arith.constant 0 : i32
    %c0_i32_2 = arith.constant 0 : i32
    return %c0_i32, %c0_i32_0, %c0_i32_1 : i32, i32, i32
  }
  func.func @transform_3(%arg0: i32) -> (i32, i32, i32) {
    %c0_i32 = arith.constant 0 : i32
    %c0_i32_0 = arith.constant 0 : i32
    %c0_i32_1 = arith.constant 0 : i32
    %c0_i32_2 = arith.constant 0 : i32
    return %c0_i32, %c0_i32_0, %c0_i32_1 : i32, i32, i32
  }
  func.func @transform_4(%arg0: i32) -> (i32, i32) {
    %c0_i32 = arith.constant 0 : i32
    %c0_i32_0 = arith.constant 0 : i32
    %c0_i32_1 = arith.constant 0 : i32
    return %c0_i32, %c0_i32_0 : i32, i32
  }
  func.func @transform_5(%arg0: i32) -> (i32, i32) {
    %c0_i32 = arith.constant 0 : i32
    %c0_i32_0 = arith.constant 0 : i32
    %c0_i32_1 = arith.constant 0 : i32
    return %c0_i32, %c0_i32_0 : i32, i32
  }
  func.func @transform_6(%arg0: i32) -> (i32, i32) {
    %c0_i32 = arith.constant 0 : i32
    %c0_i32_0 = arith.constant 0 : i32
    %c0_i32_1 = arith.constant 0 : i32
    return %c0_i32, %c0_i32_0 : i32, i32
  }
  func.func @transform_7(%arg0: i32) -> (i32, i32) {
    %c0_i32 = arith.constant 0 : i32
    %c0_i32_0 = arith.constant 0 : i32
    return %arg0, %c0_i32 : i32, i32
  }
}

</mosaic_0001>

<llo_original>
// kernel: tpu_custom_call.1
$region0: #{tpu_custom_call.1}
  #allocation0 [shape = 'u32[]', space=smem, size = 0x4, offset = 0x4, fixed_abs, tag = 'smem constant byte address 0x4 - core index']
  #allocation1 [shape = 'u32[144,128]{1,0:T(1,128)}', space=vmem, size = 0x12000, scoped, tag = 'internal scratch']
  %s0 = inlined_call_operand.hbm [shape: f32[1024,128], index: 0, kind: input, shape index: {}]
  %s1 = inlined_call_operand.hbm [shape: bf16[4,128,128], index: 1, kind: input, shape index: {}]
  %s2 = inlined_call_operand.hbm [shape: bf16[5,128,128], index: 2, kind: input, shape index: {}]
  %s3 = inlined_call_operand.hbm [shape: bf16[6,128,128], index: 3, kind: input, shape index: {}]
  %s4 = inlined_call_operand.vmem [shape: f32[3,128], index: 4, kind: input, shape index: {}]
  %s5 = inlined_call_operand.hbm [shape: f32[384,128], index: 5, kind: input, shape index: {}]
  %s6 = inlined_call_operand.vmem [shape: f32[1,128], index: 6, kind: input, shape index: {}]
  %s7 = inlined_call_operand.hbm [shape: f32[64,128], index: 7, kind: output, shape index: {}]
  %s8 = sld [smem:[#allocation0]]
  $region81: #{tpu_custom_call.1} parent=0
    _
  %s10 = ssub.s32 1, %s8
  %s11 = scalar_select 0, %s10, %s8
  $region1: #{tpu_custom_call.1} parent=0
    #allocation2 [shape = 'u8[524288]{0}', space=vmem, size = 0x80000, scoped, tag = 'input window, operand 0']
    #allocation3 [shape = 's32[2]{0}', space=sflag, size = 0x8, scoped, tag = 'scoped memory for tpu_custom_call.1']
    #allocation4 [shape = 's32[2]{0}', space=sflag, size = 0x8, scoped, tag = 'scoped memory for tpu_custom_call.1']
    #allocation5 [shape = 'u8[131072]{0}', space=vmem, size = 0x20000, scoped, tag = 'input window, operand 1, single buffered']
    #allocation6 [shape = 's32[1]{0}', space=sflag, size = 0x4, scoped, tag = 'scoped memory for tpu_custom_call.1']
    #allocation7 [shape = 'u8[163840]{0}', space=vmem, size = 0x28000, scoped, tag = 'input window, operand 2, single buffered']
    #allocation8 [shape = 'u8[196608]{0}', space=vmem, size = 0x30000, scoped, tag = 'input window, operand 3, single buffered']
    #allocation9 [shape = 's32[1]{0}', space=sflag, size = 0x4, scoped, tag = 'scoped memory for tpu_custom_call.1']
    #allocation10 [shape = 'u8[196608]{0}', space=vmem, size = 0x30000, scoped, tag = 'input window, operand 5, single buffered']
    #allocation11 [shape = 'u8[32768]{0}', space=vmem, size = 0x8000, scoped, tag = 'output window, operand 0']
    %12 = vsyncpa [#allocation3], 0
    %s13 = scalar_lea.sflag [#allocation3], 1
    %14 = vsyncpa %s13, 0
    %15 = vsyncpa [#allocation6], 0
    %16 = vsyncpa [#allocation9], 0
    %17 = vsyncpa [#allocation4], 0
    %s18 = scalar_lea.sflag [#allocation4], 1
    %19 = vsyncpa %s18, 0
    loop: start=0, step=1, limit=4
    $region2: #{tpu_custom_call.1} parent=1 // loop_pre_header
      _
    $region3: #{tpu_custom_call.1} parent=1 // loop_header
      %s21 = sphi 0, %s25
      %p22 = scmp.ge.s32.totalorder %s21, 4
      %s31 = sphi 0, %s33
      %s34 = sphi 0, %s31
      %s35 = sphi 0, %s34
      %s51 = sphi 0, %s35
      %s55 = sphi 0, %s55
      %s57 = sphi 0, %s55
      %s58 = sphi 0, %s57
      %s72 = sphi 0, %s58
      %s76 = sphi 0, %s76
      %s78 = sphi 0, %s76
      %s79 = sphi 0, %s78
      %s93 = sphi 0, %s79
      %s97 = sphi 0, %s97
      %s99 = sphi 0, %s97
      %s100 = sphi 0, %s99
      %s114 = sphi 0, %s100
      %s118 = sphi 0, %s118
      %s120 = sphi 0, %s118
      %s121 = sphi 0, %s120
      %s135 = sphi 0, %s121
      %s139 = sphi 0, %s139
      %s141 = sphi 0, %s139
      %s142 = sphi 0, %s141
      %s156 = sphi 0, %s142
      %s160 = sphi 0, %s160
      %s162 = sphi 0, %s160
      %s163 = sphi 0, %s162
      %s177 = sphi 0, %s163
      %s183 = sphi 0, %s185
      %s186 = sphi 0, %s183
      %s187 = sphi 0, %s186
      %s203 = sphi 0, %s187
    $region4: #{tpu_custom_call.1} parent=1 // loop_header_branch
      %24 = sbr.rel (%p22) target = $region8
    $region5: #{tpu_custom_call.1} parent=1 // loop_body
      %s26 = ssub.s32 %s21, 1
      %s27 = ssub.s32 %s21, 2
      %s28 = sadd.s32 %s21, 1
      %s29 = ssub.s32 %s21, %s28
      %p30 = scmp.eq.s32.totalorder %s29, 0
      %s32 = sadd.s32 %s31, 1
      %s33 = scalar_select %p30, %s31, %s32
      %p36 = pneg %p30
      %p37 = scmp.eq.s32.totalorder %s21, 1
      %p38 = por %p36, %p37
      %p39 = scmp.ne.s32.totalorder %s31, %s34
      %p40 = scmp.eq.s32.totalorder %s21, 0
      %p41 = por %p39, %p40
      %p42 = scmp.ne.s32.totalorder %s31, %s34
      %p43 = scmp.eq.s32.totalorder %s26, 1
      %p44 = por %p42, %p43
      %p45 = scmp.ne.s32.totalorder %s34, %s35
      %p46 = scmp.eq.s32.totalorder %s26, 0
      %p47 = por %p45, %p46
      %p48 = scmp.ne.s32.totalorder %s34, %s35
      %p49 = scmp.eq.s32.totalorder %s27, 1
      %p50 = por %p48, %p49
      %p52 = scmp.ne.s32.totalorder %s35, %s51
      %p53 = scmp.eq.s32.totalorder %s27, 0
      %p54 = por %p52, %p53
      %s56 = sadd.s32 %s55, 1
      %p59 = scmp.eq.s32.totalorder %s21, 1
      %p60 = scmp.ne.s32.totalorder %s55, %s57
      %p61 = scmp.eq.s32.totalorder %s21, 0
      %p62 = por %p60, %p61
      %p63 = scmp.ne.s32.totalorder %s55, %s57
      %p64 = scmp.eq.s32.totalorder %s26, 1
      %p65 = por %p63, %p64
      %p66 = scmp.ne.s32.totalorder %s57, %s58
      %p67 = scmp.eq.s32.totalorder %s26, 0
      %p68 = por %p66, %p67
      %p69 = scmp.ne.s32.totalorder %s57, %s58
      %p70 = scmp.eq.s32.totalorder %s27, 1
      %p71 = por %p69, %p70
      %p73 = scmp.ne.s32.totalorder %s58, %s72
      %p74 = scmp.eq.s32.totalorder %s27, 0
      %p75 = por %p73, %p74
      %s77 = sadd.s32 %s76, 1
      %p80 = scmp.eq.s32.totalorder %s21, 1
      %p81 = scmp.ne.s32.totalorder %s76, %s78
      %p82 = scmp.eq.s32.totalorder %s21, 0
      %p83 = por %p81, %p82
      %p84 = scmp.ne.s32.totalorder %s76, %s78
      %p85 = scmp.eq.s32.totalorder %s26, 1
      %p86 = por %p84, %p85
      %p87 = scmp.ne.s32.totalorder %s78, %s79
      %p88 = scmp.eq.s32.totalorder %s26, 0
      %p89 = por %p87, %p88
      %p90 = scmp.ne.s32.totalorder %s78, %s79
      %p91 = scmp.eq.s32.totalorder %s27, 1
      %p92 = por %p90, %p91
      %p94 = scmp.ne.s32.totalorder %s79, %s93
      %p95 = scmp.eq.s32.totalorder %s27, 0
      %p96 = por %p94, %p95
      %s98 = sadd.s32 %s97, 1
      %p101 = scmp.eq.s32.totalorder %s21, 1
      %p102 = scmp.ne.s32.totalorder %s97, %s99
      %p103 = scmp.eq.s32.totalorder %s21, 0
      %p104 = por %p102, %p103
      %p105 = scmp.ne.s32.totalorder %s97, %s99
      %p106 = scmp.eq.s32.totalorder %s26, 1
      %p107 = por %p105, %p106
      %p108 = scmp.ne.s32.totalorder %s99, %s100
      %p109 = scmp.eq.s32.totalorder %s26, 0
      %p110 = por %p108, %p109
      %p111 = scmp.ne.s32.totalorder %s99, %s100
      %p112 = scmp.eq.s32.totalorder %s27, 1
      %p113 = por %p111, %p112
      %p115 = scmp.ne.s32.totalorder %s100, %s114
      %p116 = scmp.eq.s32.totalorder %s27, 0
      %p117 = por %p115, %p116
      %s119 = sadd.s32 %s118, 1
      %p122 = scmp.eq.s32.totalorder %s21, 1
      %p123 = scmp.ne.s32.totalorder %s118, %s120
      %p124 = scmp.eq.s32.totalorder %s21, 0
      %p125 = por %p123, %p124
      %p126 = scmp.ne.s32.totalorder %s118, %s120
      %p127 = scmp.eq.s32.totalorder %s26, 1
      %p128 = por %p126, %p127
      %p129 = scmp.ne.s32.totalorder %s120, %s121
      %p130 = scmp.eq.s32.totalorder %s26, 0
      %p131 = por %p129, %p130
      %p132 = scmp.ne.s32.totalorder %s120, %s121
      %p133 = scmp.eq.s32.totalorder %s27, 1
      %p134 = por %p132, %p133
      %p136 = scmp.ne.s32.totalorder %s121, %s135
      %p137 = scmp.eq.s32.totalorder %s27, 0
      %p138 = por %p136, %p137
      %s140 = sadd.s32 %s139, 1
      %p143 = scmp.eq.s32.totalorder %s21, 1
      %p144 = scmp.ne.s32.totalorder %s139, %s141
      %p145 = scmp.eq.s32.totalorder %s21, 0
      %p146 = por %p144, %p145
      %p147 = scmp.ne.s32.totalorder %s139, %s141
      %p148 = scmp.eq.s32.totalorder %s26, 1
      %p149 = por %p147, %p148
      %p150 = scmp.ne.s32.totalorder %s141, %s142
      %p151 = scmp.eq.s32.totalorder %s26, 0
      %p152 = por %p150, %p151
      %p153 = scmp.ne.s32.totalorder %s141, %s142
      %p154 = scmp.eq.s32.totalorder %s27, 1
      %p155 = por %p153, %p154
      %p157 = scmp.ne.s32.totalorder %s142, %s156
      %p158 = scmp.eq.s32.totalorder %s27, 0
      %p159 = por %p157, %p158
      %s161 = sadd.s32 %s160, 1
      %p164 = scmp.eq.s32.totalorder %s21, 1
      %p165 = scmp.ne.s32.totalorder %s160, %s162
      %p166 = scmp.eq.s32.totalorder %s21, 0
      %p167 = por %p165, %p166
      %p168 = scmp.ne.s32.totalorder %s160, %s162
      %p169 = scmp.eq.s32.totalorder %s26, 1
      %p170 = por %p168, %p169
      %p171 = scmp.ne.s32.totalorder %s162, %s163
      %p172 = scmp.eq.s32.totalorder %s26, 0
      %p173 = por %p171, %p172
      %p174 = scmp.ne.s32.totalorder %s162, %s163
      %p175 = scmp.eq.s32.totalorder %s27, 1
      %p176 = por %p174, %p175
      %p178 = scmp.ne.s32.totalorder %s163, %s177
      %p179 = scmp.eq.s32.totalorder %s27, 0
      %p180 = por %p178, %p179
      %s181 = ssub.s32 %s21, %s28
      %p182 = scmp.eq.s32.totalorder %s181, 0
      %s184 = sadd.s32 %s183, 1
      %s185 = scalar_select %p182, %s183, %s184
      %p188 = pneg %p182
      %p189 = scmp.eq.s32.totalorder %s21, 1
      %p190 = por %p188, %p189
      %p191 = scmp.ne.s32.totalorder %s183, %s186
      %p192 = scmp.eq.s32.totalorder %s21, 0
      %p193 = por %p191, %p192
      %p194 = scmp.ne.s32.totalorder %s183, %s186
      %p195 = scmp.eq.s32.totalorder %s26, 1
      %p196 = por %p194, %p195
      %p197 = scmp.ne.s32.totalorder %s186, %s187
      %p198 = scmp.eq.s32.totalorder %s26, 0
      %p199 = por %p197, %p198
      %p200 = scmp.ne.s32.totalorder %s186, %s187
      %p201 = scmp.eq.s32.totalorder %s27, 1
      %p202 = por %p200, %p201
      %p204 = scmp.ne.s32.totalorder %s187, %s203
      %p205 = scmp.eq.s32.totalorder %s27, 0
      %p206 = por %p204, %p205
      %p207 = scmp.le.s32.totalorder 1, %s21
      %p208 = scmp.lt.s32.totalorder %s21, 3
      %p209 = pnand %p207, %p208
      %p210 = pneg %p209
      // Predicated region
      $region9: #{tpu_custom_call.1} parent=5 // pred_check
        _
      $region10: #{tpu_custom_call.1} parent=5 // pred_check_branch
        %212 = sbr.rel (%p209) target = $region12
      $region11: #{tpu_custom_call.1} parent=5 // pred_region
        %s213 = ssub.s32 %s21, 1
        // Predicated region
        $region13: #{tpu_custom_call.1} parent=11 // pred_check
          %p214 = pneg %p68
        $region14: #{tpu_custom_call.1} parent=11 // pred_check_branch
          %216 = sbr.rel (%p214) target = $region16
        $region15: #{tpu_custom_call.1} parent=11 // pred_region
          %s218 = ssub.s32 4096, 4096
          %219 = vsyncadd [#allocation6], %s218
          %s220 = sshll.u32 [#allocation5], 4
          %s221 = int_to_ptr.vmem [resolvable:$true] %s220
          %226 = dma.hbm_to_vmem [thread:$0]  %s1, 4096, %s221, [#allocation6], 64, 64, 4
        $region16: #{tpu_custom_call.1} parent=11 // pred_fallthru
          _
        // Predicated region
        $region17: #{tpu_custom_call.1} parent=11 // pred_check
          %p227 = pneg %p89
        $region18: #{tpu_custom_call.1} parent=11 // pred_check_branch
          %229 = sbr.rel (%p227) target = $region20
        $region19: #{tpu_custom_call.1} parent=11 // pred_region
          %s231 = ssub.s32 5120, 5120
          %232 = vsyncadd [#allocation6], %s231
          %s233 = sshll.u32 [#allocation7], 4
          %s234 = int_to_ptr.vmem [resolvable:$true] %s233
          %239 = dma.hbm_to_vmem [thread:$0]  %s2, 5120, %s234, [#allocation6], 64, 64, 4
        $region20: #{tpu_custom_call.1} parent=11 // pred_fallthru
          _
        // Predicated region
        $region21: #{tpu_custom_call.1} parent=11 // pred_check
          %p240 = pneg %p110
        $region22: #{tpu_custom_call.1} parent=11 // pred_check_branch
          %242 = sbr.rel (%p240) target = $region24
        $region23: #{tpu_custom_call.1} parent=11 // pred_region
          %s244 = ssub.s32 6144, 6144
          %245 = vsyncadd [#allocation9], %s244
          %s246 = sshll.u32 [#allocation8], 4
          %s247 = int_to_ptr.vmem [resolvable:$true] %s246
          %252 = dma.hbm_to_vmem [thread:$0]  %s3, 6144, %s247, [#allocation9], 64, 64, 4
        $region24: #{tpu_custom_call.1} parent=11 // pred_fallthru
          _
        // Predicated region
        $region25: #{tpu_custom_call.1} parent=11 // pred_check
          %p253 = pneg %p131
        $region26: #{tpu_custom_call.1} parent=11 // pred_check_branch
          %255 = sbr.rel (%p253) target = $region28
        $region27: #{tpu_custom_call.1} parent=11 // pred_region
          _
        $region28: #{tpu_custom_call.1} parent=11 // pred_fallthru
          _
        // Predicated region
        $region29: #{tpu_custom_call.1} parent=11 // pred_check
          %p256 = pneg %p152
        $region30: #{tpu_custom_call.1} parent=11 // pred_check_branch
          %258 = sbr.rel (%p256) target = $region32
        $region31: #{tpu_custom_call.1} parent=11 // pred_region
          %s260 = ssub.s32 6144, 6144
          %261 = vsyncadd [#allocation9], %s260
          %s262 = sshll.u32 [#allocation10], 4
          %s263 = int_to_ptr.vmem [resolvable:$true] %s262
          %268 = dma.hbm_to_vmem [thread:$0]  %s5, 6144, %s263, [#allocation9], 128, 128, 8
        $region32: #{tpu_custom_call.1} parent=11 // pred_fallthru
          _
        // Predicated region
        $region33: #{tpu_custom_call.1} parent=11 // pred_check
          %p269 = pneg %p173
        $region34: #{tpu_custom_call.1} parent=11 // pred_check_branch
          %271 = sbr.rel (%p269) target = $region36
        $region35: #{tpu_custom_call.1} parent=11 // pred_region
          _
        $region36: #{tpu_custom_call.1} parent=11 // pred_fallthru
          _
      $region12: #{tpu_custom_call.1} parent=5 // pred_fallthru
        _
      %p272 = scmp.lt.s32.totalorder %s21, 2
      // Predicated region
      $region37: #{tpu_custom_call.1} parent=5 // pred_check
        %p273 = pneg %p272
      $region38: #{tpu_custom_call.1} parent=5 // pred_check_branch
        %275 = sbr.rel (%p273) target = $region40
      $region39: #{tpu_custom_call.1} parent=5 // pred_region
        // Predicated region
        $region41: #{tpu_custom_call.1} parent=39 // pred_check
          %p276 = pneg %p41
        $region42: #{tpu_custom_call.1} parent=39 // pred_check_branch
          %278 = sbr.rel (%p276) target = $region44
        $region43: #{tpu_custom_call.1} parent=39 // pred_region
          %s279 = sand.u32 %s31, 1
          %s280 = scalar_lea.sflag [#allocation3], %s279
          %s281 = sand.u32 %s31, 1
          %s282 = smul.addr %s281, 512
          %s283 = scalar_lea.vmem [#allocation2], %s282
          %s284 = smul.u32 64, %s21
          %s286 = ssub.s32 8192, 8192
          %287 = vsyncadd %s280, %s286
          %s288 = smul.addr %s284, 128
          %s289 = scalar_lea.hbm %s0, %s288
          %s290 = sshll.u32 %s283, 4
          %s291 = int_to_ptr.vmem [resolvable:$true] %s290
          %296 = dma.hbm_to_vmem [thread:$0]  %s289, 8192, %s291, %s280, 128, 128, 8
        $region44: #{tpu_custom_call.1} parent=39 // pred_fallthru
          _
      $region40: #{tpu_custom_call.1} parent=5 // pred_fallthru
        _
      %p297 = scmp.le.s32.totalorder 1, %s21
      %p298 = scmp.lt.s32.totalorder %s21, 3
      %p299 = pnand %p297, %p298
      %p300 = pneg %p299
      // Predicated region
      $region45: #{tpu_custom_call.1} parent=5 // pred_check
        _
      $region46: #{tpu_custom_call.1} parent=5 // pred_check_branch
        %302 = sbr.rel (%p299) target = $region48
      $region47: #{tpu_custom_call.1} parent=5 // pred_region
        %s303 = ssub.s32 %s21, 1
        %s304 = sand.u32 %s34, 1
        %s305 = scalar_lea.sflag [#allocation3], %s304
        %s306 = sand.u32 %s34, 1
        %s307 = smul.addr %s306, 512
        %s308 = scalar_lea.vmem [#allocation2], %s307
        // Predicated region
        $region49: #{tpu_custom_call.1} parent=47 // pred_check
          %p309 = pneg %p47
        $region50: #{tpu_custom_call.1} parent=47 // pred_check_branch
          %311 = sbr.rel (%p309) target = $region52
        $region51: #{tpu_custom_call.1} parent=47 // pred_region
          %312 = dma.done %s305, 8192
        $region52: #{tpu_custom_call.1} parent=47 // pred_fallthru
          _
        // Predicated region
        $region53: #{tpu_custom_call.1} parent=47 // pred_check
          %p313 = pneg %p68
        $region54: #{tpu_custom_call.1} parent=47 // pred_check_branch
          %315 = sbr.rel (%p313) target = $region56
        $region55: #{tpu_custom_call.1} parent=47 // pred_region
          %316 = dma.done [#allocation6], 4096
        $region56: #{tpu_custom_call.1} parent=47 // pred_fallthru
          _
        // Predicated region
        $region57: #{tpu_custom_call.1} parent=47 // pred_check
          %p317 = pneg %p89
        $region58: #{tpu_custom_call.1} parent=47 // pred_check_branch
          %319 = sbr.rel (%p317) target = $region60
        $region59: #{tpu_custom_call.1} parent=47 // pred_region
          %320 = dma.done [#allocation6], 5120
        $region60: #{tpu_custom_call.1} parent=47 // pred_fallthru
          _
        // Predicated region
        $region61: #{tpu_custom_call.1} parent=47 // pred_check
          %p321 = pneg %p110
        $region62: #{tpu_custom_call.1} parent=47 // pred_check_branch
          %323 = sbr.rel (%p321) target = $region64
        $region63: #{tpu_custom_call.1} parent=47 // pred_region
          %324 = dma.done [#allocation9], 6144
        $region64: #{tpu_custom_call.1} parent=47 // pred_fallthru
          _
        // Predicated region
        $region65: #{tpu_custom_call.1} parent=47 // pred_check
          %p325 = pneg %p152
        $region66: #{tpu_custom_call.1} parent=47 // pred_check_branch
          %327 = sbr.rel (%p325) target = $region68
        $region67: #{tpu_custom_call.1} parent=47 // pred_region
          %328 = dma.done [#allocation9], 6144
        $region68: #{tpu_custom_call.1} parent=47 // pred_fallthru
          _
        %s329 = sand.u32 %s34, 1
        %s330 = scalar_lea.sflag [#allocation3], %s329
        %s331 = sand.u32 %s34, 1
        %s332 = smul.addr %s331, 512
        %s333 = scalar_lea.vmem [#allocation2], %s332
        %p334 = pneg %p47
        %p335 = pneg %p44
        %p336 = pneg %p68
        %p337 = pneg %p65
        %p338 = pneg %p89
        %p339 = pneg %p86
        %p340 = pneg %p110
        %p341 = pneg %p107
        %p342 = pneg %p131
        %p343 = pneg %p128
        %p344 = pneg %p152
        %p345 = pneg %p149
        %p346 = pneg %p173
        %p347 = pneg %p170
        %p348 = pneg %p199
        %p349 = pneg %p196
        %s350 = sand.u32 %s186, 1
        %s351 = scalar_lea.sflag [#allocation4], %s350
        %s352 = sand.u32 %s186, 1
        %s353 = smul.addr %s352, 32
        %s354 = scalar_lea.vmem [#allocation11], %s353
        %s355 = smul.u32 64, %s26
        %s356 = smul.u32 4, %s26
        %v358 = vld [vmem:[%s308] sm:$0xff]
        %v359 = vld [vmem:[%s308 + $0x8] sm:$0xff]
        %v360 = vld [vmem:[%s308 + $0x10] sm:$0xff]
        %v361 = vld [vmem:[%s308 + $0x18] sm:$0xff]
        %v362 = vld [vmem:[%s308 + $0x20] sm:$0xff]
        %v363 = vld [vmem:[%s308 + $0x28] sm:$0xff]
        %v364 = vld [vmem:[%s308 + $0x30] sm:$0xff]
        %v365 = vld [vmem:[%s308 + $0x38] sm:$0xff]
        %v366 = vld [vmem:[%s308 + $0x40] sm:$0xff]
        %v367 = vld [vmem:[%s308 + $0x48] sm:$0xff]
        %v368 = vld [vmem:[%s308 + $0x50] sm:$0xff]
        %v369 = vld [vmem:[%s308 + $0x58] sm:$0xff]
        %v370 = vld [vmem:[%s308 + $0x60] sm:$0xff]
        %v371 = vld [vmem:[%s308 + $0x68] sm:$0xff]
        %v372 = vld [vmem:[%s308 + $0x70] sm:$0xff]
        %v373 = vld [vmem:[%s308 + $0x78] sm:$0xff]
        %v374 = vld [vmem:[%s308 + $0x80] sm:$0xff]
        %v375 = vld [vmem:[%s308 + $0x88] sm:$0xff]
        %v376 = vld [vmem:[%s308 + $0x90] sm:$0xff]
        %v377 = vld [vmem:[%s308 + $0x98] sm:$0xff]
        %v378 = vld [vmem:[%s308 + $0xa0] sm:$0xff]
        %v379 = vld [vmem:[%s308 + $0xa8] sm:$0xff]
        %v380 = vld [vmem:[%s308 + $0xb0] sm:$0xff]
        %v381 = vld [vmem:[%s308 + $0xb8] sm:$0xff]
        %v382 = vld [vmem:[%s308 + $0xc0] sm:$0xff]
        %v383 = vld [vmem:[%s308 + $0xc8] sm:$0xff]
        %v384 = vld [vmem:[%s308 + $0xd0] sm:$0xff]
        %v385 = vld [vmem:[%s308 + $0xd8] sm:$0xff]
        %v386 = vld [vmem:[%s308 + $0xe0] sm:$0xff]
        %v387 = vld [vmem:[%s308 + $0xe8] sm:$0xff]
        %v388 = vld [vmem:[%s308 + $0xf0] sm:$0xff]
        %v389 = vld [vmem:[%s308 + $0xf8] sm:$0xff]
        %v390 = vld [vmem:[%s308 + $0x100] sm:$0xff]
        %v391 = vld [vmem:[%s308 + $0x108] sm:$0xff]
        %v392 = vld [vmem:[%s308 + $0x110] sm:$0xff]
        %v393 = vld [vmem:[%s308 + $0x118] sm:$0xff]
        %v394 = vld [vmem:[%s308 + $0x120] sm:$0xff]
        %v395 = vld [vmem:[%s308 + $0x128] sm:$0xff]
        %v396 = vld [vmem:[%s308 + $0x130] sm:$0xff]
        %v397 = vld [vmem:[%s308 + $0x138] sm:$0xff]
        %v398 = vld [vmem:[%s308 + $0x140] sm:$0xff]
        %v399 = vld [vmem:[%s308 + $0x148] sm:$0xff]
        %v400 = vld [vmem:[%s308 + $0x150] sm:$0xff]
        %v401 = vld [vmem:[%s308 + $0x158] sm:$0xff]
        %v402 = vld [vmem:[%s308 + $0x160] sm:$0xff]
        %v403 = vld [vmem:[%s308 + $0x168] sm:$0xff]
        %v404 = vld [vmem:[%s308 + $0x170] sm:$0xff]
        %v405 = vld [vmem:[%s308 + $0x178] sm:$0xff]
        %v406 = vld [vmem:[%s308 + $0x180] sm:$0xff]
        %v407 = vld [vmem:[%s308 + $0x188] sm:$0xff]
        %v408 = vld [vmem:[%s308 + $0x190] sm:$0xff]
        %v409 = vld [vmem:[%s308 + $0x198] sm:$0xff]
        %v410 = vld [vmem:[%s308 + $0x1a0] sm:$0xff]
        %v411 = vld [vmem:[%s308 + $0x1a8] sm:$0xff]
        %v412 = vld [vmem:[%s308 + $0x1b0] sm:$0xff]
        %v413 = vld [vmem:[%s308 + $0x1b8] sm:$0xff]
        %v414 = vld [vmem:[%s308 + $0x1c0] sm:$0xff]
        %v415 = vld [vmem:[%s308 + $0x1c8] sm:$0xff]
        %v416 = vld [vmem:[%s308 + $0x1d0] sm:$0xff]
        %v417 = vld [vmem:[%s308 + $0x1d8] sm:$0xff]
        %v418 = vld [vmem:[%s308 + $0x1e0] sm:$0xff]
        %v419 = vld [vmem:[%s308 + $0x1e8] sm:$0xff]
        %v420 = vld [vmem:[%s308 + $0x1f0] sm:$0xff]
        %v421 = vld [vmem:[%s308 + $0x1f8] sm:$0xff]
        %v422 = vld [vmem:[%s4] sm:$0x7]
        %v423 = vpack.c.bf16 %v359, %v358
        %v424 = vpack.c.bf16 %v361, %v360
        %v425 = vpack.c.bf16 %v363, %v362
        %v426 = vpack.c.bf16 %v365, %v364
        %v427 = vpack.c.bf16 %v367, %v366
        %v428 = vpack.c.bf16 %v369, %v368
        %v429 = vpack.c.bf16 %v371, %v370
        %v430 = vpack.c.bf16 %v373, %v372
        %v431 = vpack.c.bf16 %v375, %v374
        %v432 = vpack.c.bf16 %v377, %v376
        %v433 = vpack.c.bf16 %v379, %v378
        %v434 = vpack.c.bf16 %v381, %v380
        %v435 = vpack.c.bf16 %v383, %v382
        %v436 = vpack.c.bf16 %v385, %v384
        %v437 = vpack.c.bf16 %v387, %v386
        %v438 = vpack.c.bf16 %v389, %v388
        %v439 = vpack.c.bf16 %v391, %v390
        %v440 = vpack.c.bf16 %v393, %v392
        %v441 = vpack.c.bf16 %v395, %v394
        %v442 = vpack.c.bf16 %v397, %v396
        %v443 = vpack.c.bf16 %v399, %v398
        %v444 = vpack.c.bf16 %v401, %v400
        %v445 = vpack.c.bf16 %v403, %v402
        %v446 = vpack.c.bf16 %v405, %v404
        %v447 = vpack.c.bf16 %v407, %v406
        %v448 = vpack.c.bf16 %v409, %v408
        %v449 = vpack.c.bf16 %v411, %v410
        %v450 = vpack.c.bf16 %v413, %v412
        %v451 = vpack.c.bf16 %v415, %v414
        %v452 = vpack.c.bf16 %v417, %v416
        %v453 = vpack.c.bf16 %v419, %v418
        %v454 = vpack.c.bf16 %v421, %v420
        %v455 = vld [vmem:[#allocation5] sm:$0xf]
        %v456 = vld [vmem:[#allocation5 + $0x4] sm:$0xf]
        %v457 = vld [vmem:[#allocation5 + $0x8] sm:$0xf]
        %v458 = vld [vmem:[#allocation5 + $0xc] sm:$0xf]
        %v459 = vld [vmem:[#allocation5 + $0x10] sm:$0xf]
        %v460 = vld [vmem:[#allocation5 + $0x14] sm:$0xf]
        %v461 = vld [vmem:[#allocation5 + $0x18] sm:$0xf]
        %v462 = vld [vmem:[#allocation5 + $0x1c] sm:$0xf]
        %v463 = vld [vmem:[#allocation5 + $0x20] sm:$0xf]
        %v464 = vld [vmem:[#allocation5 + $0x24] sm:$0xf]
        %v465 = vld [vmem:[#allocation5 + $0x28] sm:$0xf]
        %v466 = vld [vmem:[#allocation5 + $0x2c] sm:$0xf]
        %v467 = vld [vmem:[#allocation5 + $0x30] sm:$0xf]
        %v468 = vld [vmem:[#allocation5 + $0x34] sm:$0xf]
        %v469 = vld [vmem:[#allocation5 + $0x38] sm:$0xf]
        %v470 = vld [vmem:[#allocation5 + $0x3c] sm:$0xf]
        %v471 = vld [vmem:[#allocation7] sm:$0xf]
        %v472 = vld [vmem:[#allocation7 + $0x4] sm:$0xf]
        %v473 = vld [vmem:[#allocation7 + $0x8] sm:$0xf]
        %v474 = vld [vmem:[#allocation7 + $0xc] sm:$0xf]
        %v475 = vld [vmem:[#allocation7 + $0x10] sm:$0xf]
        %v476 = vld [vmem:[#allocation7 + $0x14] sm:$0xf]
        %v477 = vld [vmem:[#allocation7 + $0x18] sm:$0xf]
        %v478 = vld [vmem:[#allocation7 + $0x1c] sm:$0xf]
        %v479 = vld [vmem:[#allocation7 + $0x20] sm:$0xf]
        %v480 = vld [vmem:[#allocation7 + $0x24] sm:$0xf]
        %v481 = vld [vmem:[#allocation7 + $0x28] sm:$0xf]
        %v482 = vld [vmem:[#allocation7 + $0x2c] sm:$0xf]
        %v483 = vld [vmem:[#allocation7 + $0x30] sm:$0xf]
        %v484 = vld [vmem:[#allocation7 + $0x34] sm:$0xf]
        %v485 = vld [vmem:[#allocation7 + $0x38] sm:$0xf]
        %v486 = vld [vmem:[#allocation7 + $0x3c] sm:$0xf]
        %v487 = vld [vmem:[#allocation8] sm:$0xf]
        %v488 = vld [vmem:[#allocation8 + $0x4] sm:$0xf]
        %v489 = vld [vmem:[#allocation8 + $0x8] sm:$0xf]
        %v490 = vld [vmem:[#allocation8 + $0xc] sm:$0xf]
        %v491 = vld [vmem:[#allocation8 + $0x10] sm:$0xf]
        %v492 = vld [vmem:[#allocation8 + $0x14] sm:$0xf]
        %v493 = vld [vmem:[#allocation8 + $0x18] sm:$0xf]
        %v494 = vld [vmem:[#allocation8 + $0x1c] sm:$0xf]
        %v495 = vld [vmem:[#allocation8 + $0x20] sm:$0xf]
        %v496 = vld [vmem:[#allocation8 + $0x24] sm:$0xf]
        %v497 = vld [vmem:[#allocation8 + $0x28] sm:$0xf]
        %v498 = vld [vmem:[#allocation8 + $0x2c] sm:$0xf]
        %v499 = vld [vmem:[#allocation8 + $0x30] sm:$0xf]
        %v500 = vld [vmem:[#allocation8 + $0x34] sm:$0xf]
        %v501 = vld [vmem:[#allocation8 + $0x38] sm:$0xf]
        %v502 = vld [vmem:[#allocation8 + $0x3c] sm:$0xf]
        %v503 = vrot.slane %v358, 1
        %v504 = vrot.slane %v359, 1
        %v505 = vrot.slane %v360, 1
        %v506 = vrot.slane %v361, 1
        %v507 = vrot.slane %v362, 1
        %v508 = vrot.slane %v363, 1
        %v509 = vrot.slane %v364, 1
        %v510 = vrot.slane %v365, 1
        %v511 = vrot.slane %v366, 1
        %v512 = vrot.slane %v367, 1
        %v513 = vrot.slane %v368, 1
        %v514 = vrot.slane %v369, 1
        %v515 = vrot.slane %v370, 1
        %v516 = vrot.slane %v371, 1
        %v517 = vrot.slane %v372, 1
        %v518 = vrot.slane %v373, 1
        %v519 = vrot.slane %v374, 1
        %v520 = vrot.slane %v375, 1
        %v521 = vrot.slane %v376, 1
        %v522 = vrot.slane %v377, 1
        %v523 = vrot.slane %v378, 1
        %v524 = vrot.slane %v379, 1
        %v525 = vrot.slane %v380, 1
        %v526 = vrot.slane %v381, 1
        %v527 = vrot.slane %v382, 1
        %v528 = vrot.slane %v383, 1
        %v529 = vrot.slane %v384, 1
        %v530 = vrot.slane %v385, 1
        %v531 = vrot.slane %v386, 1
        %v532 = vrot.slane %v387, 1
        %v533 = vrot.slane %v388, 1
        %v534 = vrot.slane %v389, 1
        %v535 = vrot.slane %v390, 1
        %v536 = vrot.slane %v391, 1
        %v537 = vrot.slane %v392, 1
        %v538 = vrot.slane %v393, 1
        %v539 = vrot.slane %v394, 1
        %v540 = vrot.slane %v395, 1
        %v541 = vrot.slane %v396, 1
        %v542 = vrot.slane %v397, 1
        %v543 = vrot.slane %v398, 1
        %v544 = vrot.slane %v399, 1
        %v545 = vrot.slane %v400, 1
        %v546 = vrot.slane %v401, 1
        %v547 = vrot.slane %v402, 1
        %v548 = vrot.slane %v403, 1
        %v549 = vrot.slane %v404, 1
        %v550 = vrot.slane %v405, 1
        %v551 = vrot.slane %v406, 1
        %v552 = vrot.slane %v407, 1
        %v553 = vrot.slane %v408, 1
        %v554 = vrot.slane %v409, 1
        %v555 = vrot.slane %v410, 1
        %v556 = vrot.slane %v411, 1
        %v557 = vrot.slane %v412, 1
        %v558 = vrot.slane %v413, 1
        %v559 = vrot.slane %v414, 1
        %v560 = vrot.slane %v415, 1
        %v561 = vrot.slane %v416, 1
        %v562 = vrot.slane %v417, 1
        %v563 = vrot.slane %v418, 1
        %v564 = vrot.slane %v419, 1
        %v565 = vrot.slane %v420, 1
        %v566 = vrot.slane %v421, 1
        %v567 = vlaneseq
        %v568 = vshrl.u32 %v567, 7
        %vm569 = vcmp.lt.s32.totalorder %v568, 7
        %v570 = vsel %vm569, %v565, %v566
        %v571 = vsel %vm569, %v564, %v565
        %v572 = vsel %vm569, %v563, %v564
        %v573 = vsel %vm569, %v562, %v563
        %v574 = vsel %vm569, %v561, %v562
        %v575 = vsel %vm569, %v560, %v561
        %v576 = vsel %vm569, %v559, %v560
        %v577 = vsel %vm569, %v558, %v559
        %v578 = vsel %vm569, %v557, %v558
        %v579 = vsel %vm569, %v556, %v557
        %v580 = vsel %vm569, %v555, %v556
        %v581 = vsel %vm569, %v554, %v555
        %v582 = vsel %vm569, %v553, %v554
        %v583 = vsel %vm569, %v552, %v553
        %v584 = vsel %vm569, %v551, %v552
        %v585 = vsel %vm569, %v550, %v551
        %v586 = vsel %vm569, %v549, %v550
        %v587 = vsel %vm569, %v548, %v549
        %v588 = vsel %vm569, %v547, %v548
        %v589 = vsel %vm569, %v546, %v547
        %v590 = vsel %vm569, %v545, %v546
        %v591 = vsel %vm569, %v544, %v545
        %v592 = vsel %vm569, %v543, %v544
        %v593 = vsel %vm569, %v542, %v543
        %v594 = vsel %vm569, %v541, %v542
        %v595 = vsel %vm569, %v540, %v541
        %v596 = vsel %vm569, %v539, %v540
        %v597 = vsel %vm569, %v538, %v539
        %v598 = vsel %vm569, %v537, %v538
        %v599 = vsel %vm569, %v536, %v537
        %v600 = vsel %vm569, %v535, %v536
        %v601 = vsel %vm569, %v534, %v535
        %v602 = vsel %vm569, %v533, %v534
        %v603 = vsel %vm569, %v532, %v533
        %v604 = vsel %vm569, %v531, %v532
        %v605 = vsel %vm569, %v530, %v531
        %v606 = vsel %vm569, %v529, %v530
        %v607 = vsel %vm569, %v528, %v529
        %v608 = vsel %vm569, %v527, %v528
        %v609 = vsel %vm569, %v526, %v527
        %v610 = vsel %vm569, %v525, %v526
        %v611 = vsel %vm569, %v524, %v525
        %v612 = vsel %vm569, %v523, %v524
        %v613 = vsel %vm569, %v522, %v523
        %v614 = vsel %vm569, %v521, %v522
        %v615 = vsel %vm569, %v520, %v521
        %v616 = vsel %vm569, %v519, %v520
        %v617 = vsel %vm569, %v518, %v519
        %v618 = vsel %vm569, %v517, %v518
        %v619 = vsel %vm569, %v516, %v517
        %v620 = vsel %vm569, %v515, %v516
        %v621 = vsel %vm569, %v514, %v515
        %v622 = vsel %vm569, %v513, %v514
        %v623 = vsel %vm569, %v512, %v513
        %v624 = vsel %vm569, %v511, %v512
        %v625 = vsel %vm569, %v510, %v511
        %v626 = vsel %vm569, %v509, %v510
        %v627 = vsel %vm569, %v508, %v509
        %v628 = vsel %vm569, %v507, %v508
        %v629 = vsel %vm569, %v506, %v507
        %v630 = vsel %vm569, %v505, %v506
        %v631 = vsel %vm569, %v504, %v505
        %v632 = vsel %vm569, %v503, %v504
        %v633 = vsel %vm569, %v566, %v503
        %v634 = vpack.c.bf16 %v631, %v632
        %v635 = vpack.c.bf16 %v629, %v630
        %v636 = vpack.c.bf16 %v627, %v628
        %v637 = vpack.c.bf16 %v625, %v626
        %v638 = vpack.c.bf16 %v623, %v624
        %v639 = vpack.c.bf16 %v621, %v622
        %v640 = vpack.c.bf16 %v619, %v620
        %v641 = vpack.c.bf16 %v617, %v618
        %v642 = vpack.c.bf16 %v615, %v616
        %v643 = vpack.c.bf16 %v613, %v614
        %v644 = vpack.c.bf16 %v611, %v612
        %v645 = vpack.c.bf16 %v609, %v610
        %v646 = vpack.c.bf16 %v607, %v608
        %v647 = vpack.c.bf16 %v605, %v606
        %v648 = vpack.c.bf16 %v603, %v604
        %v649 = vpack.c.bf16 %v601, %v602
        %v650 = vpack.c.bf16 %v599, %v600
        %v651 = vpack.c.bf16 %v597, %v598
        %v652 = vpack.c.bf16 %v595, %v596
        %v653 = vpack.c.bf16 %v593, %v594
        %v654 = vpack.c.bf16 %v591, %v592
        %v655 = vpack.c.bf16 %v589, %v590
        %v656 = vpack.c.bf16 %v587, %v588
        %v657 = vpack.c.bf16 %v585, %v586
        %v658 = vpack.c.bf16 %v583, %v584
        %v659 = vpack.c.bf16 %v581, %v582
        %v660 = vpack.c.bf16 %v579, %v580
        %v661 = vpack.c.bf16 %v577, %v578
        %v662 = vpack.c.bf16 %v575, %v576
        %v663 = vpack.c.bf16 %v573, %v574
        %v664 = vpack.c.bf16 %v571, %v572
        %v665 = vpack.c.bf16 %v633, %v570
        %s666 = scalar_lea.vmem [#allocation5], 64
        %v667 = vld [vmem:[%s666] sm:$0xf]
        %v668 = vld [vmem:[%s666 + $0x4] sm:$0xf]
        %v669 = vld [vmem:[%s666 + $0x8] sm:$0xf]
        %v670 = vld [vmem:[%s666 + $0xc] sm:$0xf]
        %v671 = vld [vmem:[%s666 + $0x10] sm:$0xf]
        %v672 = vld [vmem:[%s666 + $0x14] sm:$0xf]
        %v673 = vld [vmem:[%s666 + $0x18] sm:$0xf]
        %v674 = vld [vmem:[%s666 + $0x1c] sm:$0xf]
        %v675 = vld [vmem:[%s666 + $0x20] sm:$0xf]
        %v676 = vld [vmem:[%s666 + $0x24] sm:$0xf]
        %v677 = vld [vmem:[%s666 + $0x28] sm:$0xf]
        %v678 = vld [vmem:[%s666 + $0x2c] sm:$0xf]
        %v679 = vld [vmem:[%s666 + $0x30] sm:$0xf]
        %v680 = vld [vmem:[%s666 + $0x34] sm:$0xf]
        %v681 = vld [vmem:[%s666 + $0x38] sm:$0xf]
        %v682 = vld [vmem:[%s666 + $0x3c] sm:$0xf]
        %v699 = vunpack.c.l.b16 %v667
        %v700 = vunpack.c.l.b16 %v668
        %v701 = vunpack.c.l.b16 %v669
        %v702 = vunpack.c.l.b16 %v670
        %v703 = vunpack.c.l.b16 %v671
        %v704 = vunpack.c.l.b16 %v672
        %v705 = vunpack.c.l.b16 %v673
        %v706 = vunpack.c.l.b16 %v674
        %v707 = vunpack.c.l.b16 %v675
        %v708 = vunpack.c.l.b16 %v676
        %v709 = vunpack.c.l.b16 %v677
        %v710 = vunpack.c.l.b16 %v678
        %v711 = vunpack.c.l.b16 %v679
        %v712 = vunpack.c.l.b16 %v680
        %v713 = vunpack.c.l.b16 %v681
        %v714 = vunpack.c.l.b16 %v682
        %v715 = vpack.c.b16 %v700, %v699
        %v716 = vpack.c.b16 %v702, %v701
        %v717 = vpack.c.b16 %v704, %v703
        %v718 = vpack.c.b16 %v706, %v705
        %v719 = vpack.c.b16 %v708, %v707
        %v720 = vpack.c.b16 %v710, %v709
        %v721 = vpack.c.b16 %v712, %v711
        %v722 = vpack.c.b16 %v714, %v713
        %731 = vmatprep.subr.bf16.mxu0 0
        %732 = vmatpush1.bf16.msra.mxu0 %v715
        %733 = vmatprep.subr.bf16.mxu0 0
        %734 = vmatpush1.bf16.msra.mxu0 %v716
        %735 = vmatprep.subr.bf16.mxu0 0
        %736 = vmatpush1.bf16.msra.mxu0 %v717
        %737 = vmatprep.subr.bf16.mxu0 0
        %738 = vmatpush1.bf16.msra.mxu0 %v718
        %739 = vmatprep.subr.bf16.mxu0 0
        %740 = vmatpush1.bf16.msra.mxu0 %v719
        %741 = vmatprep.subr.bf16.mxu0 0
        %742 = vmatpush1.bf16.msra.mxu0 %v720
        %743 = vmatprep.subr.bf16.mxu0 0
        %744 = vmatpush1.bf16.msra.mxu0 %v721
        %745 = vmatprep.subr.bf16.mxu0 0
        %746 = vmatpush1.bf16.msra.mxu0 %v722
        %747 = vmatprep.subr.bf16.mxu0 0
        %748 = vmatpush1.bf16.msra.mxu0 0
        %749 = vmatprep.subr.bf16.mxu0 0
        %750 = vmatpush1.bf16.msra.mxu0 0
        %751 = vmatprep.subr.bf16.mxu0 0
        %752 = vmatpush1.bf16.msra.mxu0 0
        %753 = vmatprep.subr.bf16.mxu0 0
        %754 = vmatpush1.bf16.msra.mxu0 0
        %755 = vmatprep.subr.bf16.mxu0 0
        %756 = vmatpush1.bf16.msra.mxu0 0
        %757 = vmatprep.subr.bf16.mxu0 0
        %758 = vmatpush1.bf16.msra.mxu0 0
        %759 = vmatprep.subr.bf16.mxu0 0
        %760 = vmatpush1.bf16.msra.mxu0 0
        %761 = vmatprep.subr.bf16.mxu0 0
        %762 = vmatpush1.bf16.msra.mxu0 0
        %763 = vmatprep.mubr.bf16.mxu0 0
        %764 = vmatmul.mubr.bf16.gmra.mrb[0].mxu0 %v634
        %v765 = vpop.f32.mrb[0].mxu0
        %v766 = vadd.f32 0.0, %v765
        %v767 = vpop.f32.mrb[0].mxu0
        %v768 = vpop.f32.mrb[0].mxu0
        %v769 = vadd.f32 0.0, %v768
        %v770 = vpop.f32.mrb[0].mxu0
        %771 = vmatprep.mubr.bf16.mxu0 0
        %772 = vmatmul.mubr.bf16.gmra.mrb[0].mxu0 %v635
        %v773 = vpop.f32.mrb[0].mxu0
        %v774 = vadd.f32 0.0, %v773
        %v775 = vpop.f32.mrb[0].mxu0
        %v776 = vpop.f32.mrb[0].mxu0
        %v777 = vadd.f32 0.0, %v776
        %v778 = vpop.f32.mrb[0].mxu0
        %779 = vmatprep.mubr.bf16.mxu0 0
        %780 = vmatmul.mubr.bf16.gmra.mrb[0].mxu0 %v636
        %v781 = vpop.f32.mrb[0].mxu0
        %v782 = vadd.f32 0.0, %v781
        %v783 = vpop.f32.mrb[0].mxu0
        %v784 = vpop.f32.mrb[0].mxu0
        %v785 = vadd.f32 0.0, %v784
        %v786 = vpop.f32.mrb[0].mxu0
        %787 = vmatprep.mubr.bf16.mxu0 0
        %788 = vmatmul.mubr.bf16.gmra.mrb[0].mxu0 %v637
        %v789 = vpop.f32.mrb[0].mxu0
        %v790 = vadd.f32 0.0, %v789
        %v791 = vpop.f32.mrb[0].mxu0
        %v792 = vpop.f32.mrb[0].mxu0
        %v793 = vadd.f32 0.0, %v792
        %v794 = vpop.f32.mrb[0].mxu0
        %795 = vmatprep.mubr.bf16.mxu0 0
        %796 = vmatmul.mubr.bf16.gmra.mrb[0].mxu0 %v638
        %v797 = vpop.f32.mrb[0].mxu0
        %v798 = vadd.f32 0.0, %v797
        %v799 = vpop.f32.mrb[0].mxu0
        %v800 = vpop.f32.mrb[0].mxu0
        %v801 = vadd.f32 0.0, %v800
        %v802 = vpop.f32.mrb[0].mxu0
        %803 = vmatprep.mubr.bf16.mxu0 0
        %804 = vmatmul.mubr.bf16.gmra.mrb[0].mxu0 %v639
        %v805 = vpop.f32.mrb[0].mxu0
        %v806 = vadd.f32 0.0, %v805
        %v807 = vpop.f32.mrb[0].mxu0
        %v808 = vpop.f32.mrb[0].mxu0
        %v809 = vadd.f32 0.0, %v808
        %v810 = vpop.f32.mrb[0].mxu0
        %811 = vmatprep.mubr.bf16.mxu0 0
        %812 = vmatmul.mubr.bf16.gmra.mrb[0].mxu0 %v640
        %v813 = vpop.f32.mrb[0].mxu0
        %v814 = vadd.f32 0.0, %v813
        %v815 = vpop.f32.mrb[0].mxu0
        %v816 = vpop.f32.mrb[0].mxu0
        %v817 = vadd.f32 0.0, %v816
        %v818 = vpop.f32.mrb[0].mxu0
        %819 = vmatprep.mubr.bf16.mxu0 0
        %820 = vmatmul.mubr.bf16.gmra.mrb[0].mxu0 %v641
        %v821 = vpop.f32.mrb[0].mxu0
        %v822 = vadd.f32 0.0, %v821
        %v823 = vpop.f32.mrb[0].mxu0
        %v824 = vpop.f32.mrb[0].mxu0
        %v825 = vadd.f32 0.0, %v824
        %v826 = vpop.f32.mrb[0].mxu0
        %827 = vmatprep.mubr.bf16.mxu0 0
        %828 = vmatmul.mubr.bf16.gmra.mrb[0].mxu0 %v642
        %v829 = vpop.f32.mrb[0].mxu0
        %v830 = vadd.f32 0.0, %v829
        %v831 = vpop.f32.mrb[0].mxu0
        %v832 = vpop.f32.mrb[0].mxu0
        %v833 = vadd.f32 0.0, %v832
        %v834 = vpop.f32.mrb[0].mxu0
        %835 = vmatprep.mubr.bf16.mxu0 0
        %836 = vmatmul.mubr.bf16.gmra.mrb[0].mxu0 %v643
        %v837 = vpop.f32.mrb[0].mxu0
        %v838 = vadd.f32 0.0, %v837
        %v839 = vpop.f32.mrb[0].mxu0
        %v840 = vpop.f32.mrb[0].mxu0
        %v841 = vadd.f32 0.0, %v840
        %v842 = vpop.f32.mrb[0].mxu0
        %843 = vmatprep.mubr.bf16.mxu0 0
        %844 = vmatmul.mubr.bf16.gmra.mrb[0].mxu0 %v644
        %v845 = vpop.f32.mrb[0].mxu0
        %v846 = vadd.f32 0.0, %v845
        %v847 = vpop.f32.mrb[0].mxu0
        %v848 = vpop.f32.mrb[0].mxu0
        %v849 = vadd.f32 0.0, %v848
        %v850 = vpop.f32.mrb[0].mxu0
        %851 = vmatprep.mubr.bf16.mxu0 0
        %852 = vmatmul.mubr.bf16.gmra.mrb[0].mxu0 %v645
        %v853 = vpop.f32.mrb[0].mxu0
        %v854 = vadd.f32 0.0, %v853
        %v855 = vpop.f32.mrb[0].mxu0
        %v856 = vpop.f32.mrb[0].mxu0
        %v857 = vadd.f32 0.0, %v856
        %v858 = vpop.f32.mrb[0].mxu0
        %859 = vmatprep.mubr.bf16.mxu0 0
        %860 = vmatmul.mubr.bf16.gmra.mrb[0].mxu0 %v646
        %v861 = vpop.f32.mrb[0].mxu0
        %v862 = vadd.f32 0.0, %v861
        %v863 = vpop.f32.mrb[0].mxu0
        %v864 = vpop.f32.mrb[0].mxu0
        %v865 = vadd.f32 0.0, %v864
        %v866 = vpop.f32.mrb[0].mxu0
        %867 = vmatprep.mubr.bf16.mxu0 0
        %868 = vmatmul.mubr.bf16.gmra.mrb[0].mxu0 %v647
        %v869 = vpop.f32.mrb[0].mxu0
        %v870 = vadd.f32 0.0, %v869
        %v871 = vpop.f32.mrb[0].mxu0
        %v872 = vpop.f32.mrb[0].mxu0
        %v873 = vadd.f32 0.0, %v872
        %v874 = vpop.f32.mrb[0].mxu0
        %875 = vmatprep.mubr.bf16.mxu0 0
        %876 = vmatmul.mubr.bf16.gmra.mrb[0].mxu0 %v648
        %v877 = vpop.f32.mrb[0].mxu0
        %v878 = vadd.f32 0.0, %v877
        %v879 = vpop.f32.mrb[0].mxu0
        %v880 = vpop.f32.mrb[0].mxu0
        %v881 = vadd.f32 0.0, %v880
        %v882 = vpop.f32.mrb[0].mxu0
        %883 = vmatprep.mubr.bf16.mxu0 0
        %884 = vmatmul.mubr.bf16.gmra.mrb[0].mxu0 %v649
        %v885 = vpop.f32.mrb[0].mxu0
        %v886 = vadd.f32 0.0, %v885
        %v887 = vpop.f32.mrb[0].mxu0
        %v888 = vpop.f32.mrb[0].mxu0
        %v889 = vadd.f32 0.0, %v888
        %v890 = vpop.f32.mrb[0].mxu0
        %891 = vmatprep.mubr.bf16.mxu0 0
        %892 = vmatmul.mubr.bf16.gmra.mrb[0].mxu0 %v650
        %v893 = vpop.f32.mrb[0].mxu0
        %v894 = vadd.f32 0.0, %v893
        %v895 = vpop.f32.mrb[0].mxu0
        %v896 = vpop.f32.mrb[0].mxu0
        %v897 = vadd.f32 0.0, %v896
        %v898 = vpop.f32.mrb[0].mxu0
        %899 = vmatprep.mubr.bf16.mxu0 0
        %900 = vmatmul.mubr.bf16.gmra.mrb[0].mxu0 %v651
        %v901 = vpop.f32.mrb[0].mxu0
        %v902 = vadd.f32 0.0, %v901
        %v903 = vpop.f32.mrb[0].mxu0
        %v904 = vpop.f32.mrb[0].mxu0
        %v905 = vadd.f32 0.0, %v904
        %v906 = vpop.f32.mrb[0].mxu0
        %907 = vmatprep.mubr.bf16.mxu0 0
        %908 = vmatmul.mubr.bf16.gmra.mrb[0].mxu0 %v652
        %v909 = vpop.f32.mrb[0].mxu0
        %v910 = vadd.f32 0.0, %v909
        %v911 = vpop.f32.mrb[0].mxu0
        %v912 = vpop.f32.mrb[0].mxu0
        %v913 = vadd.f32 0.0, %v912
        %v914 = vpop.f32.mrb[0].mxu0
        %915 = vmatprep.mubr.bf16.mxu0 0
        %916 = vmatmul.mubr.bf16.gmra.mrb[0].mxu0 %v653
        %v917 = vpop.f32.mrb[0].mxu0
        %v918 = vadd.f32 0.0, %v917
        %v919 = vpop.f32.mrb[0].mxu0
        %v920 = vpop.f32.mrb[0].mxu0
        %v921 = vadd.f32 0.0, %v920
        %v922 = vpop.f32.mrb[0].mxu0
        %923 = vmatprep.mubr.bf16.mxu0 0
        %924 = vmatmul.mubr.bf16.gmra.mrb[0].mxu0 %v654
        %v925 = vpop.f32.mrb[0].mxu0
        %v926 = vadd.f32 0.0, %v925
        %v927 = vpop.f32.mrb[0].mxu0
        %v928 = vpop.f32.mrb[0].mxu0
        %v929 = vadd.f32 0.0, %v928
        %v930 = vpop.f32.mrb[0].mxu0
        %931 = vmatprep.mubr.bf16.mxu0 0
        %932 = vmatmul.mubr.bf16.gmra.mrb[0].mxu0 %v655
        %v933 = vpop.f32.mrb[0].mxu0
        %v934 = vadd.f32 0.0, %v933
        %v935 = vpop.f32.mrb[0].mxu0
        %v936 = vpop.f32.mrb[0].mxu0
        %v937 = vadd.f32 0.0, %v936
        %v938 = vpop.f32.mrb[0].mxu0
        %939 = vmatprep.mubr.bf16.mxu0 0
        %940 = vmatmul.mubr.bf16.gmra.mrb[0].mxu0 %v656
        %v941 = vpop.f32.mrb[0].mxu0
        %v942 = vadd.f32 0.0, %v941
        %v943 = vpop.f32.mrb[0].mxu0
        %v944 = vpop.f32.mrb[0].mxu0
        %v945 = vadd.f32 0.0, %v944
        %v946 = vpop.f32.mrb[0].mxu0
        %947 = vmatprep.mubr.bf16.mxu0 0
        %948 = vmatmul.mubr.bf16.gmra.mrb[0].mxu0 %v657
        %v949 = vpop.f32.mrb[0].mxu0
        %v950 = vadd.f32 0.0, %v949
        %v951 = vpop.f32.mrb[0].mxu0
        %v952 = vpop.f32.mrb[0].mxu0
        %v953 = vadd.f32 0.0, %v952
        %v954 = vpop.f32.mrb[0].mxu0
        %955 = vmatprep.mubr.bf16.mxu0 0
        %956 = vmatmul.mubr.bf16.gmra.mrb[0].mxu0 %v658
        %v957 = vpop.f32.mrb[0].mxu0
        %v958 = vadd.f32 0.0, %v957
        %v959 = vpop.f32.mrb[0].mxu0
        %v960 = vpop.f32.mrb[0].mxu0
        %v961 = vadd.f32 0.0, %v960
        %v962 = vpop.f32.mrb[0].mxu0
        %963 = vmatprep.mubr.bf16.mxu0 0
        %964 = vmatmul.mubr.bf16.gmra.mrb[0].mxu0 %v659
        %v965 = vpop.f32.mrb[0].mxu0
        %v966 = vadd.f32 0.0, %v965
        %v967 = vpop.f32.mrb[0].mxu0
        %v968 = vpop.f32.mrb[0].mxu0
        %v969 = vadd.f32 0.0, %v968
        %v970 = vpop.f32.mrb[0].mxu0
        %971 = vmatprep.mubr.bf16.mxu0 0
        %972 = vmatmul.mubr.bf16.gmra.mrb[0].mxu0 %v660
        %v973 = vpop.f32.mrb[0].mxu0
        %v974 = vadd.f32 0.0, %v973
        %v975 = vpop.f32.mrb[0].mxu0
        %v976 = vpop.f32.mrb[0].mxu0
        %v977 = vadd.f32 0.0, %v976
        %v978 = vpop.f32.mrb[0].mxu0
        %979 = vmatprep.mubr.bf16.mxu0 0
        %980 = vmatmul.mubr.bf16.gmra.mrb[0].mxu0 %v661
        %v981 = vpop.f32.mrb[0].mxu0
        %v982 = vadd.f32 0.0, %v981
        %v983 = vpop.f32.mrb[0].mxu0
        %v984 = vpop.f32.mrb[0].mxu0
        %v985 = vadd.f32 0.0, %v984
        %v986 = vpop.f32.mrb[0].mxu0
        %987 = vmatprep.mubr.bf16.mxu0 0
        %988 = vmatmul.mubr.bf16.gmra.mrb[0].mxu0 %v662
        %v989 = vpop.f32.mrb[0].mxu0
        %v990 = vadd.f32 0.0, %v989
        %v991 = vpop.f32.mrb[0].mxu0
        %v992 = vpop.f32.mrb[0].mxu0
        %v993 = vadd.f32 0.0, %v992
        %v994 = vpop.f32.mrb[0].mxu0
        %995 = vmatprep.mubr.bf16.mxu0 0
        %996 = vmatmul.mubr.bf16.gmra.mrb[0].mxu0 %v663
        %v997 = vpop.f32.mrb[0].mxu0
        %v998 = vadd.f32 0.0, %v997
        %v999 = vpop.f32.mrb[0].mxu0
        %v1000 = vpop.f32.mrb[0].mxu0
        %v1001 = vadd.f32 0.0, %v1000
        %v1002 = vpop.f32.mrb[0].mxu0
        %1003 = vmatprep.mubr.bf16.mxu0 0
        %1004 = vmatmul.mubr.bf16.gmra.mrb[0].mxu0 %v664
        %v1005 = vpop.f32.mrb[0].mxu0
        %v1006 = vadd.f32 0.0, %v1005
        %v1007 = vpop.f32.mrb[0].mxu0
        %v1008 = vpop.f32.mrb[0].mxu0
        %v1009 = vadd.f32 0.0, %v1008
        %v1010 = vpop.f32.mrb[0].mxu0
        %1011 = vmatprep.mubr.bf16.mxu0 0
        %1012 = vmatmul.mubr.bf16.gmra.mrb[0].mxu0 %v665
        %v1013 = vpop.f32.mrb[0].mxu0
        %v1014 = vadd.f32 0.0, %v1013
        %v1015 = vpop.f32.mrb[0].mxu0
        %v1016 = vpop.f32.mrb[0].mxu0
        %v1017 = vadd.f32 0.0, %v1016
        %v1018 = vpop.f32.mrb[0].mxu0
        %1019 = vdwg.mxu0
        %v1036 = vunpack.c.l.b16 %v455
        %v1037 = vunpack.c.l.b16 %v456
        %v1038 = vunpack.c.l.b16 %v457
        %v1039 = vunpack.c.l.b16 %v458
        %v1040 = vunpack.c.l.b16 %v459
        %v1041 = vunpack.c.l.b16 %v460
        %v1042 = vunpack.c.l.b16 %v461
        %v1043 = vunpack.c.l.b16 %v462
        %v1044 = vunpack.c.l.b16 %v463
        %v1045 = vunpack.c.l.b16 %v464
        %v1046 = vunpack.c.l.b16 %v465
        %v1047 = vunpack.c.l.b16 %v466
        %v1048 = vunpack.c.l.b16 %v467
        %v1049 = vunpack.c.l.b16 %v468
        %v1050 = vunpack.c.l.b16 %v469
        %v1051 = vunpack.c.l.b16 %v470
        %v1052 = vpack.c.b16 %v1037, %v1036
        %v1053 = vpack.c.b16 %v1039, %v1038
        %v1054 = vpack.c.b16 %v1041, %v1040
        %v1055 = vpack.c.b16 %v1043, %v1042
        %v1056 = vpack.c.b16 %v1045, %v1044
        %v1057 = vpack.c.b16 %v1047, %v1046
        %v1058 = vpack.c.b16 %v1049, %v1048
        %v1059 = vpack.c.b16 %v1051, %v1050
        %1068 = vmatprep.subr.bf16.mxu0 0
        %1069 = vmatpush1.bf16.msra.mxu0 %v1052
        %1070 = vmatprep.subr.bf16.mxu0 0
        %1071 = vmatpush1.bf16.msra.mxu0 %v1053
        %1072 = vmatprep.subr.bf16.mxu0 0
        %1073 = vmatpush1.bf16.msra.mxu0 %v1054
        %1074 = vmatprep.subr.bf16.mxu0 0
        %1075 = vmatpush1.bf16.msra.mxu0 %v1055
        %1076 = vmatprep.subr.bf16.mxu0 0
        %1077 = vmatpush1.bf16.msra.mxu0 %v1056
        %1078 = vmatprep.subr.bf16.mxu0 0
        %1079 = vmatpush1.bf16.msra.mxu0 %v1057
        %1080 = vmatprep.subr.bf16.mxu0 0
        %1081 = vmatpush1.bf16.msra.mxu0 %v1058
        %1082 = vmatprep.subr.bf16.mxu0 0
        %1083 = vmatpush1.bf16.msra.mxu0 %v1059
        %1084 = vmatprep.subr.bf16.mxu0 0
        %1085 = vmatpush1.bf16.msra.mxu0 0
        %1086 = vmatprep.subr.bf16.mxu0 0
        %1087 = vmatpush1.bf16.msra.mxu0 0
        %1088 = vmatprep.subr.bf16.mxu0 0
        %1089 = vmatpush1.bf16.msra.mxu0 0
        %1090 = vmatprep.subr.bf16.mxu0 0
        %1091 = vmatpush1.bf16.msra.mxu0 0
        %1092 = vmatprep.subr.bf16.mxu0 0
        %1093 = vmatpush1.bf16.msra.mxu0 0
        %1094 = vmatprep.subr.bf16.mxu0 0
        %1095 = vmatpush1.bf16.msra.mxu0 0
        %1096 = vmatprep.subr.bf16.mxu0 0
        %1097 = vmatpush1.bf16.msra.mxu0 0
        %1098 = vmatprep.subr.bf16.mxu0 0
        %1099 = vmatpush1.bf16.msra.mxu0 0
        %1100 = vmatprep.mubr.bf16.mxu0 0
        %1101 = vmatmul.mubr.bf16.gmra.mrb[0].mxu0 %v423
        %v1102 = vpop.f32.mrb[0].mxu0
        %v1103 = vadd.f32 %v766, %v1102
        %v1104 = vpop.f32.mrb[0].mxu0
        %v1105 = vpop.f32.mrb[0].mxu0
        %v1106 = vadd.f32 %v769, %v1105
        %v1107 = vpop.f32.mrb[0].mxu0
        %1108 = vmatprep.mubr.bf16.mxu0 0
        %1109 = vmatmul.mubr.bf16.gmra.mrb[0].mxu0 %v424
        %v1110 = vpop.f32.mrb[0].mxu0
        %v1111 = vadd.f32 %v774, %v1110
        %v1112 = vpop.f32.mrb[0].mxu0
        %v1113 = vpop.f32.mrb[0].mxu0
        %v1114 = vadd.f32 %v777, %v1113
        %v1115 = vpop.f32.mrb[0].mxu0
        %1116 = vmatprep.mubr.bf16.mxu0 0
        %1117 = vmatmul.mubr.bf16.gmra.mrb[0].mxu0 %v425
        %v1118 = vpop.f32.mrb[0].mxu0
        %v1119 = vadd.f32 %v782, %v1118
        %v1120 = vpop.f32.mrb[0].mxu0
        %v1121 = vpop.f32.mrb[0].mxu0
        %v1122 = vadd.f32 %v785, %v1121
        %v1123 = vpop.f32.mrb[0].mxu0
        %1124 = vmatprep.mubr.bf16.mxu0 0
        %1125 = vmatmul.mubr.bf16.gmra.mrb[0].mxu0 %v426
        %v1126 = vpop.f32.mrb[0].mxu0
        %v1127 = vadd.f32 %v790, %v1126
        %v1128 = vpop.f32.mrb[0].mxu0
        %v1129 = vpop.f32.mrb[0].mxu0
        %v1130 = vadd.f32 %v793, %v1129
        %v1131 = vpop.f32.mrb[0].mxu0
        %1132 = vmatprep.mubr.bf16.mxu0 0
        %1133 = vmatmul.mubr.bf16.gmra.mrb[0].mxu0 %v427
        %v1134 = vpop.f32.mrb[0].mxu0
        %v1135 = vadd.f32 %v798, %v1134
        %v1136 = vpop.f32.mrb[0].mxu0
        %v1137 = vpop.f32.mrb[0].mxu0
        %v1138 = vadd.f32 %v801, %v1137
        %v1139 = vpop.f32.mrb[0].mxu0
        %1140 = vmatprep.mubr.bf16.mxu0 0
        %1141 = vmatmul.mubr.bf16.gmra.mrb[0].mxu0 %v428
        %v1142 = vpop.f32.mrb[0].mxu0
        %v1143 = vadd.f32 %v806, %v1142
        %v1144 = vpop.f32.mrb[0].mxu0
        %v1145 = vpop.f32.mrb[0].mxu0
        %v1146 = vadd.f32 %v809, %v1145
        %v1147 = vpop.f32.mrb[0].mxu0
        %1148 = vmatprep.mubr.bf16.mxu0 0
        %1149 = vmatmul.mubr.bf16.gmra.mrb[0].mxu0 %v429
        %v1150 = vpop.f32.mrb[0].mxu0
        %v1151 = vadd.f32 %v814, %v1150
        %v1152 = vpop.f32.mrb[0].mxu0
        %v1153 = vpop.f32.mrb[0].mxu0
        %v1154 = vadd.f32 %v817, %v1153
        %v1155 = vpop.f32.mrb[0].mxu0
        %1156 = vmatprep.mubr.bf16.mxu0 0
        %1157 = vmatmul.mubr.bf16.gmra.mrb[0].mxu0 %v430
        %v1158 = vpop.f32.mrb[0].mxu0
        %v1159 = vadd.f32 %v822, %v1158
        %v1160 = vpop.f32.mrb[0].mxu0
        %v1161 = vpop.f32.mrb[0].mxu0
        %v1162 = vadd.f32 %v825, %v1161
        %v1163 = vpop.f32.mrb[0].mxu0
        %1164 = vmatprep.mubr.bf16.mxu0 0
        %1165 = vmatmul.mubr.bf16.gmra.mrb[0].mxu0 %v431
        %v1166 = vpop.f32.mrb[0].mxu0
        %v1167 = vadd.f32 %v830, %v1166
        %v1168 = vpop.f32.mrb[0].mxu0
        %v1169 = vpop.f32.mrb[0].mxu0
        %v1170 = vadd.f32 %v833, %v1169
        %v1171 = vpop.f32.mrb[0].mxu0
        %1172 = vmatprep.mubr.bf16.mxu0 0
        %1173 = vmatmul.mubr.bf16.gmra.mrb[0].mxu0 %v432
        %v1174 = vpop.f32.mrb[0].mxu0
        %v1175 = vadd.f32 %v838, %v1174
        %v1176 = vpop.f32.mrb[0].mxu0
        %v1177 = vpop.f32.mrb[0].mxu0
        %v1178 = vadd.f32 %v841, %v1177
        %v1179 = vpop.f32.mrb[0].mxu0
        %1180 = vmatprep.mubr.bf16.mxu0 0
        %1181 = vmatmul.mubr.bf16.gmra.mrb[0].mxu0 %v433
        %v1182 = vpop.f32.mrb[0].mxu0
        %v1183 = vadd.f32 %v846, %v1182
        %v1184 = vpop.f32.mrb[0].mxu0
        %v1185 = vpop.f32.mrb[0].mxu0
        %v1186 = vadd.f32 %v849, %v1185
        %v1187 = vpop.f32.mrb[0].mxu0
        %1188 = vmatprep.mubr.bf16.mxu0 0
        %1189 = vmatmul.mubr.bf16.gmra.mrb[0].mxu0 %v434
        %v1190 = vpop.f32.mrb[0].mxu0
        %v1191 = vadd.f32 %v854, %v1190
        %v1192 = vpop.f32.mrb[0].mxu0
        %v1193 = vpop.f32.mrb[0].mxu0
        %v1194 = vadd.f32 %v857, %v1193
        %v1195 = vpop.f32.mrb[0].mxu0
        %1196 = vmatprep.mubr.bf16.mxu0 0
        %1197 = vmatmul.mubr.bf16.gmra.mrb[0].mxu0 %v435
        %v1198 = vpop.f32.mrb[0].mxu0
        %v1199 = vadd.f32 %v862, %v1198
        %v1200 = vpop.f32.mrb[0].mxu0
        %v1201 = vpop.f32.mrb[0].mxu0
        %v1202 = vadd.f32 %v865, %v1201
        %v1203 = vpop.f32.mrb[0].mxu0
        %1204 = vmatprep.mubr.bf16.mxu0 0
        %1205 = vmatmul.mubr.bf16.gmra.mrb[0].mxu0 %v436
        %v1206 = vpop.f32.mrb[0].mxu0
        %v1207 = vadd.f32 %v870, %v1206
        %v1208 = vpop.f32.mrb[0].mxu0
        %v1209 = vpop.f32.mrb[0].mxu0
        %v1210 = vadd.f32 %v873, %v1209
        %v1211 = vpop.f32.mrb[0].mxu0
        %1212 = vmatprep.mubr.bf16.mxu0 0
        %1213 = vmatmul.mubr.bf16.gmra.mrb[0].mxu0 %v437
        %v1214 = vpop.f32.mrb[0].mxu0
        %v1215 = vadd.f32 %v878, %v1214
        %v1216 = vpop.f32.mrb[0].mxu0
        %v1217 = vpop.f32.mrb[0].mxu0
        %v1218 = vadd.f32 %v881, %v1217
        %v1219 = vpop.f32.mrb[0].mxu0
        %1220 = vmatprep.mubr.bf16.mxu0 0
        %1221 = vmatmul.mubr.bf16.gmra.mrb[0].mxu0 %v438
        %v1222 = vpop.f32.mrb[0].mxu0
        %v1223 = vadd.f32 %v886, %v1222
        %v1224 = vpop.f32.mrb[0].mxu0
        %v1225 = vpop.f32.mrb[0].mxu0
        %v1226 = vadd.f32 %v889, %v1225
        %v1227 = vpop.f32.mrb[0].mxu0
        %1228 = vmatprep.mubr.bf16.mxu0 0
        %1229 = vmatmul.mubr.bf16.gmra.mrb[0].mxu0 %v439
        %v1230 = vpop.f32.mrb[0].mxu0
        %v1231 = vadd.f32 %v894, %v1230
        %v1232 = vpop.f32.mrb[0].mxu0
        %v1233 = vpop.f32.mrb[0].mxu0
        %v1234 = vadd.f32 %v897, %v1233
        %v1235 = vpop.f32.mrb[0].mxu0
        %1236 = vmatprep.mubr.bf16.mxu0 0
        %1237 = vmatmul.mubr.bf16.gmra.mrb[0].mxu0 %v440
        %v1238 = vpop.f32.mrb[0].mxu0
        %v1239 = vadd.f32 %v902, %v1238
        %v1240 = vpop.f32.mrb[0].mxu0
        %v1241 = vpop.f32.mrb[0].mxu0
        %v1242 = vadd.f32 %v905, %v1241
        %v1243 = vpop.f32.mrb[0].mxu0
        %1244 = vmatprep.mubr.bf16.mxu0 0
        %1245 = vmatmul.mubr.bf16.gmra.mrb[0].mxu0 %v441
        %v1246 = vpop.f32.mrb[0].mxu0
        %v1247 = vadd.f32 %v910, %v1246
        %v1248 = vpop.f32.mrb[0].mxu0
        %v1249 = vpop.f32.mrb[0].mxu0
        %v1250 = vadd.f32 %v913, %v1249
        %v1251 = vpop.f32.mrb[0].mxu0
        %1252 = vmatprep.mubr.bf16.mxu0 0
        %1253 = vmatmul.mubr.bf16.gmra.mrb[0].mxu0 %v442
        %v1254 = vpop.f32.mrb[0].mxu0
        %v1255 = vadd.f32 %v918, %v1254
        %v1256 = vpop.f32.mrb[0].mxu0
        %v1257 = vpop.f32.mrb[0].mxu0
        %v1258 = vadd.f32 %v921, %v1257
        %v1259 = vpop.f32.mrb[0].mxu0
        %1260 = vmatprep.mubr.bf16.mxu0 0
        %1261 = vmatmul.mubr.bf16.gmra.mrb[0].mxu0 %v443
        %v1262 = vpop.f32.mrb[0].mxu0
        %v1263 = vadd.f32 %v926, %v1262
        %v1264 = vpop.f32.mrb[0].mxu0
        %v1265 = vpop.f32.mrb[0].mxu0
        %v1266 = vadd.f32 %v929, %v1265
        %v1267 = vpop.f32.mrb[0].mxu0
        %1268 = vmatprep.mubr.bf16.mxu0 0
        %1269 = vmatmul.mubr.bf16.gmra.mrb[0].mxu0 %v444
        %v1270 = vpop.f32.mrb[0].mxu0
        %v1271 = vadd.f32 %v934, %v1270
        %v1272 = vpop.f32.mrb[0].mxu0
        %v1273 = vpop.f32.mrb[0].mxu0
        %v1274 = vadd.f32 %v937, %v1273
        %v1275 = vpop.f32.mrb[0].mxu0
        %1276 = vmatprep.mubr.bf16.mxu0 0
        %1277 = vmatmul.mubr.bf16.gmra.mrb[0].mxu0 %v445
        %v1278 = vpop.f32.mrb[0].mxu0
        %v1279 = vadd.f32 %v942, %v1278
        %v1280 = vpop.f32.mrb[0].mxu0
        %v1281 = vpop.f32.mrb[0].mxu0
        %v1282 = vadd.f32 %v945, %v1281
        %v1283 = vpop.f32.mrb[0].mxu0
        %1284 = vmatprep.mubr.bf16.mxu0 0
        %1285 = vmatmul.mubr.bf16.gmra.mrb[0].mxu0 %v446
        %v1286 = vpop.f32.mrb[0].mxu0
        %v1287 = vadd.f32 %v950, %v1286
        %v1288 = vpop.f32.mrb[0].mxu0
        %v1289 = vpop.f32.mrb[0].mxu0
        %v1290 = vadd.f32 %v953, %v1289
        %v1291 = vpop.f32.mrb[0].mxu0
        %1292 = vmatprep.mubr.bf16.mxu0 0
        %1293 = vmatmul.mubr.bf16.gmra.mrb[0].mxu0 %v447
        %v1294 = vpop.f32.mrb[0].mxu0
        %v1295 = vadd.f32 %v958, %v1294
        %v1296 = vpop.f32.mrb[0].mxu0
        %v1297 = vpop.f32.mrb[0].mxu0
        %v1298 = vadd.f32 %v961, %v1297
        %v1299 = vpop.f32.mrb[0].mxu0
        %1300 = vmatprep.mubr.bf16.mxu0 0
        %1301 = vmatmul.mubr.bf16.gmra.mrb[0].mxu0 %v448
        %v1302 = vpop.f32.mrb[0].mxu0
        %v1303 = vadd.f32 %v966, %v1302
        %v1304 = vpop.f32.mrb[0].mxu0
        %v1305 = vpop.f32.mrb[0].mxu0
        %v1306 = vadd.f32 %v969, %v1305
        %v1307 = vpop.f32.mrb[0].mxu0
        %1308 = vmatprep.mubr.bf16.mxu0 0
        %1309 = vmatmul.mubr.bf16.gmra.mrb[0].mxu0 %v449
        %v1310 = vpop.f32.mrb[0].mxu0
        %v1311 = vadd.f32 %v974, %v1310
        %v1312 = vpop.f32.mrb[0].mxu0
        %v1313 = vpop.f32.mrb[0].mxu0
        %v1314 = vadd.f32 %v977, %v1313
        %v1315 = vpop.f32.mrb[0].mxu0
        %1316 = vmatprep.mubr.bf16.mxu0 0
        %1317 = vmatmul.mubr.bf16.gmra.mrb[0].mxu0 %v450
        %v1318 = vpop.f32.mrb[0].mxu0
        %v1319 = vadd.f32 %v982, %v1318
        %v1320 = vpop.f32.mrb[0].mxu0
        %v1321 = vpop.f32.mrb[0].mxu0
        %v1322 = vadd.f32 %v985, %v1321
        %v1323 = vpop.f32.mrb[0].mxu0
        %1324 = vmatprep.mubr.bf16.mxu0 0
        %1325 = vmatmul.mubr.bf16.gmra.mrb[0].mxu0 %v451
        %v1326 = vpop.f32.mrb[0].mxu0
        %v1327 = vadd.f32 %v990, %v1326
        %v1328 = vpop.f32.mrb[0].mxu0
        %v1329 = vpop.f32.mrb[0].mxu0
        %v1330 = vadd.f32 %v993, %v1329
        %v1331 = vpop.f32.mrb[0].mxu0
        %1332 = vmatprep.mubr.bf16.mxu0 0
        %1333 = vmatmul.mubr.bf16.gmra.mrb[0].mxu0 %v452
        %v1334 = vpop.f32.mrb[0].mxu0
        %v1335 = vadd.f32 %v998, %v1334
        %v1336 = vpop.f32.mrb[0].mxu0
        %v1337 = vpop.f32.mrb[0].mxu0
        %v1338 = vadd.f32 %v1001, %v1337
        %v1339 = vpop.f32.mrb[0].mxu0
        %1340 = vmatprep.mubr.bf16.mxu0 0
        %1341 = vmatmul.mubr.bf16.gmra.mrb[0].mxu0 %v453
        %v1342 = vpop.f32.mrb[0].mxu0
        %v1343 = vadd.f32 %v1006, %v1342
        %v1344 = vpop.f32.mrb[0].mxu0
        %v1345 = vpop.f32.mrb[0].mxu0
        %v1346 = vadd.f32 %v1009, %v1345
        %v1347 = vpop.f32.mrb[0].mxu0
        %1348 = vmatprep.mubr.bf16.mxu0 0
        %1349 = vmatmul.mubr.bf16.gmra.mrb[0].mxu0 %v454
        %v1350 = vpop.f32.mrb[0].mxu0
        %v1351 = vadd.f32 %v1014, %v1350
        %v1352 = vpop.f32.mrb[0].mxu0
        %v1353 = vpop.f32.mrb[0].mxu0
        %v1354 = vadd.f32 %v1017, %v1353
        %v1355 = vpop.f32.mrb[0].mxu0
        %1356 = vdwg.mxu0
        %s1357 = scalar_lea.vmem [#allocation7], 64
        %v1358 = vld [vmem:[%s1357] sm:$0xf]
        %v1359 = vld [vmem:[%s1357 + $0x4] sm:$0xf]
        %v1360 = vld [vmem:[%s1357 + $0x8] sm:$0xf]
        %v1361 = vld [vmem:[%s1357 + $0xc] sm:$0xf]
        %v1362 = vld [vmem:[%s1357 + $0x10] sm:$0xf]
        %v1363 = vld [vmem:[%s1357 + $0x14] sm:$0xf]
        %v1364 = vld [vmem:[%s1357 + $0x18] sm:$0xf]
        %v1365 = vld [vmem:[%s1357 + $0x1c] sm:$0xf]
        %v1366 = vld [vmem:[%s1357 + $0x20] sm:$0xf]
        %v1367 = vld [vmem:[%s1357 + $0x24] sm:$0xf]
        %v1368 = vld [vmem:[%s1357 + $0x28] sm:$0xf]
        %v1369 = vld [vmem:[%s1357 + $0x2c] sm:$0xf]
        %v1370 = vld [vmem:[%s1357 + $0x30] sm:$0xf]
        %v1371 = vld [vmem:[%s1357 + $0x34] sm:$0xf]
        %v1372 = vld [vmem:[%s1357 + $0x38] sm:$0xf]
        %v1373 = vld [vmem:[%s1357 + $0x3c] sm:$0xf]
        %v1390 = vunpack.c.l.b16 %v1358
        %v1391 = vunpack.c.l.b16 %v1359
        %v1392 = vunpack.c.l.b16 %v1360
        %v1393 = vunpack.c.l.b16 %v1361
        %v1394 = vunpack.c.l.b16 %v1362
        %v1395 = vunpack.c.l.b16 %v1363
        %v1396 = vunpack.c.l.b16 %v1364
        %v1397 = vunpack.c.l.b16 %v1365
        %v1398 = vunpack.c.l.b16 %v1366
        %v1399 = vunpack.c.l.b16 %v1367
        %v1400 = vunpack.c.l.b16 %v1368
        %v1401 = vunpack.c.l.b16 %v1369
        %v1402 = vunpack.c.l.b16 %v1370
        %v1403 = vunpack.c.l.b16 %v1371
        %v1404 = vunpack.c.l.b16 %v1372
        %v1405 = vunpack.c.l.b16 %v1373
        %v1406 = vpack.c.b16 %v1391, %v1390
        %v1407 = vpack.c.b16 %v1393, %v1392
        %v1408 = vpack.c.b16 %v1395, %v1394
        %v1409 = vpack.c.b16 %v1397, %v1396
        %v1410 = vpack.c.b16 %v1399, %v1398
        %v1411 = vpack.c.b16 %v1401, %v1400
        %v1412 = vpack.c.b16 %v1403, %v1402
        %v1413 = vpack.c.b16 %v1405, %v1404
        %1422 = vmatprep.subr.bf16.mxu0 0
        %1423 = vmatpush1.bf16.msra.mxu0 %v1406
        %1424 = vmatprep.subr.bf16.mxu0 0
        %1425 = vmatpush1.bf16.msra.mxu0 %v1407
        %1426 = vmatprep.subr.bf16.mxu0 0
        %1427 = vmatpush1.bf16.msra.mxu0 %v1408
        %1428 = vmatprep.subr.bf16.mxu0 0
        %1429 = vmatpush1.bf16.msra.mxu0 %v1409
        %1430 = vmatprep.subr.bf16.mxu0 0
        %1431 = vmatpush1.bf16.msra.mxu0 %v1410
        %1432 = vmatprep.subr.bf16.mxu0 0
        %1433 = vmatpush1.bf16.msra.mxu0 %v1411
        %1434 = vmatprep.subr.bf16.mxu0 0
        %1435 = vmatpush1.bf16.msra.mxu0 %v1412
        %1436 = vmatprep.subr.bf16.mxu0 0
        %1437 = vmatpush1.bf16.msra.mxu0 %v1413
        %1438 = vmatprep.subr.bf16.mxu0 0
        %1439 = vmatpush1.bf16.msra.mxu0 0
        %1440 = vmatprep.subr.bf16.mxu0 0
        %1441 = vmatpush1.bf16.msra.mxu0 0
        %1442 = vmatprep.subr.bf16.mxu0 0
        %1443 = vmatpush1.bf16.msra.mxu0 0
        %1444 = vmatprep.subr.bf16.mxu0 0
        %1445 = vmatpush1.bf16.msra.mxu0 0
        %1446 = vmatprep.subr.bf16.mxu0 0
        %1447 = vmatpush1.bf16.msra.mxu0 0
        %1448 = vmatprep.subr.bf16.mxu0 0
        %1449 = vmatpush1.bf16.msra.mxu0 0
        %1450 = vmatprep.subr.bf16.mxu0 0
        %1451 = vmatpush1.bf16.msra.mxu0 0
        %1452 = vmatprep.subr.bf16.mxu0 0
        %1453 = vmatpush1.bf16.msra.mxu0 0
        %1454 = vmatprep.mubr.bf16.mxu0 0
        %1455 = vmatmul.mubr.bf16.gmra.mrb[0].mxu0 %v634
        %v1456 = vpop.f32.mrb[0].mxu0
        %v1457 = vadd.f32 0.0, %v1456
        %v1458 = vpop.f32.mrb[0].mxu0
        %v1459 = vpop.f32.mrb[0].mxu0
        %v1460 = vadd.f32 0.0, %v1459
        %v1461 = vpop.f32.mrb[0].mxu0
        %1462 = vmatprep.mubr.bf16.mxu0 0
        %1463 = vmatmul.mubr.bf16.gmra.mrb[0].mxu0 %v635
        %v1464 = vpop.f32.mrb[0].mxu0
        %v1465 = vadd.f32 0.0, %v1464
        %v1466 = vpop.f32.mrb[0].mxu0
        %v1467 = vpop.f32.mrb[0].mxu0
        %v1468 = vadd.f32 0.0, %v1467
        %v1469 = vpop.f32.mrb[0].mxu0
        %1470 = vmatprep.mubr.bf16.mxu0 0
        %1471 = vmatmul.mubr.bf16.gmra.mrb[0].mxu0 %v636
        %v1472 = vpop.f32.mrb[0].mxu0
        %v1473 = vadd.f32 0.0, %v1472
        %v1474 = vpop.f32.mrb[0].mxu0
        %v1475 = vpop.f32.mrb[0].mxu0
        %v1476 = vadd.f32 0.0, %v1475
        %v1477 = vpop.f32.mrb[0].mxu0
        %1478 = vmatprep.mubr.bf16.mxu0 0
        %1479 = vmatmul.mubr.bf16.gmra.mrb[0].mxu0 %v637
        %v1480 = vpop.f32.mrb[0].mxu0
        %v1481 = vadd.f32 0.0, %v1480
        %v1482 = vpop.f32.mrb[0].mxu0
        %v1483 = vpop.f32.mrb[0].mxu0
        %v1484 = vadd.f32 0.0, %v1483
        %v1485 = vpop.f32.mrb[0].mxu0
        %1486 = vmatprep.mubr.bf16.mxu0 0
        %1487 = vmatmul.mubr.bf16.gmra.mrb[0].mxu0 %v638
        %v1488 = vpop.f32.mrb[0].mxu0
        %v1489 = vadd.f32 0.0, %v1488
        %v1490 = vpop.f32.mrb[0].mxu0
        %v1491 = vpop.f32.mrb[0].mxu0
        %v1492 = vadd.f32 0.0, %v1491
        %v1493 = vpop.f32.mrb[0].mxu0
        %1494 = vmatprep.mubr.bf16.mxu0 0
        %1495 = vmatmul.mubr.bf16.gmra.mrb[0].mxu0 %v639
        %v1496 = vpop.f32.mrb[0].mxu0
        %v1497 = vadd.f32 0.0, %v1496
        %v1498 = vpop.f32.mrb[0].mxu0
        %v1499 = vpop.f32.mrb[0].mxu0
        %v1500 = vadd.f32 0.0, %v1499
        %v1501 = vpop.f32.mrb[0].mxu0
        %1502 = vmatprep.mubr.bf16.mxu0 0
        %1503 = vmatmul.mubr.bf16.gmra.mrb[0].mxu0 %v640
        %v1504 = vpop.f32.mrb[0].mxu0
        %v1505 = vadd.f32 0.0, %v1504
        %v1506 = vpop.f32.mrb[0].mxu0
        %v1507 = vpop.f32.mrb[0].mxu0
        %v1508 = vadd.f32 0.0, %v1507
        %v1509 = vpop.f32.mrb[0].mxu0
        %1510 = vmatprep.mubr.bf16.mxu0 0
        %1511 = vmatmul.mubr.bf16.gmra.mrb[0].mxu0 %v641
        %v1512 = vpop.f32.mrb[0].mxu0
        %v1513 = vadd.f32 0.0, %v1512
        %v1514 = vpop.f32.mrb[0].mxu0
        %v1515 = vpop.f32.mrb[0].mxu0
        %v1516 = vadd.f32 0.0, %v1515
        %v1517 = vpop.f32.mrb[0].mxu0
        %1518 = vmatprep.mubr.bf16.mxu0 0
        %1519 = vmatmul.mubr.bf16.gmra.mrb[0].mxu0 %v642
        %v1520 = vpop.f32.mrb[0].mxu0
        %v1521 = vadd.f32 0.0, %v1520
        %v1522 = vpop.f32.mrb[0].mxu0
        %v1523 = vpop.f32.mrb[0].mxu0
        %v1524 = vadd.f32 0.0, %v1523
        %v1525 = vpop.f32.mrb[0].mxu0
        %1526 = vmatprep.mubr.bf16.mxu0 0
        %1527 = vmatmul.mubr.bf16.gmra.mrb[0].mxu0 %v643
        %v1528 = vpop.f32.mrb[0].mxu0
        %v1529 = vadd.f32 0.0, %v1528
        %v1530 = vpop.f32.mrb[0].mxu0
        %v1531 = vpop.f32.mrb[0].mxu0
        %v1532 = vadd.f32 0.0, %v1531
        %v1533 = vpop.f32.mrb[0].mxu0
        %1534 = vmatprep.mubr.bf16.mxu0 0
        %1535 = vmatmul.mubr.bf16.gmra.mrb[0].mxu0 %v644
        %v1536 = vpop.f32.mrb[0].mxu0
        %v1537 = vadd.f32 0.0, %v1536
        %v1538 = vpop.f32.mrb[0].mxu0
        %v1539 = vpop.f32.mrb[0].mxu0
        %v1540 = vadd.f32 0.0, %v1539
        %v1541 = vpop.f32.mrb[0].mxu0
        %1542 = vmatprep.mubr.bf16.mxu0 0
        %1543 = vmatmul.mubr.bf16.gmra.mrb[0].mxu0 %v645
        %v1544 = vpop.f32.mrb[0].mxu0
        %v1545 = vadd.f32 0.0, %v1544
        %v1546 = vpop.f32.mrb[0].mxu0
        %v1547 = vpop.f32.mrb[0].mxu0
        %v1548 = vadd.f32 0.0, %v1547
        %v1549 = vpop.f32.mrb[0].mxu0
        %1550 = vmatprep.mubr.bf16.mxu0 0
        %1551 = vmatmul.mubr.bf16.gmra.mrb[0].mxu0 %v646
        %v1552 = vpop.f32.mrb[0].mxu0
        %v1553 = vadd.f32 0.0, %v1552
        %v1554 = vpop.f32.mrb[0].mxu0
        %v1555 = vpop.f32.mrb[0].mxu0
        %v1556 = vadd.f32 0.0, %v1555
        %v1557 = vpop.f32.mrb[0].mxu0
        %1558 = vmatprep.mubr.bf16.mxu0 0
        %1559 = vmatmul.mubr.bf16.gmra.mrb[0].mxu0 %v647
        %v1560 = vpop.f32.mrb[0].mxu0
        %v1561 = vadd.f32 0.0, %v1560
        %v1562 = vpop.f32.mrb[0].mxu0
        %v1563 = vpop.f32.mrb[0].mxu0
        %v1564 = vadd.f32 0.0, %v1563
        %v1565 = vpop.f32.mrb[0].mxu0
        %1566 = vmatprep.mubr.bf16.mxu0 0
        %1567 = vmatmul.mubr.bf16.gmra.mrb[0].mxu0 %v648
        %v1568 = vpop.f32.mrb[0].mxu0
        %v1569 = vadd.f32 0.0, %v1568
        %v1570 = vpop.f32.mrb[0].mxu0
        %v1571 = vpop.f32.mrb[0].mxu0
        %v1572 = vadd.f32 0.0, %v1571
        %v1573 = vpop.f32.mrb[0].mxu0
        %1574 = vmatprep.mubr.bf16.mxu0 0
        %1575 = vmatmul.mubr.bf16.gmra.mrb[0].mxu0 %v649
        %v1576 = vpop.f32.mrb[0].mxu0
        %v1577 = vadd.f32 0.0, %v1576
        %v1578 = vpop.f32.mrb[0].mxu0
        %v1579 = vpop.f32.mrb[0].mxu0
        %v1580 = vadd.f32 0.0, %v1579
        %v1581 = vpop.f32.mrb[0].mxu0
        %1582 = vmatprep.mubr.bf16.mxu0 0
        %1583 = vmatmul.mubr.bf16.gmra.mrb[0].mxu0 %v650
        %v1584 = vpop.f32.mrb[0].mxu0
        %v1585 = vadd.f32 0.0, %v1584
        %v1586 = vpop.f32.mrb[0].mxu0
        %v1587 = vpop.f32.mrb[0].mxu0
        %v1588 = vadd.f32 0.0, %v1587
        %v1589 = vpop.f32.mrb[0].mxu0
        %1590 = vmatprep.mubr.bf16.mxu0 0
        %1591 = vmatmul.mubr.bf16.gmra.mrb[0].mxu0 %v651
        %v1592 = vpop.f32.mrb[0].mxu0
        %v1593 = vadd.f32 0.0, %v1592
        %v1594 = vpop.f32.mrb[0].mxu0
        %v1595 = vpop.f32.mrb[0].mxu0
        %v1596 = vadd.f32 0.0, %v1595
        %v1597 = vpop.f32.mrb[0].mxu0
        %1598 = vmatprep.mubr.bf16.mxu0 0
        %1599 = vmatmul.mubr.bf16.gmra.mrb[0].mxu0 %v652
        %v1600 = vpop.f32.mrb[0].mxu0
        %v1601 = vadd.f32 0.0, %v1600
        %v1602 = vpop.f32.mrb[0].mxu0
        %v1603 = vpop.f32.mrb[0].mxu0
        %v1604 = vadd.f32 0.0, %v1603
        %v1605 = vpop.f32.mrb[0].mxu0
        %1606 = vmatprep.mubr.bf16.mxu0 0
        %1607 = vmatmul.mubr.bf16.gmra.mrb[0].mxu0 %v653
        %v1608 = vpop.f32.mrb[0].mxu0
        %v1609 = vadd.f32 0.0, %v1608
        %v1610 = vpop.f32.mrb[0].mxu0
        %v1611 = vpop.f32.mrb[0].mxu0
        %v1612 = vadd.f32 0.0, %v1611
        %v1613 = vpop.f32.mrb[0].mxu0
        %1614 = vmatprep.mubr.bf16.mxu0 0
        %1615 = vmatmul.mubr.bf16.gmra.mrb[0].mxu0 %v654
        %v1616 = vpop.f32.mrb[0].mxu0
        %v1617 = vadd.f32 0.0, %v1616
        %v1618 = vpop.f32.mrb[0].mxu0
        %v1619 = vpop.f32.mrb[0].mxu0
        %v1620 = vadd.f32 0.0, %v1619
        %v1621 = vpop.f32.mrb[0].mxu0
        %1622 = vmatprep.mubr.bf16.mxu0 0
        %1623 = vmatmul.mubr.bf16.gmra.mrb[0].mxu0 %v655
        %v1624 = vpop.f32.mrb[0].mxu0
        %v1625 = vadd.f32 0.0, %v1624
        %v1626 = vpop.f32.mrb[0].mxu0
        %v1627 = vpop.f32.mrb[0].mxu0
        %v1628 = vadd.f32 0.0, %v1627
        %v1629 = vpop.f32.mrb[0].mxu0
        %1630 = vmatprep.mubr.bf16.mxu0 0
        %1631 = vmatmul.mubr.bf16.gmra.mrb[0].mxu0 %v656
        %v1632 = vpop.f32.mrb[0].mxu0
        %v1633 = vadd.f32 0.0, %v1632
        %v1634 = vpop.f32.mrb[0].mxu0
        %v1635 = vpop.f32.mrb[0].mxu0
        %v1636 = vadd.f32 0.0, %v1635
        %v1637 = vpop.f32.mrb[0].mxu0
        %1638 = vmatprep.mubr.bf16.mxu0 0
        %1639 = vmatmul.mubr.bf16.gmra.mrb[0].mxu0 %v657
        %v1640 = vpop.f32.mrb[0].mxu0
        %v1641 = vadd.f32 0.0, %v1640
        %v1642 = vpop.f32.mrb[0].mxu0
        %v1643 = vpop.f32.mrb[0].mxu0
        %v1644 = vadd.f32 0.0, %v1643
        %v1645 = vpop.f32.mrb[0].mxu0
        %1646 = vmatprep.mubr.bf16.mxu0 0
        %1647 = vmatmul.mubr.bf16.gmra.mrb[0].mxu0 %v658
        %v1648 = vpop.f32.mrb[0].mxu0
        %v1649 = vadd.f32 0.0, %v1648
        %v1650 = vpop.f32.mrb[0].mxu0
        %v1651 = vpop.f32.mrb[0].mxu0
        %v1652 = vadd.f32 0.0, %v1651
        %v1653 = vpop.f32.mrb[0].mxu0
        %1654 = vmatprep.mubr.bf16.mxu0 0
        %1655 = vmatmul.mubr.bf16.gmra.mrb[0].mxu0 %v659
        %v1656 = vpop.f32.mrb[0].mxu0
        %v1657 = vadd.f32 0.0, %v1656
        %v1658 = vpop.f32.mrb[0].mxu0
        %v1659 = vpop.f32.mrb[0].mxu0
        %v1660 = vadd.f32 0.0, %v1659
        %v1661 = vpop.f32.mrb[0].mxu0
        %1662 = vmatprep.mubr.bf16.mxu0 0
        %1663 = vmatmul.mubr.bf16.gmra.mrb[0].mxu0 %v660
        %v1664 = vpop.f32.mrb[0].mxu0
        %v1665 = vadd.f32 0.0, %v1664
        %v1666 = vpop.f32.mrb[0].mxu0
        %v1667 = vpop.f32.mrb[0].mxu0
        %v1668 = vadd.f32 0.0, %v1667
        %v1669 = vpop.f32.mrb[0].mxu0
        %1670 = vmatprep.mubr.bf16.mxu0 0
        %1671 = vmatmul.mubr.bf16.gmra.mrb[0].mxu0 %v661
        %v1672 = vpop.f32.mrb[0].mxu0
        %v1673 = vadd.f32 0.0, %v1672
        %v1674 = vpop.f32.mrb[0].mxu0
        %v1675 = vpop.f32.mrb[0].mxu0
        %v1676 = vadd.f32 0.0, %v1675
        %v1677 = vpop.f32.mrb[0].mxu0
        %1678 = vmatprep.mubr.bf16.mxu0 0
        %1679 = vmatmul.mubr.bf16.gmra.mrb[0].mxu0 %v662
        %v1680 = vpop.f32.mrb[0].mxu0
        %v1681 = vadd.f32 0.0, %v1680
        %v1682 = vpop.f32.mrb[0].mxu0
        %v1683 = vpop.f32.mrb[0].mxu0
        %v1684 = vadd.f32 0.0, %v1683
        %v1685 = vpop.f32.mrb[0].mxu0
        %1686 = vmatprep.mubr.bf16.mxu0 0
        %1687 = vmatmul.mubr.bf16.gmra.mrb[0].mxu0 %v663
        %v1688 = vpop.f32.mrb[0].mxu0
        %v1689 = vadd.f32 0.0, %v1688
        %v1690 = vpop.f32.mrb[0].mxu0
        %v1691 = vpop.f32.mrb[0].mxu0
        %v1692 = vadd.f32 0.0, %v1691
        %v1693 = vpop.f32.mrb[0].mxu0
        %1694 = vmatprep.mubr.bf16.mxu0 0
        %1695 = vmatmul.mubr.bf16.gmra.mrb[0].mxu0 %v664
        %v1696 = vpop.f32.mrb[0].mxu0
        %v1697 = vadd.f32 0.0, %v1696
        %v1698 = vpop.f32.mrb[0].mxu0
        %v1699 = vpop.f32.mrb[0].mxu0
        %v1700 = vadd.f32 0.0, %v1699
        %v1701 = vpop.f32.mrb[0].mxu0
        %1702 = vmatprep.mubr.bf16.mxu0 0
        %1703 = vmatmul.mubr.bf16.gmra.mrb[0].mxu0 %v665
        %v1704 = vpop.f32.mrb[0].mxu0
        %v1705 = vadd.f32 0.0, %v1704
        %v1706 = vpop.f32.mrb[0].mxu0
        %v1707 = vpop.f32.mrb[0].mxu0
        %v1708 = vadd.f32 0.0, %v1707
        %v1709 = vpop.f32.mrb[0].mxu0
        %1710 = vdwg.mxu0
        %v1727 = vunpack.c.l.b16 %v471
        %v1728 = vunpack.c.l.b16 %v472
        %v1729 = vunpack.c.l.b16 %v473
        %v1730 = vunpack.c.l.b16 %v474
        %v1731 = vunpack.c.l.b16 %v475
        %v1732 = vunpack.c.l.b16 %v476
        %v1733 = vunpack.c.l.b16 %v477
        %v1734 = vunpack.c.l.b16 %v478
        %v1735 = vunpack.c.l.b16 %v479
        %v1736 = vunpack.c.l.b16 %v480
        %v1737 = vunpack.c.l.b16 %v481
        %v1738 = vunpack.c.l.b16 %v482
        %v1739 = vunpack.c.l.b16 %v483
        %v1740 = vunpack.c.l.b16 %v484
        %v1741 = vunpack.c.l.b16 %v485
        %v1742 = vunpack.c.l.b16 %v486
        %v1743 = vpack.c.b16 %v1728, %v1727
        %v1744 = vpack.c.b16 %v1730, %v1729
        %v1745 = vpack.c.b16 %v1732, %v1731
        %v1746 = vpack.c.b16 %v1734, %v1733
        %v1747 = vpack.c.b16 %v1736, %v1735
        %v1748 = vpack.c.b16 %v1738, %v1737
        %v1749 = vpack.c.b16 %v1740, %v1739
        %v1750 = vpack.c.b16 %v1742, %v1741
        %1759 = vmatprep.subr.bf16.mxu0 0
        %1760 = vmatpush1.bf16.msra.mxu0 %v1743
        %1761 = vmatprep.subr.bf16.mxu0 0
        %1762 = vmatpush1.bf16.msra.mxu0 %v1744
        %1763 = vmatprep.subr.bf16.mxu0 0
        %1764 = vmatpush1.bf16.msra.mxu0 %v1745
        %1765 = vmatprep.subr.bf16.mxu0 0
        %1766 = vmatpush1.bf16.msra.mxu0 %v1746
        %1767 = vmatprep.subr.bf16.mxu0 0
        %1768 = vmatpush1.bf16.msra.mxu0 %v1747
        %1769 = vmatprep.subr.bf16.mxu0 0
        %1770 = vmatpush1.bf16.msra.mxu0 %v1748
        %1771 = vmatprep.subr.bf16.mxu0 0
        %1772 = vmatpush1.bf16.msra.mxu0 %v1749
        %1773 = vmatprep.subr.bf16.mxu0 0
        %1774 = vmatpush1.bf16.msra.mxu0 %v1750
        %1775 = vmatprep.subr.bf16.mxu0 0
        %1776 = vmatpush1.bf16.msra.mxu0 0
        %1777 = vmatprep.subr.bf16.mxu0 0
        %1778 = vmatpush1.bf16.msra.mxu0 0
        %1779 = vmatprep.subr.bf16.mxu0 0
        %1780 = vmatpush1.bf16.msra.mxu0 0
        %1781 = vmatprep.subr.bf16.mxu0 0
        %1782 = vmatpush1.bf16.msra.mxu0 0
        %1783 = vmatprep.subr.bf16.mxu0 0
        %1784 = vmatpush1.bf16.msra.mxu0 0
        %1785 = vmatprep.subr.bf16.mxu0 0
        %1786 = vmatpush1.bf16.msra.mxu0 0
        %1787 = vmatprep.subr.bf16.mxu0 0
        %1788 = vmatpush1.bf16.msra.mxu0 0
        %1789 = vmatprep.subr.bf16.mxu0 0
        %1790 = vmatpush1.bf16.msra.mxu0 0
        %1791 = vmatprep.mubr.bf16.mxu0 0
        %1792 = vmatmul.mubr.bf16.gmra.mrb[0].mxu0 %v423
        %v1793 = vpop.f32.mrb[0].mxu0
        %v1794 = vadd.f32 %v1457, %v1793
        %v1795 = vpop.f32.mrb[0].mxu0
        %v1796 = vpop.f32.mrb[0].mxu0
        %v1797 = vadd.f32 %v1460, %v1796
        %v1798 = vpop.f32.mrb[0].mxu0
        %1799 = vmatprep.mubr.bf16.mxu0 0
        %1800 = vmatmul.mubr.bf16.gmra.mrb[0].mxu0 %v424
        %v1801 = vpop.f32.mrb[0].mxu0
        %v1802 = vadd.f32 %v1465, %v1801
        %v1803 = vpop.f32.mrb[0].mxu0
        %v1804 = vpop.f32.mrb[0].mxu0
        %v1805 = vadd.f32 %v1468, %v1804
        %v1806 = vpop.f32.mrb[0].mxu0
        %1807 = vmatprep.mubr.bf16.mxu0 0
        %1808 = vmatmul.mubr.bf16.gmra.mrb[0].mxu0 %v425
        %v1809 = vpop.f32.mrb[0].mxu0
        %v1810 = vadd.f32 %v1473, %v1809
        %v1811 = vpop.f32.mrb[0].mxu0
        %v1812 = vpop.f32.mrb[0].mxu0
        %v1813 = vadd.f32 %v1476, %v1812
        %v1814 = vpop.f32.mrb[0].mxu0
        %1815 = vmatprep.mubr.bf16.mxu0 0
        %1816 = vmatmul.mubr.bf16.gmra.mrb[0].mxu0 %v426
        %v1817 = vpop.f32.mrb[0].mxu0
        %v1818 = vadd.f32 %v1481, %v1817
        %v1819 = vpop.f32.mrb[0].mxu0
        %v1820 = vpop.f32.mrb[0].mxu0
        %v1821 = vadd.f32 %v1484, %v1820
        %v1822 = vpop.f32.mrb[0].mxu0
        %1823 = vmatprep.mubr.bf16.mxu0 0
        %1824 = vmatmul.mubr.bf16.gmra.mrb[0].mxu0 %v427
        %v1825 = vpop.f32.mrb[0].mxu0
        %v1826 = vadd.f32 %v1489, %v1825
        %v1827 = vpop.f32.mrb[0].mxu0
        %v1828 = vpop.f32.mrb[0].mxu0
        %v1829 = vadd.f32 %v1492, %v1828
        %v1830 = vpop.f32.mrb[0].mxu0
        %1831 = vmatprep.mubr.bf16.mxu0 0
        %1832 = vmatmul.mubr.bf16.gmra.mrb[0].mxu0 %v428
        %v1833 = vpop.f32.mrb[0].mxu0
        %v1834 = vadd.f32 %v1497, %v1833
        %v1835 = vpop.f32.mrb[0].mxu0
        %v1836 = vpop.f32.mrb[0].mxu0
        %v1837 = vadd.f32 %v1500, %v1836
        %v1838 = vpop.f32.mrb[0].mxu0
        %1839 = vmatprep.mubr.bf16.mxu0 0
        %1840 = vmatmul.mubr.bf16.gmra.mrb[0].mxu0 %v429
        %v1841 = vpop.f32.mrb[0].mxu0
        %v1842 = vadd.f32 %v1505, %v1841
        %v1843 = vpop.f32.mrb[0].mxu0
        %v1844 = vpop.f32.mrb[0].mxu0
        %v1845 = vadd.f32 %v1508, %v1844
        %v1846 = vpop.f32.mrb[0].mxu0
        %1847 = vmatprep.mubr.bf16.mxu0 0
        %1848 = vmatmul.mubr.bf16.gmra.mrb[0].mxu0 %v430
        %v1849 = vpop.f32.mrb[0].mxu0
        %v1850 = vadd.f32 %v1513, %v1849
        %v1851 = vpop.f32.mrb[0].mxu0
        %v1852 = vpop.f32.mrb[0].mxu0
        %v1853 = vadd.f32 %v1516, %v1852
        %v1854 = vpop.f32.mrb[0].mxu0
        %1855 = vmatprep.mubr.bf16.mxu0 0
        %1856 = vmatmul.mubr.bf16.gmra.mrb[0].mxu0 %v431
        %v1857 = vpop.f32.mrb[0].mxu0
        %v1858 = vadd.f32 %v1521, %v1857
        %v1859 = vpop.f32.mrb[0].mxu0
        %v1860 = vpop.f32.mrb[0].mxu0
        %v1861 = vadd.f32 %v1524, %v1860
        %v1862 = vpop.f32.mrb[0].mxu0
        %1863 = vmatprep.mubr.bf16.mxu0 0
        %1864 = vmatmul.mubr.bf16.gmra.mrb[0].mxu0 %v432
        %v1865 = vpop.f32.mrb[0].mxu0
        %v1866 = vadd.f32 %v1529, %v1865
        %v1867 = vpop.f32.mrb[0].mxu0
        %v1868 = vpop.f32.mrb[0].mxu0
        %v1869 = vadd.f32 %v1532, %v1868
        %v1870 = vpop.f32.mrb[0].mxu0
        %1871 = vmatprep.mubr.bf16.mxu0 0
        %1872 = vmatmul.mubr.bf16.gmra.mrb[0].mxu0 %v433
        %v1873 = vpop.f32.mrb[0].mxu0
        %v1874 = vadd.f32 %v1537, %v1873
        %v1875 = vpop.f32.mrb[0].mxu0
        %v1876 = vpop.f32.mrb[0].mxu0
        %v1877 = vadd.f32 %v1540, %v1876
        %v1878 = vpop.f32.mrb[0].mxu0
        %1879 = vmatprep.mubr.bf16.mxu0 0
        %1880 = vmatmul.mubr.bf16.gmra.mrb[0].mxu0 %v434
        %v1881 = vpop.f32.mrb[0].mxu0
        %v1882 = vadd.f32 %v1545, %v1881
        %v1883 = vpop.f32.mrb[0].mxu0
        %v1884 = vpop.f32.mrb[0].mxu0
        %v1885 = vadd.f32 %v1548, %v1884
        %v1886 = vpop.f32.mrb[0].mxu0
        %1887 = vmatprep.mubr.bf16.mxu0 0
        %1888 = vmatmul.mubr.bf16.gmra.mrb[0].mxu0 %v435
        %v1889 = vpop.f32.mrb[0].mxu0
        %v1890 = vadd.f32 %v1553, %v1889
        %v1891 = vpop.f32.mrb[0].mxu0
        %v1892 = vpop.f32.mrb[0].mxu0
        %v1893 = vadd.f32 %v1556, %v1892
        %v1894 = vpop.f32.mrb[0].mxu0
        %1895 = vmatprep.mubr.bf16.mxu0 0
        %1896 = vmatmul.mubr.bf16.gmra.mrb[0].mxu0 %v436
        %v1897 = vpop.f32.mrb[0].mxu0
        %v1898 = vadd.f32 %v1561, %v1897
        %v1899 = vpop.f32.mrb[0].mxu0
        %v1900 = vpop.f32.mrb[0].mxu0
        %v1901 = vadd.f32 %v1564, %v1900
        %v1902 = vpop.f32.mrb[0].mxu0
        %1903 = vmatprep.mubr.bf16.mxu0 0
        %1904 = vmatmul.mubr.bf16.gmra.mrb[0].mxu0 %v437
        %v1905 = vpop.f32.mrb[0].mxu0
        %v1906 = vadd.f32 %v1569, %v1905
        %v1907 = vpop.f32.mrb[0].mxu0
        %v1908 = vpop.f32.mrb[0].mxu0
        %v1909 = vadd.f32 %v1572, %v1908
        %v1910 = vpop.f32.mrb[0].mxu0
        %1911 = vmatprep.mubr.bf16.mxu0 0
        %1912 = vmatmul.mubr.bf16.gmra.mrb[0].mxu0 %v438
        %v1913 = vpop.f32.mrb[0].mxu0
        %v1914 = vadd.f32 %v1577, %v1913
        %v1915 = vpop.f32.mrb[0].mxu0
        %v1916 = vpop.f32.mrb[0].mxu0
        %v1917 = vadd.f32 %v1580, %v1916
        %v1918 = vpop.f32.mrb[0].mxu0
        %1919 = vmatprep.mubr.bf16.mxu0 0
        %1920 = vmatmul.mubr.bf16.gmra.mrb[0].mxu0 %v439
        %v1921 = vpop.f32.mrb[0].mxu0
        %v1922 = vadd.f32 %v1585, %v1921
        %v1923 = vpop.f32.mrb[0].mxu0
        %v1924 = vpop.f32.mrb[0].mxu0
        %v1925 = vadd.f32 %v1588, %v1924
        %v1926 = vpop.f32.mrb[0].mxu0
        %1927 = vmatprep.mubr.bf16.mxu0 0
        %1928 = vmatmul.mubr.bf16.gmra.mrb[0].mxu0 %v440
        %v1929 = vpop.f32.mrb[0].mxu0
        %v1930 = vadd.f32 %v1593, %v1929
        %v1931 = vpop.f32.mrb[0].mxu0
        %v1932 = vpop.f32.mrb[0].mxu0
        %v1933 = vadd.f32 %v1596, %v1932
        %v1934 = vpop.f32.mrb[0].mxu0
        %1935 = vmatprep.mubr.bf16.mxu0 0
        %1936 = vmatmul.mubr.bf16.gmra.mrb[0].mxu0 %v441
        %v1937 = vpop.f32.mrb[0].mxu0
        %v1938 = vadd.f32 %v1601, %v1937
        %v1939 = vpop.f32.mrb[0].mxu0
        %v1940 = vpop.f32.mrb[0].mxu0
        %v1941 = vadd.f32 %v1604, %v1940
        %v1942 = vpop.f32.mrb[0].mxu0
        %1943 = vmatprep.mubr.bf16.mxu0 0
        %1944 = vmatmul.mubr.bf16.gmra.mrb[0].mxu0 %v442
        %v1945 = vpop.f32.mrb[0].mxu0
        %v1946 = vadd.f32 %v1609, %v1945
        %v1947 = vpop.f32.mrb[0].mxu0
        %v1948 = vpop.f32.mrb[0].mxu0
        %v1949 = vadd.f32 %v1612, %v1948
        %v1950 = vpop.f32.mrb[0].mxu0
        %1951 = vmatprep.mubr.bf16.mxu0 0
        %1952 = vmatmul.mubr.bf16.gmra.mrb[0].mxu0 %v443
        %v1953 = vpop.f32.mrb[0].mxu0
        %v1954 = vadd.f32 %v1617, %v1953
        %v1955 = vpop.f32.mrb[0].mxu0
        %v1956 = vpop.f32.mrb[0].mxu0
        %v1957 = vadd.f32 %v1620, %v1956
        %v1958 = vpop.f32.mrb[0].mxu0
        %1959 = vmatprep.mubr.bf16.mxu0 0
        %1960 = vmatmul.mubr.bf16.gmra.mrb[0].mxu0 %v444
        %v1961 = vpop.f32.mrb[0].mxu0
        %v1962 = vadd.f32 %v1625, %v1961
        %v1963 = vpop.f32.mrb[0].mxu0
        %v1964 = vpop.f32.mrb[0].mxu0
        %v1965 = vadd.f32 %v1628, %v1964
        %v1966 = vpop.f32.mrb[0].mxu0
        %1967 = vmatprep.mubr.bf16.mxu0 0
        %1968 = vmatmul.mubr.bf16.gmra.mrb[0].mxu0 %v445
        %v1969 = vpop.f32.mrb[0].mxu0
        %v1970 = vadd.f32 %v1633, %v1969
        %v1971 = vpop.f32.mrb[0].mxu0
        %v1972 = vpop.f32.mrb[0].mxu0
        %v1973 = vadd.f32 %v1636, %v1972
        %v1974 = vpop.f32.mrb[0].mxu0
        %1975 = vmatprep.mubr.bf16.mxu0 0
        %1976 = vmatmul.mubr.bf16.gmra.mrb[0].mxu0 %v446
        %v1977 = vpop.f32.mrb[0].mxu0
        %v1978 = vadd.f32 %v1641, %v1977
        %v1979 = vpop.f32.mrb[0].mxu0
        %v1980 = vpop.f32.mrb[0].mxu0
        %v1981 = vadd.f32 %v1644, %v1980
        %v1982 = vpop.f32.mrb[0].mxu0
        %1983 = vmatprep.mubr.bf16.mxu0 0
        %1984 = vmatmul.mubr.bf16.gmra.mrb[0].mxu0 %v447
        %v1985 = vpop.f32.mrb[0].mxu0
        %v1986 = vadd.f32 %v1649, %v1985
        %v1987 = vpop.f32.mrb[0].mxu0
        %v1988 = vpop.f32.mrb[0].mxu0
        %v1989 = vadd.f32 %v1652, %v1988
        %v1990 = vpop.f32.mrb[0].mxu0
        %1991 = vmatprep.mubr.bf16.mxu0 0
        %1992 = vmatmul.mubr.bf16.gmra.mrb[0].mxu0 %v448
        %v1993 = vpop.f32.mrb[0].mxu0
        %v1994 = vadd.f32 %v1657, %v1993
        %v1995 = vpop.f32.mrb[0].mxu0
        %v1996 = vpop.f32.mrb[0].mxu0
        %v1997 = vadd.f32 %v1660, %v1996
        %v1998 = vpop.f32.mrb[0].mxu0
        %1999 = vmatprep.mubr.bf16.mxu0 0
        %2000 = vmatmul.mubr.bf16.gmra.mrb[0].mxu0 %v449
        %v2001 = vpop.f32.mrb[0].mxu0
        %v2002 = vadd.f32 %v1665, %v2001
        %v2003 = vpop.f32.mrb[0].mxu0
        %v2004 = vpop.f32.mrb[0].mxu0
        %v2005 = vadd.f32 %v1668, %v2004
        %v2006 = vpop.f32.mrb[0].mxu0
        %2007 = vmatprep.mubr.bf16.mxu0 0
        %2008 = vmatmul.mubr.bf16.gmra.mrb[0].mxu0 %v450
        %v2009 = vpop.f32.mrb[0].mxu0
        %v2010 = vadd.f32 %v1673, %v2009
        %v2011 = vpop.f32.mrb[0].mxu0
        %v2012 = vpop.f32.mrb[0].mxu0
        %v2013 = vadd.f32 %v1676, %v2012
        %v2014 = vpop.f32.mrb[0].mxu0
        %2015 = vmatprep.mubr.bf16.mxu0 0
        %2016 = vmatmul.mubr.bf16.gmra.mrb[0].mxu0 %v451
        %v2017 = vpop.f32.mrb[0].mxu0
        %v2018 = vadd.f32 %v1681, %v2017
        %v2019 = vpop.f32.mrb[0].mxu0
        %v2020 = vpop.f32.mrb[0].mxu0
        %v2021 = vadd.f32 %v1684, %v2020
        %v2022 = vpop.f32.mrb[0].mxu0
        %2023 = vmatprep.mubr.bf16.mxu0 0
        %2024 = vmatmul.mubr.bf16.gmra.mrb[0].mxu0 %v452
        %v2025 = vpop.f32.mrb[0].mxu0
        %v2026 = vadd.f32 %v1689, %v2025
        %v2027 = vpop.f32.mrb[0].mxu0
        %v2028 = vpop.f32.mrb[0].mxu0
        %v2029 = vadd.f32 %v1692, %v2028
        %v2030 = vpop.f32.mrb[0].mxu0
        %2031 = vmatprep.mubr.bf16.mxu0 0
        %2032 = vmatmul.mubr.bf16.gmra.mrb[0].mxu0 %v453
        %v2033 = vpop.f32.mrb[0].mxu0
        %v2034 = vadd.f32 %v1697, %v2033
        %v2035 = vpop.f32.mrb[0].mxu0
        %v2036 = vpop.f32.mrb[0].mxu0
        %v2037 = vadd.f32 %v1700, %v2036
        %v2038 = vpop.f32.mrb[0].mxu0
        %2039 = vmatprep.mubr.bf16.mxu0 0
        %2040 = vmatmul.mubr.bf16.gmra.mrb[0].mxu0 %v454
        %v2041 = vpop.f32.mrb[0].mxu0
        %v2042 = vadd.f32 %v1705, %v2041
        %v2043 = vpop.f32.mrb[0].mxu0
        %v2044 = vpop.f32.mrb[0].mxu0
        %v2045 = vadd.f32 %v1708, %v2044
        %v2046 = vpop.f32.mrb[0].mxu0
        %2047 = vdwg.mxu0
        %s2048 = scalar_lea.vmem [#allocation8], 64
        %v2049 = vld [vmem:[%s2048] sm:$0xf]
        %v2050 = vld [vmem:[%s2048 + $0x4] sm:$0xf]
        %v2051 = vld [vmem:[%s2048 + $0x8] sm:$0xf]
        %v2052 = vld [vmem:[%s2048 + $0xc] sm:$0xf]
        %v2053 = vld [vmem:[%s2048 + $0x10] sm:$0xf]
        %v2054 = vld [vmem:[%s2048 + $0x14] sm:$0xf]
        %v2055 = vld [vmem:[%s2048 + $0x18] sm:$0xf]
        %v2056 = vld [vmem:[%s2048 + $0x1c] sm:$0xf]
        %v2057 = vld [vmem:[%s2048 + $0x20] sm:$0xf]
        %v2058 = vld [vmem:[%s2048 + $0x24] sm:$0xf]
        %v2059 = vld [vmem:[%s2048 + $0x28] sm:$0xf]
        %v2060 = vld [vmem:[%s2048 + $0x2c] sm:$0xf]
        %v2061 = vld [vmem:[%s2048 + $0x30] sm:$0xf]
        %v2062 = vld [vmem:[%s2048 + $0x34] sm:$0xf]
        %v2063 = vld [vmem:[%s2048 + $0x38] sm:$0xf]
        %v2064 = vld [vmem:[%s2048 + $0x3c] sm:$0xf]
        %v2081 = vunpack.c.l.b16 %v2049
        %v2082 = vunpack.c.l.b16 %v2050
        %v2083 = vunpack.c.l.b16 %v2051
        %v2084 = vunpack.c.l.b16 %v2052
        %v2085 = vunpack.c.l.b16 %v2053
        %v2086 = vunpack.c.l.b16 %v2054
        %v2087 = vunpack.c.l.b16 %v2055
        %v2088 = vunpack.c.l.b16 %v2056
        %v2089 = vunpack.c.l.b16 %v2057
        %v2090 = vunpack.c.l.b16 %v2058
        %v2091 = vunpack.c.l.b16 %v2059
        %v2092 = vunpack.c.l.b16 %v2060
        %v2093 = vunpack.c.l.b16 %v2061
        %v2094 = vunpack.c.l.b16 %v2062
        %v2095 = vunpack.c.l.b16 %v2063
        %v2096 = vunpack.c.l.b16 %v2064
        %v2097 = vpack.c.b16 %v2082, %v2081
        %v2098 = vpack.c.b16 %v2084, %v2083
        %v2099 = vpack.c.b16 %v2086, %v2085
        %v2100 = vpack.c.b16 %v2088, %v2087
        %v2101 = vpack.c.b16 %v2090, %v2089
        %v2102 = vpack.c.b16 %v2092, %v2091
        %v2103 = vpack.c.b16 %v2094, %v2093
        %v2104 = vpack.c.b16 %v2096, %v2095
        %2113 = vmatprep.subr.bf16.mxu0 0
        %2114 = vmatpush1.bf16.msra.mxu0 %v2097
        %2115 = vmatprep.subr.bf16.mxu0 0
        %2116 = vmatpush1.bf16.msra.mxu0 %v2098
        %2117 = vmatprep.subr.bf16.mxu0 0
        %2118 = vmatpush1.bf16.msra.mxu0 %v2099
        %2119 = vmatprep.subr.bf16.mxu0 0
        %2120 = vmatpush1.bf16.msra.mxu0 %v2100
        %2121 = vmatprep.subr.bf16.mxu0 0
        %2122 = vmatpush1.bf16.msra.mxu0 %v2101
        %2123 = vmatprep.subr.bf16.mxu0 0
        %2124 = vmatpush1.bf16.msra.mxu0 %v2102
        %2125 = vmatprep.subr.bf16.mxu0 0
        %2126 = vmatpush1.bf16.msra.mxu0 %v2103
        %2127 = vmatprep.subr.bf16.mxu0 0
        %2128 = vmatpush1.bf16.msra.mxu0 %v2104
        %2129 = vmatprep.subr.bf16.mxu0 0
        %2130 = vmatpush1.bf16.msra.mxu0 0
        %2131 = vmatprep.subr.bf16.mxu0 0
        %2132 = vmatpush1.bf16.msra.mxu0 0
        %2133 = vmatprep.subr.bf16.mxu0 0
        %2134 = vmatpush1.bf16.msra.mxu0 0
        %2135 = vmatprep.subr.bf16.mxu0 0
        %2136 = vmatpush1.bf16.msra.mxu0 0
        %2137 = vmatprep.subr.bf16.mxu0 0
        %2138 = vmatpush1.bf16.msra.mxu0 0
        %2139 = vmatprep.subr.bf16.mxu0 0
        %2140 = vmatpush1.bf16.msra.mxu0 0
        %2141 = vmatprep.subr.bf16.mxu0 0
        %2142 = vmatpush1.bf16.msra.mxu0 0
        %2143 = vmatprep.subr.bf16.mxu0 0
        %2144 = vmatpush1.bf16.msra.mxu0 0
        %2145 = vmatprep.mubr.bf16.mxu0 0
        %2146 = vmatmul.mubr.bf16.gmra.mrb[0].mxu0 %v634
        %v2147 = vpop.f32.mrb[0].mxu0
        %v2148 = vadd.f32 0.0, %v2147
        %v2149 = vpop.f32.mrb[0].mxu0
        %v2150 = vpop.f32.mrb[0].mxu0
        %v2151 = vadd.f32 0.0, %v2150
        %v2152 = vpop.f32.mrb[0].mxu0
        %2153 = vmatprep.mubr.bf16.mxu0 0
        %2154 = vmatmul.mubr.bf16.gmra.mrb[0].mxu0 %v635
        %v2155 = vpop.f32.mrb[0].mxu0
        %v2156 = vadd.f32 0.0, %v2155
        %v2157 = vpop.f32.mrb[0].mxu0
        %v2158 = vpop.f32.mrb[0].mxu0
        %v2159 = vadd.f32 0.0, %v2158
        %v2160 = vpop.f32.mrb[0].mxu0
        %2161 = vmatprep.mubr.bf16.mxu0 0
        %2162 = vmatmul.mubr.bf16.gmra.mrb[0].mxu0 %v636
        %v2163 = vpop.f32.mrb[0].mxu0
        %v2164 = vadd.f32 0.0, %v2163
        %v2165 = vpop.f32.mrb[0].mxu0
        %v2166 = vpop.f32.mrb[0].mxu0
        %v2167 = vadd.f32 0.0, %v2166
        %v2168 = vpop.f32.mrb[0].mxu0
        %2169 = vmatprep.mubr.bf16.mxu0 0
        %2170 = vmatmul.mubr.bf16.gmra.mrb[0].mxu0 %v637
        %v2171 = vpop.f32.mrb[0].mxu0
        %v2172 = vadd.f32 0.0, %v2171
        %v2173 = vpop.f32.mrb[0].mxu0
        %v2174 = vpop.f32.mrb[0].mxu0
        %v2175 = vadd.f32 0.0, %v2174
        %v2176 = vpop.f32.mrb[0].mxu0
        %2177 = vmatprep.mubr.bf16.mxu0 0
        %2178 = vmatmul.mubr.bf16.gmra.mrb[0].mxu0 %v638
        %v2179 = vpop.f32.mrb[0].mxu0
        %v2180 = vadd.f32 0.0, %v2179
        %v2181 = vpop.f32.mrb[0].mxu0
        %v2182 = vpop.f32.mrb[0].mxu0
        %v2183 = vadd.f32 0.0, %v2182
        %v2184 = vpop.f32.mrb[0].mxu0
        %2185 = vmatprep.mubr.bf16.mxu0 0
        %2186 = vmatmul.mubr.bf16.gmra.mrb[0].mxu0 %v639
        %v2187 = vpop.f32.mrb[0].mxu0
        %v2188 = vadd.f32 0.0, %v2187
        %v2189 = vpop.f32.mrb[0].mxu0
        %v2190 = vpop.f32.mrb[0].mxu0
        %v2191 = vadd.f32 0.0, %v2190
        %v2192 = vpop.f32.mrb[0].mxu0
        %2193 = vmatprep.mubr.bf16.mxu0 0
        %2194 = vmatmul.mubr.bf16.gmra.mrb[0].mxu0 %v640
        %v2195 = vpop.f32.mrb[0].mxu0
        %v2196 = vadd.f32 0.0, %v2195
        %v2197 = vpop.f32.mrb[0].mxu0
        %v2198 = vpop.f32.mrb[0].mxu0
        %v2199 = vadd.f32 0.0, %v2198
        %v2200 = vpop.f32.mrb[0].mxu0
        %2201 = vmatprep.mubr.bf16.mxu0 0
        %2202 = vmatmul.mubr.bf16.gmra.mrb[0].mxu0 %v641
        %v2203 = vpop.f32.mrb[0].mxu0
        %v2204 = vadd.f32 0.0, %v2203
        %v2205 = vpop.f32.mrb[0].mxu0
        %v2206 = vpop.f32.mrb[0].mxu0
        %v2207 = vadd.f32 0.0, %v2206
        %v2208 = vpop.f32.mrb[0].mxu0
        %2209 = vmatprep.mubr.bf16.mxu0 0
        %2210 = vmatmul.mubr.bf16.gmra.mrb[0].mxu0 %v642
        %v2211 = vpop.f32.mrb[0].mxu0
        %v2212 = vadd.f32 0.0, %v2211
        %v2213 = vpop.f32.mrb[0].mxu0
        %v2214 = vpop.f32.mrb[0].mxu0
        %v2215 = vadd.f32 0.0, %v2214
        %v2216 = vpop.f32.mrb[0].mxu0
        %2217 = vmatprep.mubr.bf16.mxu0 0
        %2218 = vmatmul.mubr.bf16.gmra.mrb[0].mxu0 %v643
        %v2219 = vpop.f32.mrb[0].mxu0
        %v2220 = vadd.f32 0.0, %v2219
        %v2221 = vpop.f32.mrb[0].mxu0
        %v2222 = vpop.f32.mrb[0].mxu0
        %v2223 = vadd.f32 0.0, %v2222
        %v2224 = vpop.f32.mrb[0].mxu0
        %2225 = vmatprep.mubr.bf16.mxu0 0
        %2226 = vmatmul.mubr.bf16.gmra.mrb[0].mxu0 %v644
        %v2227 = vpop.f32.mrb[0].mxu0
        %v2228 = vadd.f32 0.0, %v2227
        %v2229 = vpop.f32.mrb[0].mxu0
        %v2230 = vpop.f32.mrb[0].mxu0
        %v2231 = vadd.f32 0.0, %v2230
        %v2232 = vpop.f32.mrb[0].mxu0
        %2233 = vmatprep.mubr.bf16.mxu0 0
        %2234 = vmatmul.mubr.bf16.gmra.mrb[0].mxu0 %v645
        %v2235 = vpop.f32.mrb[0].mxu0
        %v2236 = vadd.f32 0.0, %v2235
        %v2237 = vpop.f32.mrb[0].mxu0
        %v2238 = vpop.f32.mrb[0].mxu0
        %v2239 = vadd.f32 0.0, %v2238
        %v2240 = vpop.f32.mrb[0].mxu0
        %2241 = vmatprep.mubr.bf16.mxu0 0
        %2242 = vmatmul.mubr.bf16.gmra.mrb[0].mxu0 %v646
        %v2243 = vpop.f32.mrb[0].mxu0
        %v2244 = vadd.f32 0.0, %v2243
        %v2245 = vpop.f32.mrb[0].mxu0
        %v2246 = vpop.f32.mrb[0].mxu0
        %v2247 = vadd.f32 0.0, %v2246
        %v2248 = vpop.f32.mrb[0].mxu0
        %2249 = vmatprep.mubr.bf16.mxu0 0
        %2250 = vmatmul.mubr.bf16.gmra.mrb[0].mxu0 %v647
        %v2251 = vpop.f32.mrb[0].mxu0
        %v2252 = vadd.f32 0.0, %v2251
        %v2253 = vpop.f32.mrb[0].mxu0
        %v2254 = vpop.f32.mrb[0].mxu0
        %v2255 = vadd.f32 0.0, %v2254
        %v2256 = vpop.f32.mrb[0].mxu0
        %2257 = vmatprep.mubr.bf16.mxu0 0
        %2258 = vmatmul.mubr.bf16.gmra.mrb[0].mxu0 %v648
        %v2259 = vpop.f32.mrb[0].mxu0
        %v2260 = vadd.f32 0.0, %v2259
        %v2261 = vpop.f32.mrb[0].mxu0
        %v2262 = vpop.f32.mrb[0].mxu0
        %v2263 = vadd.f32 0.0, %v2262
        %v2264 = vpop.f32.mrb[0].mxu0
        %2265 = vmatprep.mubr.bf16.mxu0 0
        %2266 = vmatmul.mubr.bf16.gmra.mrb[0].mxu0 %v649
        %v2267 = vpop.f32.mrb[0].mxu0
        %v2268 = vadd.f32 0.0, %v2267
        %v2269 = vpop.f32.mrb[0].mxu0
        %v2270 = vpop.f32.mrb[0].mxu0
        %v2271 = vadd.f32 0.0, %v2270
        %v2272 = vpop.f32.mrb[0].mxu0
        %2273 = vmatprep.mubr.bf16.mxu0 0
        %2274 = vmatmul.mubr.bf16.gmra.mrb[0].mxu0 %v650
        %v2275 = vpop.f32.mrb[0].mxu0
        %v2276 = vadd.f32 0.0, %v2275
        %v2277 = vpop.f32.mrb[0].mxu0
        %v2278 = vpop.f32.mrb[0].mxu0
        %v2279 = vadd.f32 0.0, %v2278
        %v2280 = vpop.f32.mrb[0].mxu0
        %2281 = vmatprep.mubr.bf16.mxu0 0
        %2282 = vmatmul.mubr.bf16.gmra.mrb[0].mxu0 %v651
        %v2283 = vpop.f32.mrb[0].mxu0
        %v2284 = vadd.f32 0.0, %v2283
        %v2285 = vpop.f32.mrb[0].mxu0
        %v2286 = vpop.f32.mrb[0].mxu0
        %v2287 = vadd.f32 0.0, %v2286
        %v2288 = vpop.f32.mrb[0].mxu0
        %2289 = vmatprep.mubr.bf16.mxu0 0
        %2290 = vmatmul.mubr.bf16.gmra.mrb[0].mxu0 %v652
        %v2291 = vpop.f32.mrb[0].mxu0
        %v2292 = vadd.f32 0.0, %v2291
        %v2293 = vpop.f32.mrb[0].mxu0
        %v2294 = vpop.f32.mrb[0].mxu0
        %v2295 = vadd.f32 0.0, %v2294
        %v2296 = vpop.f32.mrb[0].mxu0
        %2297 = vmatprep.mubr.bf16.mxu0 0
        %2298 = vmatmul.mubr.bf16.gmra.mrb[0].mxu0 %v653
        %v2299 = vpop.f32.mrb[0].mxu0
        %v2300 = vadd.f32 0.0, %v2299
        %v2301 = vpop.f32.mrb[0].mxu0
        %v2302 = vpop.f32.mrb[0].mxu0
        %v2303 = vadd.f32 0.0, %v2302
        %v2304 = vpop.f32.mrb[0].mxu0
        %2305 = vmatprep.mubr.bf16.mxu0 0
        %2306 = vmatmul.mubr.bf16.gmra.mrb[0].mxu0 %v654
        %v2307 = vpop.f32.mrb[0].mxu0
        %v2308 = vadd.f32 0.0, %v2307
        %v2309 = vpop.f32.mrb[0].mxu0
        %v2310 = vpop.f32.mrb[0].mxu0
        %v2311 = vadd.f32 0.0, %v2310
        %v2312 = vpop.f32.mrb[0].mxu0
        %2313 = vmatprep.mubr.bf16.mxu0 0
        %2314 = vmatmul.mubr.bf16.gmra.mrb[0].mxu0 %v655
        %v2315 = vpop.f32.mrb[0].mxu0
        %v2316 = vadd.f32 0.0, %v2315
        %v2317 = vpop.f32.mrb[0].mxu0
        %v2318 = vpop.f32.mrb[0].mxu0
        %v2319 = vadd.f32 0.0, %v2318
        %v2320 = vpop.f32.mrb[0].mxu0
        %2321 = vmatprep.mubr.bf16.mxu0 0
        %2322 = vmatmul.mubr.bf16.gmra.mrb[0].mxu0 %v656
        %v2323 = vpop.f32.mrb[0].mxu0
        %v2324 = vadd.f32 0.0, %v2323
        %v2325 = vpop.f32.mrb[0].mxu0
        %v2326 = vpop.f32.mrb[0].mxu0
        %v2327 = vadd.f32 0.0, %v2326
        %v2328 = vpop.f32.mrb[0].mxu0
        %2329 = vmatprep.mubr.bf16.mxu0 0
        %2330 = vmatmul.mubr.bf16.gmra.mrb[0].mxu0 %v657
        %v2331 = vpop.f32.mrb[0].mxu0
        %v2332 = vadd.f32 0.0, %v2331
        %v2333 = vpop.f32.mrb[0].mxu0
        %v2334 = vpop.f32.mrb[0].mxu0
        %v2335 = vadd.f32 0.0, %v2334
        %v2336 = vpop.f32.mrb[0].mxu0
        %2337 = vmatprep.mubr.bf16.mxu0 0
        %2338 = vmatmul.mubr.bf16.gmra.mrb[0].mxu0 %v658
        %v2339 = vpop.f32.mrb[0].mxu0
        %v2340 = vadd.f32 0.0, %v2339
        %v2341 = vpop.f32.mrb[0].mxu0
        %v2342 = vpop.f32.mrb[0].mxu0
        %v2343 = vadd.f32 0.0, %v2342
        %v2344 = vpop.f32.mrb[0].mxu0
        %2345 = vmatprep.mubr.bf16.mxu0 0
        %2346 = vmatmul.mubr.bf16.gmra.mrb[0].mxu0 %v659
        %v2347 = vpop.f32.mrb[0].mxu0
        %v2348 = vadd.f32 0.0, %v2347
        %v2349 = vpop.f32.mrb[0].mxu0
        %v2350 = vpop.f32.mrb[0].mxu0
        %v2351 = vadd.f32 0.0, %v2350
        %v2352 = vpop.f32.mrb[0].mxu0
        %2353 = vmatprep.mubr.bf16.mxu0 0
        %2354 = vmatmul.mubr.bf16.gmra.mrb[0].mxu0 %v660
        %v2355 = vpop.f32.mrb[0].mxu0
        %v2356 = vadd.f32 0.0, %v2355
        %v2357 = vpop.f32.mrb[0].mxu0
        %v2358 = vpop.f32.mrb[0].mxu0
        %v2359 = vadd.f32 0.0, %v2358
        %v2360 = vpop.f32.mrb[0].mxu0
        %2361 = vmatprep.mubr.bf16.mxu0 0
        %2362 = vmatmul.mubr.bf16.gmra.mrb[0].mxu0 %v661
        %v2363 = vpop.f32.mrb[0].mxu0
        %v2364 = vadd.f32 0.0, %v2363
        %v2365 = vpop.f32.mrb[0].mxu0
        %v2366 = vpop.f32.mrb[0].mxu0
        %v2367 = vadd.f32 0.0, %v2366
        %v2368 = vpop.f32.mrb[0].mxu0
        %2369 = vmatprep.mubr.bf16.mxu0 0
        %2370 = vmatmul.mubr.bf16.gmra.mrb[0].mxu0 %v662
        %v2371 = vpop.f32.mrb[0].mxu0
        %v2372 = vadd.f32 0.0, %v2371
        %v2373 = vpop.f32.mrb[0].mxu0
        %v2374 = vpop.f32.mrb[0].mxu0
        %v2375 = vadd.f32 0.0, %v2374
        %v2376 = vpop.f32.mrb[0].mxu0
        %2377 = vmatprep.mubr.bf16.mxu0 0
        %2378 = vmatmul.mubr.bf16.gmra.mrb[0].mxu0 %v663
        %v2379 = vpop.f32.mrb[0].mxu0
        %v2380 = vadd.f32 0.0, %v2379
        %v2381 = vpop.f32.mrb[0].mxu0
        %v2382 = vpop.f32.mrb[0].mxu0
        %v2383 = vadd.f32 0.0, %v2382
        %v2384 = vpop.f32.mrb[0].mxu0
        %2385 = vmatprep.mubr.bf16.mxu0 0
        %2386 = vmatmul.mubr.bf16.gmra.mrb[0].mxu0 %v664
        %v2387 = vpop.f32.mrb[0].mxu0
        %v2388 = vadd.f32 0.0, %v2387
        %v2389 = vpop.f32.mrb[0].mxu0
        %v2390 = vpop.f32.mrb[0].mxu0
        %v2391 = vadd.f32 0.0, %v2390
        %v2392 = vpop.f32.mrb[0].mxu0
        %2393 = vmatprep.mubr.bf16.mxu0 0
        %2394 = vmatmul.mubr.bf16.gmra.mrb[0].mxu0 %v665
        %v2395 = vpop.f32.mrb[0].mxu0
        %v2396 = vadd.f32 0.0, %v2395
        %v2397 = vpop.f32.mrb[0].mxu0
        %v2398 = vpop.f32.mrb[0].mxu0
        %v2399 = vadd.f32 0.0, %v2398
        %v2400 = vpop.f32.mrb[0].mxu0
        %2401 = vdwg.mxu0
        %v2418 = vunpack.c.l.b16 %v487
        %v2419 = vunpack.c.l.b16 %v488
        %v2420 = vunpack.c.l.b16 %v489
        %v2421 = vunpack.c.l.b16 %v490
        %v2422 = vunpack.c.l.b16 %v491
        %v2423 = vunpack.c.l.b16 %v492
        %v2424 = vunpack.c.l.b16 %v493
        %v2425 = vunpack.c.l.b16 %v494
        %v2426 = vunpack.c.l.b16 %v495
        %v2427 = vunpack.c.l.b16 %v496
        %v2428 = vunpack.c.l.b16 %v497
        %v2429 = vunpack.c.l.b16 %v498
        %v2430 = vunpack.c.l.b16 %v499
        %v2431 = vunpack.c.l.b16 %v500
        %v2432 = vunpack.c.l.b16 %v501
        %v2433 = vunpack.c.l.b16 %v502
        %v2434 = vpack.c.b16 %v2419, %v2418
        %v2435 = vpack.c.b16 %v2421, %v2420
        %v2436 = vpack.c.b16 %v2423, %v2422
        %v2437 = vpack.c.b16 %v2425, %v2424
        %v2438 = vpack.c.b16 %v2427, %v2426
        %v2439 = vpack.c.b16 %v2429, %v2428
        %v2440 = vpack.c.b16 %v2431, %v2430
        %v2441 = vpack.c.b16 %v2433, %v2432
        %2450 = vmatprep.subr.bf16.mxu0 0
        %2451 = vmatpush1.bf16.msra.mxu0 %v2434
        %2452 = vmatprep.subr.bf16.mxu0 0
        %2453 = vmatpush1.bf16.msra.mxu0 %v2435
        %2454 = vmatprep.subr.bf16.mxu0 0
        %2455 = vmatpush1.bf16.msra.mxu0 %v2436
        %2456 = vmatprep.subr.bf16.mxu0 0
        %2457 = vmatpush1.bf16.msra.mxu0 %v2437
        %2458 = vmatprep.subr.bf16.mxu0 0
        %2459 = vmatpush1.bf16.msra.mxu0 %v2438
        %2460 = vmatprep.subr.bf16.mxu0 0
        %2461 = vmatpush1.bf16.msra.mxu0 %v2439
        %2462 = vmatprep.subr.bf16.mxu0 0
        %2463 = vmatpush1.bf16.msra.mxu0 %v2440
        %2464 = vmatprep.subr.bf16.mxu0 0
        %2465 = vmatpush1.bf16.msra.mxu0 %v2441
        %2466 = vmatprep.subr.bf16.mxu0 0
        %2467 = vmatpush1.bf16.msra.mxu0 0
        %2468 = vmatprep.subr.bf16.mxu0 0
        %2469 = vmatpush1.bf16.msra.mxu0 0
        %2470 = vmatprep.subr.bf16.mxu0 0
        %2471 = vmatpush1.bf16.msra.mxu0 0
        %2472 = vmatprep.subr.bf16.mxu0 0
        %2473 = vmatpush1.bf16.msra.mxu0 0
        %2474 = vmatprep.subr.bf16.mxu0 0
        %2475 = vmatpush1.bf16.msra.mxu0 0
        %2476 = vmatprep.subr.bf16.mxu0 0
        %2477 = vmatpush1.bf16.msra.mxu0 0
        %2478 = vmatprep.subr.bf16.mxu0 0
        %2479 = vmatpush1.bf16.msra.mxu0 0
        %2480 = vmatprep.subr.bf16.mxu0 0
        %2481 = vmatpush1.bf16.msra.mxu0 0
        %2482 = vmatprep.mubr.bf16.mxu0 0
        %2483 = vmatmul.mubr.bf16.gmra.mrb[0].mxu0 %v423
        %v2484 = vpop.f32.mrb[0].mxu0
        %v2485 = vadd.f32 %v2148, %v2484
        %v2486 = vpop.f32.mrb[0].mxu0
        %v2487 = vpop.f32.mrb[0].mxu0
        %v2488 = vadd.f32 %v2151, %v2487
        %v2489 = vpop.f32.mrb[0].mxu0
        %2490 = vmatprep.mubr.bf16.mxu0 0
        %2491 = vmatmul.mubr.bf16.gmra.mrb[0].mxu0 %v424
        %v2492 = vpop.f32.mrb[0].mxu0
        %v2493 = vadd.f32 %v2156, %v2492
        %v2494 = vpop.f32.mrb[0].mxu0
        %v2495 = vpop.f32.mrb[0].mxu0
        %v2496 = vadd.f32 %v2159, %v2495
        %v2497 = vpop.f32.mrb[0].mxu0
        %2498 = vmatprep.mubr.bf16.mxu0 0
        %2499 = vmatmul.mubr.bf16.gmra.mrb[0].mxu0 %v425
        %v2500 = vpop.f32.mrb[0].mxu0
        %v2501 = vadd.f32 %v2164, %v2500
        %v2502 = vpop.f32.mrb[0].mxu0
        %v2503 = vpop.f32.mrb[0].mxu0
        %v2504 = vadd.f32 %v2167, %v2503
        %v2505 = vpop.f32.mrb[0].mxu0
        %2506 = vmatprep.mubr.bf16.mxu0 0
        %2507 = vmatmul.mubr.bf16.gmra.mrb[0].mxu0 %v426
        %v2508 = vpop.f32.mrb[0].mxu0
        %v2509 = vadd.f32 %v2172, %v2508
        %v2510 = vpop.f32.mrb[0].mxu0
        %v2511 = vpop.f32.mrb[0].mxu0
        %v2512 = vadd.f32 %v2175, %v2511
        %v2513 = vpop.f32.mrb[0].mxu0
        %2514 = vmatprep.mubr.bf16.mxu0 0
        %2515 = vmatmul.mubr.bf16.gmra.mrb[0].mxu0 %v427
        %v2516 = vpop.f32.mrb[0].mxu0
        %v2517 = vadd.f32 %v2180, %v2516
        %v2518 = vpop.f32.mrb[0].mxu0
        %v2519 = vpop.f32.mrb[0].mxu0
        %v2520 = vadd.f32 %v2183, %v2519
        %v2521 = vpop.f32.mrb[0].mxu0
        %2522 = vmatprep.mubr.bf16.mxu0 0
        %2523 = vmatmul.mubr.bf16.gmra.mrb[0].mxu0 %v428
        %v2524 = vpop.f32.mrb[0].mxu0
        %v2525 = vadd.f32 %v2188, %v2524
        %v2526 = vpop.f32.mrb[0].mxu0
        %v2527 = vpop.f32.mrb[0].mxu0
        %v2528 = vadd.f32 %v2191, %v2527
        %v2529 = vpop.f32.mrb[0].mxu0
        %2530 = vmatprep.mubr.bf16.mxu0 0
        %2531 = vmatmul.mubr.bf16.gmra.mrb[0].mxu0 %v429
        %v2532 = vpop.f32.mrb[0].mxu0
        %v2533 = vadd.f32 %v2196, %v2532
        %v2534 = vpop.f32.mrb[0].mxu0
        %v2535 = vpop.f32.mrb[0].mxu0
        %v2536 = vadd.f32 %v2199, %v2535
        %v2537 = vpop.f32.mrb[0].mxu0
        %2538 = vmatprep.mubr.bf16.mxu0 0
        %2539 = vmatmul.mubr.bf16.gmra.mrb[0].mxu0 %v430
        %v2540 = vpop.f32.mrb[0].mxu0
        %v2541 = vadd.f32 %v2204, %v2540
        %v2542 = vpop.f32.mrb[0].mxu0
        %v2543 = vpop.f32.mrb[0].mxu0
        %v2544 = vadd.f32 %v2207, %v2543
        %v2545 = vpop.f32.mrb[0].mxu0
        %2546 = vmatprep.mubr.bf16.mxu0 0
        %2547 = vmatmul.mubr.bf16.gmra.mrb[0].mxu0 %v431
        %v2548 = vpop.f32.mrb[0].mxu0
        %v2549 = vadd.f32 %v2212, %v2548
        %v2550 = vpop.f32.mrb[0].mxu0
        %v2551 = vpop.f32.mrb[0].mxu0
        %v2552 = vadd.f32 %v2215, %v2551
        %v2553 = vpop.f32.mrb[0].mxu0
        %2554 = vmatprep.mubr.bf16.mxu0 0
        %2555 = vmatmul.mubr.bf16.gmra.mrb[0].mxu0 %v432
        %v2556 = vpop.f32.mrb[0].mxu0
        %v2557 = vadd.f32 %v2220, %v2556
        %v2558 = vpop.f32.mrb[0].mxu0
        %v2559 = vpop.f32.mrb[0].mxu0
        %v2560 = vadd.f32 %v2223, %v2559
        %v2561 = vpop.f32.mrb[0].mxu0
        %2562 = vmatprep.mubr.bf16.mxu0 0
        %2563 = vmatmul.mubr.bf16.gmra.mrb[0].mxu0 %v433
        %v2564 = vpop.f32.mrb[0].mxu0
        %v2565 = vadd.f32 %v2228, %v2564
        %v2566 = vpop.f32.mrb[0].mxu0
        %v2567 = vpop.f32.mrb[0].mxu0
        %v2568 = vadd.f32 %v2231, %v2567
        %v2569 = vpop.f32.mrb[0].mxu0
        %2570 = vmatprep.mubr.bf16.mxu0 0
        %2571 = vmatmul.mubr.bf16.gmra.mrb[0].mxu0 %v434
        %v2572 = vpop.f32.mrb[0].mxu0
        %v2573 = vadd.f32 %v2236, %v2572
        %v2574 = vpop.f32.mrb[0].mxu0
        %v2575 = vpop.f32.mrb[0].mxu0
        %v2576 = vadd.f32 %v2239, %v2575
        %v2577 = vpop.f32.mrb[0].mxu0
        %2578 = vmatprep.mubr.bf16.mxu0 0
        %2579 = vmatmul.mubr.bf16.gmra.mrb[0].mxu0 %v435
        %v2580 = vpop.f32.mrb[0].mxu0
        %v2581 = vadd.f32 %v2244, %v2580
        %v2582 = vpop.f32.mrb[0].mxu0
        %v2583 = vpop.f32.mrb[0].mxu0
        %v2584 = vadd.f32 %v2247, %v2583
        %v2585 = vpop.f32.mrb[0].mxu0
        %2586 = vmatprep.mubr.bf16.mxu0 0
        %2587 = vmatmul.mubr.bf16.gmra.mrb[0].mxu0 %v436
        %v2588 = vpop.f32.mrb[0].mxu0
        %v2589 = vadd.f32 %v2252, %v2588
        %v2590 = vpop.f32.mrb[0].mxu0
        %v2591 = vpop.f32.mrb[0].mxu0
        %v2592 = vadd.f32 %v2255, %v2591
        %v2593 = vpop.f32.mrb[0].mxu0
        %2594 = vmatprep.mubr.bf16.mxu0 0
        %2595 = vmatmul.mubr.bf16.gmra.mrb[0].mxu0 %v437
        %v2596 = vpop.f32.mrb[0].mxu0
        %v2597 = vadd.f32 %v2260, %v2596
        %v2598 = vpop.f32.mrb[0].mxu0
        %v2599 = vpop.f32.mrb[0].mxu0
        %v2600 = vadd.f32 %v2263, %v2599
        %v2601 = vpop.f32.mrb[0].mxu0
        %2602 = vmatprep.mubr.bf16.mxu0 0
        %2603 = vmatmul.mubr.bf16.gmra.mrb[0].mxu0 %v438
        %v2604 = vpop.f32.mrb[0].mxu0
        %v2605 = vadd.f32 %v2268, %v2604
        %v2606 = vpop.f32.mrb[0].mxu0
        %v2607 = vpop.f32.mrb[0].mxu0
        %v2608 = vadd.f32 %v2271, %v2607
        %v2609 = vpop.f32.mrb[0].mxu0
        %2610 = vmatprep.mubr.bf16.mxu0 0
        %2611 = vmatmul.mubr.bf16.gmra.mrb[0].mxu0 %v439
        %v2612 = vpop.f32.mrb[0].mxu0
        %v2613 = vadd.f32 %v2276, %v2612
        %v2614 = vpop.f32.mrb[0].mxu0
        %v2615 = vpop.f32.mrb[0].mxu0
        %v2616 = vadd.f32 %v2279, %v2615
        %v2617 = vpop.f32.mrb[0].mxu0
        %2618 = vmatprep.mubr.bf16.mxu0 0
        %2619 = vmatmul.mubr.bf16.gmra.mrb[0].mxu0 %v440
        %v2620 = vpop.f32.mrb[0].mxu0
        %v2621 = vadd.f32 %v2284, %v2620
        %v2622 = vpop.f32.mrb[0].mxu0
        %v2623 = vpop.f32.mrb[0].mxu0
        %v2624 = vadd.f32 %v2287, %v2623
        %v2625 = vpop.f32.mrb[0].mxu0
        %2626 = vmatprep.mubr.bf16.mxu0 0
        %2627 = vmatmul.mubr.bf16.gmra.mrb[0].mxu0 %v441
        %v2628 = vpop.f32.mrb[0].mxu0
        %v2629 = vadd.f32 %v2292, %v2628
        %v2630 = vpop.f32.mrb[0].mxu0
        %v2631 = vpop.f32.mrb[0].mxu0
        %v2632 = vadd.f32 %v2295, %v2631
        %v2633 = vpop.f32.mrb[0].mxu0
        %2634 = vmatprep.mubr.bf16.mxu0 0
        %2635 = vmatmul.mubr.bf16.gmra.mrb[0].mxu0 %v442
        %v2636 = vpop.f32.mrb[0].mxu0
        %v2637 = vadd.f32 %v2300, %v2636
        %v2638 = vpop.f32.mrb[0].mxu0
        %v2639 = vpop.f32.mrb[0].mxu0
        %v2640 = vadd.f32 %v2303, %v2639
        %v2641 = vpop.f32.mrb[0].mxu0
        %2642 = vmatprep.mubr.bf16.mxu0 0
        %2643 = vmatmul.mubr.bf16.gmra.mrb[0].mxu0 %v443
        %v2644 = vpop.f32.mrb[0].mxu0
        %v2645 = vadd.f32 %v2308, %v2644
        %v2646 = vpop.f32.mrb[0].mxu0
        %v2647 = vpop.f32.mrb[0].mxu0
        %v2648 = vadd.f32 %v2311, %v2647
        %v2649 = vpop.f32.mrb[0].mxu0
        %2650 = vmatprep.mubr.bf16.mxu0 0
        %2651 = vmatmul.mubr.bf16.gmra.mrb[0].mxu0 %v444
        %v2652 = vpop.f32.mrb[0].mxu0
        %v2653 = vadd.f32 %v2316, %v2652
        %v2654 = vpop.f32.mrb[0].mxu0
        %v2655 = vpop.f32.mrb[0].mxu0
        %v2656 = vadd.f32 %v2319, %v2655
        %v2657 = vpop.f32.mrb[0].mxu0
        %2658 = vmatprep.mubr.bf16.mxu0 0
        %2659 = vmatmul.mubr.bf16.gmra.mrb[0].mxu0 %v445
        %v2660 = vpop.f32.mrb[0].mxu0
        %v2661 = vadd.f32 %v2324, %v2660
        %v2662 = vpop.f32.mrb[0].mxu0
        %v2663 = vpop.f32.mrb[0].mxu0
        %v2664 = vadd.f32 %v2327, %v2663
        %v2665 = vpop.f32.mrb[0].mxu0
        %2666 = vmatprep.mubr.bf16.mxu0 0
        %2667 = vmatmul.mubr.bf16.gmra.mrb[0].mxu0 %v446
        %v2668 = vpop.f32.mrb[0].mxu0
        %v2669 = vadd.f32 %v2332, %v2668
        %v2670 = vpop.f32.mrb[0].mxu0
        %v2671 = vpop.f32.mrb[0].mxu0
        %v2672 = vadd.f32 %v2335, %v2671
        %v2673 = vpop.f32.mrb[0].mxu0
        %2674 = vmatprep.mubr.bf16.mxu0 0
        %2675 = vmatmul.mubr.bf16.gmra.mrb[0].mxu0 %v447
        %v2676 = vpop.f32.mrb[0].mxu0
        %v2677 = vadd.f32 %v2340, %v2676
        %v2678 = vpop.f32.mrb[0].mxu0
        %v2679 = vpop.f32.mrb[0].mxu0
        %v2680 = vadd.f32 %v2343, %v2679
        %v2681 = vpop.f32.mrb[0].mxu0
        %2682 = vmatprep.mubr.bf16.mxu0 0
        %2683 = vmatmul.mubr.bf16.gmra.mrb[0].mxu0 %v448
        %v2684 = vpop.f32.mrb[0].mxu0
        %v2685 = vadd.f32 %v2348, %v2684
        %v2686 = vpop.f32.mrb[0].mxu0
        %v2687 = vpop.f32.mrb[0].mxu0
        %v2688 = vadd.f32 %v2351, %v2687
        %v2689 = vpop.f32.mrb[0].mxu0
        %2690 = vmatprep.mubr.bf16.mxu0 0
        %2691 = vmatmul.mubr.bf16.gmra.mrb[0].mxu0 %v449
        %v2692 = vpop.f32.mrb[0].mxu0
        %v2693 = vadd.f32 %v2356, %v2692
        %v2694 = vpop.f32.mrb[0].mxu0
        %v2695 = vpop.f32.mrb[0].mxu0
        %v2696 = vadd.f32 %v2359, %v2695
        %v2697 = vpop.f32.mrb[0].mxu0
        %2698 = vmatprep.mubr.bf16.mxu0 0
        %2699 = vmatmul.mubr.bf16.gmra.mrb[0].mxu0 %v450
        %v2700 = vpop.f32.mrb[0].mxu0
        %v2701 = vadd.f32 %v2364, %v2700
        %v2702 = vpop.f32.mrb[0].mxu0
        %v2703 = vpop.f32.mrb[0].mxu0
        %v2704 = vadd.f32 %v2367, %v2703
        %v2705 = vpop.f32.mrb[0].mxu0
        %2706 = vmatprep.mubr.bf16.mxu0 0
        %2707 = vmatmul.mubr.bf16.gmra.mrb[0].mxu0 %v451
        %v2708 = vpop.f32.mrb[0].mxu0
        %v2709 = vadd.f32 %v2372, %v2708
        %v2710 = vpop.f32.mrb[0].mxu0
        %v2711 = vpop.f32.mrb[0].mxu0
        %v2712 = vadd.f32 %v2375, %v2711
        %v2713 = vpop.f32.mrb[0].mxu0
        %2714 = vmatprep.mubr.bf16.mxu0 0
        %2715 = vmatmul.mubr.bf16.gmra.mrb[0].mxu0 %v452
        %v2716 = vpop.f32.mrb[0].mxu0
        %v2717 = vadd.f32 %v2380, %v2716
        %v2718 = vpop.f32.mrb[0].mxu0
        %v2719 = vpop.f32.mrb[0].mxu0
        %v2720 = vadd.f32 %v2383, %v2719
        %v2721 = vpop.f32.mrb[0].mxu0
        %2722 = vmatprep.mubr.bf16.mxu0 0
        %2723 = vmatmul.mubr.bf16.gmra.mrb[0].mxu0 %v453
        %v2724 = vpop.f32.mrb[0].mxu0
        %v2725 = vadd.f32 %v2388, %v2724
        %v2726 = vpop.f32.mrb[0].mxu0
        %v2727 = vpop.f32.mrb[0].mxu0
        %v2728 = vadd.f32 %v2391, %v2727
        %v2729 = vpop.f32.mrb[0].mxu0
        %2730 = vmatprep.mubr.bf16.mxu0 0
        %2731 = vmatmul.mubr.bf16.gmra.mrb[0].mxu0 %v454
        %v2732 = vpop.f32.mrb[0].mxu0
        %v2733 = vadd.f32 %v2396, %v2732
        %v2734 = vpop.f32.mrb[0].mxu0
        %v2735 = vpop.f32.mrb[0].mxu0
        %v2736 = vadd.f32 %v2399, %v2735
        %v2737 = vpop.f32.mrb[0].mxu0
        %2738 = vdwg.mxu0
        %v2739 = vrot.slane %v632, 1
        %v2740 = vrot.slane %v631, 1
        %v2741 = vrot.slane %v630, 1
        %v2742 = vrot.slane %v629, 1
        %v2743 = vrot.slane %v628, 1
        %v2744 = vrot.slane %v627, 1
        %v2745 = vrot.slane %v626, 1
        %v2746 = vrot.slane %v625, 1
        %v2747 = vrot.slane %v624, 1
        %v2748 = vrot.slane %v623, 1
        %v2749 = vrot.slane %v622, 1
        %v2750 = vrot.slane %v621, 1
        %v2751 = vrot.slane %v620, 1
        %v2752 = vrot.slane %v619, 1
        %v2753 = vrot.slane %v618, 1
        %v2754 = vrot.slane %v617, 1
        %v2755 = vrot.slane %v616, 1
        %v2756 = vrot.slane %v615, 1
        %v2757 = vrot.slane %v614, 1
        %v2758 = vrot.slane %v613, 1
        %v2759 = vrot.slane %v612, 1
        %v2760 = vrot.slane %v611, 1
        %v2761 = vrot.slane %v610, 1
        %v2762 = vrot.slane %v609, 1
        %v2763 = vrot.slane %v608, 1
        %v2764 = vrot.slane %v607, 1
        %v2765 = vrot.slane %v606, 1
        %v2766 = vrot.slane %v605, 1
        %v2767 = vrot.slane %v604, 1
        %v2768 = vrot.slane %v603, 1
        %v2769 = vrot.slane %v602, 1
        %v2770 = vrot.slane %v601, 1
        %v2771 = vrot.slane %v600, 1
        %v2772 = vrot.slane %v599, 1
        %v2773 = vrot.slane %v598, 1
        %v2774 = vrot.slane %v597, 1
        %v2775 = vrot.slane %v596, 1
        %v2776 = vrot.slane %v595, 1
        %v2777 = vrot.slane %v594, 1
        %v2778 = vrot.slane %v593, 1
        %v2779 = vrot.slane %v592, 1
        %v2780 = vrot.slane %v591, 1
        %v2781 = vrot.slane %v590, 1
        %v2782 = vrot.slane %v589, 1
        %v2783 = vrot.slane %v588, 1
        %v2784 = vrot.slane %v587, 1
        %v2785 = vrot.slane %v586, 1
        %v2786 = vrot.slane %v585, 1
        %v2787 = vrot.slane %v584, 1
        %v2788 = vrot.slane %v583, 1
        %v2789 = vrot.slane %v582, 1
        %v2790 = vrot.slane %v581, 1
        %v2791 = vrot.slane %v580, 1
        %v2792 = vrot.slane %v579, 1
        %v2793 = vrot.slane %v578, 1
        %v2794 = vrot.slane %v577, 1
        %v2795 = vrot.slane %v576, 1
        %v2796 = vrot.slane %v575, 1
        %v2797 = vrot.slane %v574, 1
        %v2798 = vrot.slane %v573, 1
        %v2799 = vrot.slane %v572, 1
        %v2800 = vrot.slane %v571, 1
        %v2801 = vrot.slane %v570, 1
        %v2802 = vrot.slane %v633, 1
        %v2803 = vsel %vm569, %v2801, %v2802
        %v2804 = vsel %vm569, %v2800, %v2801
        %v2805 = vsel %vm569, %v2799, %v2800
        %v2806 = vsel %vm569, %v2798, %v2799
        %v2807 = vsel %vm569, %v2797, %v2798
        %v2808 = vsel %vm569, %v2796, %v2797
        %v2809 = vsel %vm569, %v2795, %v2796
        %v2810 = vsel %vm569, %v2794, %v2795
        %v2811 = vsel %vm569, %v2793, %v2794
        %v2812 = vsel %vm569, %v2792, %v2793
        %v2813 = vsel %vm569, %v2791, %v2792
        %v2814 = vsel %vm569, %v2790, %v2791
        %v2815 = vsel %vm569, %v2789, %v2790
        %v2816 = vsel %vm569, %v2788, %v2789
        %v2817 = vsel %vm569, %v2787, %v2788
        %v2818 = vsel %vm569, %v2786, %v2787
        %v2819 = vsel %vm569, %v2785, %v2786
        %v2820 = vsel %vm569, %v2784, %v2785
        %v2821 = vsel %vm569, %v2783, %v2784
        %v2822 = vsel %vm569, %v2782, %v2783
        %v2823 = vsel %vm569, %v2781, %v2782
        %v2824 = vsel %vm569, %v2780, %v2781
        %v2825 = vsel %vm569, %v2779, %v2780
        %v2826 = vsel %vm569, %v2778, %v2779
        %v2827 = vsel %vm569, %v2777, %v2778
        %v2828 = vsel %vm569, %v2776, %v2777
        %v2829 = vsel %vm569, %v2775, %v2776
        %v2830 = vsel %vm569, %v2774, %v2775
        %v2831 = vsel %vm569, %v2773, %v2774
        %v2832 = vsel %vm569, %v2772, %v2773
        %v2833 = vsel %vm569, %v2771, %v2772
        %v2834 = vsel %vm569, %v2770, %v2771
        %v2835 = vsel %vm569, %v2769, %v2770
        %v2836 = vsel %vm569, %v2768, %v2769
        %v2837 = vsel %vm569, %v2767, %v2768
        %v2838 = vsel %vm569, %v2766, %v2767
        %v2839 = vsel %vm569, %v2765, %v2766
        %v2840 = vsel %vm569, %v2764, %v2765
        %v2841 = vsel %vm569, %v2763, %v2764
        %v2842 = vsel %vm569, %v2762, %v2763
        %v2843 = vsel %vm569, %v2761, %v2762
        %v2844 = vsel %vm569, %v2760, %v2761
        %v2845 = vsel %vm569, %v2759, %v2760
        %v2846 = vsel %vm569, %v2758, %v2759
        %v2847 = vsel %vm569, %v2757, %v2758
        %v2848 = vsel %vm569, %v2756, %v2757
        %v2849 = vsel %vm569, %v2755, %v2756
        %v2850 = vsel %vm569, %v2754, %v2755
        %v2851 = vsel %vm569, %v2753, %v2754
        %v2852 = vsel %vm569, %v2752, %v2753
        %v2853 = vsel %vm569, %v2751, %v2752
        %v2854 = vsel %vm569, %v2750, %v2751
        %v2855 = vsel %vm569, %v2749, %v2750
        %v2856 = vsel %vm569, %v2748, %v2749
        %v2857 = vsel %vm569, %v2747, %v2748
        %v2858 = vsel %vm569, %v2746, %v2747
        %v2859 = vsel %vm569, %v2745, %v2746
        %v2860 = vsel %vm569, %v2744, %v2745
        %v2861 = vsel %vm569, %v2743, %v2744
        %v2862 = vsel %vm569, %v2742, %v2743
        %v2863 = vsel %vm569, %v2741, %v2742
        %v2864 = vsel %vm569, %v2740, %v2741
        %v2865 = vsel %vm569, %v2739, %v2740
        %v2866 = vsel %vm569, %v2802, %v2739
        %v2867 = vpack.c.bf16 %v2864, %v2865
        %v2868 = vpack.c.bf16 %v2862, %v2863
        %v2869 = vpack.c.bf16 %v2860, %v2861
        %v2870 = vpack.c.bf16 %v2858, %v2859
        %v2871 = vpack.c.bf16 %v2856, %v2857
        %v2872 = vpack.c.bf16 %v2854, %v2855
        %v2873 = vpack.c.bf16 %v2852, %v2853
        %v2874 = vpack.c.bf16 %v2850, %v2851
        %v2875 = vpack.c.bf16 %v2848, %v2849
        %v2876 = vpack.c.bf16 %v2846, %v2847
        %v2877 = vpack.c.bf16 %v2844, %v2845
        %v2878 = vpack.c.bf16 %v2842, %v2843
        %v2879 = vpack.c.bf16 %v2840, %v2841
        %v2880 = vpack.c.bf16 %v2838, %v2839
        %v2881 = vpack.c.bf16 %v2836, %v2837
        %v2882 = vpack.c.bf16 %v2834, %v2835
        %v2883 = vpack.c.bf16 %v2832, %v2833
        %v2884 = vpack.c.bf16 %v2830, %v2831
        %v2885 = vpack.c.bf16 %v2828, %v2829
        %v2886 = vpack.c.bf16 %v2826, %v2827
        %v2887 = vpack.c.bf16 %v2824, %v2825
        %v2888 = vpack.c.bf16 %v2822, %v2823
        %v2889 = vpack.c.bf16 %v2820, %v2821
        %v2890 = vpack.c.bf16 %v2818, %v2819
        %v2891 = vpack.c.bf16 %v2816, %v2817
        %v2892 = vpack.c.bf16 %v2814, %v2815
        %v2893 = vpack.c.bf16 %v2812, %v2813
        %v2894 = vpack.c.bf16 %v2810, %v2811
        %v2895 = vpack.c.bf16 %v2808, %v2809
        %v2896 = vpack.c.bf16 %v2806, %v2807
        %v2897 = vpack.c.bf16 %v2804, %v2805
        %v2898 = vpack.c.bf16 %v2866, %v2803
        %s2899 = scalar_lea.vmem [#allocation5], 128
        %v2900 = vld [vmem:[%s2899] sm:$0xf]
        %v2901 = vld [vmem:[%s2899 + $0x4] sm:$0xf]
        %v2902 = vld [vmem:[%s2899 + $0x8] sm:$0xf]
        %v2903 = vld [vmem:[%s2899 + $0xc] sm:$0xf]
        %v2904 = vld [vmem:[%s2899 + $0x10] sm:$0xf]
        %v2905 = vld [vmem:[%s2899 + $0x14] sm:$0xf]
        %v2906 = vld [vmem:[%s2899 + $0x18] sm:$0xf]
        %v2907 = vld [vmem:[%s2899 + $0x1c] sm:$0xf]
        %v2908 = vld [vmem:[%s2899 + $0x20] sm:$0xf]
        %v2909 = vld [vmem:[%s2899 + $0x24] sm:$0xf]
        %v2910 = vld [vmem:[%s2899 + $0x28] sm:$0xf]
        %v2911 = vld [vmem:[%s2899 + $0x2c] sm:$0xf]
        %v2912 = vld [vmem:[%s2899 + $0x30] sm:$0xf]
        %v2913 = vld [vmem:[%s2899 + $0x34] sm:$0xf]
        %v2914 = vld [vmem:[%s2899 + $0x38] sm:$0xf]
        %v2915 = vld [vmem:[%s2899 + $0x3c] sm:$0xf]
        %v2932 = vunpack.c.l.b16 %v2900
        %v2933 = vunpack.c.l.b16 %v2901
        %v2934 = vunpack.c.l.b16 %v2902
        %v2935 = vunpack.c.l.b16 %v2903
        %v2936 = vunpack.c.l.b16 %v2904
        %v2937 = vunpack.c.l.b16 %v2905
        %v2938 = vunpack.c.l.b16 %v2906
        %v2939 = vunpack.c.l.b16 %v2907
        %v2940 = vunpack.c.l.b16 %v2908
        %v2941 = vunpack.c.l.b16 %v2909
        %v2942 = vunpack.c.l.b16 %v2910
        %v2943 = vunpack.c.l.b16 %v2911
        %v2944 = vunpack.c.l.b16 %v2912
        %v2945 = vunpack.c.l.b16 %v2913
        %v2946 = vunpack.c.l.b16 %v2914
        %v2947 = vunpack.c.l.b16 %v2915
        %v2948 = vpack.c.b16 %v2933, %v2932
        %v2949 = vpack.c.b16 %v2935, %v2934
        %v2950 = vpack.c.b16 %v2937, %v2936
        %v2951 = vpack.c.b16 %v2939, %v2938
        %v2952 = vpack.c.b16 %v2941, %v2940
        %v2953 = vpack.c.b16 %v2943, %v2942
        %v2954 = vpack.c.b16 %v2945, %v2944
        %v2955 = vpack.c.b16 %v2947, %v2946
        %2964 = vmatprep.subr.bf16.mxu0 0
        %2965 = vmatpush1.bf16.msra.mxu0 %v2948
        %2966 = vmatprep.subr.bf16.mxu0 0
        %2967 = vmatpush1.bf16.msra.mxu0 %v2949
        %2968 = vmatprep.subr.bf16.mxu0 0
        %2969 = vmatpush1.bf16.msra.mxu0 %v2950
        %2970 = vmatprep.subr.bf16.mxu0 0
        %2971 = vmatpush1.bf16.msra.mxu0 %v2951
        %2972 = vmatprep.subr.bf16.mxu0 0
        %2973 = vmatpush1.bf16.msra.mxu0 %v2952
        %2974 = vmatprep.subr.bf16.mxu0 0
        %2975 = vmatpush1.bf16.msra.mxu0 %v2953
        %2976 = vmatprep.subr.bf16.mxu0 0
        %2977 = vmatpush1.bf16.msra.mxu0 %v2954
        %2978 = vmatprep.subr.bf16.mxu0 0
        %2979 = vmatpush1.bf16.msra.mxu0 %v2955
        %2980 = vmatprep.subr.bf16.mxu0 0
        %2981 = vmatpush1.bf16.msra.mxu0 0
        %2982 = vmatprep.subr.bf16.mxu0 0
        %2983 = vmatpush1.bf16.msra.mxu0 0
        %2984 = vmatprep.subr.bf16.mxu0 0
        %2985 = vmatpush1.bf16.msra.mxu0 0
        %2986 = vmatprep.subr.bf16.mxu0 0
        %2987 = vmatpush1.bf16.msra.mxu0 0
        %2988 = vmatprep.subr.bf16.mxu0 0
        %2989 = vmatpush1.bf16.msra.mxu0 0
        %2990 = vmatprep.subr.bf16.mxu0 0
        %2991 = vmatpush1.bf16.msra.mxu0 0
        %2992 = vmatprep.subr.bf16.mxu0 0
        %2993 = vmatpush1.bf16.msra.mxu0 0
        %2994 = vmatprep.subr.bf16.mxu0 0
        %2995 = vmatpush1.bf16.msra.mxu0 0
        %2996 = vmatprep.mubr.bf16.mxu0 0
        %2997 = vmatmul.mubr.bf16.gmra.mrb[0].mxu0 %v2867
        %v2998 = vpop.f32.mrb[0].mxu0
        %v2999 = vadd.f32 0.0, %v2998
        %v3000 = vpop.f32.mrb[0].mxu0
        %v3001 = vpop.f32.mrb[0].mxu0
        %v3002 = vadd.f32 0.0, %v3001
        %v3003 = vpop.f32.mrb[0].mxu0
        %3004 = vmatprep.mubr.bf16.mxu0 0
        %3005 = vmatmul.mubr.bf16.gmra.mrb[0].mxu0 %v2868
        %v3006 = vpop.f32.mrb[0].mxu0
        %v3007 = vadd.f32 0.0, %v3006
        %v3008 = vpop.f32.mrb[0].mxu0
        %v3009 = vpop.f32.mrb[0].mxu0
        %v3010 = vadd.f32 0.0, %v3009
        %v3011 = vpop.f32.mrb[0].mxu0
        %3012 = vmatprep.mubr.bf16.mxu0 0
        %3013 = vmatmul.mubr.bf16.gmra.mrb[0].mxu0 %v2869
        %v3014 = vpop.f32.mrb[0].mxu0
        %v3015 = vadd.f32 0.0, %v3014
        %v3016 = vpop.f32.mrb[0].mxu0
        %v3017 = vpop.f32.mrb[0].mxu0
        %v3018 = vadd.f32 0.0, %v3017
        %v3019 = vpop.f32.mrb[0].mxu0
        %3020 = vmatprep.mubr.bf16.mxu0 0
        %3021 = vmatmul.mubr.bf16.gmra.mrb[0].mxu0 %v2870
        %v3022 = vpop.f32.mrb[0].mxu0
        %v3023 = vadd.f32 0.0, %v3022
        %v3024 = vpop.f32.mrb[0].mxu0
        %v3025 = vpop.f32.mrb[0].mxu0
        %v3026 = vadd.f32 0.0, %v3025
        %v3027 = vpop.f32.mrb[0].mxu0
        %3028 = vmatprep.mubr.bf16.mxu0 0
        %3029 = vmatmul.mubr.bf16.gmra.mrb[0].mxu0 %v2871
        %v3030 = vpop.f32.mrb[0].mxu0
        %v3031 = vadd.f32 0.0, %v3030
        %v3032 = vpop.f32.mrb[0].mxu0
        %v3033 = vpop.f32.mrb[0].mxu0
        %v3034 = vadd.f32 0.0, %v3033
        %v3035 = vpop.f32.mrb[0].mxu0
        %3036 = vmatprep.mubr.bf16.mxu0 0
        %3037 = vmatmul.mubr.bf16.gmra.mrb[0].mxu0 %v2872
        %v3038 = vpop.f32.mrb[0].mxu0
        %v3039 = vadd.f32 0.0, %v3038
        %v3040 = vpop.f32.mrb[0].mxu0
        %v3041 = vpop.f32.mrb[0].mxu0
        %v3042 = vadd.f32 0.0, %v3041
        %v3043 = vpop.f32.mrb[0].mxu0
        %3044 = vmatprep.mubr.bf16.mxu0 0
        %3045 = vmatmul.mubr.bf16.gmra.mrb[0].mxu0 %v2873
        %v3046 = vpop.f32.mrb[0].mxu0
        %v3047 = vadd.f32 0.0, %v3046
        %v3048 = vpop.f32.mrb[0].mxu0
        %v3049 = vpop.f32.mrb[0].mxu0
        %v3050 = vadd.f32 0.0, %v3049
        %v3051 = vpop.f32.mrb[0].mxu0
        %3052 = vmatprep.mubr.bf16.mxu0 0
        %3053 = vmatmul.mubr.bf16.gmra.mrb[0].mxu0 %v2874
        %v3054 = vpop.f32.mrb[0].mxu0
        %v3055 = vadd.f32 0.0, %v3054
        %v3056 = vpop.f32.mrb[0].mxu0
        %v3057 = vpop.f32.mrb[0].mxu0
        %v3058 = vadd.f32 0.0, %v3057
        %v3059 = vpop.f32.mrb[0].mxu0
        %3060 = vmatprep.mubr.bf16.mxu0 0
        %3061 = vmatmul.mubr.bf16.gmra.mrb[0].mxu0 %v2875
        %v3062 = vpop.f32.mrb[0].mxu0
        %v3063 = vadd.f32 0.0, %v3062
        %v3064 = vpop.f32.mrb[0].mxu0
        %v3065 = vpop.f32.mrb[0].mxu0
        %v3066 = vadd.f32 0.0, %v3065
        %v3067 = vpop.f32.mrb[0].mxu0
        %3068 = vmatprep.mubr.bf16.mxu0 0
        %3069 = vmatmul.mubr.bf16.gmra.mrb[0].mxu0 %v2876
        %v3070 = vpop.f32.mrb[0].mxu0
        %v3071 = vadd.f32 0.0, %v3070
        %v3072 = vpop.f32.mrb[0].mxu0
        %v3073 = vpop.f32.mrb[0].mxu0
        %v3074 = vadd.f32 0.0, %v3073
        %v3075 = vpop.f32.mrb[0].mxu0
        %3076 = vmatprep.mubr.bf16.mxu0 0
        %3077 = vmatmul.mubr.bf16.gmra.mrb[0].mxu0 %v2877
        %v3078 = vpop.f32.mrb[0].mxu0
        %v3079 = vadd.f32 0.0, %v3078
        %v3080 = vpop.f32.mrb[0].mxu0
        %v3081 = vpop.f32.mrb[0].mxu0
        %v3082 = vadd.f32 0.0, %v3081
        %v3083 = vpop.f32.mrb[0].mxu0
        %3084 = vmatprep.mubr.bf16.mxu0 0
        %3085 = vmatmul.mubr.bf16.gmra.mrb[0].mxu0 %v2878
        %v3086 = vpop.f32.mrb[0].mxu0
        %v3087 = vadd.f32 0.0, %v3086
        %v3088 = vpop.f32.mrb[0].mxu0
        %v3089 = vpop.f32.mrb[0].mxu0
        %v3090 = vadd.f32 0.0, %v3089
        %v3091 = vpop.f32.mrb[0].mxu0
        %3092 = vmatprep.mubr.bf16.mxu0 0
        %3093 = vmatmul.mubr.bf16.gmra.mrb[0].mxu0 %v2879
        %v3094 = vpop.f32.mrb[0].mxu0
        %v3095 = vadd.f32 0.0, %v3094
        %v3096 = vpop.f32.mrb[0].mxu0
        %v3097 = vpop.f32.mrb[0].mxu0
        %v3098 = vadd.f32 0.0, %v3097
        %v3099 = vpop.f32.mrb[0].mxu0
        %3100 = vmatprep.mubr.bf16.mxu0 0
        %3101 = vmatmul.mubr.bf16.gmra.mrb[0].mxu0 %v2880
        %v3102 = vpop.f32.mrb[0].mxu0
        %v3103 = vadd.f32 0.0, %v3102
        %v3104 = vpop.f32.mrb[0].mxu0
        %v3105 = vpop.f32.mrb[0].mxu0
        %v3106 = vadd.f32 0.0, %v3105
        %v3107 = vpop.f32.mrb[0].mxu0
        %3108 = vmatprep.mubr.bf16.mxu0 0
        %3109 = vmatmul.mubr.bf16.gmra.mrb[0].mxu0 %v2881
        %v3110 = vpop.f32.mrb[0].mxu0
        %v3111 = vadd.f32 0.0, %v3110
        %v3112 = vpop.f32.mrb[0].mxu0
        %v3113 = vpop.f32.mrb[0].mxu0
        %v3114 = vadd.f32 0.0, %v3113
        %v3115 = vpop.f32.mrb[0].mxu0
        %3116 = vmatprep.mubr.bf16.mxu0 0
        %3117 = vmatmul.mubr.bf16.gmra.mrb[0].mxu0 %v2882
        %v3118 = vpop.f32.mrb[0].mxu0
        %v3119 = vadd.f32 0.0, %v3118
        %v3120 = vpop.f32.mrb[0].mxu0
        %v3121 = vpop.f32.mrb[0].mxu0
        %v3122 = vadd.f32 0.0, %v3121
        %v3123 = vpop.f32.mrb[0].mxu0
        %3124 = vmatprep.mubr.bf16.mxu0 0
        %3125 = vmatmul.mubr.bf16.gmra.mrb[0].mxu0 %v2883
        %v3126 = vpop.f32.mrb[0].mxu0
        %v3127 = vadd.f32 0.0, %v3126
        %v3128 = vpop.f32.mrb[0].mxu0
        %v3129 = vpop.f32.mrb[0].mxu0
        %v3130 = vadd.f32 0.0, %v3129
        %v3131 = vpop.f32.mrb[0].mxu0
        %3132 = vmatprep.mubr.bf16.mxu0 0
        %3133 = vmatmul.mubr.bf16.gmra.mrb[0].mxu0 %v2884
        %v3134 = vpop.f32.mrb[0].mxu0
        %v3135 = vadd.f32 0.0, %v3134
        %v3136 = vpop.f32.mrb[0].mxu0
        %v3137 = vpop.f32.mrb[0].mxu0
        %v3138 = vadd.f32 0.0, %v3137
        %v3139 = vpop.f32.mrb[0].mxu0
        %3140 = vmatprep.mubr.bf16.mxu0 0
        %3141 = vmatmul.mubr.bf16.gmra.mrb[0].mxu0 %v2885
        %v3142 = vpop.f32.mrb[0].mxu0
        %v3143 = vadd.f32 0.0, %v3142
        %v3144 = vpop.f32.mrb[0].mxu0
        %v3145 = vpop.f32.mrb[0].mxu0
        %v3146 = vadd.f32 0.0, %v3145
        %v3147 = vpop.f32.mrb[0].mxu0
        %3148 = vmatprep.mubr.bf16.mxu0 0
        %3149 = vmatmul.mubr.bf16.gmra.mrb[0].mxu0 %v2886
        %v3150 = vpop.f32.mrb[0].mxu0
        %v3151 = vadd.f32 0.0, %v3150
        %v3152 = vpop.f32.mrb[0].mxu0
        %v3153 = vpop.f32.mrb[0].mxu0
        %v3154 = vadd.f32 0.0, %v3153
        %v3155 = vpop.f32.mrb[0].mxu0
        %3156 = vmatprep.mubr.bf16.mxu0 0
        %3157 = vmatmul.mubr.bf16.gmra.mrb[0].mxu0 %v2887
        %v3158 = vpop.f32.mrb[0].mxu0
        %v3159 = vadd.f32 0.0, %v3158
        %v3160 = vpop.f32.mrb[0].mxu0
        %v3161 = vpop.f32.mrb[0].mxu0
        %v3162 = vadd.f32 0.0, %v3161
        %v3163 = vpop.f32.mrb[0].mxu0
        %3164 = vmatprep.mubr.bf16.mxu0 0
        %3165 = vmatmul.mubr.bf16.gmra.mrb[0].mxu0 %v2888
        %v3166 = vpop.f32.mrb[0].mxu0
        %v3167 = vadd.f32 0.0, %v3166
        %v3168 = vpop.f32.mrb[0].mxu0
        %v3169 = vpop.f32.mrb[0].mxu0
        %v3170 = vadd.f32 0.0, %v3169
        %v3171 = vpop.f32.mrb[0].mxu0
        %3172 = vmatprep.mubr.bf16.mxu0 0
        %3173 = vmatmul.mubr.bf16.gmra.mrb[0].mxu0 %v2889
        %v3174 = vpop.f32.mrb[0].mxu0
        %v3175 = vadd.f32 0.0, %v3174
        %v3176 = vpop.f32.mrb[0].mxu0
        %v3177 = vpop.f32.mrb[0].mxu0
        %v3178 = vadd.f32 0.0, %v3177
        %v3179 = vpop.f32.mrb[0].mxu0
        %3180 = vmatprep.mubr.bf16.mxu0 0
        %3181 = vmatmul.mubr.bf16.gmra.mrb[0].mxu0 %v2890
        %v3182 = vpop.f32.mrb[0].mxu0
        %v3183 = vadd.f32 0.0, %v3182
        %v3184 = vpop.f32.mrb[0].mxu0
        %v3185 = vpop.f32.mrb[0].mxu0
        %v3186 = vadd.f32 0.0, %v3185
        %v3187 = vpop.f32.mrb[0].mxu0
        %3188 = vmatprep.mubr.bf16.mxu0 0
        %3189 = vmatmul.mubr.bf16.gmra.mrb[0].mxu0 %v2891
        %v3190 = vpop.f32.mrb[0].mxu0
        %v3191 = vadd.f32 0.0, %v3190
        %v3192 = vpop.f32.mrb[0].mxu0
        %v3193 = vpop.f32.mrb[0].mxu0
        %v3194 = vadd.f32 0.0, %v3193
        %v3195 = vpop.f32.mrb[0].mxu0
        %3196 = vmatprep.mubr.bf16.mxu0 0
        %3197 = vmatmul.mubr.bf16.gmra.mrb[0].mxu0 %v2892
        %v3198 = vpop.f32.mrb[0].mxu0
        %v3199 = vadd.f32 0.0, %v3198
        %v3200 = vpop.f32.mrb[0].mxu0
        %v3201 = vpop.f32.mrb[0].mxu0
        %v3202 = vadd.f32 0.0, %v3201
        %v3203 = vpop.f32.mrb[0].mxu0
        %3204 = vmatprep.mubr.bf16.mxu0 0
        %3205 = vmatmul.mubr.bf16.gmra.mrb[0].mxu0 %v2893
        %v3206 = vpop.f32.mrb[0].mxu0
        %v3207 = vadd.f32 0.0, %v3206
        %v3208 = vpop.f32.mrb[0].mxu0
        %v3209 = vpop.f32.mrb[0].mxu0
        %v3210 = vadd.f32 0.0, %v3209
        %v3211 = vpop.f32.mrb[0].mxu0
        %3212 = vmatprep.mubr.bf16.mxu0 0
        %3213 = vmatmul.mubr.bf16.gmra.mrb[0].mxu0 %v2894
        %v3214 = vpop.f32.mrb[0].mxu0
        %v3215 = vadd.f32 0.0, %v3214
        %v3216 = vpop.f32.mrb[0].mxu0
        %v3217 = vpop.f32.mrb[0].mxu0
        %v3218 = vadd.f32 0.0, %v3217
        %v3219 = vpop.f32.mrb[0].mxu0
        %3220 = vmatprep.mubr.bf16.mxu0 0
        %3221 = vmatmul.mubr.bf16.gmra.mrb[0].mxu0 %v2895
        %v3222 = vpop.f32.mrb[0].mxu0
        %v3223 = vadd.f32 0.0, %v3222
        %v3224 = vpop.f32.mrb[0].mxu0
        %v3225 = vpop.f32.mrb[0].mxu0
        %v3226 = vadd.f32 0.0, %v3225
        %v3227 = vpop.f32.mrb[0].mxu0
        %3228 = vmatprep.mubr.bf16.mxu0 0
        %3229 = vmatmul.mubr.bf16.gmra.mrb[0].mxu0 %v2896
        %v3230 = vpop.f32.mrb[0].mxu0
        %v3231 = vadd.f32 0.0, %v3230
        %v3232 = vpop.f32.mrb[0].mxu0
        %v3233 = vpop.f32.mrb[0].mxu0
        %v3234 = vadd.f32 0.0, %v3233
        %v3235 = vpop.f32.mrb[0].mxu0
        %3236 = vmatprep.mubr.bf16.mxu0 0
        %3237 = vmatmul.mubr.bf16.gmra.mrb[0].mxu0 %v2897
        %v3238 = vpop.f32.mrb[0].mxu0
        %v3239 = vadd.f32 0.0, %v3238
        %v3240 = vpop.f32.mrb[0].mxu0
        %v3241 = vpop.f32.mrb[0].mxu0
        %v3242 = vadd.f32 0.0, %v3241
        %v3243 = vpop.f32.mrb[0].mxu0
        %3244 = vmatprep.mubr.bf16.mxu0 0
        %3245 = vmatmul.mubr.bf16.gmra.mrb[0].mxu0 %v2898
        %v3246 = vpop.f32.mrb[0].mxu0
        %v3247 = vadd.f32 0.0, %v3246
        %v3248 = vpop.f32.mrb[0].mxu0
        %v3249 = vpop.f32.mrb[0].mxu0
        %v3250 = vadd.f32 0.0, %v3249
        %v3251 = vpop.f32.mrb[0].mxu0
        %3252 = vdwg.mxu0
        %v3253 = vadd.f32 %v1103, %v2999
        %v3254 = vadd.f32 %v1106, %v3002
        %v3255 = vadd.f32 %v1111, %v3007
        %v3256 = vadd.f32 %v1114, %v3010
        %v3257 = vadd.f32 %v1119, %v3015
        %v3258 = vadd.f32 %v1122, %v3018
        %v3259 = vadd.f32 %v1127, %v3023
        %v3260 = vadd.f32 %v1130, %v3026
        %v3261 = vadd.f32 %v1135, %v3031
        %v3262 = vadd.f32 %v1138, %v3034
        %v3263 = vadd.f32 %v1143, %v3039
        %v3264 = vadd.f32 %v1146, %v3042
        %v3265 = vadd.f32 %v1151, %v3047
        %v3266 = vadd.f32 %v1154, %v3050
        %v3267 = vadd.f32 %v1159, %v3055
        %v3268 = vadd.f32 %v1162, %v3058
        %v3269 = vadd.f32 %v1167, %v3063
        %v3270 = vadd.f32 %v1170, %v3066
        %v3271 = vadd.f32 %v1175, %v3071
        %v3272 = vadd.f32 %v1178, %v3074
        %v3273 = vadd.f32 %v1183, %v3079
        %v3274 = vadd.f32 %v1186, %v3082
        %v3275 = vadd.f32 %v1191, %v3087
        %v3276 = vadd.f32 %v1194, %v3090
        %v3277 = vadd.f32 %v1199, %v3095
        %v3278 = vadd.f32 %v1202, %v3098
        %v3279 = vadd.f32 %v1207, %v3103
        %v3280 = vadd.f32 %v1210, %v3106
        %v3281 = vadd.f32 %v1215, %v3111
        %v3282 = vadd.f32 %v1218, %v3114
        %v3283 = vadd.f32 %v1223, %v3119
        %v3284 = vadd.f32 %v1226, %v3122
        %v3285 = vadd.f32 %v1231, %v3127
        %v3286 = vadd.f32 %v1234, %v3130
        %v3287 = vadd.f32 %v1239, %v3135
        %v3288 = vadd.f32 %v1242, %v3138
        %v3289 = vadd.f32 %v1247, %v3143
        %v3290 = vadd.f32 %v1250, %v3146
        %v3291 = vadd.f32 %v1255, %v3151
        %v3292 = vadd.f32 %v1258, %v3154
        %v3293 = vadd.f32 %v1263, %v3159
        %v3294 = vadd.f32 %v1266, %v3162
        %v3295 = vadd.f32 %v1271, %v3167
        %v3296 = vadd.f32 %v1274, %v3170
        %v3297 = vadd.f32 %v1279, %v3175
        %v3298 = vadd.f32 %v1282, %v3178
        %v3299 = vadd.f32 %v1287, %v3183
        %v3300 = vadd.f32 %v1290, %v3186
        %v3301 = vadd.f32 %v1295, %v3191
        %v3302 = vadd.f32 %v1298, %v3194
        %v3303 = vadd.f32 %v1303, %v3199
        %v3304 = vadd.f32 %v1306, %v3202
        %v3305 = vadd.f32 %v1311, %v3207
        %v3306 = vadd.f32 %v1314, %v3210
        %v3307 = vadd.f32 %v1319, %v3215
        %v3308 = vadd.f32 %v1322, %v3218
        %v3309 = vadd.f32 %v1327, %v3223
        %v3310 = vadd.f32 %v1330, %v3226
        %v3311 = vadd.f32 %v1335, %v3231
        %v3312 = vadd.f32 %v1338, %v3234
        %v3313 = vadd.f32 %v1343, %v3239
        %v3314 = vadd.f32 %v1346, %v3242
        %v3315 = vadd.f32 %v1351, %v3247
        %v3316 = vadd.f32 %v1354, %v3250
        %s3317 = scalar_lea.vmem [#allocation7], 128
        %v3318 = vld [vmem:[%s3317] sm:$0xf]
        %v3319 = vld [vmem:[%s3317 + $0x4] sm:$0xf]
        %v3320 = vld [vmem:[%s3317 + $0x8] sm:$0xf]
        %v3321 = vld [vmem:[%s3317 + $0xc] sm:$0xf]
        %v3322 = vld [vmem:[%s3317 + $0x10] sm:$0xf]
        %v3323 = vld [vmem:[%s3317 + $0x14] sm:$0xf]
        %v3324 = vld [vmem:[%s3317 + $0x18] sm:$0xf]
        %v3325 = vld [vmem:[%s3317 + $0x1c] sm:$0xf]
        %v3326 = vld [vmem:[%s3317 + $0x20] sm:$0xf]
        %v3327 = vld [vmem:[%s3317 + $0x24] sm:$0xf]
        %v3328 = vld [vmem:[%s3317 + $0x28] sm:$0xf]
        %v3329 = vld [vmem:[%s3317 + $0x2c] sm:$0xf]
        %v3330 = vld [vmem:[%s3317 + $0x30] sm:$0xf]
        %v3331 = vld [vmem:[%s3317 + $0x34] sm:$0xf]
        %v3332 = vld [vmem:[%s3317 + $0x38] sm:$0xf]
        %v3333 = vld [vmem:[%s3317 + $0x3c] sm:$0xf]
        %v3350 = vunpack.c.l.b16 %v3318
        %v3351 = vunpack.c.l.b16 %v3319
        %v3352 = vunpack.c.l.b16 %v3320
        %v3353 = vunpack.c.l.b16 %v3321
        %v3354 = vunpack.c.l.b16 %v3322
        %v3355 = vunpack.c.l.b16 %v3323
        %v3356 = vunpack.c.l.b16 %v3324
        %v3357 = vunpack.c.l.b16 %v3325
        %v3358 = vunpack.c.l.b16 %v3326
        %v3359 = vunpack.c.l.b16 %v3327
        %v3360 = vunpack.c.l.b16 %v3328
        %v3361 = vunpack.c.l.b16 %v3329
        %v3362 = vunpack.c.l.b16 %v3330
        %v3363 = vunpack.c.l.b16 %v3331
        %v3364 = vunpack.c.l.b16 %v3332
        %v3365 = vunpack.c.l.b16 %v3333
        %v3366 = vpack.c.b16 %v3351, %v3350
        %v3367 = vpack.c.b16 %v3353, %v3352
        %v3368 = vpack.c.b16 %v3355, %v3354
        %v3369 = vpack.c.b16 %v3357, %v3356
        %v3370 = vpack.c.b16 %v3359, %v3358
        %v3371 = vpack.c.b16 %v3361, %v3360
        %v3372 = vpack.c.b16 %v3363, %v3362
        %v3373 = vpack.c.b16 %v3365, %v3364
        %3382 = vmatprep.subr.bf16.mxu0 0
        %3383 = vmatpush1.bf16.msra.mxu0 %v3366
        %3384 = vmatprep.subr.bf16.mxu0 0
        %3385 = vmatpush1.bf16.msra.mxu0 %v3367
        %3386 = vmatprep.subr.bf16.mxu0 0
        %3387 = vmatpush1.bf16.msra.mxu0 %v3368
        %3388 = vmatprep.subr.bf16.mxu0 0
        %3389 = vmatpush1.bf16.msra.mxu0 %v3369
        %3390 = vmatprep.subr.bf16.mxu0 0
        %3391 = vmatpush1.bf16.msra.mxu0 %v3370
        %3392 = vmatprep.subr.bf16.mxu0 0
        %3393 = vmatpush1.bf16.msra.mxu0 %v3371
        %3394 = vmatprep.subr.bf16.mxu0 0
        %3395 = vmatpush1.bf16.msra.mxu0 %v3372
        %3396 = vmatprep.subr.bf16.mxu0 0
        %3397 = vmatpush1.bf16.msra.mxu0 %v3373
        %3398 = vmatprep.subr.bf16.mxu0 0
        %3399 = vmatpush1.bf16.msra.mxu0 0
        %3400 = vmatprep.subr.bf16.mxu0 0
        %3401 = vmatpush1.bf16.msra.mxu0 0
        %3402 = vmatprep.subr.bf16.mxu0 0
        %3403 = vmatpush1.bf16.msra.mxu0 0
        %3404 = vmatprep.subr.bf16.mxu0 0
        %3405 = vmatpush1.bf16.msra.mxu0 0
        %3406 = vmatprep.subr.bf16.mxu0 0
        %3407 = vmatpush1.bf16.msra.mxu0 0
        %3408 = vmatprep.subr.bf16.mxu0 0
        %3409 = vmatpush1.bf16.msra.mxu0 0
        %3410 = vmatprep.subr.bf16.mxu0 0
        %3411 = vmatpush1.bf16.msra.mxu0 0
        %3412 = vmatprep.subr.bf16.mxu0 0
        %3413 = vmatpush1.bf16.msra.mxu0 0
        %3414 = vmatprep.mubr.bf16.mxu0 0
        %3415 = vmatmul.mubr.bf16.gmra.mrb[0].mxu0 %v2867
        %v3416 = vpop.f32.mrb[0].mxu0
        %v3417 = vadd.f32 0.0, %v3416
        %v3418 = vpop.f32.mrb[0].mxu0
        %v3419 = vpop.f32.mrb[0].mxu0
        %v3420 = vadd.f32 0.0, %v3419
        %v3421 = vpop.f32.mrb[0].mxu0
        %3422 = vmatprep.mubr.bf16.mxu0 0
        %3423 = vmatmul.mubr.bf16.gmra.mrb[0].mxu0 %v2868
        %v3424 = vpop.f32.mrb[0].mxu0
        %v3425 = vadd.f32 0.0, %v3424
        %v3426 = vpop.f32.mrb[0].mxu0
        %v3427 = vpop.f32.mrb[0].mxu0
        %v3428 = vadd.f32 0.0, %v3427
        %v3429 = vpop.f32.mrb[0].mxu0
        %3430 = vmatprep.mubr.bf16.mxu0 0
        %3431 = vmatmul.mubr.bf16.gmra.mrb[0].mxu0 %v2869
        %v3432 = vpop.f32.mrb[0].mxu0
        %v3433 = vadd.f32 0.0, %v3432
        %v3434 = vpop.f32.mrb[0].mxu0
        %v3435 = vpop.f32.mrb[0].mxu0
        %v3436 = vadd.f32 0.0, %v3435
        %v3437 = vpop.f32.mrb[0].mxu0
        %3438 = vmatprep.mubr.bf16.mxu0 0
        %3439 = vmatmul.mubr.bf16.gmra.mrb[0].mxu0 %v2870
        %v3440 = vpop.f32.mrb[0].mxu0
        %v3441 = vadd.f32 0.0, %v3440
        %v3442 = vpop.f32.mrb[0].mxu0
        %v3443 = vpop.f32.mrb[0].mxu0
        %v3444 = vadd.f32 0.0, %v3443
        %v3445 = vpop.f32.mrb[0].mxu0
        %3446 = vmatprep.mubr.bf16.mxu0 0
        %3447 = vmatmul.mubr.bf16.gmra.mrb[0].mxu0 %v2871
        %v3448 = vpop.f32.mrb[0].mxu0
        %v3449 = vadd.f32 0.0, %v3448
        %v3450 = vpop.f32.mrb[0].mxu0
        %v3451 = vpop.f32.mrb[0].mxu0
        %v3452 = vadd.f32 0.0, %v3451
        %v3453 = vpop.f32.mrb[0].mxu0
        %3454 = vmatprep.mubr.bf16.mxu0 0
        %3455 = vmatmul.mubr.bf16.gmra.mrb[0].mxu0 %v2872
        %v3456 = vpop.f32.mrb[0].mxu0
        %v3457 = vadd.f32 0.0, %v3456
        %v3458 = vpop.f32.mrb[0].mxu0
        %v3459 = vpop.f32.mrb[0].mxu0
        %v3460 = vadd.f32 0.0, %v3459
        %v3461 = vpop.f32.mrb[0].mxu0
        %3462 = vmatprep.mubr.bf16.mxu0 0
        %3463 = vmatmul.mubr.bf16.gmra.mrb[0].mxu0 %v2873
        %v3464 = vpop.f32.mrb[0].mxu0
        %v3465 = vadd.f32 0.0, %v3464
        %v3466 = vpop.f32.mrb[0].mxu0
        %v3467 = vpop.f32.mrb[0].mxu0
        %v3468 = vadd.f32 0.0, %v3467
        %v3469 = vpop.f32.mrb[0].mxu0
        %3470 = vmatprep.mubr.bf16.mxu0 0
        %3471 = vmatmul.mubr.bf16.gmra.mrb[0].mxu0 %v2874
        %v3472 = vpop.f32.mrb[0].mxu0
        %v3473 = vadd.f32 0.0, %v3472
        %v3474 = vpop.f32.mrb[0].mxu0
        %v3475 = vpop.f32.mrb[0].mxu0
        %v3476 = vadd.f32 0.0, %v3475
        %v3477 = vpop.f32.mrb[0].mxu0
        %3478 = vmatprep.mubr.bf16.mxu0 0
        %3479 = vmatmul.mubr.bf16.gmra.mrb[0].mxu0 %v2875
        %v3480 = vpop.f32.mrb[0].mxu0
        %v3481 = vadd.f32 0.0, %v3480
        %v3482 = vpop.f32.mrb[0].mxu0
        %v3483 = vpop.f32.mrb[0].mxu0
        %v3484 = vadd.f32 0.0, %v3483
        %v3485 = vpop.f32.mrb[0].mxu0
        %3486 = vmatprep.mubr.bf16.mxu0 0
        %3487 = vmatmul.mubr.bf16.gmra.mrb[0].mxu0 %v2876
        %v3488 = vpop.f32.mrb[0].mxu0
        %v3489 = vadd.f32 0.0, %v3488
        %v3490 = vpop.f32.mrb[0].mxu0
        %v3491 = vpop.f32.mrb[0].mxu0
        %v3492 = vadd.f32 0.0, %v3491
        %v3493 = vpop.f32.mrb[0].mxu0
        %3494 = vmatprep.mubr.bf16.mxu0 0
        %3495 = vmatmul.mubr.bf16.gmra.mrb[0].mxu0 %v2877
        %v3496 = vpop.f32.mrb[0].mxu0
        %v3497 = vadd.f32 0.0, %v3496
        %v3498 = vpop.f32.mrb[0].mxu0
        %v3499 = vpop.f32.mrb[0].mxu0
        %v3500 = vadd.f32 0.0, %v3499
        %v3501 = vpop.f32.mrb[0].mxu0
        %3502 = vmatprep.mubr.bf16.mxu0 0
        %3503 = vmatmul.mubr.bf16.gmra.mrb[0].mxu0 %v2878
        %v3504 = vpop.f32.mrb[0].mxu0
        %v3505 = vadd.f32 0.0, %v3504
        %v3506 = vpop.f32.mrb[0].mxu0
        %v3507 = vpop.f32.mrb[0].mxu0
        %v3508 = vadd.f32 0.0, %v3507
        %v3509 = vpop.f32.mrb[0].mxu0
        %3510 = vmatprep.mubr.bf16.mxu0 0
        %3511 = vmatmul.mubr.bf16.gmra.mrb[0].mxu0 %v2879
        %v3512 = vpop.f32.mrb[0].mxu0
        %v3513 = vadd.f32 0.0, %v3512
        %v3514 = vpop.f32.mrb[0].mxu0
        %v3515 = vpop.f32.mrb[0].mxu0
        %v3516 = vadd.f32 0.0, %v3515
        %v3517 = vpop.f32.mrb[0].mxu0
        %3518 = vmatprep.mubr.bf16.mxu0 0
        %3519 = vmatmul.mubr.bf16.gmra.mrb[0].mxu0 %v2880
        %v3520 = vpop.f32.mrb[0].mxu0
        %v3521 = vadd.f32 0.0, %v3520
        %v3522 = vpop.f32.mrb[0].mxu0
        %v3523 = vpop.f32.mrb[0].mxu0
        %v3524 = vadd.f32 0.0, %v3523
        %v3525 = vpop.f32.mrb[0].mxu0
        %3526 = vmatprep.mubr.bf16.mxu0 0
        %3527 = vmatmul.mubr.bf16.gmra.mrb[0].mxu0 %v2881
        %v3528 = vpop.f32.mrb[0].mxu0
        %v3529 = vadd.f32 0.0, %v3528
        %v3530 = vpop.f32.mrb[0].mxu0
        %v3531 = vpop.f32.mrb[0].mxu0
        %v3532 = vadd.f32 0.0, %v3531
        %v3533 = vpop.f32.mrb[0].mxu0
        %3534 = vmatprep.mubr.bf16.mxu0 0
        %3535 = vmatmul.mubr.bf16.gmra.mrb[0].mxu0 %v2882
        %v3536 = vpop.f32.mrb[0].mxu0
        %v3537 = vadd.f32 0.0, %v3536
        %v3538 = vpop.f32.mrb[0].mxu0
        %v3539 = vpop.f32.mrb[0].mxu0
        %v3540 = vadd.f32 0.0, %v3539
        %v3541 = vpop.f32.mrb[0].mxu0
        %3542 = vmatprep.mubr.bf16.mxu0 0
        %3543 = vmatmul.mubr.bf16.gmra.mrb[0].mxu0 %v2883
        %v3544 = vpop.f32.mrb[0].mxu0
        %v3545 = vadd.f32 0.0, %v3544
        %v3546 = vpop.f32.mrb[0].mxu0
        %v3547 = vpop.f32.mrb[0].mxu0
        %v3548 = vadd.f32 0.0, %v3547
        %v3549 = vpop.f32.mrb[0].mxu0
        %3550 = vmatprep.mubr.bf16.mxu0 0
        %3551 = vmatmul.mubr.bf16.gmra.mrb[0].mxu0 %v2884
        %v3552 = vpop.f32.mrb[0].mxu0
        %v3553 = vadd.f32 0.0, %v3552
        %v3554 = vpop.f32.mrb[0].mxu0
        %v3555 = vpop.f32.mrb[0].mxu0
        %v3556 = vadd.f32 0.0, %v3555
        %v3557 = vpop.f32.mrb[0].mxu0
        %3558 = vmatprep.mubr.bf16.mxu0 0
        %3559 = vmatmul.mubr.bf16.gmra.mrb[0].mxu0 %v2885
        %v3560 = vpop.f32.mrb[0].mxu0
        %v3561 = vadd.f32 0.0, %v3560
        %v3562 = vpop.f32.mrb[0].mxu0
        %v3563 = vpop.f32.mrb[0].mxu0
        %v3564 = vadd.f32 0.0, %v3563
        %v3565 = vpop.f32.mrb[0].mxu0
        %3566 = vmatprep.mubr.bf16.mxu0 0
        %3567 = vmatmul.mubr.bf16.gmra.mrb[0].mxu0 %v2886
        %v3568 = vpop.f32.mrb[0].mxu0
        %v3569 = vadd.f32 0.0, %v3568
        %v3570 = vpop.f32.mrb[0].mxu0
        %v3571 = vpop.f32.mrb[0].mxu0
        %v3572 = vadd.f32 0.0, %v3571
        %v3573 = vpop.f32.mrb[0].mxu0
        %3574 = vmatprep.mubr.bf16.mxu0 0
        %3575 = vmatmul.mubr.bf16.gmra.mrb[0].mxu0 %v2887
        %v3576 = vpop.f32.mrb[0].mxu0
        %v3577 = vadd.f32 0.0, %v3576
        %v3578 = vpop.f32.mrb[0].mxu0
        %v3579 = vpop.f32.mrb[0].mxu0
        %v3580 = vadd.f32 0.0, %v3579
        %v3581 = vpop.f32.mrb[0].mxu0
        %3582 = vmatprep.mubr.bf16.mxu0 0
        %3583 = vmatmul.mubr.bf16.gmra.mrb[0].mxu0 %v2888
        %v3584 = vpop.f32.mrb[0].mxu0
        %v3585 = vadd.f32 0.0, %v3584
        %v3586 = vpop.f32.mrb[0].mxu0
        %v3587 = vpop.f32.mrb[0].mxu0
        %v3588 = vadd.f32 0.0, %v3587
        %v3589 = vpop.f32.mrb[0].mxu0
        %3590 = vmatprep.mubr.bf16.mxu0 0
        %3591 = vmatmul.mubr.bf16.gmra.mrb[0].mxu0 %v2889
        %v3592 = vpop.f32.mrb[0].mxu0
        %v3593 = vadd.f32 0.0, %v3592
        %v3594 = vpop.f32.mrb[0].mxu0
        %v3595 = vpop.f32.mrb[0].mxu0
        %v3596 = vadd.f32 0.0, %v3595
        %v3597 = vpop.f32.mrb[0].mxu0
        %3598 = vmatprep.mubr.bf16.mxu0 0
        %3599 = vmatmul.mubr.bf16.gmra.mrb[0].mxu0 %v2890
        %v3600 = vpop.f32.mrb[0].mxu0
        %v3601 = vadd.f32 0.0, %v3600
        %v3602 = vpop.f32.mrb[0].mxu0
        %v3603 = vpop.f32.mrb[0].mxu0
        %v3604 = vadd.f32 0.0, %v3603
        %v3605 = vpop.f32.mrb[0].mxu0
        %3606 = vmatprep.mubr.bf16.mxu0 0
        %3607 = vmatmul.mubr.bf16.gmra.mrb[0].mxu0 %v2891
        %v3608 = vpop.f32.mrb[0].mxu0
        %v3609 = vadd.f32 0.0, %v3608
        %v3610 = vpop.f32.mrb[0].mxu0
        %v3611 = vpop.f32.mrb[0].mxu0
        %v3612 = vadd.f32 0.0, %v3611
        %v3613 = vpop.f32.mrb[0].mxu0
        %3614 = vmatprep.mubr.bf16.mxu0 0
        %3615 = vmatmul.mubr.bf16.gmra.mrb[0].mxu0 %v2892
        %v3616 = vpop.f32.mrb[0].mxu0
        %v3617 = vadd.f32 0.0, %v3616
        %v3618 = vpop.f32.mrb[0].mxu0
        %v3619 = vpop.f32.mrb[0].mxu0
        %v3620 = vadd.f32 0.0, %v3619
        %v3621 = vpop.f32.mrb[0].mxu0
        %3622 = vmatprep.mubr.bf16.mxu0 0
        %3623 = vmatmul.mubr.bf16.gmra.mrb[0].mxu0 %v2893
        %v3624 = vpop.f32.mrb[0].mxu0
        %v3625 = vadd.f32 0.0, %v3624
        %v3626 = vpop.f32.mrb[0].mxu0
        %v3627 = vpop.f32.mrb[0].mxu0
        %v3628 = vadd.f32 0.0, %v3627
        %v3629 = vpop.f32.mrb[0].mxu0
        %3630 = vmatprep.mubr.bf16.mxu0 0
        %3631 = vmatmul.mubr.bf16.gmra.mrb[0].mxu0 %v2894
        %v3632 = vpop.f32.mrb[0].mxu0
        %v3633 = vadd.f32 0.0, %v3632
        %v3634 = vpop.f32.mrb[0].mxu0
        %v3635 = vpop.f32.mrb[0].mxu0
        %v3636 = vadd.f32 0.0, %v3635
        %v3637 = vpop.f32.mrb[0].mxu0
        %3638 = vmatprep.mubr.bf16.mxu0 0
        %3639 = vmatmul.mubr.bf16.gmra.mrb[0].mxu0 %v2895
        %v3640 = vpop.f32.mrb[0].mxu0
        %v3641 = vadd.f32 0.0, %v3640
        %v3642 = vpop.f32.mrb[0].mxu0
        %v3643 = vpop.f32.mrb[0].mxu0
        %v3644 = vadd.f32 0.0, %v3643
        %v3645 = vpop.f32.mrb[0].mxu0
        %3646 = vmatprep.mubr.bf16.mxu0 0
        %3647 = vmatmul.mubr.bf16.gmra.mrb[0].mxu0 %v2896
        %v3648 = vpop.f32.mrb[0].mxu0
        %v3649 = vadd.f32 0.0, %v3648
        %v3650 = vpop.f32.mrb[0].mxu0
        %v3651 = vpop.f32.mrb[0].mxu0
        %v3652 = vadd.f32 0.0, %v3651
        %v3653 = vpop.f32.mrb[0].mxu0
        %3654 = vmatprep.mubr.bf16.mxu0 0
        %3655 = vmatmul.mubr.bf16.gmra.mrb[0].mxu0 %v2897
        %v3656 = vpop.f32.mrb[0].mxu0
        %v3657 = vadd.f32 0.0, %v3656
        %v3658 = vpop.f32.mrb[0].mxu0
        %v3659 = vpop.f32.mrb[0].mxu0
        %v3660 = vadd.f32 0.0, %v3659
        %v3661 = vpop.f32.mrb[0].mxu0
        %3662 = vmatprep.mubr.bf16.mxu0 0
        %3663 = vmatmul.mubr.bf16.gmra.mrb[0].mxu0 %v2898
        %v3664 = vpop.f32.mrb[0].mxu0
        %v3665 = vadd.f32 0.0, %v3664
        %v3666 = vpop.f32.mrb[0].mxu0
        %v3667 = vpop.f32.mrb[0].mxu0
        %v3668 = vadd.f32 0.0, %v3667
        %v3669 = vpop.f32.mrb[0].mxu0
        %3670 = vdwg.mxu0
        %v3671 = vadd.f32 %v1794, %v3417
        %v3672 = vadd.f32 %v1797, %v3420
        %v3673 = vadd.f32 %v1802, %v3425
        %v3674 = vadd.f32 %v1805, %v3428
        %v3675 = vadd.f32 %v1810, %v3433
        %v3676 = vadd.f32 %v1813, %v3436
        %v3677 = vadd.f32 %v1818, %v3441
        %v3678 = vadd.f32 %v1821, %v3444
        %v3679 = vadd.f32 %v1826, %v3449
        %v3680 = vadd.f32 %v1829, %v3452
        %v3681 = vadd.f32 %v1834, %v3457
        %v3682 = vadd.f32 %v1837, %v3460
        %v3683 = vadd.f32 %v1842, %v3465
        %v3684 = vadd.f32 %v1845, %v3468
        %v3685 = vadd.f32 %v1850, %v3473
        %v3686 = vadd.f32 %v1853, %v3476
        %v3687 = vadd.f32 %v1858, %v3481
        %v3688 = vadd.f32 %v1861, %v3484
        %v3689 = vadd.f32 %v1866, %v3489
        %v3690 = vadd.f32 %v1869, %v3492
        %v3691 = vadd.f32 %v1874, %v3497
        %v3692 = vadd.f32 %v1877, %v3500
        %v3693 = vadd.f32 %v1882, %v3505
        %v3694 = vadd.f32 %v1885, %v3508
        %v3695 = vadd.f32 %v1890, %v3513
        %v3696 = vadd.f32 %v1893, %v3516
        %v3697 = vadd.f32 %v1898, %v3521
        %v3698 = vadd.f32 %v1901, %v3524
        %v3699 = vadd.f32 %v1906, %v3529
        %v3700 = vadd.f32 %v1909, %v3532
        %v3701 = vadd.f32 %v1914, %v3537
        %v3702 = vadd.f32 %v1917, %v3540
        %v3703 = vadd.f32 %v1922, %v3545
        %v3704 = vadd.f32 %v1925, %v3548
        %v3705 = vadd.f32 %v1930, %v3553
        %v3706 = vadd.f32 %v1933, %v3556
        %v3707 = vadd.f32 %v1938, %v3561
        %v3708 = vadd.f32 %v1941, %v3564
        %v3709 = vadd.f32 %v1946, %v3569
        %v3710 = vadd.f32 %v1949, %v3572
        %v3711 = vadd.f32 %v1954, %v3577
        %v3712 = vadd.f32 %v1957, %v3580
        %v3713 = vadd.f32 %v1962, %v3585
        %v3714 = vadd.f32 %v1965, %v3588
        %v3715 = vadd.f32 %v1970, %v3593
        %v3716 = vadd.f32 %v1973, %v3596
        %v3717 = vadd.f32 %v1978, %v3601
        %v3718 = vadd.f32 %v1981, %v3604
        %v3719 = vadd.f32 %v1986, %v3609
        %v3720 = vadd.f32 %v1989, %v3612
        %v3721 = vadd.f32 %v1994, %v3617
        %v3722 = vadd.f32 %v1997, %v3620
        %v3723 = vadd.f32 %v2002, %v3625
        %v3724 = vadd.f32 %v2005, %v3628
        %v3725 = vadd.f32 %v2010, %v3633
        %v3726 = vadd.f32 %v2013, %v3636
        %v3727 = vadd.f32 %v2018, %v3641
        %v3728 = vadd.f32 %v2021, %v3644
        %v3729 = vadd.f32 %v2026, %v3649
        %v3730 = vadd.f32 %v2029, %v3652
        %v3731 = vadd.f32 %v2034, %v3657
        %v3732 = vadd.f32 %v2037, %v3660
        %v3733 = vadd.f32 %v2042, %v3665
        %v3734 = vadd.f32 %v2045, %v3668
        %s3735 = scalar_lea.vmem [#allocation8], 128
        %v3736 = vld [vmem:[%s3735] sm:$0xf]
        %v3737 = vld [vmem:[%s3735 + $0x4] sm:$0xf]
        %v3738 = vld [vmem:[%s3735 + $0x8] sm:$0xf]
        %v3739 = vld [vmem:[%s3735 + $0xc] sm:$0xf]
        %v3740 = vld [vmem:[%s3735 + $0x10] sm:$0xf]
        %v3741 = vld [vmem:[%s3735 + $0x14] sm:$0xf]
        %v3742 = vld [vmem:[%s3735 + $0x18] sm:$0xf]
        %v3743 = vld [vmem:[%s3735 + $0x1c] sm:$0xf]
        %v3744 = vld [vmem:[%s3735 + $0x20] sm:$0xf]
        %v3745 = vld [vmem:[%s3735 + $0x24] sm:$0xf]
        %v3746 = vld [vmem:[%s3735 + $0x28] sm:$0xf]
        %v3747 = vld [vmem:[%s3735 + $0x2c] sm:$0xf]
        %v3748 = vld [vmem:[%s3735 + $0x30] sm:$0xf]
        %v3749 = vld [vmem:[%s3735 + $0x34] sm:$0xf]
        %v3750 = vld [vmem:[%s3735 + $0x38] sm:$0xf]
        %v3751 = vld [vmem:[%s3735 + $0x3c] sm:$0xf]
        %v3768 = vunpack.c.l.b16 %v3736
        %v3769 = vunpack.c.l.b16 %v3737
        %v3770 = vunpack.c.l.b16 %v3738
        %v3771 = vunpack.c.l.b16 %v3739
        %v3772 = vunpack.c.l.b16 %v3740
        %v3773 = vunpack.c.l.b16 %v3741
        %v3774 = vunpack.c.l.b16 %v3742
        %v3775 = vunpack.c.l.b16 %v3743
        %v3776 = vunpack.c.l.b16 %v3744
        %v3777 = vunpack.c.l.b16 %v3745
        %v3778 = vunpack.c.l.b16 %v3746
        %v3779 = vunpack.c.l.b16 %v3747
        %v3780 = vunpack.c.l.b16 %v3748
        %v3781 = vunpack.c.l.b16 %v3749
        %v3782 = vunpack.c.l.b16 %v3750
        %v3783 = vunpack.c.l.b16 %v3751
        %v3784 = vpack.c.b16 %v3769, %v3768
        %v3785 = vpack.c.b16 %v3771, %v3770
        %v3786 = vpack.c.b16 %v3773, %v3772
        %v3787 = vpack.c.b16 %v3775, %v3774
        %v3788 = vpack.c.b16 %v3777, %v3776
        %v3789 = vpack.c.b16 %v3779, %v3778
        %v3790 = vpack.c.b16 %v3781, %v3780
        %v3791 = vpack.c.b16 %v3783, %v3782
        %3800 = vmatprep.subr.bf16.mxu0 0
        %3801 = vmatpush1.bf16.msra.mxu0 %v3784
        %3802 = vmatprep.subr.bf16.mxu0 0
        %3803 = vmatpush1.bf16.msra.mxu0 %v3785
        %3804 = vmatprep.subr.bf16.mxu0 0
        %3805 = vmatpush1.bf16.msra.mxu0 %v3786
        %3806 = vmatprep.subr.bf16.mxu0 0
        %3807 = vmatpush1.bf16.msra.mxu0 %v3787
        %3808 = vmatprep.subr.bf16.mxu0 0
        %3809 = vmatpush1.bf16.msra.mxu0 %v3788
        %3810 = vmatprep.subr.bf16.mxu0 0
        %3811 = vmatpush1.bf16.msra.mxu0 %v3789
        %3812 = vmatprep.subr.bf16.mxu0 0
        %3813 = vmatpush1.bf16.msra.mxu0 %v3790
        %3814 = vmatprep.subr.bf16.mxu0 0
        %3815 = vmatpush1.bf16.msra.mxu0 %v3791
        %3816 = vmatprep.subr.bf16.mxu0 0
        %3817 = vmatpush1.bf16.msra.mxu0 0
        %3818 = vmatprep.subr.bf16.mxu0 0
        %3819 = vmatpush1.bf16.msra.mxu0 0
        %3820 = vmatprep.subr.bf16.mxu0 0
        %3821 = vmatpush1.bf16.msra.mxu0 0
        %3822 = vmatprep.subr.bf16.mxu0 0
        %3823 = vmatpush1.bf16.msra.mxu0 0
        %3824 = vmatprep.subr.bf16.mxu0 0
        %3825 = vmatpush1.bf16.msra.mxu0 0
        %3826 = vmatprep.subr.bf16.mxu0 0
        %3827 = vmatpush1.bf16.msra.mxu0 0
        %3828 = vmatprep.subr.bf16.mxu0 0
        %3829 = vmatpush1.bf16.msra.mxu0 0
        %3830 = vmatprep.subr.bf16.mxu0 0
        %3831 = vmatpush1.bf16.msra.mxu0 0
        %3832 = vmatprep.mubr.bf16.mxu0 0
        %3833 = vmatmul.mubr.bf16.gmra.mrb[0].mxu0 %v2867
        %v3834 = vpop.f32.mrb[0].mxu0
        %v3835 = vadd.f32 0.0, %v3834
        %v3836 = vpop.f32.mrb[0].mxu0
        %v3837 = vpop.f32.mrb[0].mxu0
        %v3838 = vadd.f32 0.0, %v3837
        %v3839 = vpop.f32.mrb[0].mxu0
        %3840 = vmatprep.mubr.bf16.mxu0 0
        %3841 = vmatmul.mubr.bf16.gmra.mrb[0].mxu0 %v2868
        %v3842 = vpop.f32.mrb[0].mxu0
        %v3843 = vadd.f32 0.0, %v3842
        %v3844 = vpop.f32.mrb[0].mxu0
        %v3845 = vpop.f32.mrb[0].mxu0
        %v3846 = vadd.f32 0.0, %v3845
        %v3847 = vpop.f32.mrb[0].mxu0
        %3848 = vmatprep.mubr.bf16.mxu0 0
        %3849 = vmatmul.mubr.bf16.gmra.mrb[0].mxu0 %v2869
        %v3850 = vpop.f32.mrb[0].mxu0
        %v3851 = vadd.f32 0.0, %v3850
        %v3852 = vpop.f32.mrb[0].mxu0
        %v3853 = vpop.f32.mrb[0].mxu0
        %v3854 = vadd.f32 0.0, %v3853
        %v3855 = vpop.f32.mrb[0].mxu0
        %3856 = vmatprep.mubr.bf16.mxu0 0
        %3857 = vmatmul.mubr.bf16.gmra.mrb[0].mxu0 %v2870
        %v3858 = vpop.f32.mrb[0].mxu0
        %v3859 = vadd.f32 0.0, %v3858
        %v3860 = vpop.f32.mrb[0].mxu0
        %v3861 = vpop.f32.mrb[0].mxu0
        %v3862 = vadd.f32 0.0, %v3861
        %v3863 = vpop.f32.mrb[0].mxu0
        %3864 = vmatprep.mubr.bf16.mxu0 0
        %3865 = vmatmul.mubr.bf16.gmra.mrb[0].mxu0 %v2871
        %v3866 = vpop.f32.mrb[0].mxu0
        %v3867 = vadd.f32 0.0, %v3866
        %v3868 = vpop.f32.mrb[0].mxu0
        %v3869 = vpop.f32.mrb[0].mxu0
        %v3870 = vadd.f32 0.0, %v3869
        %v3871 = vpop.f32.mrb[0].mxu0
        %3872 = vmatprep.mubr.bf16.mxu0 0
        %3873 = vmatmul.mubr.bf16.gmra.mrb[0].mxu0 %v2872
        %v3874 = vpop.f32.mrb[0].mxu0
        %v3875 = vadd.f32 0.0, %v3874
        %v3876 = vpop.f32.mrb[0].mxu0
        %v3877 = vpop.f32.mrb[0].mxu0
        %v3878 = vadd.f32 0.0, %v3877
        %v3879 = vpop.f32.mrb[0].mxu0
        %3880 = vmatprep.mubr.bf16.mxu0 0
        %3881 = vmatmul.mubr.bf16.gmra.mrb[0].mxu0 %v2873
        %v3882 = vpop.f32.mrb[0].mxu0
        %v3883 = vadd.f32 0.0, %v3882
        %v3884 = vpop.f32.mrb[0].mxu0
        %v3885 = vpop.f32.mrb[0].mxu0
        %v3886 = vadd.f32 0.0, %v3885
        %v3887 = vpop.f32.mrb[0].mxu0
        %3888 = vmatprep.mubr.bf16.mxu0 0
        %3889 = vmatmul.mubr.bf16.gmra.mrb[0].mxu0 %v2874
        %v3890 = vpop.f32.mrb[0].mxu0
        %v3891 = vadd.f32 0.0, %v3890
        %v3892 = vpop.f32.mrb[0].mxu0
        %v3893 = vpop.f32.mrb[0].mxu0
        %v3894 = vadd.f32 0.0, %v3893
        %v3895 = vpop.f32.mrb[0].mxu0
        %3896 = vmatprep.mubr.bf16.mxu0 0
        %3897 = vmatmul.mubr.bf16.gmra.mrb[0].mxu0 %v2875
        %v3898 = vpop.f32.mrb[0].mxu0
        %v3899 = vadd.f32 0.0, %v3898
        %v3900 = vpop.f32.mrb[0].mxu0
        %v3901 = vpop.f32.mrb[0].mxu0
        %v3902 = vadd.f32 0.0, %v3901
        %v3903 = vpop.f32.mrb[0].mxu0
        %3904 = vmatprep.mubr.bf16.mxu0 0
        %3905 = vmatmul.mubr.bf16.gmra.mrb[0].mxu0 %v2876
        %v3906 = vpop.f32.mrb[0].mxu0
        %v3907 = vadd.f32 0.0, %v3906
        %v3908 = vpop.f32.mrb[0].mxu0
        %v3909 = vpop.f32.mrb[0].mxu0
        %v3910 = vadd.f32 0.0, %v3909
        %v3911 = vpop.f32.mrb[0].mxu0
        %3912 = vmatprep.mubr.bf16.mxu0 0
        %3913 = vmatmul.mubr.bf16.gmra.mrb[0].mxu0 %v2877
        %v3914 = vpop.f32.mrb[0].mxu0
        %v3915 = vadd.f32 0.0, %v3914
        %v3916 = vpop.f32.mrb[0].mxu0
        %v3917 = vpop.f32.mrb[0].mxu0
        %v3918 = vadd.f32 0.0, %v3917
        %v3919 = vpop.f32.mrb[0].mxu0
        %3920 = vmatprep.mubr.bf16.mxu0 0
        %3921 = vmatmul.mubr.bf16.gmra.mrb[0].mxu0 %v2878
        %v3922 = vpop.f32.mrb[0].mxu0
        %v3923 = vadd.f32 0.0, %v3922
        %v3924 = vpop.f32.mrb[0].mxu0
        %v3925 = vpop.f32.mrb[0].mxu0
        %v3926 = vadd.f32 0.0, %v3925
        %v3927 = vpop.f32.mrb[0].mxu0
        %3928 = vmatprep.mubr.bf16.mxu0 0
        %3929 = vmatmul.mubr.bf16.gmra.mrb[0].mxu0 %v2879
        %v3930 = vpop.f32.mrb[0].mxu0
        %v3931 = vadd.f32 0.0, %v3930
        %v3932 = vpop.f32.mrb[0].mxu0
        %v3933 = vpop.f32.mrb[0].mxu0
        %v3934 = vadd.f32 0.0, %v3933
        %v3935 = vpop.f32.mrb[0].mxu0
        %3936 = vmatprep.mubr.bf16.mxu0 0
        %3937 = vmatmul.mubr.bf16.gmra.mrb[0].mxu0 %v2880
        %v3938 = vpop.f32.mrb[0].mxu0
        %v3939 = vadd.f32 0.0, %v3938
        %v3940 = vpop.f32.mrb[0].mxu0
        %v3941 = vpop.f32.mrb[0].mxu0
        %v3942 = vadd.f32 0.0, %v3941
        %v3943 = vpop.f32.mrb[0].mxu0
        %3944 = vmatprep.mubr.bf16.mxu0 0
        %3945 = vmatmul.mubr.bf16.gmra.mrb[0].mxu0 %v2881
        %v3946 = vpop.f32.mrb[0].mxu0
        %v3947 = vadd.f32 0.0, %v3946
        %v3948 = vpop.f32.mrb[0].mxu0
        %v3949 = vpop.f32.mrb[0].mxu0
        %v3950 = vadd.f32 0.0, %v3949
        %v3951 = vpop.f32.mrb[0].mxu0
        %3952 = vmatprep.mubr.bf16.mxu0 0
        %3953 = vmatmul.mubr.bf16.gmra.mrb[0].mxu0 %v2882
        %v3954 = vpop.f32.mrb[0].mxu0
        %v3955 = vadd.f32 0.0, %v3954
        %v3956 = vpop.f32.mrb[0].mxu0
        %v3957 = vpop.f32.mrb[0].mxu0
        %v3958 = vadd.f32 0.0, %v3957
        %v3959 = vpop.f32.mrb[0].mxu0
        %3960 = vmatprep.mubr.bf16.mxu0 0
        %3961 = vmatmul.mubr.bf16.gmra.mrb[0].mxu0 %v2883
        %v3962 = vpop.f32.mrb[0].mxu0
        %v3963 = vadd.f32 0.0, %v3962
        %v3964 = vpop.f32.mrb[0].mxu0
        %v3965 = vpop.f32.mrb[0].mxu0
        %v3966 = vadd.f32 0.0, %v3965
        %v3967 = vpop.f32.mrb[0].mxu0
        %3968 = vmatprep.mubr.bf16.mxu0 0
        %3969 = vmatmul.mubr.bf16.gmra.mrb[0].mxu0 %v2884
        %v3970 = vpop.f32.mrb[0].mxu0
        %v3971 = vadd.f32 0.0, %v3970
        %v3972 = vpop.f32.mrb[0].mxu0
        %v3973 = vpop.f32.mrb[0].mxu0
        %v3974 = vadd.f32 0.0, %v3973
        %v3975 = vpop.f32.mrb[0].mxu0
        %3976 = vmatprep.mubr.bf16.mxu0 0
        %3977 = vmatmul.mubr.bf16.gmra.mrb[0].mxu0 %v2885
        %v3978 = vpop.f32.mrb[0].mxu0
        %v3979 = vadd.f32 0.0, %v3978
        %v3980 = vpop.f32.mrb[0].mxu0
        %v3981 = vpop.f32.mrb[0].mxu0
        %v3982 = vadd.f32 0.0, %v3981
        %v3983 = vpop.f32.mrb[0].mxu0
        %3984 = vmatprep.mubr.bf16.mxu0 0
        %3985 = vmatmul.mubr.bf16.gmra.mrb[0].mxu0 %v2886
        %v3986 = vpop.f32.mrb[0].mxu0
        %v3987 = vadd.f32 0.0, %v3986
        %v3988 = vpop.f32.mrb[0].mxu0
        %v3989 = vpop.f32.mrb[0].mxu0
        %v3990 = vadd.f32 0.0, %v3989
        %v3991 = vpop.f32.mrb[0].mxu0
        %3992 = vmatprep.mubr.bf16.mxu0 0
        %3993 = vmatmul.mubr.bf16.gmra.mrb[0].mxu0 %v2887
        %v3994 = vpop.f32.mrb[0].mxu0
        %v3995 = vadd.f32 0.0, %v3994
        %v3996 = vpop.f32.mrb[0].mxu0
        %v3997 = vpop.f32.mrb[0].mxu0
        %v3998 = vadd.f32 0.0, %v3997
        %v3999 = vpop.f32.mrb[0].mxu0
        %4000 = vmatprep.mubr.bf16.mxu0 0
        %4001 = vmatmul.mubr.bf16.gmra.mrb[0].mxu0 %v2888
        %v4002 = vpop.f32.mrb[0].mxu0
        %v4003 = vadd.f32 0.0, %v4002
        %v4004 = vpop.f32.mrb[0].mxu0
        %v4005 = vpop.f32.mrb[0].mxu0
        %v4006 = vadd.f32 0.0, %v4005
        %v4007 = vpop.f32.mrb[0].mxu0
        %4008 = vmatprep.mubr.bf16.mxu0 0
        %4009 = vmatmul.mubr.bf16.gmra.mrb[0].mxu0 %v2889
        %v4010 = vpop.f32.mrb[0].mxu0
        %v4011 = vadd.f32 0.0, %v4010
        %v4012 = vpop.f32.mrb[0].mxu0
        %v4013 = vpop.f32.mrb[0].mxu0
        %v4014 = vadd.f32 0.0, %v4013
        %v4015 = vpop.f32.mrb[0].mxu0
        %4016 = vmatprep.mubr.bf16.mxu0 0
        %4017 = vmatmul.mubr.bf16.gmra.mrb[0].mxu0 %v2890
        %v4018 = vpop.f32.mrb[0].mxu0
        %v4019 = vadd.f32 0.0, %v4018
        %v4020 = vpop.f32.mrb[0].mxu0
        %v4021 = vpop.f32.mrb[0].mxu0
        %v4022 = vadd.f32 0.0, %v4021
        %v4023 = vpop.f32.mrb[0].mxu0
        %4024 = vmatprep.mubr.bf16.mxu0 0
        %4025 = vmatmul.mubr.bf16.gmra.mrb[0].mxu0 %v2891
        %v4026 = vpop.f32.mrb[0].mxu0
        %v4027 = vadd.f32 0.0, %v4026
        %v4028 = vpop.f32.mrb[0].mxu0
        %v4029 = vpop.f32.mrb[0].mxu0
        %v4030 = vadd.f32 0.0, %v4029
        %v4031 = vpop.f32.mrb[0].mxu0
        %4032 = vmatprep.mubr.bf16.mxu0 0
        %4033 = vmatmul.mubr.bf16.gmra.mrb[0].mxu0 %v2892
        %v4034 = vpop.f32.mrb[0].mxu0
        %v4035 = vadd.f32 0.0, %v4034
        %v4036 = vpop.f32.mrb[0].mxu0
        %v4037 = vpop.f32.mrb[0].mxu0
        %v4038 = vadd.f32 0.0, %v4037
        %v4039 = vpop.f32.mrb[0].mxu0
        %4040 = vmatprep.mubr.bf16.mxu0 0
        %4041 = vmatmul.mubr.bf16.gmra.mrb[0].mxu0 %v2893
        %v4042 = vpop.f32.mrb[0].mxu0
        %v4043 = vadd.f32 0.0, %v4042
        %v4044 = vpop.f32.mrb[0].mxu0
        %v4045 = vpop.f32.mrb[0].mxu0
        %v4046 = vadd.f32 0.0, %v4045
        %v4047 = vpop.f32.mrb[0].mxu0
        %4048 = vmatprep.mubr.bf16.mxu0 0
        %4049 = vmatmul.mubr.bf16.gmra.mrb[0].mxu0 %v2894
        %v4050 = vpop.f32.mrb[0].mxu0
        %v4051 = vadd.f32 0.0, %v4050
        %v4052 = vpop.f32.mrb[0].mxu0
        %v4053 = vpop.f32.mrb[0].mxu0
        %v4054 = vadd.f32 0.0, %v4053
        %v4055 = vpop.f32.mrb[0].mxu0
        %4056 = vmatprep.mubr.bf16.mxu0 0
        %4057 = vmatmul.mubr.bf16.gmra.mrb[0].mxu0 %v2895
        %v4058 = vpop.f32.mrb[0].mxu0
        %v4059 = vadd.f32 0.0, %v4058
        %v4060 = vpop.f32.mrb[0].mxu0
        %v4061 = vpop.f32.mrb[0].mxu0
        %v4062 = vadd.f32 0.0, %v4061
        %v4063 = vpop.f32.mrb[0].mxu0
        %4064 = vmatprep.mubr.bf16.mxu0 0
        %4065 = vmatmul.mubr.bf16.gmra.mrb[0].mxu0 %v2896
        %v4066 = vpop.f32.mrb[0].mxu0
        %v4067 = vadd.f32 0.0, %v4066
        %v4068 = vpop.f32.mrb[0].mxu0
        %v4069 = vpop.f32.mrb[0].mxu0
        %v4070 = vadd.f32 0.0, %v4069
        %v4071 = vpop.f32.mrb[0].mxu0
        %4072 = vmatprep.mubr.bf16.mxu0 0
        %4073 = vmatmul.mubr.bf16.gmra.mrb[0].mxu0 %v2897
        %v4074 = vpop.f32.mrb[0].mxu0
        %v4075 = vadd.f32 0.0, %v4074
        %v4076 = vpop.f32.mrb[0].mxu0
        %v4077 = vpop.f32.mrb[0].mxu0
        %v4078 = vadd.f32 0.0, %v4077
        %v4079 = vpop.f32.mrb[0].mxu0
        %4080 = vmatprep.mubr.bf16.mxu0 0
        %4081 = vmatmul.mubr.bf16.gmra.mrb[0].mxu0 %v2898
        %v4082 = vpop.f32.mrb[0].mxu0
        %v4083 = vadd.f32 0.0, %v4082
        %v4084 = vpop.f32.mrb[0].mxu0
        %v4085 = vpop.f32.mrb[0].mxu0
        %v4086 = vadd.f32 0.0, %v4085
        %v4087 = vpop.f32.mrb[0].mxu0
        %4088 = vdwg.mxu0
        %v4089 = vadd.f32 %v2485, %v3835
        %v4090 = vadd.f32 %v2488, %v3838
        %v4091 = vadd.f32 %v2493, %v3843
        %v4092 = vadd.f32 %v2496, %v3846
        %v4093 = vadd.f32 %v2501, %v3851
        %v4094 = vadd.f32 %v2504, %v3854
        %v4095 = vadd.f32 %v2509, %v3859
        %v4096 = vadd.f32 %v2512, %v3862
        %v4097 = vadd.f32 %v2517, %v3867
        %v4098 = vadd.f32 %v2520, %v3870
        %v4099 = vadd.f32 %v2525, %v3875
        %v4100 = vadd.f32 %v2528, %v3878
        %v4101 = vadd.f32 %v2533, %v3883
        %v4102 = vadd.f32 %v2536, %v3886
        %v4103 = vadd.f32 %v2541, %v3891
        %v4104 = vadd.f32 %v2544, %v3894
        %v4105 = vadd.f32 %v2549, %v3899
        %v4106 = vadd.f32 %v2552, %v3902
        %v4107 = vadd.f32 %v2557, %v3907
        %v4108 = vadd.f32 %v2560, %v3910
        %v4109 = vadd.f32 %v2565, %v3915
        %v4110 = vadd.f32 %v2568, %v3918
        %v4111 = vadd.f32 %v2573, %v3923
        %v4112 = vadd.f32 %v2576, %v3926
        %v4113 = vadd.f32 %v2581, %v3931
        %v4114 = vadd.f32 %v2584, %v3934
        %v4115 = vadd.f32 %v2589, %v3939
        %v4116 = vadd.f32 %v2592, %v3942
        %v4117 = vadd.f32 %v2597, %v3947
        %v4118 = vadd.f32 %v2600, %v3950
        %v4119 = vadd.f32 %v2605, %v3955
        %v4120 = vadd.f32 %v2608, %v3958
        %v4121 = vadd.f32 %v2613, %v3963
        %v4122 = vadd.f32 %v2616, %v3966
        %v4123 = vadd.f32 %v2621, %v3971
        %v4124 = vadd.f32 %v2624, %v3974
        %v4125 = vadd.f32 %v2629, %v3979
        %v4126 = vadd.f32 %v2632, %v3982
        %v4127 = vadd.f32 %v2637, %v3987
        %v4128 = vadd.f32 %v2640, %v3990
        %v4129 = vadd.f32 %v2645, %v3995
        %v4130 = vadd.f32 %v2648, %v3998
        %v4131 = vadd.f32 %v2653, %v4003
        %v4132 = vadd.f32 %v2656, %v4006
        %v4133 = vadd.f32 %v2661, %v4011
        %v4134 = vadd.f32 %v2664, %v4014
        %v4135 = vadd.f32 %v2669, %v4019
        %v4136 = vadd.f32 %v2672, %v4022
        %v4137 = vadd.f32 %v2677, %v4027
        %v4138 = vadd.f32 %v2680, %v4030
        %v4139 = vadd.f32 %v2685, %v4035
        %v4140 = vadd.f32 %v2688, %v4038
        %v4141 = vadd.f32 %v2693, %v4043
        %v4142 = vadd.f32 %v2696, %v4046
        %v4143 = vadd.f32 %v2701, %v4051
        %v4144 = vadd.f32 %v2704, %v4054
        %v4145 = vadd.f32 %v2709, %v4059
        %v4146 = vadd.f32 %v2712, %v4062
        %v4147 = vadd.f32 %v2717, %v4067
        %v4148 = vadd.f32 %v2720, %v4070
        %v4149 = vadd.f32 %v2725, %v4075
        %v4150 = vadd.f32 %v2728, %v4078
        %v4151 = vadd.f32 %v2733, %v4083
        %v4152 = vadd.f32 %v2736, %v4086
        %v4153 = vrot.slane %v2865, 1
        %v4154 = vrot.slane %v2864, 1
        %v4155 = vrot.slane %v2863, 1
        %v4156 = vrot.slane %v2862, 1
        %v4157 = vrot.slane %v2861, 1
        %v4158 = vrot.slane %v2860, 1
        %v4159 = vrot.slane %v2859, 1
        %v4160 = vrot.slane %v2858, 1
        %v4161 = vrot.slane %v2857, 1
        %v4162 = vrot.slane %v2856, 1
        %v4163 = vrot.slane %v2855, 1
        %v4164 = vrot.slane %v2854, 1
        %v4165 = vrot.slane %v2853, 1
        %v4166 = vrot.slane %v2852, 1
        %v4167 = vrot.slane %v2851, 1
        %v4168 = vrot.slane %v2850, 1
        %v4169 = vrot.slane %v2849, 1
        %v4170 = vrot.slane %v2848, 1
        %v4171 = vrot.slane %v2847, 1
        %v4172 = vrot.slane %v2846, 1
        %v4173 = vrot.slane %v2845, 1
        %v4174 = vrot.slane %v2844, 1
        %v4175 = vrot.slane %v2843, 1
        %v4176 = vrot.slane %v2842, 1
        %v4177 = vrot.slane %v2841, 1
        %v4178 = vrot.slane %v2840, 1
        %v4179 = vrot.slane %v2839, 1
        %v4180 = vrot.slane %v2838, 1
        %v4181 = vrot.slane %v2837, 1
        %v4182 = vrot.slane %v2836, 1
        %v4183 = vrot.slane %v2835, 1
        %v4184 = vrot.slane %v2834, 1
        %v4185 = vrot.slane %v2833, 1
        %v4186 = vrot.slane %v2832, 1
        %v4187 = vrot.slane %v2831, 1
        %v4188 = vrot.slane %v2830, 1
        %v4189 = vrot.slane %v2829, 1
        %v4190 = vrot.slane %v2828, 1
        %v4191 = vrot.slane %v2827, 1
        %v4192 = vrot.slane %v2826, 1
        %v4193 = vrot.slane %v2825, 1
        %v4194 = vrot.slane %v2824, 1
        %v4195 = vrot.slane %v2823, 1
        %v4196 = vrot.slane %v2822, 1
        %v4197 = vrot.slane %v2821, 1
        %v4198 = vrot.slane %v2820, 1
        %v4199 = vrot.slane %v2819, 1
        %v4200 = vrot.slane %v2818, 1
        %v4201 = vrot.slane %v2817, 1
        %v4202 = vrot.slane %v2816, 1
        %v4203 = vrot.slane %v2815, 1
        %v4204 = vrot.slane %v2814, 1
        %v4205 = vrot.slane %v2813, 1
        %v4206 = vrot.slane %v2812, 1
        %v4207 = vrot.slane %v2811, 1
        %v4208 = vrot.slane %v2810, 1
        %v4209 = vrot.slane %v2809, 1
        %v4210 = vrot.slane %v2808, 1
        %v4211 = vrot.slane %v2807, 1
        %v4212 = vrot.slane %v2806, 1
        %v4213 = vrot.slane %v2805, 1
        %v4214 = vrot.slane %v2804, 1
        %v4215 = vrot.slane %v2803, 1
        %v4216 = vrot.slane %v2866, 1
        %v4217 = vsel %vm569, %v4215, %v4216
        %v4218 = vsel %vm569, %v4214, %v4215
        %v4219 = vsel %vm569, %v4213, %v4214
        %v4220 = vsel %vm569, %v4212, %v4213
        %v4221 = vsel %vm569, %v4211, %v4212
        %v4222 = vsel %vm569, %v4210, %v4211
        %v4223 = vsel %vm569, %v4209, %v4210
        %v4224 = vsel %vm569, %v4208, %v4209
        %v4225 = vsel %vm569, %v4207, %v4208
        %v4226 = vsel %vm569, %v4206, %v4207
        %v4227 = vsel %vm569, %v4205, %v4206
        %v4228 = vsel %vm569, %v4204, %v4205
        %v4229 = vsel %vm569, %v4203, %v4204
        %v4230 = vsel %vm569, %v4202, %v4203
        %v4231 = vsel %vm569, %v4201, %v4202
        %v4232 = vsel %vm569, %v4200, %v4201
        %v4233 = vsel %vm569, %v4199, %v4200
        %v4234 = vsel %vm569, %v4198, %v4199
        %v4235 = vsel %vm569, %v4197, %v4198
        %v4236 = vsel %vm569, %v4196, %v4197
        %v4237 = vsel %vm569, %v4195, %v4196
        %v4238 = vsel %vm569, %v4194, %v4195
        %v4239 = vsel %vm569, %v4193, %v4194
        %v4240 = vsel %vm569, %v4192, %v4193
        %v4241 = vsel %vm569, %v4191, %v4192
        %v4242 = vsel %vm569, %v4190, %v4191
        %v4243 = vsel %vm569, %v4189, %v4190
        %v4244 = vsel %vm569, %v4188, %v4189
        %v4245 = vsel %vm569, %v4187, %v4188
        %v4246 = vsel %vm569, %v4186, %v4187
        %v4247 = vsel %vm569, %v4185, %v4186
        %v4248 = vsel %vm569, %v4184, %v4185
        %v4249 = vsel %vm569, %v4183, %v4184
        %v4250 = vsel %vm569, %v4182, %v4183
        %v4251 = vsel %vm569, %v4181, %v4182
        %v4252 = vsel %vm569, %v4180, %v4181
        %v4253 = vsel %vm569, %v4179, %v4180
        %v4254 = vsel %vm569, %v4178, %v4179
        %v4255 = vsel %vm569, %v4177, %v4178
        %v4256 = vsel %vm569, %v4176, %v4177
        %v4257 = vsel %vm569, %v4175, %v4176
        %v4258 = vsel %vm569, %v4174, %v4175
        %v4259 = vsel %vm569, %v4173, %v4174
        %v4260 = vsel %vm569, %v4172, %v4173
        %v4261 = vsel %vm569, %v4171, %v4172
        %v4262 = vsel %vm569, %v4170, %v4171
        %v4263 = vsel %vm569, %v4169, %v4170
        %v4264 = vsel %vm569, %v4168, %v4169
        %v4265 = vsel %vm569, %v4167, %v4168
        %v4266 = vsel %vm569, %v4166, %v4167
        %v4267 = vsel %vm569, %v4165, %v4166
        %v4268 = vsel %vm569, %v4164, %v4165
        %v4269 = vsel %vm569, %v4163, %v4164
        %v4270 = vsel %vm569, %v4162, %v4163
        %v4271 = vsel %vm569, %v4161, %v4162
        %v4272 = vsel %vm569, %v4160, %v4161
        %v4273 = vsel %vm569, %v4159, %v4160
        %v4274 = vsel %vm569, %v4158, %v4159
        %v4275 = vsel %vm569, %v4157, %v4158
        %v4276 = vsel %vm569, %v4156, %v4157
        %v4277 = vsel %vm569, %v4155, %v4156
        %v4278 = vsel %vm569, %v4154, %v4155
        %v4279 = vsel %vm569, %v4153, %v4154
        %v4280 = vsel %vm569, %v4216, %v4153
        %v4281 = vpack.c.bf16 %v4278, %v4279
        %v4282 = vpack.c.bf16 %v4276, %v4277
        %v4283 = vpack.c.bf16 %v4274, %v4275
        %v4284 = vpack.c.bf16 %v4272, %v4273
        %v4285 = vpack.c.bf16 %v4270, %v4271
        %v4286 = vpack.c.bf16 %v4268, %v4269
        %v4287 = vpack.c.bf16 %v4266, %v4267
        %v4288 = vpack.c.bf16 %v4264, %v4265
        %v4289 = vpack.c.bf16 %v4262, %v4263
        %v4290 = vpack.c.bf16 %v4260, %v4261
        %v4291 = vpack.c.bf16 %v4258, %v4259
        %v4292 = vpack.c.bf16 %v4256, %v4257
        %v4293 = vpack.c.bf16 %v4254, %v4255
        %v4294 = vpack.c.bf16 %v4252, %v4253
        %v4295 = vpack.c.bf16 %v4250, %v4251
        %v4296 = vpack.c.bf16 %v4248, %v4249
        %v4297 = vpack.c.bf16 %v4246, %v4247
        %v4298 = vpack.c.bf16 %v4244, %v4245
        %v4299 = vpack.c.bf16 %v4242, %v4243
        %v4300 = vpack.c.bf16 %v4240, %v4241
        %v4301 = vpack.c.bf16 %v4238, %v4239
        %v4302 = vpack.c.bf16 %v4236, %v4237
        %v4303 = vpack.c.bf16 %v4234, %v4235
        %v4304 = vpack.c.bf16 %v4232, %v4233
        %v4305 = vpack.c.bf16 %v4230, %v4231
        %v4306 = vpack.c.bf16 %v4228, %v4229
        %v4307 = vpack.c.bf16 %v4226, %v4227
        %v4308 = vpack.c.bf16 %v4224, %v4225
        %v4309 = vpack.c.bf16 %v4222, %v4223
        %v4310 = vpack.c.bf16 %v4220, %v4221
        %v4311 = vpack.c.bf16 %v4218, %v4219
        %v4312 = vpack.c.bf16 %v4280, %v4217
        %s4313 = scalar_lea.vmem [#allocation5], 192
        %v4314 = vld [vmem:[%s4313] sm:$0xf]
        %v4315 = vld [vmem:[%s4313 + $0x4] sm:$0xf]
        %v4316 = vld [vmem:[%s4313 + $0x8] sm:$0xf]
        %v4317 = vld [vmem:[%s4313 + $0xc] sm:$0xf]
        %v4318 = vld [vmem:[%s4313 + $0x10] sm:$0xf]
        %v4319 = vld [vmem:[%s4313 + $0x14] sm:$0xf]
        %v4320 = vld [vmem:[%s4313 + $0x18] sm:$0xf]
        %v4321 = vld [vmem:[%s4313 + $0x1c] sm:$0xf]
        %v4322 = vld [vmem:[%s4313 + $0x20] sm:$0xf]
        %v4323 = vld [vmem:[%s4313 + $0x24] sm:$0xf]
        %v4324 = vld [vmem:[%s4313 + $0x28] sm:$0xf]
        %v4325 = vld [vmem:[%s4313 + $0x2c] sm:$0xf]
        %v4326 = vld [vmem:[%s4313 + $0x30] sm:$0xf]
        %v4327 = vld [vmem:[%s4313 + $0x34] sm:$0xf]
        %v4328 = vld [vmem:[%s4313 + $0x38] sm:$0xf]
        %v4329 = vld [vmem:[%s4313 + $0x3c] sm:$0xf]
        %v4346 = vunpack.c.l.b16 %v4314
        %v4347 = vunpack.c.l.b16 %v4315
        %v4348 = vunpack.c.l.b16 %v4316
        %v4349 = vunpack.c.l.b16 %v4317
        %v4350 = vunpack.c.l.b16 %v4318
        %v4351 = vunpack.c.l.b16 %v4319
        %v4352 = vunpack.c.l.b16 %v4320
        %v4353 = vunpack.c.l.b16 %v4321
        %v4354 = vunpack.c.l.b16 %v4322
        %v4355 = vunpack.c.l.b16 %v4323
        %v4356 = vunpack.c.l.b16 %v4324
        %v4357 = vunpack.c.l.b16 %v4325
        %v4358 = vunpack.c.l.b16 %v4326
        %v4359 = vunpack.c.l.b16 %v4327
        %v4360 = vunpack.c.l.b16 %v4328
        %v4361 = vunpack.c.l.b16 %v4329
        %v4362 = vpack.c.b16 %v4347, %v4346
        %v4363 = vpack.c.b16 %v4349, %v4348
        %v4364 = vpack.c.b16 %v4351, %v4350
        %v4365 = vpack.c.b16 %v4353, %v4352
        %v4366 = vpack.c.b16 %v4355, %v4354
        %v4367 = vpack.c.b16 %v4357, %v4356
        %v4368 = vpack.c.b16 %v4359, %v4358
        %v4369 = vpack.c.b16 %v4361, %v4360
        %4378 = vmatprep.subr.bf16.mxu0 0
        %4379 = vmatpush1.bf16.msra.mxu0 %v4362
        %4380 = vmatprep.subr.bf16.mxu0 0
        %4381 = vmatpush1.bf16.msra.mxu0 %v4363
        %4382 = vmatprep.subr.bf16.mxu0 0
        %4383 = vmatpush1.bf16.msra.mxu0 %v4364
        %4384 = vmatprep.subr.bf16.mxu0 0
        %4385 = vmatpush1.bf16.msra.mxu0 %v4365
        %4386 = vmatprep.subr.bf16.mxu0 0
        %4387 = vmatpush1.bf16.msra.mxu0 %v4366
        %4388 = vmatprep.subr.bf16.mxu0 0
        %4389 = vmatpush1.bf16.msra.mxu0 %v4367
        %4390 = vmatprep.subr.bf16.mxu0 0
        %4391 = vmatpush1.bf16.msra.mxu0 %v4368
        %4392 = vmatprep.subr.bf16.mxu0 0
        %4393 = vmatpush1.bf16.msra.mxu0 %v4369
        %4394 = vmatprep.subr.bf16.mxu0 0
        %4395 = vmatpush1.bf16.msra.mxu0 0
        %4396 = vmatprep.subr.bf16.mxu0 0
        %4397 = vmatpush1.bf16.msra.mxu0 0
        %4398 = vmatprep.subr.bf16.mxu0 0
        %4399 = vmatpush1.bf16.msra.mxu0 0
        %4400 = vmatprep.subr.bf16.mxu0 0
        %4401 = vmatpush1.bf16.msra.mxu0 0
        %4402 = vmatprep.subr.bf16.mxu0 0
        %4403 = vmatpush1.bf16.msra.mxu0 0
        %4404 = vmatprep.subr.bf16.mxu0 0
        %4405 = vmatpush1.bf16.msra.mxu0 0
        %4406 = vmatprep.subr.bf16.mxu0 0
        %4407 = vmatpush1.bf16.msra.mxu0 0
        %4408 = vmatprep.subr.bf16.mxu0 0
        %4409 = vmatpush1.bf16.msra.mxu0 0
        %4410 = vmatprep.mubr.bf16.mxu0 0
        %4411 = vmatmul.mubr.bf16.gmra.mrb[0].mxu0 %v4281
        %v4412 = vpop.f32.mrb[0].mxu0
        %v4413 = vadd.f32 0.0, %v4412
        %v4414 = vpop.f32.mrb[0].mxu0
        %v4415 = vpop.f32.mrb[0].mxu0
        %v4416 = vadd.f32 0.0, %v4415
        %v4417 = vpop.f32.mrb[0].mxu0
        %4418 = vmatprep.mubr.bf16.mxu0 0
        %4419 = vmatmul.mubr.bf16.gmra.mrb[0].mxu0 %v4282
        %v4420 = vpop.f32.mrb[0].mxu0
        %v4421 = vadd.f32 0.0, %v4420
        %v4422 = vpop.f32.mrb[0].mxu0
        %v4423 = vpop.f32.mrb[0].mxu0
        %v4424 = vadd.f32 0.0, %v4423
        %v4425 = vpop.f32.mrb[0].mxu0
        %4426 = vmatprep.mubr.bf16.mxu0 0
        %4427 = vmatmul.mubr.bf16.gmra.mrb[0].mxu0 %v4283
        %v4428 = vpop.f32.mrb[0].mxu0
        %v4429 = vadd.f32 0.0, %v4428
        %v4430 = vpop.f32.mrb[0].mxu0
        %v4431 = vpop.f32.mrb[0].mxu0
        %v4432 = vadd.f32 0.0, %v4431
        %v4433 = vpop.f32.mrb[0].mxu0
        %4434 = vmatprep.mubr.bf16.mxu0 0
        %4435 = vmatmul.mubr.bf16.gmra.mrb[0].mxu0 %v4284
        %v4436 = vpop.f32.mrb[0].mxu0
        %v4437 = vadd.f32 0.0, %v4436
        %v4438 = vpop.f32.mrb[0].mxu0
        %v4439 = vpop.f32.mrb[0].mxu0
        %v4440 = vadd.f32 0.0, %v4439
        %v4441 = vpop.f32.mrb[0].mxu0
        %4442 = vmatprep.mubr.bf16.mxu0 0
        %4443 = vmatmul.mubr.bf16.gmra.mrb[0].mxu0 %v4285
        %v4444 = vpop.f32.mrb[0].mxu0
        %v4445 = vadd.f32 0.0, %v4444
        %v4446 = vpop.f32.mrb[0].mxu0
        %v4447 = vpop.f32.mrb[0].mxu0
        %v4448 = vadd.f32 0.0, %v4447
        %v4449 = vpop.f32.mrb[0].mxu0
        %4450 = vmatprep.mubr.bf16.mxu0 0
        %4451 = vmatmul.mubr.bf16.gmra.mrb[0].mxu0 %v4286
        %v4452 = vpop.f32.mrb[0].mxu0
        %v4453 = vadd.f32 0.0, %v4452
        %v4454 = vpop.f32.mrb[0].mxu0
        %v4455 = vpop.f32.mrb[0].mxu0
        %v4456 = vadd.f32 0.0, %v4455
        %v4457 = vpop.f32.mrb[0].mxu0
        %4458 = vmatprep.mubr.bf16.mxu0 0
        %4459 = vmatmul.mubr.bf16.gmra.mrb[0].mxu0 %v4287
        %v4460 = vpop.f32.mrb[0].mxu0
        %v4461 = vadd.f32 0.0, %v4460
        %v4462 = vpop.f32.mrb[0].mxu0
        %v4463 = vpop.f32.mrb[0].mxu0
        %v4464 = vadd.f32 0.0, %v4463
        %v4465 = vpop.f32.mrb[0].mxu0
        %4466 = vmatprep.mubr.bf16.mxu0 0
        %4467 = vmatmul.mubr.bf16.gmra.mrb[0].mxu0 %v4288
        %v4468 = vpop.f32.mrb[0].mxu0
        %v4469 = vadd.f32 0.0, %v4468
        %v4470 = vpop.f32.mrb[0].mxu0
        %v4471 = vpop.f32.mrb[0].mxu0
        %v4472 = vadd.f32 0.0, %v4471
        %v4473 = vpop.f32.mrb[0].mxu0
        %4474 = vmatprep.mubr.bf16.mxu0 0
        %4475 = vmatmul.mubr.bf16.gmra.mrb[0].mxu0 %v4289
        %v4476 = vpop.f32.mrb[0].mxu0
        %v4477 = vadd.f32 0.0, %v4476
        %v4478 = vpop.f32.mrb[0].mxu0
        %v4479 = vpop.f32.mrb[0].mxu0
        %v4480 = vadd.f32 0.0, %v4479
        %v4481 = vpop.f32.mrb[0].mxu0
        %4482 = vmatprep.mubr.bf16.mxu0 0
        %4483 = vmatmul.mubr.bf16.gmra.mrb[0].mxu0 %v4290
        %v4484 = vpop.f32.mrb[0].mxu0
        %v4485 = vadd.f32 0.0, %v4484
        %v4486 = vpop.f32.mrb[0].mxu0
        %v4487 = vpop.f32.mrb[0].mxu0
        %v4488 = vadd.f32 0.0, %v4487
        %v4489 = vpop.f32.mrb[0].mxu0
        %4490 = vmatprep.mubr.bf16.mxu0 0
        %4491 = vmatmul.mubr.bf16.gmra.mrb[0].mxu0 %v4291
        %v4492 = vpop.f32.mrb[0].mxu0
        %v4493 = vadd.f32 0.0, %v4492
        %v4494 = vpop.f32.mrb[0].mxu0
        %v4495 = vpop.f32.mrb[0].mxu0
        %v4496 = vadd.f32 0.0, %v4495
        %v4497 = vpop.f32.mrb[0].mxu0
        %4498 = vmatprep.mubr.bf16.mxu0 0
        %4499 = vmatmul.mubr.bf16.gmra.mrb[0].mxu0 %v4292
        %v4500 = vpop.f32.mrb[0].mxu0
        %v4501 = vadd.f32 0.0, %v4500
        %v4502 = vpop.f32.mrb[0].mxu0
        %v4503 = vpop.f32.mrb[0].mxu0
        %v4504 = vadd.f32 0.0, %v4503
        %v4505 = vpop.f32.mrb[0].mxu0
        %4506 = vmatprep.mubr.bf16.mxu0 0
        %4507 = vmatmul.mubr.bf16.gmra.mrb[0].mxu0 %v4293
        %v4508 = vpop.f32.mrb[0].mxu0
        %v4509 = vadd.f32 0.0, %v4508
        %v4510 = vpop.f32.mrb[0].mxu0
        %v4511 = vpop.f32.mrb[0].mxu0
        %v4512 = vadd.f32 0.0, %v4511
        %v4513 = vpop.f32.mrb[0].mxu0
        %4514 = vmatprep.mubr.bf16.mxu0 0
        %4515 = vmatmul.mubr.bf16.gmra.mrb[0].mxu0 %v4294
        %v4516 = vpop.f32.mrb[0].mxu0
        %v4517 = vadd.f32 0.0, %v4516
        %v4518 = vpop.f32.mrb[0].mxu0
        %v4519 = vpop.f32.mrb[0].mxu0
        %v4520 = vadd.f32 0.0, %v4519
        %v4521 = vpop.f32.mrb[0].mxu0
        %4522 = vmatprep.mubr.bf16.mxu0 0
        %4523 = vmatmul.mubr.bf16.gmra.mrb[0].mxu0 %v4295
        %v4524 = vpop.f32.mrb[0].mxu0
        %v4525 = vadd.f32 0.0, %v4524
        %v4526 = vpop.f32.mrb[0].mxu0
        %v4527 = vpop.f32.mrb[0].mxu0
        %v4528 = vadd.f32 0.0, %v4527
        %v4529 = vpop.f32.mrb[0].mxu0
        %4530 = vmatprep.mubr.bf16.mxu0 0
        %4531 = vmatmul.mubr.bf16.gmra.mrb[0].mxu0 %v4296
        %v4532 = vpop.f32.mrb[0].mxu0
        %v4533 = vadd.f32 0.0, %v4532
        %v4534 = vpop.f32.mrb[0].mxu0
        %v4535 = vpop.f32.mrb[0].mxu0
        %v4536 = vadd.f32 0.0, %v4535
        %v4537 = vpop.f32.mrb[0].mxu0
        %4538 = vmatprep.mubr.bf16.mxu0 0
        %4539 = vmatmul.mubr.bf16.gmra.mrb[0].mxu0 %v4297
        %v4540 = vpop.f32.mrb[0].mxu0
        %v4541 = vadd.f32 0.0, %v4540
        %v4542 = vpop.f32.mrb[0].mxu0
        %v4543 = vpop.f32.mrb[0].mxu0
        %v4544 = vadd.f32 0.0, %v4543
        %v4545 = vpop.f32.mrb[0].mxu0
        %4546 = vmatprep.mubr.bf16.mxu0 0
        %4547 = vmatmul.mubr.bf16.gmra.mrb[0].mxu0 %v4298
        %v4548 = vpop.f32.mrb[0].mxu0
        %v4549 = vadd.f32 0.0, %v4548
        %v4550 = vpop.f32.mrb[0].mxu0
        %v4551 = vpop.f32.mrb[0].mxu0
        %v4552 = vadd.f32 0.0, %v4551
        %v4553 = vpop.f32.mrb[0].mxu0
        %4554 = vmatprep.mubr.bf16.mxu0 0
        %4555 = vmatmul.mubr.bf16.gmra.mrb[0].mxu0 %v4299
        %v4556 = vpop.f32.mrb[0].mxu0
        %v4557 = vadd.f32 0.0, %v4556
        %v4558 = vpop.f32.mrb[0].mxu0
        %v4559 = vpop.f32.mrb[0].mxu0
        %v4560 = vadd.f32 0.0, %v4559
        %v4561 = vpop.f32.mrb[0].mxu0
        %4562 = vmatprep.mubr.bf16.mxu0 0
        %4563 = vmatmul.mubr.bf16.gmra.mrb[0].mxu0 %v4300
        %v4564 = vpop.f32.mrb[0].mxu0
        %v4565 = vadd.f32 0.0, %v4564
        %v4566 = vpop.f32.mrb[0].mxu0
        %v4567 = vpop.f32.mrb[0].mxu0
        %v4568 = vadd.f32 0.0, %v4567
        %v4569 = vpop.f32.mrb[0].mxu0
        %4570 = vmatprep.mubr.bf16.mxu0 0
        %4571 = vmatmul.mubr.bf16.gmra.mrb[0].mxu0 %v4301
        %v4572 = vpop.f32.mrb[0].mxu0
        %v4573 = vadd.f32 0.0, %v4572
        %v4574 = vpop.f32.mrb[0].mxu0
        %v4575 = vpop.f32.mrb[0].mxu0
        %v4576 = vadd.f32 0.0, %v4575
        %v4577 = vpop.f32.mrb[0].mxu0
        %4578 = vmatprep.mubr.bf16.mxu0 0
        %4579 = vmatmul.mubr.bf16.gmra.mrb[0].mxu0 %v4302
        %v4580 = vpop.f32.mrb[0].mxu0
        %v4581 = vadd.f32 0.0, %v4580
        %v4582 = vpop.f32.mrb[0].mxu0
        %v4583 = vpop.f32.mrb[0].mxu0
        %v4584 = vadd.f32 0.0, %v4583
        %v4585 = vpop.f32.mrb[0].mxu0
        %4586 = vmatprep.mubr.bf16.mxu0 0
        %4587 = vmatmul.mubr.bf16.gmra.mrb[0].mxu0 %v4303
        %v4588 = vpop.f32.mrb[0].mxu0
        %v4589 = vadd.f32 0.0, %v4588
        %v4590 = vpop.f32.mrb[0].mxu0
        %v4591 = vpop.f32.mrb[0].mxu0
        %v4592 = vadd.f32 0.0, %v4591
        %v4593 = vpop.f32.mrb[0].mxu0
        %4594 = vmatprep.mubr.bf16.mxu0 0
        %4595 = vmatmul.mubr.bf16.gmra.mrb[0].mxu0 %v4304
        %v4596 = vpop.f32.mrb[0].mxu0
        %v4597 = vadd.f32 0.0, %v4596
        %v4598 = vpop.f32.mrb[0].mxu0
        %v4599 = vpop.f32.mrb[0].mxu0
        %v4600 = vadd.f32 0.0, %v4599
        %v4601 = vpop.f32.mrb[0].mxu0
        %4602 = vmatprep.mubr.bf16.mxu0 0
        %4603 = vmatmul.mubr.bf16.gmra.mrb[0].mxu0 %v4305
        %v4604 = vpop.f32.mrb[0].mxu0
        %v4605 = vadd.f32 0.0, %v4604
        %v4606 = vpop.f32.mrb[0].mxu0
        %v4607 = vpop.f32.mrb[0].mxu0
        %v4608 = vadd.f32 0.0, %v4607
        %v4609 = vpop.f32.mrb[0].mxu0
        %4610 = vmatprep.mubr.bf16.mxu0 0
        %4611 = vmatmul.mubr.bf16.gmra.mrb[0].mxu0 %v4306
        %v4612 = vpop.f32.mrb[0].mxu0
        %v4613 = vadd.f32 0.0, %v4612
        %v4614 = vpop.f32.mrb[0].mxu0
        %v4615 = vpop.f32.mrb[0].mxu0
        %v4616 = vadd.f32 0.0, %v4615
        %v4617 = vpop.f32.mrb[0].mxu0
        %4618 = vmatprep.mubr.bf16.mxu0 0
        %4619 = vmatmul.mubr.bf16.gmra.mrb[0].mxu0 %v4307
        %v4620 = vpop.f32.mrb[0].mxu0
        %v4621 = vadd.f32 0.0, %v4620
        %v4622 = vpop.f32.mrb[0].mxu0
        %v4623 = vpop.f32.mrb[0].mxu0
        %v4624 = vadd.f32 0.0, %v4623
        %v4625 = vpop.f32.mrb[0].mxu0
        %4626 = vmatprep.mubr.bf16.mxu0 0
        %4627 = vmatmul.mubr.bf16.gmra.mrb[0].mxu0 %v4308
        %v4628 = vpop.f32.mrb[0].mxu0
        %v4629 = vadd.f32 0.0, %v4628
        %v4630 = vpop.f32.mrb[0].mxu0
        %v4631 = vpop.f32.mrb[0].mxu0
        %v4632 = vadd.f32 0.0, %v4631
        %v4633 = vpop.f32.mrb[0].mxu0
        %4634 = vmatprep.mubr.bf16.mxu0 0
        %4635 = vmatmul.mubr.bf16.gmra.mrb[0].mxu0 %v4309
        %v4636 = vpop.f32.mrb[0].mxu0
        %v4637 = vadd.f32 0.0, %v4636
        %v4638 = vpop.f32.mrb[0].mxu0
        %v4639 = vpop.f32.mrb[0].mxu0
        %v4640 = vadd.f32 0.0, %v4639
        %v4641 = vpop.f32.mrb[0].mxu0
        %4642 = vmatprep.mubr.bf16.mxu0 0
        %4643 = vmatmul.mubr.bf16.gmra.mrb[0].mxu0 %v4310
        %v4644 = vpop.f32.mrb[0].mxu0
        %v4645 = vadd.f32 0.0, %v4644
        %v4646 = vpop.f32.mrb[0].mxu0
        %v4647 = vpop.f32.mrb[0].mxu0
        %v4648 = vadd.f32 0.0, %v4647
        %v4649 = vpop.f32.mrb[0].mxu0
        %4650 = vmatprep.mubr.bf16.mxu0 0
        %4651 = vmatmul.mubr.bf16.gmra.mrb[0].mxu0 %v4311
        %v4652 = vpop.f32.mrb[0].mxu0
        %v4653 = vadd.f32 0.0, %v4652
        %v4654 = vpop.f32.mrb[0].mxu0
        %v4655 = vpop.f32.mrb[0].mxu0
        %v4656 = vadd.f32 0.0, %v4655
        %v4657 = vpop.f32.mrb[0].mxu0
        %4658 = vmatprep.mubr.bf16.mxu0 0
        %4659 = vmatmul.mubr.bf16.gmra.mrb[0].mxu0 %v4312
        %v4660 = vpop.f32.mrb[0].mxu0
        %v4661 = vadd.f32 0.0, %v4660
        %v4662 = vpop.f32.mrb[0].mxu0
        %v4663 = vpop.f32.mrb[0].mxu0
        %v4664 = vadd.f32 0.0, %v4663
        %v4665 = vpop.f32.mrb[0].mxu0
        %4666 = vdwg.mxu0
        %v4667 = vadd.f32 %v3253, %v4413
        %v4668 = vadd.f32 %v3254, %v4416
        %v4669 = vadd.f32 %v3255, %v4421
        %v4670 = vadd.f32 %v3256, %v4424
        %v4671 = vadd.f32 %v3257, %v4429
        %v4672 = vadd.f32 %v3258, %v4432
        %v4673 = vadd.f32 %v3259, %v4437
        %v4674 = vadd.f32 %v3260, %v4440
        %v4675 = vadd.f32 %v3261, %v4445
        %v4676 = vadd.f32 %v3262, %v4448
        %v4677 = vadd.f32 %v3263, %v4453
        %v4678 = vadd.f32 %v3264, %v4456
        %v4679 = vadd.f32 %v3265, %v4461
        %v4680 = vadd.f32 %v3266, %v4464
        %v4681 = vadd.f32 %v3267, %v4469
        %v4682 = vadd.f32 %v3268, %v4472
        %v4683 = vadd.f32 %v3269, %v4477
        %v4684 = vadd.f32 %v3270, %v4480
        %v4685 = vadd.f32 %v3271, %v4485
        %v4686 = vadd.f32 %v3272, %v4488
        %v4687 = vadd.f32 %v3273, %v4493
        %v4688 = vadd.f32 %v3274, %v4496
        %v4689 = vadd.f32 %v3275, %v4501
        %v4690 = vadd.f32 %v3276, %v4504
        %v4691 = vadd.f32 %v3277, %v4509
        %v4692 = vadd.f32 %v3278, %v4512
        %v4693 = vadd.f32 %v3279, %v4517
        %v4694 = vadd.f32 %v3280, %v4520
        %v4695 = vadd.f32 %v3281, %v4525
        %v4696 = vadd.f32 %v3282, %v4528
        %v4697 = vadd.f32 %v3283, %v4533
        %v4698 = vadd.f32 %v3284, %v4536
        %v4699 = vadd.f32 %v3285, %v4541
        %v4700 = vadd.f32 %v3286, %v4544
        %v4701 = vadd.f32 %v3287, %v4549
        %v4702 = vadd.f32 %v3288, %v4552
        %v4703 = vadd.f32 %v3289, %v4557
        %v4704 = vadd.f32 %v3290, %v4560
        %v4705 = vadd.f32 %v3291, %v4565
        %v4706 = vadd.f32 %v3292, %v4568
        %v4707 = vadd.f32 %v3293, %v4573
        %v4708 = vadd.f32 %v3294, %v4576
        %v4709 = vadd.f32 %v3295, %v4581
        %v4710 = vadd.f32 %v3296, %v4584
        %v4711 = vadd.f32 %v3297, %v4589
        %v4712 = vadd.f32 %v3298, %v4592
        %v4713 = vadd.f32 %v3299, %v4597
        %v4714 = vadd.f32 %v3300, %v4600
        %v4715 = vadd.f32 %v3301, %v4605
        %v4716 = vadd.f32 %v3302, %v4608
        %v4717 = vadd.f32 %v3303, %v4613
        %v4718 = vadd.f32 %v3304, %v4616
        %v4719 = vadd.f32 %v3305, %v4621
        %v4720 = vadd.f32 %v3306, %v4624
        %v4721 = vadd.f32 %v3307, %v4629
        %v4722 = vadd.f32 %v3308, %v4632
        %v4723 = vadd.f32 %v3309, %v4637
        %v4724 = vadd.f32 %v3310, %v4640
        %v4725 = vadd.f32 %v3311, %v4645
        %v4726 = vadd.f32 %v3312, %v4648
        %v4727 = vadd.f32 %v3313, %v4653
        %v4728 = vadd.f32 %v3314, %v4656
        %v4729 = vadd.f32 %v3315, %v4661
        %v4730 = vadd.f32 %v3316, %v4664
        %s4731 = scalar_lea.vmem [#allocation7], 192
        %v4732 = vld [vmem:[%s4731] sm:$0xf]
        %v4733 = vld [vmem:[%s4731 + $0x4] sm:$0xf]
        %v4734 = vld [vmem:[%s4731 + $0x8] sm:$0xf]
        %v4735 = vld [vmem:[%s4731 + $0xc] sm:$0xf]
        %v4736 = vld [vmem:[%s4731 + $0x10] sm:$0xf]
        %v4737 = vld [vmem:[%s4731 + $0x14] sm:$0xf]
        %v4738 = vld [vmem:[%s4731 + $0x18] sm:$0xf]
        %v4739 = vld [vmem:[%s4731 + $0x1c] sm:$0xf]
        %v4740 = vld [vmem:[%s4731 + $0x20] sm:$0xf]
        %v4741 = vld [vmem:[%s4731 + $0x24] sm:$0xf]
        %v4742 = vld [vmem:[%s4731 + $0x28] sm:$0xf]
        %v4743 = vld [vmem:[%s4731 + $0x2c] sm:$0xf]
        %v4744 = vld [vmem:[%s4731 + $0x30] sm:$0xf]
        %v4745 = vld [vmem:[%s4731 + $0x34] sm:$0xf]
        %v4746 = vld [vmem:[%s4731 + $0x38] sm:$0xf]
        %v4747 = vld [vmem:[%s4731 + $0x3c] sm:$0xf]
        %v4764 = vunpack.c.l.b16 %v4732
        %v4765 = vunpack.c.l.b16 %v4733
        %v4766 = vunpack.c.l.b16 %v4734
        %v4767 = vunpack.c.l.b16 %v4735
        %v4768 = vunpack.c.l.b16 %v4736
        %v4769 = vunpack.c.l.b16 %v4737
        %v4770 = vunpack.c.l.b16 %v4738
        %v4771 = vunpack.c.l.b16 %v4739
        %v4772 = vunpack.c.l.b16 %v4740
        %v4773 = vunpack.c.l.b16 %v4741
        %v4774 = vunpack.c.l.b16 %v4742
        %v4775 = vunpack.c.l.b16 %v4743
        %v4776 = vunpack.c.l.b16 %v4744
        %v4777 = vunpack.c.l.b16 %v4745
        %v4778 = vunpack.c.l.b16 %v4746
        %v4779 = vunpack.c.l.b16 %v4747
        %v4780 = vpack.c.b16 %v4765, %v4764
        %v4781 = vpack.c.b16 %v4767, %v4766
        %v4782 = vpack.c.b16 %v4769, %v4768
        %v4783 = vpack.c.b16 %v4771, %v4770
        %v4784 = vpack.c.b16 %v4773, %v4772
        %v4785 = vpack.c.b16 %v4775, %v4774
        %v4786 = vpack.c.b16 %v4777, %v4776
        %v4787 = vpack.c.b16 %v4779, %v4778
        %4796 = vmatprep.subr.bf16.mxu0 0
        %4797 = vmatpush1.bf16.msra.mxu0 %v4780
        %4798 = vmatprep.subr.bf16.mxu0 0
        %4799 = vmatpush1.bf16.msra.mxu0 %v4781
        %4800 = vmatprep.subr.bf16.mxu0 0
        %4801 = vmatpush1.bf16.msra.mxu0 %v4782
        %4802 = vmatprep.subr.bf16.mxu0 0
        %4803 = vmatpush1.bf16.msra.mxu0 %v4783
        %4804 = vmatprep.subr.bf16.mxu0 0
        %4805 = vmatpush1.bf16.msra.mxu0 %v4784
        %4806 = vmatprep.subr.bf16.mxu0 0
        %4807 = vmatpush1.bf16.msra.mxu0 %v4785
        %4808 = vmatprep.subr.bf16.mxu0 0
        %4809 = vmatpush1.bf16.msra.mxu0 %v4786
        %4810 = vmatprep.subr.bf16.mxu0 0
        %4811 = vmatpush1.bf16.msra.mxu0 %v4787
        %4812 = vmatprep.subr.bf16.mxu0 0
        %4813 = vmatpush1.bf16.msra.mxu0 0
        %4814 = vmatprep.subr.bf16.mxu0 0
        %4815 = vmatpush1.bf16.msra.mxu0 0
        %4816 = vmatprep.subr.bf16.mxu0 0
        %4817 = vmatpush1.bf16.msra.mxu0 0
        %4818 = vmatprep.subr.bf16.mxu0 0
        %4819 = vmatpush1.bf16.msra.mxu0 0
        %4820 = vmatprep.subr.bf16.mxu0 0
        %4821 = vmatpush1.bf16.msra.mxu0 0
        %4822 = vmatprep.subr.bf16.mxu0 0
        %4823 = vmatpush1.bf16.msra.mxu0 0
        %4824 = vmatprep.subr.bf16.mxu0 0
        %4825 = vmatpush1.bf16.msra.mxu0 0
        %4826 = vmatprep.subr.bf16.mxu0 0
        %4827 = vmatpush1.bf16.msra.mxu0 0
        %4828 = vmatprep.mubr.bf16.mxu0 0
        %4829 = vmatmul.mubr.bf16.gmra.mrb[0].mxu0 %v4281
        %v4830 = vpop.f32.mrb[0].mxu0
        %v4831 = vadd.f32 0.0, %v4830
        %v4832 = vpop.f32.mrb[0].mxu0
        %v4833 = vpop.f32.mrb[0].mxu0
        %v4834 = vadd.f32 0.0, %v4833
        %v4835 = vpop.f32.mrb[0].mxu0
        %4836 = vmatprep.mubr.bf16.mxu0 0
        %4837 = vmatmul.mubr.bf16.gmra.mrb[0].mxu0 %v4282
        %v4838 = vpop.f32.mrb[0].mxu0
        %v4839 = vadd.f32 0.0, %v4838
        %v4840 = vpop.f32.mrb[0].mxu0
        %v4841 = vpop.f32.mrb[0].mxu0
        %v4842 = vadd.f32 0.0, %v4841
        %v4843 = vpop.f32.mrb[0].mxu0
        %4844 = vmatprep.mubr.bf16.mxu0 0
        %4845 = vmatmul.mubr.bf16.gmra.mrb[0].mxu0 %v4283
        %v4846 = vpop.f32.mrb[0].mxu0
        %v4847 = vadd.f32 0.0, %v4846
        %v4848 = vpop.f32.mrb[0].mxu0
        %v4849 = vpop.f32.mrb[0].mxu0
        %v4850 = vadd.f32 0.0, %v4849
        %v4851 = vpop.f32.mrb[0].mxu0
        %4852 = vmatprep.mubr.bf16.mxu0 0
        %4853 = vmatmul.mubr.bf16.gmra.mrb[0].mxu0 %v4284
        %v4854 = vpop.f32.mrb[0].mxu0
        %v4855 = vadd.f32 0.0, %v4854
        %v4856 = vpop.f32.mrb[0].mxu0
        %v4857 = vpop.f32.mrb[0].mxu0
        %v4858 = vadd.f32 0.0, %v4857
        %v4859 = vpop.f32.mrb[0].mxu0
        %4860 = vmatprep.mubr.bf16.mxu0 0
        %4861 = vmatmul.mubr.bf16.gmra.mrb[0].mxu0 %v4285
        %v4862 = vpop.f32.mrb[0].mxu0
        %v4863 = vadd.f32 0.0, %v4862
        %v4864 = vpop.f32.mrb[0].mxu0
        %v4865 = vpop.f32.mrb[0].mxu0
        %v4866 = vadd.f32 0.0, %v4865
        %v4867 = vpop.f32.mrb[0].mxu0
        %4868 = vmatprep.mubr.bf16.mxu0 0
        %4869 = vmatmul.mubr.bf16.gmra.mrb[0].mxu0 %v4286
        %v4870 = vpop.f32.mrb[0].mxu0
        %v4871 = vadd.f32 0.0, %v4870
        %v4872 = vpop.f32.mrb[0].mxu0
        %v4873 = vpop.f32.mrb[0].mxu0
        %v4874 = vadd.f32 0.0, %v4873
        %v4875 = vpop.f32.mrb[0].mxu0
        %4876 = vmatprep.mubr.bf16.mxu0 0
        %4877 = vmatmul.mubr.bf16.gmra.mrb[0].mxu0 %v4287
        %v4878 = vpop.f32.mrb[0].mxu0
        %v4879 = vadd.f32 0.0, %v4878
        %v4880 = vpop.f32.mrb[0].mxu0
        %v4881 = vpop.f32.mrb[0].mxu0
        %v4882 = vadd.f32 0.0, %v4881
        %v4883 = vpop.f32.mrb[0].mxu0
        %4884 = vmatprep.mubr.bf16.mxu0 0
        %4885 = vmatmul.mubr.bf16.gmra.mrb[0].mxu0 %v4288
        %v4886 = vpop.f32.mrb[0].mxu0
        %v4887 = vadd.f32 0.0, %v4886
        %v4888 = vpop.f32.mrb[0].mxu0
        %v4889 = vpop.f32.mrb[0].mxu0
        %v4890 = vadd.f32 0.0, %v4889
        %v4891 = vpop.f32.mrb[0].mxu0
        %4892 = vmatprep.mubr.bf16.mxu0 0
        %4893 = vmatmul.mubr.bf16.gmra.mrb[0].mxu0 %v4289
        %v4894 = vpop.f32.mrb[0].mxu0
        %v4895 = vadd.f32 0.0, %v4894
        %v4896 = vpop.f32.mrb[0].mxu0
        %v4897 = vpop.f32.mrb[0].mxu0
        %v4898 = vadd.f32 0.0, %v4897
        %v4899 = vpop.f32.mrb[0].mxu0
        %4900 = vmatprep.mubr.bf16.mxu0 0
        %4901 = vmatmul.mubr.bf16.gmra.mrb[0].mxu0 %v4290
        %v4902 = vpop.f32.mrb[0].mxu0
        %v4903 = vadd.f32 0.0, %v4902
        %v4904 = vpop.f32.mrb[0].mxu0
        %v4905 = vpop.f32.mrb[0].mxu0
        %v4906 = vadd.f32 0.0, %v4905
        %v4907 = vpop.f32.mrb[0].mxu0
        %4908 = vmatprep.mubr.bf16.mxu0 0
        %4909 = vmatmul.mubr.bf16.gmra.mrb[0].mxu0 %v4291
        %v4910 = vpop.f32.mrb[0].mxu0
        %v4911 = vadd.f32 0.0, %v4910
        %v4912 = vpop.f32.mrb[0].mxu0
        %v4913 = vpop.f32.mrb[0].mxu0
        %v4914 = vadd.f32 0.0, %v4913
        %v4915 = vpop.f32.mrb[0].mxu0
        %4916 = vmatprep.mubr.bf16.mxu0 0
        %4917 = vmatmul.mubr.bf16.gmra.mrb[0].mxu0 %v4292
        %v4918 = vpop.f32.mrb[0].mxu0
        %v4919 = vadd.f32 0.0, %v4918
        %v4920 = vpop.f32.mrb[0].mxu0
        %v4921 = vpop.f32.mrb[0].mxu0
        %v4922 = vadd.f32 0.0, %v4921
        %v4923 = vpop.f32.mrb[0].mxu0
        %4924 = vmatprep.mubr.bf16.mxu0 0
        %4925 = vmatmul.mubr.bf16.gmra.mrb[0].mxu0 %v4293
        %v4926 = vpop.f32.mrb[0].mxu0
        %v4927 = vadd.f32 0.0, %v4926
        %v4928 = vpop.f32.mrb[0].mxu0
        %v4929 = vpop.f32.mrb[0].mxu0
        %v4930 = vadd.f32 0.0, %v4929
        %v4931 = vpop.f32.mrb[0].mxu0
        %4932 = vmatprep.mubr.bf16.mxu0 0
        %4933 = vmatmul.mubr.bf16.gmra.mrb[0].mxu0 %v4294
        %v4934 = vpop.f32.mrb[0].mxu0
        %v4935 = vadd.f32 0.0, %v4934
        %v4936 = vpop.f32.mrb[0].mxu0
        %v4937 = vpop.f32.mrb[0].mxu0
        %v4938 = vadd.f32 0.0, %v4937
        %v4939 = vpop.f32.mrb[0].mxu0
        %4940 = vmatprep.mubr.bf16.mxu0 0
        %4941 = vmatmul.mubr.bf16.gmra.mrb[0].mxu0 %v4295
        %v4942 = vpop.f32.mrb[0].mxu0
        %v4943 = vadd.f32 0.0, %v4942
        %v4944 = vpop.f32.mrb[0].mxu0
        %v4945 = vpop.f32.mrb[0].mxu0
        %v4946 = vadd.f32 0.0, %v4945
        %v4947 = vpop.f32.mrb[0].mxu0
        %4948 = vmatprep.mubr.bf16.mxu0 0
        %4949 = vmatmul.mubr.bf16.gmra.mrb[0].mxu0 %v4296
        %v4950 = vpop.f32.mrb[0].mxu0
        %v4951 = vadd.f32 0.0, %v4950
        %v4952 = vpop.f32.mrb[0].mxu0
        %v4953 = vpop.f32.mrb[0].mxu0
        %v4954 = vadd.f32 0.0, %v4953
        %v4955 = vpop.f32.mrb[0].mxu0
        %4956 = vmatprep.mubr.bf16.mxu0 0
        %4957 = vmatmul.mubr.bf16.gmra.mrb[0].mxu0 %v4297
        %v4958 = vpop.f32.mrb[0].mxu0
        %v4959 = vadd.f32 0.0, %v4958
        %v4960 = vpop.f32.mrb[0].mxu0
        %v4961 = vpop.f32.mrb[0].mxu0
        %v4962 = vadd.f32 0.0, %v4961
        %v4963 = vpop.f32.mrb[0].mxu0
        %4964 = vmatprep.mubr.bf16.mxu0 0
        %4965 = vmatmul.mubr.bf16.gmra.mrb[0].mxu0 %v4298
        %v4966 = vpop.f32.mrb[0].mxu0
        %v4967 = vadd.f32 0.0, %v4966
        %v4968 = vpop.f32.mrb[0].mxu0
        %v4969 = vpop.f32.mrb[0].mxu0
        %v4970 = vadd.f32 0.0, %v4969
        %v4971 = vpop.f32.mrb[0].mxu0
        %4972 = vmatprep.mubr.bf16.mxu0 0
        %4973 = vmatmul.mubr.bf16.gmra.mrb[0].mxu0 %v4299
        %v4974 = vpop.f32.mrb[0].mxu0
        %v4975 = vadd.f32 0.0, %v4974
        %v4976 = vpop.f32.mrb[0].mxu0
        %v4977 = vpop.f32.mrb[0].mxu0
        %v4978 = vadd.f32 0.0, %v4977
        %v4979 = vpop.f32.mrb[0].mxu0
        %4980 = vmatprep.mubr.bf16.mxu0 0
        %4981 = vmatmul.mubr.bf16.gmra.mrb[0].mxu0 %v4300
        %v4982 = vpop.f32.mrb[0].mxu0
        %v4983 = vadd.f32 0.0, %v4982
        %v4984 = vpop.f32.mrb[0].mxu0
        %v4985 = vpop.f32.mrb[0].mxu0
        %v4986 = vadd.f32 0.0, %v4985
        %v4987 = vpop.f32.mrb[0].mxu0
        %4988 = vmatprep.mubr.bf16.mxu0 0
        %4989 = vmatmul.mubr.bf16.gmra.mrb[0].mxu0 %v4301
        %v4990 = vpop.f32.mrb[0].mxu0
        %v4991 = vadd.f32 0.0, %v4990
        %v4992 = vpop.f32.mrb[0].mxu0
        %v4993 = vpop.f32.mrb[0].mxu0
        %v4994 = vadd.f32 0.0, %v4993
        %v4995 = vpop.f32.mrb[0].mxu0
        %4996 = vmatprep.mubr.bf16.mxu0 0
        %4997 = vmatmul.mubr.bf16.gmra.mrb[0].mxu0 %v4302
        %v4998 = vpop.f32.mrb[0].mxu0
        %v4999 = vadd.f32 0.0, %v4998
        %v5000 = vpop.f32.mrb[0].mxu0
        %v5001 = vpop.f32.mrb[0].mxu0
        %v5002 = vadd.f32 0.0, %v5001
        %v5003 = vpop.f32.mrb[0].mxu0
        %5004 = vmatprep.mubr.bf16.mxu0 0
        %5005 = vmatmul.mubr.bf16.gmra.mrb[0].mxu0 %v4303
        %v5006 = vpop.f32.mrb[0].mxu0
        %v5007 = vadd.f32 0.0, %v5006
        %v5008 = vpop.f32.mrb[0].mxu0
        %v5009 = vpop.f32.mrb[0].mxu0
        %v5010 = vadd.f32 0.0, %v5009
        %v5011 = vpop.f32.mrb[0].mxu0
        %5012 = vmatprep.mubr.bf16.mxu0 0
        %5013 = vmatmul.mubr.bf16.gmra.mrb[0].mxu0 %v4304
        %v5014 = vpop.f32.mrb[0].mxu0
        %v5015 = vadd.f32 0.0, %v5014
        %v5016 = vpop.f32.mrb[0].mxu0
        %v5017 = vpop.f32.mrb[0].mxu0
        %v5018 = vadd.f32 0.0, %v5017
        %v5019 = vpop.f32.mrb[0].mxu0
        %5020 = vmatprep.mubr.bf16.mxu0 0
        %5021 = vmatmul.mubr.bf16.gmra.mrb[0].mxu0 %v4305
        %v5022 = vpop.f32.mrb[0].mxu0
        %v5023 = vadd.f32 0.0, %v5022
        %v5024 = vpop.f32.mrb[0].mxu0
        %v5025 = vpop.f32.mrb[0].mxu0
        %v5026 = vadd.f32 0.0, %v5025
        %v5027 = vpop.f32.mrb[0].mxu0
        %5028 = vmatprep.mubr.bf16.mxu0 0
        %5029 = vmatmul.mubr.bf16.gmra.mrb[0].mxu0 %v4306
        %v5030 = vpop.f32.mrb[0].mxu0
        %v5031 = vadd.f32 0.0, %v5030
        %v5032 = vpop.f32.mrb[0].mxu0
        %v5033 = vpop.f32.mrb[0].mxu0
        %v5034 = vadd.f32 0.0, %v5033
        %v5035 = vpop.f32.mrb[0].mxu0
        %5036 = vmatprep.mubr.bf16.mxu0 0
        %5037 = vmatmul.mubr.bf16.gmra.mrb[0].mxu0 %v4307
        %v5038 = vpop.f32.mrb[0].mxu0
        %v5039 = vadd.f32 0.0, %v5038
        %v5040 = vpop.f32.mrb[0].mxu0
        %v5041 = vpop.f32.mrb[0].mxu0
        %v5042 = vadd.f32 0.0, %v5041
        %v5043 = vpop.f32.mrb[0].mxu0
        %5044 = vmatprep.mubr.bf16.mxu0 0
        %5045 = vmatmul.mubr.bf16.gmra.mrb[0].mxu0 %v4308
        %v5046 = vpop.f32.mrb[0].mxu0
        %v5047 = vadd.f32 0.0, %v5046
        %v5048 = vpop.f32.mrb[0].mxu0
        %v5049 = vpop.f32.mrb[0].mxu0
        %v5050 = vadd.f32 0.0, %v5049
        %v5051 = vpop.f32.mrb[0].mxu0
        %5052 = vmatprep.mubr.bf16.mxu0 0
        %5053 = vmatmul.mubr.bf16.gmra.mrb[0].mxu0 %v4309
        %v5054 = vpop.f32.mrb[0].mxu0
        %v5055 = vadd.f32 0.0, %v5054
        %v5056 = vpop.f32.mrb[0].mxu0
        %v5057 = vpop.f32.mrb[0].mxu0
        %v5058 = vadd.f32 0.0, %v5057
        %v5059 = vpop.f32.mrb[0].mxu0
        %5060 = vmatprep.mubr.bf16.mxu0 0
        %5061 = vmatmul.mubr.bf16.gmra.mrb[0].mxu0 %v4310
        %v5062 = vpop.f32.mrb[0].mxu0
        %v5063 = vadd.f32 0.0, %v5062
        %v5064 = vpop.f32.mrb[0].mxu0
        %v5065 = vpop.f32.mrb[0].mxu0
        %v5066 = vadd.f32 0.0, %v5065
        %v5067 = vpop.f32.mrb[0].mxu0
        %5068 = vmatprep.mubr.bf16.mxu0 0
        %5069 = vmatmul.mubr.bf16.gmra.mrb[0].mxu0 %v4311
        %v5070 = vpop.f32.mrb[0].mxu0
        %v5071 = vadd.f32 0.0, %v5070
        %v5072 = vpop.f32.mrb[0].mxu0
        %v5073 = vpop.f32.mrb[0].mxu0
        %v5074 = vadd.f32 0.0, %v5073
        %v5075 = vpop.f32.mrb[0].mxu0
        %5076 = vmatprep.mubr.bf16.mxu0 0
        %5077 = vmatmul.mubr.bf16.gmra.mrb[0].mxu0 %v4312
        %v5078 = vpop.f32.mrb[0].mxu0
        %v5079 = vadd.f32 0.0, %v5078
        %v5080 = vpop.f32.mrb[0].mxu0
        %v5081 = vpop.f32.mrb[0].mxu0
        %v5082 = vadd.f32 0.0, %v5081
        %v5083 = vpop.f32.mrb[0].mxu0
        %5084 = vdwg.mxu0
        %v5085 = vadd.f32 %v3671, %v4831
        %v5086 = vadd.f32 %v3672, %v4834
        %v5087 = vadd.f32 %v3673, %v4839
        %v5088 = vadd.f32 %v3674, %v4842
        %v5089 = vadd.f32 %v3675, %v4847
        %v5090 = vadd.f32 %v3676, %v4850
        %v5091 = vadd.f32 %v3677, %v4855
        %v5092 = vadd.f32 %v3678, %v4858
        %v5093 = vadd.f32 %v3679, %v4863
        %v5094 = vadd.f32 %v3680, %v4866
        %v5095 = vadd.f32 %v3681, %v4871
        %v5096 = vadd.f32 %v3682, %v4874
        %v5097 = vadd.f32 %v3683, %v4879
        %v5098 = vadd.f32 %v3684, %v4882
        %v5099 = vadd.f32 %v3685, %v4887
        %v5100 = vadd.f32 %v3686, %v4890
        %v5101 = vadd.f32 %v3687, %v4895
        %v5102 = vadd.f32 %v3688, %v4898
        %v5103 = vadd.f32 %v3689, %v4903
        %v5104 = vadd.f32 %v3690, %v4906
        %v5105 = vadd.f32 %v3691, %v4911
        %v5106 = vadd.f32 %v3692, %v4914
        %v5107 = vadd.f32 %v3693, %v4919
        %v5108 = vadd.f32 %v3694, %v4922
        %v5109 = vadd.f32 %v3695, %v4927
        %v5110 = vadd.f32 %v3696, %v4930
        %v5111 = vadd.f32 %v3697, %v4935
        %v5112 = vadd.f32 %v3698, %v4938
        %v5113 = vadd.f32 %v3699, %v4943
        %v5114 = vadd.f32 %v3700, %v4946
        %v5115 = vadd.f32 %v3701, %v4951
        %v5116 = vadd.f32 %v3702, %v4954
        %v5117 = vadd.f32 %v3703, %v4959
        %v5118 = vadd.f32 %v3704, %v4962
        %v5119 = vadd.f32 %v3705, %v4967
        %v5120 = vadd.f32 %v3706, %v4970
        %v5121 = vadd.f32 %v3707, %v4975
        %v5122 = vadd.f32 %v3708, %v4978
        %v5123 = vadd.f32 %v3709, %v4983
        %v5124 = vadd.f32 %v3710, %v4986
        %v5125 = vadd.f32 %v3711, %v4991
        %v5126 = vadd.f32 %v3712, %v4994
        %v5127 = vadd.f32 %v3713, %v4999
        %v5128 = vadd.f32 %v3714, %v5002
        %v5129 = vadd.f32 %v3715, %v5007
        %v5130 = vadd.f32 %v3716, %v5010
        %v5131 = vadd.f32 %v3717, %v5015
        %v5132 = vadd.f32 %v3718, %v5018
        %v5133 = vadd.f32 %v3719, %v5023
        %v5134 = vadd.f32 %v3720, %v5026
        %v5135 = vadd.f32 %v3721, %v5031
        %v5136 = vadd.f32 %v3722, %v5034
        %v5137 = vadd.f32 %v3723, %v5039
        %v5138 = vadd.f32 %v3724, %v5042
        %v5139 = vadd.f32 %v3725, %v5047
        %v5140 = vadd.f32 %v3726, %v5050
        %v5141 = vadd.f32 %v3727, %v5055
        %v5142 = vadd.f32 %v3728, %v5058
        %v5143 = vadd.f32 %v3729, %v5063
        %v5144 = vadd.f32 %v3730, %v5066
        %v5145 = vadd.f32 %v3731, %v5071
        %v5146 = vadd.f32 %v3732, %v5074
        %v5147 = vadd.f32 %v3733, %v5079
        %v5148 = vadd.f32 %v3734, %v5082
        %s5149 = scalar_lea.vmem [#allocation8], 192
        %v5150 = vld [vmem:[%s5149] sm:$0xf]
        %v5151 = vld [vmem:[%s5149 + $0x4] sm:$0xf]
        %v5152 = vld [vmem:[%s5149 + $0x8] sm:$0xf]
        %v5153 = vld [vmem:[%s5149 + $0xc] sm:$0xf]
        %v5154 = vld [vmem:[%s5149 + $0x10] sm:$0xf]
        %v5155 = vld [vmem:[%s5149 + $0x14] sm:$0xf]
        %v5156 = vld [vmem:[%s5149 + $0x18] sm:$0xf]
        %v5157 = vld [vmem:[%s5149 + $0x1c] sm:$0xf]
        %v5158 = vld [vmem:[%s5149 + $0x20] sm:$0xf]
        %v5159 = vld [vmem:[%s5149 + $0x24] sm:$0xf]
        %v5160 = vld [vmem:[%s5149 + $0x28] sm:$0xf]
        %v5161 = vld [vmem:[%s5149 + $0x2c] sm:$0xf]
        %v5162 = vld [vmem:[%s5149 + $0x30] sm:$0xf]
        %v5163 = vld [vmem:[%s5149 + $0x34] sm:$0xf]
        %v5164 = vld [vmem:[%s5149 + $0x38] sm:$0xf]
        %v5165 = vld [vmem:[%s5149 + $0x3c] sm:$0xf]
        %v5182 = vunpack.c.l.b16 %v5150
        %v5183 = vunpack.c.l.b16 %v5151
        %v5184 = vunpack.c.l.b16 %v5152
        %v5185 = vunpack.c.l.b16 %v5153
        %v5186 = vunpack.c.l.b16 %v5154
        %v5187 = vunpack.c.l.b16 %v5155
        %v5188 = vunpack.c.l.b16 %v5156
        %v5189 = vunpack.c.l.b16 %v5157
        %v5190 = vunpack.c.l.b16 %v5158
        %v5191 = vunpack.c.l.b16 %v5159
        %v5192 = vunpack.c.l.b16 %v5160
        %v5193 = vunpack.c.l.b16 %v5161
        %v5194 = vunpack.c.l.b16 %v5162
        %v5195 = vunpack.c.l.b16 %v5163
        %v5196 = vunpack.c.l.b16 %v5164
        %v5197 = vunpack.c.l.b16 %v5165
        %v5198 = vpack.c.b16 %v5183, %v5182
        %v5199 = vpack.c.b16 %v5185, %v5184
        %v5200 = vpack.c.b16 %v5187, %v5186
        %v5201 = vpack.c.b16 %v5189, %v5188
        %v5202 = vpack.c.b16 %v5191, %v5190
        %v5203 = vpack.c.b16 %v5193, %v5192
        %v5204 = vpack.c.b16 %v5195, %v5194
        %v5205 = vpack.c.b16 %v5197, %v5196
        %5214 = vmatprep.subr.bf16.mxu0 0
        %5215 = vmatpush1.bf16.msra.mxu0 %v5198
        %5216 = vmatprep.subr.bf16.mxu0 0
        %5217 = vmatpush1.bf16.msra.mxu0 %v5199
        %5218 = vmatprep.subr.bf16.mxu0 0
        %5219 = vmatpush1.bf16.msra.mxu0 %v5200
        %5220 = vmatprep.subr.bf16.mxu0 0
        %5221 = vmatpush1.bf16.msra.mxu0 %v5201
        %5222 = vmatprep.subr.bf16.mxu0 0
        %5223 = vmatpush1.bf16.msra.mxu0 %v5202
        %5224 = vmatprep.subr.bf16.mxu0 0
        %5225 = vmatpush1.bf16.msra.mxu0 %v5203
        %5226 = vmatprep.subr.bf16.mxu0 0
        %5227 = vmatpush1.bf16.msra.mxu0 %v5204
        %5228 = vmatprep.subr.bf16.mxu0 0
        %5229 = vmatpush1.bf16.msra.mxu0 %v5205
        %5230 = vmatprep.subr.bf16.mxu0 0
        %5231 = vmatpush1.bf16.msra.mxu0 0
        %5232 = vmatprep.subr.bf16.mxu0 0
        %5233 = vmatpush1.bf16.msra.mxu0 0
        %5234 = vmatprep.subr.bf16.mxu0 0
        %5235 = vmatpush1.bf16.msra.mxu0 0
        %5236 = vmatprep.subr.bf16.mxu0 0
        %5237 = vmatpush1.bf16.msra.mxu0 0
        %5238 = vmatprep.subr.bf16.mxu0 0
        %5239 = vmatpush1.bf16.msra.mxu0 0
        %5240 = vmatprep.subr.bf16.mxu0 0
        %5241 = vmatpush1.bf16.msra.mxu0 0
        %5242 = vmatprep.subr.bf16.mxu0 0
        %5243 = vmatpush1.bf16.msra.mxu0 0
        %5244 = vmatprep.subr.bf16.mxu0 0
        %5245 = vmatpush1.bf16.msra.mxu0 0
        %5246 = vmatprep.mubr.bf16.mxu0 0
        %5247 = vmatmul.mubr.bf16.gmra.mrb[0].mxu0 %v4281
        %v5248 = vpop.f32.mrb[0].mxu0
        %v5249 = vadd.f32 0.0, %v5248
        %v5250 = vpop.f32.mrb[0].mxu0
        %v5251 = vpop.f32.mrb[0].mxu0
        %v5252 = vadd.f32 0.0, %v5251
        %v5253 = vpop.f32.mrb[0].mxu0
        %5254 = vmatprep.mubr.bf16.mxu0 0
        %5255 = vmatmul.mubr.bf16.gmra.mrb[0].mxu0 %v4282
        %v5256 = vpop.f32.mrb[0].mxu0
        %v5257 = vadd.f32 0.0, %v5256
        %v5258 = vpop.f32.mrb[0].mxu0
        %v5259 = vpop.f32.mrb[0].mxu0
        %v5260 = vadd.f32 0.0, %v5259
        %v5261 = vpop.f32.mrb[0].mxu0
        %5262 = vmatprep.mubr.bf16.mxu0 0
        %5263 = vmatmul.mubr.bf16.gmra.mrb[0].mxu0 %v4283
        %v5264 = vpop.f32.mrb[0].mxu0
        %v5265 = vadd.f32 0.0, %v5264
        %v5266 = vpop.f32.mrb[0].mxu0
        %v5267 = vpop.f32.mrb[0].mxu0
        %v5268 = vadd.f32 0.0, %v5267
        %v5269 = vpop.f32.mrb[0].mxu0
        %5270 = vmatprep.mubr.bf16.mxu0 0
        %5271 = vmatmul.mubr.bf16.gmra.mrb[0].mxu0 %v4284
        %v5272 = vpop.f32.mrb[0].mxu0
        %v5273 = vadd.f32 0.0, %v5272
        %v5274 = vpop.f32.mrb[0].mxu0
        %v5275 = vpop.f32.mrb[0].mxu0
        %v5276 = vadd.f32 0.0, %v5275
        %v5277 = vpop.f32.mrb[0].mxu0
        %5278 = vmatprep.mubr.bf16.mxu0 0
        %5279 = vmatmul.mubr.bf16.gmra.mrb[0].mxu0 %v4285
        %v5280 = vpop.f32.mrb[0].mxu0
        %v5281 = vadd.f32 0.0, %v5280
        %v5282 = vpop.f32.mrb[0].mxu0
        %v5283 = vpop.f32.mrb[0].mxu0
        %v5284 = vadd.f32 0.0, %v5283
        %v5285 = vpop.f32.mrb[0].mxu0
        %5286 = vmatprep.mubr.bf16.mxu0 0
        %5287 = vmatmul.mubr.bf16.gmra.mrb[0].mxu0 %v4286
        %v5288 = vpop.f32.mrb[0].mxu0
        %v5289 = vadd.f32 0.0, %v5288
        %v5290 = vpop.f32.mrb[0].mxu0
        %v5291 = vpop.f32.mrb[0].mxu0
        %v5292 = vadd.f32 0.0, %v5291
        %v5293 = vpop.f32.mrb[0].mxu0
        %5294 = vmatprep.mubr.bf16.mxu0 0
        %5295 = vmatmul.mubr.bf16.gmra.mrb[0].mxu0 %v4287
        %v5296 = vpop.f32.mrb[0].mxu0
        %v5297 = vadd.f32 0.0, %v5296
        %v5298 = vpop.f32.mrb[0].mxu0
        %v5299 = vpop.f32.mrb[0].mxu0
        %v5300 = vadd.f32 0.0, %v5299
        %v5301 = vpop.f32.mrb[0].mxu0
        %5302 = vmatprep.mubr.bf16.mxu0 0
        %5303 = vmatmul.mubr.bf16.gmra.mrb[0].mxu0 %v4288
        %v5304 = vpop.f32.mrb[0].mxu0
        %v5305 = vadd.f32 0.0, %v5304
        %v5306 = vpop.f32.mrb[0].mxu0
        %v5307 = vpop.f32.mrb[0].mxu0
        %v5308 = vadd.f32 0.0, %v5307
        %v5309 = vpop.f32.mrb[0].mxu0
        %5310 = vmatprep.mubr.bf16.mxu0 0
        %5311 = vmatmul.mubr.bf16.gmra.mrb[0].mxu0 %v4289
        %v5312 = vpop.f32.mrb[0].mxu0
        %v5313 = vadd.f32 0.0, %v5312
        %v5314 = vpop.f32.mrb[0].mxu0
        %v5315 = vpop.f32.mrb[0].mxu0
        %v5316 = vadd.f32 0.0, %v5315
        %v5317 = vpop.f32.mrb[0].mxu0
        %5318 = vmatprep.mubr.bf16.mxu0 0
        %5319 = vmatmul.mubr.bf16.gmra.mrb[0].mxu0 %v4290
        %v5320 = vpop.f32.mrb[0].mxu0
        %v5321 = vadd.f32 0.0, %v5320
        %v5322 = vpop.f32.mrb[0].mxu0
        %v5323 = vpop.f32.mrb[0].mxu0
        %v5324 = vadd.f32 0.0, %v5323
        %v5325 = vpop.f32.mrb[0].mxu0
        %5326 = vmatprep.mubr.bf16.mxu0 0
        %5327 = vmatmul.mubr.bf16.gmra.mrb[0].mxu0 %v4291
        %v5328 = vpop.f32.mrb[0].mxu0
        %v5329 = vadd.f32 0.0, %v5328
        %v5330 = vpop.f32.mrb[0].mxu0
        %v5331 = vpop.f32.mrb[0].mxu0
        %v5332 = vadd.f32 0.0, %v5331
        %v5333 = vpop.f32.mrb[0].mxu0
        %5334 = vmatprep.mubr.bf16.mxu0 0
        %5335 = vmatmul.mubr.bf16.gmra.mrb[0].mxu0 %v4292
        %v5336 = vpop.f32.mrb[0].mxu0
        %v5337 = vadd.f32 0.0, %v5336
        %v5338 = vpop.f32.mrb[0].mxu0
        %v5339 = vpop.f32.mrb[0].mxu0
        %v5340 = vadd.f32 0.0, %v5339
        %v5341 = vpop.f32.mrb[0].mxu0
        %5342 = vmatprep.mubr.bf16.mxu0 0
        %5343 = vmatmul.mubr.bf16.gmra.mrb[0].mxu0 %v4293
        %v5344 = vpop.f32.mrb[0].mxu0
        %v5345 = vadd.f32 0.0, %v5344
        %v5346 = vpop.f32.mrb[0].mxu0
        %v5347 = vpop.f32.mrb[0].mxu0
        %v5348 = vadd.f32 0.0, %v5347
        %v5349 = vpop.f32.mrb[0].mxu0
        %5350 = vmatprep.mubr.bf16.mxu0 0
        %5351 = vmatmul.mubr.bf16.gmra.mrb[0].mxu0 %v4294
        %v5352 = vpop.f32.mrb[0].mxu0
        %v5353 = vadd.f32 0.0, %v5352
        %v5354 = vpop.f32.mrb[0].mxu0
        %v5355 = vpop.f32.mrb[0].mxu0
        %v5356 = vadd.f32 0.0, %v5355
        %v5357 = vpop.f32.mrb[0].mxu0
        %5358 = vmatprep.mubr.bf16.mxu0 0
        %5359 = vmatmul.mubr.bf16.gmra.mrb[0].mxu0 %v4295
        %v5360 = vpop.f32.mrb[0].mxu0
        %v5361 = vadd.f32 0.0, %v5360
        %v5362 = vpop.f32.mrb[0].mxu0
        %v5363 = vpop.f32.mrb[0].mxu0
        %v5364 = vadd.f32 0.0, %v5363
        %v5365 = vpop.f32.mrb[0].mxu0
        %5366 = vmatprep.mubr.bf16.mxu0 0
        %5367 = vmatmul.mubr.bf16.gmra.mrb[0].mxu0 %v4296
        %v5368 = vpop.f32.mrb[0].mxu0
        %v5369 = vadd.f32 0.0, %v5368
        %v5370 = vpop.f32.mrb[0].mxu0
        %v5371 = vpop.f32.mrb[0].mxu0
        %v5372 = vadd.f32 0.0, %v5371
        %v5373 = vpop.f32.mrb[0].mxu0
        %5374 = vmatprep.mubr.bf16.mxu0 0
        %5375 = vmatmul.mubr.bf16.gmra.mrb[0].mxu0 %v4297
        %v5376 = vpop.f32.mrb[0].mxu0
        %v5377 = vadd.f32 0.0, %v5376
        %v5378 = vpop.f32.mrb[0].mxu0
        %v5379 = vpop.f32.mrb[0].mxu0
        %v5380 = vadd.f32 0.0, %v5379
        %v5381 = vpop.f32.mrb[0].mxu0
        %5382 = vmatprep.mubr.bf16.mxu0 0
        %5383 = vmatmul.mubr.bf16.gmra.mrb[0].mxu0 %v4298
        %v5384 = vpop.f32.mrb[0].mxu0
        %v5385 = vadd.f32 0.0, %v5384
        %v5386 = vpop.f32.mrb[0].mxu0
        %v5387 = vpop.f32.mrb[0].mxu0
        %v5388 = vadd.f32 0.0, %v5387
        %v5389 = vpop.f32.mrb[0].mxu0
        %5390 = vmatprep.mubr.bf16.mxu0 0
        %5391 = vmatmul.mubr.bf16.gmra.mrb[0].mxu0 %v4299
        %v5392 = vpop.f32.mrb[0].mxu0
        %v5393 = vadd.f32 0.0, %v5392
        %v5394 = vpop.f32.mrb[0].mxu0
        %v5395 = vpop.f32.mrb[0].mxu0
        %v5396 = vadd.f32 0.0, %v5395
        %v5397 = vpop.f32.mrb[0].mxu0
        %5398 = vmatprep.mubr.bf16.mxu0 0
        %5399 = vmatmul.mubr.bf16.gmra.mrb[0].mxu0 %v4300
        %v5400 = vpop.f32.mrb[0].mxu0
        %v5401 = vadd.f32 0.0, %v5400
        %v5402 = vpop.f32.mrb[0].mxu0
        %v5403 = vpop.f32.mrb[0].mxu0
        %v5404 = vadd.f32 0.0, %v5403
        %v5405 = vpop.f32.mrb[0].mxu0
        %5406 = vmatprep.mubr.bf16.mxu0 0
        %5407 = vmatmul.mubr.bf16.gmra.mrb[0].mxu0 %v4301
        %v5408 = vpop.f32.mrb[0].mxu0
        %v5409 = vadd.f32 0.0, %v5408
        %v5410 = vpop.f32.mrb[0].mxu0
        %v5411 = vpop.f32.mrb[0].mxu0
        %v5412 = vadd.f32 0.0, %v5411
        %v5413 = vpop.f32.mrb[0].mxu0
        %5414 = vmatprep.mubr.bf16.mxu0 0
        %5415 = vmatmul.mubr.bf16.gmra.mrb[0].mxu0 %v4302
        %v5416 = vpop.f32.mrb[0].mxu0
        %v5417 = vadd.f32 0.0, %v5416
        %v5418 = vpop.f32.mrb[0].mxu0
        %v5419 = vpop.f32.mrb[0].mxu0
        %v5420 = vadd.f32 0.0, %v5419
        %v5421 = vpop.f32.mrb[0].mxu0
        %5422 = vmatprep.mubr.bf16.mxu0 0
        %5423 = vmatmul.mubr.bf16.gmra.mrb[0].mxu0 %v4303
        %v5424 = vpop.f32.mrb[0].mxu0
        %v5425 = vadd.f32 0.0, %v5424
        %v5426 = vpop.f32.mrb[0].mxu0
        %v5427 = vpop.f32.mrb[0].mxu0
        %v5428 = vadd.f32 0.0, %v5427
        %v5429 = vpop.f32.mrb[0].mxu0
        %5430 = vmatprep.mubr.bf16.mxu0 0
        %5431 = vmatmul.mubr.bf16.gmra.mrb[0].mxu0 %v4304
        %v5432 = vpop.f32.mrb[0].mxu0
        %v5433 = vadd.f32 0.0, %v5432
        %v5434 = vpop.f32.mrb[0].mxu0
        %v5435 = vpop.f32.mrb[0].mxu0
        %v5436 = vadd.f32 0.0, %v5435
        %v5437 = vpop.f32.mrb[0].mxu0
        %5438 = vmatprep.mubr.bf16.mxu0 0
        %5439 = vmatmul.mubr.bf16.gmra.mrb[0].mxu0 %v4305
        %v5440 = vpop.f32.mrb[0].mxu0
        %v5441 = vadd.f32 0.0, %v5440
        %v5442 = vpop.f32.mrb[0].mxu0
        %v5443 = vpop.f32.mrb[0].mxu0
        %v5444 = vadd.f32 0.0, %v5443
        %v5445 = vpop.f32.mrb[0].mxu0
        %5446 = vmatprep.mubr.bf16.mxu0 0
        %5447 = vmatmul.mubr.bf16.gmra.mrb[0].mxu0 %v4306
        %v5448 = vpop.f32.mrb[0].mxu0
        %v5449 = vadd.f32 0.0, %v5448
        %v5450 = vpop.f32.mrb[0].mxu0
        %v5451 = vpop.f32.mrb[0].mxu0
        %v5452 = vadd.f32 0.0, %v5451
        %v5453 = vpop.f32.mrb[0].mxu0
        %5454 = vmatprep.mubr.bf16.mxu0 0
        %5455 = vmatmul.mubr.bf16.gmra.mrb[0].mxu0 %v4307
        %v5456 = vpop.f32.mrb[0].mxu0
        %v5457 = vadd.f32 0.0, %v5456
        %v5458 = vpop.f32.mrb[0].mxu0
        %v5459 = vpop.f32.mrb[0].mxu0
        %v5460 = vadd.f32 0.0, %v5459
        %v5461 = vpop.f32.mrb[0].mxu0
        %5462 = vmatprep.mubr.bf16.mxu0 0
        %5463 = vmatmul.mubr.bf16.gmra.mrb[0].mxu0 %v4308
        %v5464 = vpop.f32.mrb[0].mxu0
        %v5465 = vadd.f32 0.0, %v5464
        %v5466 = vpop.f32.mrb[0].mxu0
        %v5467 = vpop.f32.mrb[0].mxu0
        %v5468 = vadd.f32 0.0, %v5467
        %v5469 = vpop.f32.mrb[0].mxu0
        %5470 = vmatprep.mubr.bf16.mxu0 0
        %5471 = vmatmul.mubr.bf16.gmra.mrb[0].mxu0 %v4309
        %v5472 = vpop.f32.mrb[0].mxu0
        %v5473 = vadd.f32 0.0, %v5472
        %v5474 = vpop.f32.mrb[0].mxu0
        %v5475 = vpop.f32.mrb[0].mxu0
        %v5476 = vadd.f32 0.0, %v5475
        %v5477 = vpop.f32.mrb[0].mxu0
        %5478 = vmatprep.mubr.bf16.mxu0 0
        %5479 = vmatmul.mubr.bf16.gmra.mrb[0].mxu0 %v4310
        %v5480 = vpop.f32.mrb[0].mxu0
        %v5481 = vadd.f32 0.0, %v5480
        %v5482 = vpop.f32.mrb[0].mxu0
        %v5483 = vpop.f32.mrb[0].mxu0
        %v5484 = vadd.f32 0.0, %v5483
        %v5485 = vpop.f32.mrb[0].mxu0
        %5486 = vmatprep.mubr.bf16.mxu0 0
        %5487 = vmatmul.mubr.bf16.gmra.mrb[0].mxu0 %v4311
        %v5488 = vpop.f32.mrb[0].mxu0
        %v5489 = vadd.f32 0.0, %v5488
        %v5490 = vpop.f32.mrb[0].mxu0
        %v5491 = vpop.f32.mrb[0].mxu0
        %v5492 = vadd.f32 0.0, %v5491
        %v5493 = vpop.f32.mrb[0].mxu0
        %5494 = vmatprep.mubr.bf16.mxu0 0
        %5495 = vmatmul.mubr.bf16.gmra.mrb[0].mxu0 %v4312
        %v5496 = vpop.f32.mrb[0].mxu0
        %v5497 = vadd.f32 0.0, %v5496
        %v5498 = vpop.f32.mrb[0].mxu0
        %v5499 = vpop.f32.mrb[0].mxu0
        %v5500 = vadd.f32 0.0, %v5499
        %v5501 = vpop.f32.mrb[0].mxu0
        %5502 = vdwg.mxu0
        %v5503 = vadd.f32 %v4089, %v5249
        %v5504 = vadd.f32 %v4090, %v5252
        %v5505 = vadd.f32 %v4091, %v5257
        %v5506 = vadd.f32 %v4092, %v5260
        %v5507 = vadd.f32 %v4093, %v5265
        %v5508 = vadd.f32 %v4094, %v5268
        %v5509 = vadd.f32 %v4095, %v5273
        %v5510 = vadd.f32 %v4096, %v5276
        %v5511 = vadd.f32 %v4097, %v5281
        %v5512 = vadd.f32 %v4098, %v5284
        %v5513 = vadd.f32 %v4099, %v5289
        %v5514 = vadd.f32 %v4100, %v5292
        %v5515 = vadd.f32 %v4101, %v5297
        %v5516 = vadd.f32 %v4102, %v5300
        %v5517 = vadd.f32 %v4103, %v5305
        %v5518 = vadd.f32 %v4104, %v5308
        %v5519 = vadd.f32 %v4105, %v5313
        %v5520 = vadd.f32 %v4106, %v5316
        %v5521 = vadd.f32 %v4107, %v5321
        %v5522 = vadd.f32 %v4108, %v5324
        %v5523 = vadd.f32 %v4109, %v5329
        %v5524 = vadd.f32 %v4110, %v5332
        %v5525 = vadd.f32 %v4111, %v5337
        %v5526 = vadd.f32 %v4112, %v5340
        %v5527 = vadd.f32 %v4113, %v5345
        %v5528 = vadd.f32 %v4114, %v5348
        %v5529 = vadd.f32 %v4115, %v5353
        %v5530 = vadd.f32 %v4116, %v5356
        %v5531 = vadd.f32 %v4117, %v5361
        %v5532 = vadd.f32 %v4118, %v5364
        %v5533 = vadd.f32 %v4119, %v5369
        %v5534 = vadd.f32 %v4120, %v5372
        %v5535 = vadd.f32 %v4121, %v5377
        %v5536 = vadd.f32 %v4122, %v5380
        %v5537 = vadd.f32 %v4123, %v5385
        %v5538 = vadd.f32 %v4124, %v5388
        %v5539 = vadd.f32 %v4125, %v5393
        %v5540 = vadd.f32 %v4126, %v5396
        %v5541 = vadd.f32 %v4127, %v5401
        %v5542 = vadd.f32 %v4128, %v5404
        %v5543 = vadd.f32 %v4129, %v5409
        %v5544 = vadd.f32 %v4130, %v5412
        %v5545 = vadd.f32 %v4131, %v5417
        %v5546 = vadd.f32 %v4132, %v5420
        %v5547 = vadd.f32 %v4133, %v5425
        %v5548 = vadd.f32 %v4134, %v5428
        %v5549 = vadd.f32 %v4135, %v5433
        %v5550 = vadd.f32 %v4136, %v5436
        %v5551 = vadd.f32 %v4137, %v5441
        %v5552 = vadd.f32 %v4138, %v5444
        %v5553 = vadd.f32 %v4139, %v5449
        %v5554 = vadd.f32 %v4140, %v5452
        %v5555 = vadd.f32 %v4141, %v5457
        %v5556 = vadd.f32 %v4142, %v5460
        %v5557 = vadd.f32 %v4143, %v5465
        %v5558 = vadd.f32 %v4144, %v5468
        %v5559 = vadd.f32 %v4145, %v5473
        %v5560 = vadd.f32 %v4146, %v5476
        %v5561 = vadd.f32 %v4147, %v5481
        %v5562 = vadd.f32 %v4148, %v5484
        %v5563 = vadd.f32 %v4149, %v5489
        %v5564 = vadd.f32 %v4150, %v5492
        %v5565 = vadd.f32 %v4151, %v5497
        %v5566 = vadd.f32 %v4152, %v5500
        %v5567 = vrot.slane %v4279, 1
        %v5568 = vrot.slane %v4278, 1
        %v5569 = vrot.slane %v4277, 1
        %v5570 = vrot.slane %v4276, 1
        %v5571 = vrot.slane %v4275, 1
        %v5572 = vrot.slane %v4274, 1
        %v5573 = vrot.slane %v4273, 1
        %v5574 = vrot.slane %v4272, 1
        %v5575 = vrot.slane %v4271, 1
        %v5576 = vrot.slane %v4270, 1
        %v5577 = vrot.slane %v4269, 1
        %v5578 = vrot.slane %v4268, 1
        %v5579 = vrot.slane %v4267, 1
        %v5580 = vrot.slane %v4266, 1
        %v5581 = vrot.slane %v4265, 1
        %v5582 = vrot.slane %v4264, 1
        %v5583 = vrot.slane %v4263, 1
        %v5584 = vrot.slane %v4262, 1
        %v5585 = vrot.slane %v4261, 1
        %v5586 = vrot.slane %v4260, 1
        %v5587 = vrot.slane %v4259, 1
        %v5588 = vrot.slane %v4258, 1
        %v5589 = vrot.slane %v4257, 1
        %v5590 = vrot.slane %v4256, 1
        %v5591 = vrot.slane %v4255, 1
        %v5592 = vrot.slane %v4254, 1
        %v5593 = vrot.slane %v4253, 1
        %v5594 = vrot.slane %v4252, 1
        %v5595 = vrot.slane %v4251, 1
        %v5596 = vrot.slane %v4250, 1
        %v5597 = vrot.slane %v4249, 1
        %v5598 = vrot.slane %v4248, 1
        %v5599 = vrot.slane %v4247, 1
        %v5600 = vrot.slane %v4246, 1
        %v5601 = vrot.slane %v4245, 1
        %v5602 = vrot.slane %v4244, 1
        %v5603 = vrot.slane %v4243, 1
        %v5604 = vrot.slane %v4242, 1
        %v5605 = vrot.slane %v4241, 1
        %v5606 = vrot.slane %v4240, 1
        %v5607 = vrot.slane %v4239, 1
        %v5608 = vrot.slane %v4238, 1
        %v5609 = vrot.slane %v4237, 1
        %v5610 = vrot.slane %v4236, 1
        %v5611 = vrot.slane %v4235, 1
        %v5612 = vrot.slane %v4234, 1
        %v5613 = vrot.slane %v4233, 1
        %v5614 = vrot.slane %v4232, 1
        %v5615 = vrot.slane %v4231, 1
        %v5616 = vrot.slane %v4230, 1
        %v5617 = vrot.slane %v4229, 1
        %v5618 = vrot.slane %v4228, 1
        %v5619 = vrot.slane %v4227, 1
        %v5620 = vrot.slane %v4226, 1
        %v5621 = vrot.slane %v4225, 1
        %v5622 = vrot.slane %v4224, 1
        %v5623 = vrot.slane %v4223, 1
        %v5624 = vrot.slane %v4222, 1
        %v5625 = vrot.slane %v4221, 1
        %v5626 = vrot.slane %v4220, 1
        %v5627 = vrot.slane %v4219, 1
        %v5628 = vrot.slane %v4218, 1
        %v5629 = vrot.slane %v4217, 1
        %v5630 = vrot.slane %v4280, 1
        %v5631 = vsel %vm569, %v5629, %v5630
        %v5632 = vsel %vm569, %v5628, %v5629
        %v5633 = vsel %vm569, %v5627, %v5628
        %v5634 = vsel %vm569, %v5626, %v5627
        %v5635 = vsel %vm569, %v5625, %v5626
        %v5636 = vsel %vm569, %v5624, %v5625
        %v5637 = vsel %vm569, %v5623, %v5624
        %v5638 = vsel %vm569, %v5622, %v5623
        %v5639 = vsel %vm569, %v5621, %v5622
        %v5640 = vsel %vm569, %v5620, %v5621
        %v5641 = vsel %vm569, %v5619, %v5620
        %v5642 = vsel %vm569, %v5618, %v5619
        %v5643 = vsel %vm569, %v5617, %v5618
        %v5644 = vsel %vm569, %v5616, %v5617
        %v5645 = vsel %vm569, %v5615, %v5616
        %v5646 = vsel %vm569, %v5614, %v5615
        %v5647 = vsel %vm569, %v5613, %v5614
        %v5648 = vsel %vm569, %v5612, %v5613
        %v5649 = vsel %vm569, %v5611, %v5612
        %v5650 = vsel %vm569, %v5610, %v5611
        %v5651 = vsel %vm569, %v5609, %v5610
        %v5652 = vsel %vm569, %v5608, %v5609
        %v5653 = vsel %vm569, %v5607, %v5608
        %v5654 = vsel %vm569, %v5606, %v5607
        %v5655 = vsel %vm569, %v5605, %v5606
        %v5656 = vsel %vm569, %v5604, %v5605
        %v5657 = vsel %vm569, %v5603, %v5604
        %v5658 = vsel %vm569, %v5602, %v5603
        %v5659 = vsel %vm569, %v5601, %v5602
        %v5660 = vsel %vm569, %v5600, %v5601
        %v5661 = vsel %vm569, %v5599, %v5600
        %v5662 = vsel %vm569, %v5598, %v5599
        %v5663 = vsel %vm569, %v5597, %v5598
        %v5664 = vsel %vm569, %v5596, %v5597
        %v5665 = vsel %vm569, %v5595, %v5596
        %v5666 = vsel %vm569, %v5594, %v5595
        %v5667 = vsel %vm569, %v5593, %v5594
        %v5668 = vsel %vm569, %v5592, %v5593
        %v5669 = vsel %vm569, %v5591, %v5592
        %v5670 = vsel %vm569, %v5590, %v5591
        %v5671 = vsel %vm569, %v5589, %v5590
        %v5672 = vsel %vm569, %v5588, %v5589
        %v5673 = vsel %vm569, %v5587, %v5588
        %v5674 = vsel %vm569, %v5586, %v5587
        %v5675 = vsel %vm569, %v5585, %v5586
        %v5676 = vsel %vm569, %v5584, %v5585
        %v5677 = vsel %vm569, %v5583, %v5584
        %v5678 = vsel %vm569, %v5582, %v5583
        %v5679 = vsel %vm569, %v5581, %v5582
        %v5680 = vsel %vm569, %v5580, %v5581
        %v5681 = vsel %vm569, %v5579, %v5580
        %v5682 = vsel %vm569, %v5578, %v5579
        %v5683 = vsel %vm569, %v5577, %v5578
        %v5684 = vsel %vm569, %v5576, %v5577
        %v5685 = vsel %vm569, %v5575, %v5576
        %v5686 = vsel %vm569, %v5574, %v5575
        %v5687 = vsel %vm569, %v5573, %v5574
        %v5688 = vsel %vm569, %v5572, %v5573
        %v5689 = vsel %vm569, %v5571, %v5572
        %v5690 = vsel %vm569, %v5570, %v5571
        %v5691 = vsel %vm569, %v5569, %v5570
        %v5692 = vsel %vm569, %v5568, %v5569
        %v5693 = vsel %vm569, %v5567, %v5568
        %v5694 = vsel %vm569, %v5630, %v5567
        %v5695 = vpack.c.bf16 %v5692, %v5693
        %v5696 = vpack.c.bf16 %v5690, %v5691
        %v5697 = vpack.c.bf16 %v5688, %v5689
        %v5698 = vpack.c.bf16 %v5686, %v5687
        %v5699 = vpack.c.bf16 %v5684, %v5685
        %v5700 = vpack.c.bf16 %v5682, %v5683
        %v5701 = vpack.c.bf16 %v5680, %v5681
        %v5702 = vpack.c.bf16 %v5678, %v5679
        %v5703 = vpack.c.bf16 %v5676, %v5677
        %v5704 = vpack.c.bf16 %v5674, %v5675
        %v5705 = vpack.c.bf16 %v5672, %v5673
        %v5706 = vpack.c.bf16 %v5670, %v5671
        %v5707 = vpack.c.bf16 %v5668, %v5669
        %v5708 = vpack.c.bf16 %v5666, %v5667
        %v5709 = vpack.c.bf16 %v5664, %v5665
        %v5710 = vpack.c.bf16 %v5662, %v5663
        %v5711 = vpack.c.bf16 %v5660, %v5661
        %v5712 = vpack.c.bf16 %v5658, %v5659
        %v5713 = vpack.c.bf16 %v5656, %v5657
        %v5714 = vpack.c.bf16 %v5654, %v5655
        %v5715 = vpack.c.bf16 %v5652, %v5653
        %v5716 = vpack.c.bf16 %v5650, %v5651
        %v5717 = vpack.c.bf16 %v5648, %v5649
        %v5718 = vpack.c.bf16 %v5646, %v5647
        %v5719 = vpack.c.bf16 %v5644, %v5645
        %v5720 = vpack.c.bf16 %v5642, %v5643
        %v5721 = vpack.c.bf16 %v5640, %v5641
        %v5722 = vpack.c.bf16 %v5638, %v5639
        %v5723 = vpack.c.bf16 %v5636, %v5637
        %v5724 = vpack.c.bf16 %v5634, %v5635
        %v5725 = vpack.c.bf16 %v5632, %v5633
        %v5726 = vpack.c.bf16 %v5694, %v5631
        %s5727 = scalar_lea.vmem [#allocation7], 256
        %v5728 = vld [vmem:[%s5727] sm:$0xf]
        %v5729 = vld [vmem:[%s5727 + $0x4] sm:$0xf]
        %v5730 = vld [vmem:[%s5727 + $0x8] sm:$0xf]
        %v5731 = vld [vmem:[%s5727 + $0xc] sm:$0xf]
        %v5732 = vld [vmem:[%s5727 + $0x10] sm:$0xf]
        %v5733 = vld [vmem:[%s5727 + $0x14] sm:$0xf]
        %v5734 = vld [vmem:[%s5727 + $0x18] sm:$0xf]
        %v5735 = vld [vmem:[%s5727 + $0x1c] sm:$0xf]
        %v5736 = vld [vmem:[%s5727 + $0x20] sm:$0xf]
        %v5737 = vld [vmem:[%s5727 + $0x24] sm:$0xf]
        %v5738 = vld [vmem:[%s5727 + $0x28] sm:$0xf]
        %v5739 = vld [vmem:[%s5727 + $0x2c] sm:$0xf]
        %v5740 = vld [vmem:[%s5727 + $0x30] sm:$0xf]
        %v5741 = vld [vmem:[%s5727 + $0x34] sm:$0xf]
        %v5742 = vld [vmem:[%s5727 + $0x38] sm:$0xf]
        %v5743 = vld [vmem:[%s5727 + $0x3c] sm:$0xf]
        %v5760 = vunpack.c.l.b16 %v5728
        %v5761 = vunpack.c.l.b16 %v5729
        %v5762 = vunpack.c.l.b16 %v5730
        %v5763 = vunpack.c.l.b16 %v5731
        %v5764 = vunpack.c.l.b16 %v5732
        %v5765 = vunpack.c.l.b16 %v5733
        %v5766 = vunpack.c.l.b16 %v5734
        %v5767 = vunpack.c.l.b16 %v5735
        %v5768 = vunpack.c.l.b16 %v5736
        %v5769 = vunpack.c.l.b16 %v5737
        %v5770 = vunpack.c.l.b16 %v5738
        %v5771 = vunpack.c.l.b16 %v5739
        %v5772 = vunpack.c.l.b16 %v5740
        %v5773 = vunpack.c.l.b16 %v5741
        %v5774 = vunpack.c.l.b16 %v5742
        %v5775 = vunpack.c.l.b16 %v5743
        %v5776 = vpack.c.b16 %v5761, %v5760
        %v5777 = vpack.c.b16 %v5763, %v5762
        %v5778 = vpack.c.b16 %v5765, %v5764
        %v5779 = vpack.c.b16 %v5767, %v5766
        %v5780 = vpack.c.b16 %v5769, %v5768
        %v5781 = vpack.c.b16 %v5771, %v5770
        %v5782 = vpack.c.b16 %v5773, %v5772
        %v5783 = vpack.c.b16 %v5775, %v5774
        %5792 = vmatprep.subr.bf16.mxu0 0
        %5793 = vmatpush1.bf16.msra.mxu0 %v5776
        %5794 = vmatprep.subr.bf16.mxu0 0
        %5795 = vmatpush1.bf16.msra.mxu0 %v5777
        %5796 = vmatprep.subr.bf16.mxu0 0
        %5797 = vmatpush1.bf16.msra.mxu0 %v5778
        %5798 = vmatprep.subr.bf16.mxu0 0
        %5799 = vmatpush1.bf16.msra.mxu0 %v5779
        %5800 = vmatprep.subr.bf16.mxu0 0
        %5801 = vmatpush1.bf16.msra.mxu0 %v5780
        %5802 = vmatprep.subr.bf16.mxu0 0
        %5803 = vmatpush1.bf16.msra.mxu0 %v5781
        %5804 = vmatprep.subr.bf16.mxu0 0
        %5805 = vmatpush1.bf16.msra.mxu0 %v5782
        %5806 = vmatprep.subr.bf16.mxu0 0
        %5807 = vmatpush1.bf16.msra.mxu0 %v5783
        %5808 = vmatprep.subr.bf16.mxu0 0
        %5809 = vmatpush1.bf16.msra.mxu0 0
        %5810 = vmatprep.subr.bf16.mxu0 0
        %5811 = vmatpush1.bf16.msra.mxu0 0
        %5812 = vmatprep.subr.bf16.mxu0 0
        %5813 = vmatpush1.bf16.msra.mxu0 0
        %5814 = vmatprep.subr.bf16.mxu0 0
        %5815 = vmatpush1.bf16.msra.mxu0 0
        %5816 = vmatprep.subr.bf16.mxu0 0
        %5817 = vmatpush1.bf16.msra.mxu0 0
        %5818 = vmatprep.subr.bf16.mxu0 0
        %5819 = vmatpush1.bf16.msra.mxu0 0
        %5820 = vmatprep.subr.bf16.mxu0 0
        %5821 = vmatpush1.bf16.msra.mxu0 0
        %5822 = vmatprep.subr.bf16.mxu0 0
        %5823 = vmatpush1.bf16.msra.mxu0 0
        %5824 = vmatprep.mubr.bf16.mxu0 0
        %5825 = vmatmul.mubr.bf16.gmra.mrb[0].mxu0 %v5695
        %v5826 = vpop.f32.mrb[0].mxu0
        %v5827 = vadd.f32 0.0, %v5826
        %v5828 = vpop.f32.mrb[0].mxu0
        %v5829 = vpop.f32.mrb[0].mxu0
        %v5830 = vadd.f32 0.0, %v5829
        %v5831 = vpop.f32.mrb[0].mxu0
        %5832 = vmatprep.mubr.bf16.mxu0 0
        %5833 = vmatmul.mubr.bf16.gmra.mrb[0].mxu0 %v5696
        %v5834 = vpop.f32.mrb[0].mxu0
        %v5835 = vadd.f32 0.0, %v5834
        %v5836 = vpop.f32.mrb[0].mxu0
        %v5837 = vpop.f32.mrb[0].mxu0
        %v5838 = vadd.f32 0.0, %v5837
        %v5839 = vpop.f32.mrb[0].mxu0
        %5840 = vmatprep.mubr.bf16.mxu0 0
        %5841 = vmatmul.mubr.bf16.gmra.mrb[0].mxu0 %v5697
        %v5842 = vpop.f32.mrb[0].mxu0
        %v5843 = vadd.f32 0.0, %v5842
        %v5844 = vpop.f32.mrb[0].mxu0
        %v5845 = vpop.f32.mrb[0].mxu0
        %v5846 = vadd.f32 0.0, %v5845
        %v5847 = vpop.f32.mrb[0].mxu0
        %5848 = vmatprep.mubr.bf16.mxu0 0
        %5849 = vmatmul.mubr.bf16.gmra.mrb[0].mxu0 %v5698
        %v5850 = vpop.f32.mrb[0].mxu0
        %v5851 = vadd.f32 0.0, %v5850
        %v5852 = vpop.f32.mrb[0].mxu0
        %v5853 = vpop.f32.mrb[0].mxu0
        %v5854 = vadd.f32 0.0, %v5853
        %v5855 = vpop.f32.mrb[0].mxu0
        %5856 = vmatprep.mubr.bf16.mxu0 0
        %5857 = vmatmul.mubr.bf16.gmra.mrb[0].mxu0 %v5699
        %v5858 = vpop.f32.mrb[0].mxu0
        %v5859 = vadd.f32 0.0, %v5858
        %v5860 = vpop.f32.mrb[0].mxu0
        %v5861 = vpop.f32.mrb[0].mxu0
        %v5862 = vadd.f32 0.0, %v5861
        %v5863 = vpop.f32.mrb[0].mxu0
        %5864 = vmatprep.mubr.bf16.mxu0 0
        %5865 = vmatmul.mubr.bf16.gmra.mrb[0].mxu0 %v5700
        %v5866 = vpop.f32.mrb[0].mxu0
        %v5867 = vadd.f32 0.0, %v5866
        %v5868 = vpop.f32.mrb[0].mxu0
        %v5869 = vpop.f32.mrb[0].mxu0
        %v5870 = vadd.f32 0.0, %v5869
        %v5871 = vpop.f32.mrb[0].mxu0
        %5872 = vmatprep.mubr.bf16.mxu0 0
        %5873 = vmatmul.mubr.bf16.gmra.mrb[0].mxu0 %v5701
        %v5874 = vpop.f32.mrb[0].mxu0
        %v5875 = vadd.f32 0.0, %v5874
        %v5876 = vpop.f32.mrb[0].mxu0
        %v5877 = vpop.f32.mrb[0].mxu0
        %v5878 = vadd.f32 0.0, %v5877
        %v5879 = vpop.f32.mrb[0].mxu0
        %5880 = vmatprep.mubr.bf16.mxu0 0
        %5881 = vmatmul.mubr.bf16.gmra.mrb[0].mxu0 %v5702
        %v5882 = vpop.f32.mrb[0].mxu0
        %v5883 = vadd.f32 0.0, %v5882
        %v5884 = vpop.f32.mrb[0].mxu0
        %v5885 = vpop.f32.mrb[0].mxu0
        %v5886 = vadd.f32 0.0, %v5885
        %v5887 = vpop.f32.mrb[0].mxu0
        %5888 = vmatprep.mubr.bf16.mxu0 0
        %5889 = vmatmul.mubr.bf16.gmra.mrb[0].mxu0 %v5703
        %v5890 = vpop.f32.mrb[0].mxu0
        %v5891 = vadd.f32 0.0, %v5890
        %v5892 = vpop.f32.mrb[0].mxu0
        %v5893 = vpop.f32.mrb[0].mxu0
        %v5894 = vadd.f32 0.0, %v5893
        %v5895 = vpop.f32.mrb[0].mxu0
        %5896 = vmatprep.mubr.bf16.mxu0 0
        %5897 = vmatmul.mubr.bf16.gmra.mrb[0].mxu0 %v5704
        %v5898 = vpop.f32.mrb[0].mxu0
        %v5899 = vadd.f32 0.0, %v5898
        %v5900 = vpop.f32.mrb[0].mxu0
        %v5901 = vpop.f32.mrb[0].mxu0
        %v5902 = vadd.f32 0.0, %v5901
        %v5903 = vpop.f32.mrb[0].mxu0
        %5904 = vmatprep.mubr.bf16.mxu0 0
        %5905 = vmatmul.mubr.bf16.gmra.mrb[0].mxu0 %v5705
        %v5906 = vpop.f32.mrb[0].mxu0
        %v5907 = vadd.f32 0.0, %v5906
        %v5908 = vpop.f32.mrb[0].mxu0
        %v5909 = vpop.f32.mrb[0].mxu0
        %v5910 = vadd.f32 0.0, %v5909
        %v5911 = vpop.f32.mrb[0].mxu0
        %5912 = vmatprep.mubr.bf16.mxu0 0
        %5913 = vmatmul.mubr.bf16.gmra.mrb[0].mxu0 %v5706
        %v5914 = vpop.f32.mrb[0].mxu0
        %v5915 = vadd.f32 0.0, %v5914
        %v5916 = vpop.f32.mrb[0].mxu0
        %v5917 = vpop.f32.mrb[0].mxu0
        %v5918 = vadd.f32 0.0, %v5917
        %v5919 = vpop.f32.mrb[0].mxu0
        %5920 = vmatprep.mubr.bf16.mxu0 0
        %5921 = vmatmul.mubr.bf16.gmra.mrb[0].mxu0 %v5707
        %v5922 = vpop.f32.mrb[0].mxu0
        %v5923 = vadd.f32 0.0, %v5922
        %v5924 = vpop.f32.mrb[0].mxu0
        %v5925 = vpop.f32.mrb[0].mxu0
        %v5926 = vadd.f32 0.0, %v5925
        %v5927 = vpop.f32.mrb[0].mxu0
        %5928 = vmatprep.mubr.bf16.mxu0 0
        %5929 = vmatmul.mubr.bf16.gmra.mrb[0].mxu0 %v5708
        %v5930 = vpop.f32.mrb[0].mxu0
        %v5931 = vadd.f32 0.0, %v5930
        %v5932 = vpop.f32.mrb[0].mxu0
        %v5933 = vpop.f32.mrb[0].mxu0
        %v5934 = vadd.f32 0.0, %v5933
        %v5935 = vpop.f32.mrb[0].mxu0
        %5936 = vmatprep.mubr.bf16.mxu0 0
        %5937 = vmatmul.mubr.bf16.gmra.mrb[0].mxu0 %v5709
        %v5938 = vpop.f32.mrb[0].mxu0
        %v5939 = vadd.f32 0.0, %v5938
        %v5940 = vpop.f32.mrb[0].mxu0
        %v5941 = vpop.f32.mrb[0].mxu0
        %v5942 = vadd.f32 0.0, %v5941
        %v5943 = vpop.f32.mrb[0].mxu0
        %5944 = vmatprep.mubr.bf16.mxu0 0
        %5945 = vmatmul.mubr.bf16.gmra.mrb[0].mxu0 %v5710
        %v5946 = vpop.f32.mrb[0].mxu0
        %v5947 = vadd.f32 0.0, %v5946
        %v5948 = vpop.f32.mrb[0].mxu0
        %v5949 = vpop.f32.mrb[0].mxu0
        %v5950 = vadd.f32 0.0, %v5949
        %v5951 = vpop.f32.mrb[0].mxu0
        %5952 = vmatprep.mubr.bf16.mxu0 0
        %5953 = vmatmul.mubr.bf16.gmra.mrb[0].mxu0 %v5711
        %v5954 = vpop.f32.mrb[0].mxu0
        %v5955 = vadd.f32 0.0, %v5954
        %v5956 = vpop.f32.mrb[0].mxu0
        %v5957 = vpop.f32.mrb[0].mxu0
        %v5958 = vadd.f32 0.0, %v5957
        %v5959 = vpop.f32.mrb[0].mxu0
        %5960 = vmatprep.mubr.bf16.mxu0 0
        %5961 = vmatmul.mubr.bf16.gmra.mrb[0].mxu0 %v5712
        %v5962 = vpop.f32.mrb[0].mxu0
        %v5963 = vadd.f32 0.0, %v5962
        %v5964 = vpop.f32.mrb[0].mxu0
        %v5965 = vpop.f32.mrb[0].mxu0
        %v5966 = vadd.f32 0.0, %v5965
        %v5967 = vpop.f32.mrb[0].mxu0
        %5968 = vmatprep.mubr.bf16.mxu0 0
        %5969 = vmatmul.mubr.bf16.gmra.mrb[0].mxu0 %v5713
        %v5970 = vpop.f32.mrb[0].mxu0
        %v5971 = vadd.f32 0.0, %v5970
        %v5972 = vpop.f32.mrb[0].mxu0
        %v5973 = vpop.f32.mrb[0].mxu0
        %v5974 = vadd.f32 0.0, %v5973
        %v5975 = vpop.f32.mrb[0].mxu0
        %5976 = vmatprep.mubr.bf16.mxu0 0
        %5977 = vmatmul.mubr.bf16.gmra.mrb[0].mxu0 %v5714
        %v5978 = vpop.f32.mrb[0].mxu0
        %v5979 = vadd.f32 0.0, %v5978
        %v5980 = vpop.f32.mrb[0].mxu0
        %v5981 = vpop.f32.mrb[0].mxu0
        %v5982 = vadd.f32 0.0, %v5981
        %v5983 = vpop.f32.mrb[0].mxu0
        %5984 = vmatprep.mubr.bf16.mxu0 0
        %5985 = vmatmul.mubr.bf16.gmra.mrb[0].mxu0 %v5715
        %v5986 = vpop.f32.mrb[0].mxu0
        %v5987 = vadd.f32 0.0, %v5986
        %v5988 = vpop.f32.mrb[0].mxu0
        %v5989 = vpop.f32.mrb[0].mxu0
        %v5990 = vadd.f32 0.0, %v5989
        %v5991 = vpop.f32.mrb[0].mxu0
        %5992 = vmatprep.mubr.bf16.mxu0 0
        %5993 = vmatmul.mubr.bf16.gmra.mrb[0].mxu0 %v5716
        %v5994 = vpop.f32.mrb[0].mxu0
        %v5995 = vadd.f32 0.0, %v5994
        %v5996 = vpop.f32.mrb[0].mxu0
        %v5997 = vpop.f32.mrb[0].mxu0
        %v5998 = vadd.f32 0.0, %v5997
        %v5999 = vpop.f32.mrb[0].mxu0
        %6000 = vmatprep.mubr.bf16.mxu0 0
        %6001 = vmatmul.mubr.bf16.gmra.mrb[0].mxu0 %v5717
        %v6002 = vpop.f32.mrb[0].mxu0
        %v6003 = vadd.f32 0.0, %v6002
        %v6004 = vpop.f32.mrb[0].mxu0
        %v6005 = vpop.f32.mrb[0].mxu0
        %v6006 = vadd.f32 0.0, %v6005
        %v6007 = vpop.f32.mrb[0].mxu0
        %6008 = vmatprep.mubr.bf16.mxu0 0
        %6009 = vmatmul.mubr.bf16.gmra.mrb[0].mxu0 %v5718
        %v6010 = vpop.f32.mrb[0].mxu0
        %v6011 = vadd.f32 0.0, %v6010
        %v6012 = vpop.f32.mrb[0].mxu0
        %v6013 = vpop.f32.mrb[0].mxu0
        %v6014 = vadd.f32 0.0, %v6013
        %v6015 = vpop.f32.mrb[0].mxu0
        %6016 = vmatprep.mubr.bf16.mxu0 0
        %6017 = vmatmul.mubr.bf16.gmra.mrb[0].mxu0 %v5719
        %v6018 = vpop.f32.mrb[0].mxu0
        %v6019 = vadd.f32 0.0, %v6018
        %v6020 = vpop.f32.mrb[0].mxu0
        %v6021 = vpop.f32.mrb[0].mxu0
        %v6022 = vadd.f32 0.0, %v6021
        %v6023 = vpop.f32.mrb[0].mxu0
        %6024 = vmatprep.mubr.bf16.mxu0 0
        %6025 = vmatmul.mubr.bf16.gmra.mrb[0].mxu0 %v5720
        %v6026 = vpop.f32.mrb[0].mxu0
        %v6027 = vadd.f32 0.0, %v6026
        %v6028 = vpop.f32.mrb[0].mxu0
        %v6029 = vpop.f32.mrb[0].mxu0
        %v6030 = vadd.f32 0.0, %v6029
        %v6031 = vpop.f32.mrb[0].mxu0
        %6032 = vmatprep.mubr.bf16.mxu0 0
        %6033 = vmatmul.mubr.bf16.gmra.mrb[0].mxu0 %v5721
        %v6034 = vpop.f32.mrb[0].mxu0
        %v6035 = vadd.f32 0.0, %v6034
        %v6036 = vpop.f32.mrb[0].mxu0
        %v6037 = vpop.f32.mrb[0].mxu0
        %v6038 = vadd.f32 0.0, %v6037
        %v6039 = vpop.f32.mrb[0].mxu0
        %6040 = vmatprep.mubr.bf16.mxu0 0
        %6041 = vmatmul.mubr.bf16.gmra.mrb[0].mxu0 %v5722
        %v6042 = vpop.f32.mrb[0].mxu0
        %v6043 = vadd.f32 0.0, %v6042
        %v6044 = vpop.f32.mrb[0].mxu0
        %v6045 = vpop.f32.mrb[0].mxu0
        %v6046 = vadd.f32 0.0, %v6045
        %v6047 = vpop.f32.mrb[0].mxu0
        %6048 = vmatprep.mubr.bf16.mxu0 0
        %6049 = vmatmul.mubr.bf16.gmra.mrb[0].mxu0 %v5723
        %v6050 = vpop.f32.mrb[0].mxu0
        %v6051 = vadd.f32 0.0, %v6050
        %v6052 = vpop.f32.mrb[0].mxu0
        %v6053 = vpop.f32.mrb[0].mxu0
        %v6054 = vadd.f32 0.0, %v6053
        %v6055 = vpop.f32.mrb[0].mxu0
        %6056 = vmatprep.mubr.bf16.mxu0 0
        %6057 = vmatmul.mubr.bf16.gmra.mrb[0].mxu0 %v5724
        %v6058 = vpop.f32.mrb[0].mxu0
        %v6059 = vadd.f32 0.0, %v6058
        %v6060 = vpop.f32.mrb[0].mxu0
        %v6061 = vpop.f32.mrb[0].mxu0
        %v6062 = vadd.f32 0.0, %v6061
        %v6063 = vpop.f32.mrb[0].mxu0
        %6064 = vmatprep.mubr.bf16.mxu0 0
        %6065 = vmatmul.mubr.bf16.gmra.mrb[0].mxu0 %v5725
        %v6066 = vpop.f32.mrb[0].mxu0
        %v6067 = vadd.f32 0.0, %v6066
        %v6068 = vpop.f32.mrb[0].mxu0
        %v6069 = vpop.f32.mrb[0].mxu0
        %v6070 = vadd.f32 0.0, %v6069
        %v6071 = vpop.f32.mrb[0].mxu0
        %6072 = vmatprep.mubr.bf16.mxu0 0
        %6073 = vmatmul.mubr.bf16.gmra.mrb[0].mxu0 %v5726
        %v6074 = vpop.f32.mrb[0].mxu0
        %v6075 = vadd.f32 0.0, %v6074
        %v6076 = vpop.f32.mrb[0].mxu0
        %v6077 = vpop.f32.mrb[0].mxu0
        %v6078 = vadd.f32 0.0, %v6077
        %v6079 = vpop.f32.mrb[0].mxu0
        %6080 = vdwg.mxu0
        %v6081 = vadd.f32 %v5085, %v5827
        %v6082 = vadd.f32 %v5086, %v5830
        %v6083 = vadd.f32 %v5087, %v5835
        %v6084 = vadd.f32 %v5088, %v5838
        %v6085 = vadd.f32 %v5089, %v5843
        %v6086 = vadd.f32 %v5090, %v5846
        %v6087 = vadd.f32 %v5091, %v5851
        %v6088 = vadd.f32 %v5092, %v5854
        %v6089 = vadd.f32 %v5093, %v5859
        %v6090 = vadd.f32 %v5094, %v5862
        %v6091 = vadd.f32 %v5095, %v5867
        %v6092 = vadd.f32 %v5096, %v5870
        %v6093 = vadd.f32 %v5097, %v5875
        %v6094 = vadd.f32 %v5098, %v5878
        %v6095 = vadd.f32 %v5099, %v5883
        %v6096 = vadd.f32 %v5100, %v5886
        %v6097 = vadd.f32 %v5101, %v5891
        %v6098 = vadd.f32 %v5102, %v5894
        %v6099 = vadd.f32 %v5103, %v5899
        %v6100 = vadd.f32 %v5104, %v5902
        %v6101 = vadd.f32 %v5105, %v5907
        %v6102 = vadd.f32 %v5106, %v5910
        %v6103 = vadd.f32 %v5107, %v5915
        %v6104 = vadd.f32 %v5108, %v5918
        %v6105 = vadd.f32 %v5109, %v5923
        %v6106 = vadd.f32 %v5110, %v5926
        %v6107 = vadd.f32 %v5111, %v5931
        %v6108 = vadd.f32 %v5112, %v5934
        %v6109 = vadd.f32 %v5113, %v5939
        %v6110 = vadd.f32 %v5114, %v5942
        %v6111 = vadd.f32 %v5115, %v5947
        %v6112 = vadd.f32 %v5116, %v5950
        %v6113 = vadd.f32 %v5117, %v5955
        %v6114 = vadd.f32 %v5118, %v5958
        %v6115 = vadd.f32 %v5119, %v5963
        %v6116 = vadd.f32 %v5120, %v5966
        %v6117 = vadd.f32 %v5121, %v5971
        %v6118 = vadd.f32 %v5122, %v5974
        %v6119 = vadd.f32 %v5123, %v5979
        %v6120 = vadd.f32 %v5124, %v5982
        %v6121 = vadd.f32 %v5125, %v5987
        %v6122 = vadd.f32 %v5126, %v5990
        %v6123 = vadd.f32 %v5127, %v5995
        %v6124 = vadd.f32 %v5128, %v5998
        %v6125 = vadd.f32 %v5129, %v6003
        %v6126 = vadd.f32 %v5130, %v6006
        %v6127 = vadd.f32 %v5131, %v6011
        %v6128 = vadd.f32 %v5132, %v6014
        %v6129 = vadd.f32 %v5133, %v6019
        %v6130 = vadd.f32 %v5134, %v6022
        %v6131 = vadd.f32 %v5135, %v6027
        %v6132 = vadd.f32 %v5136, %v6030
        %v6133 = vadd.f32 %v5137, %v6035
        %v6134 = vadd.f32 %v5138, %v6038
        %v6135 = vadd.f32 %v5139, %v6043
        %v6136 = vadd.f32 %v5140, %v6046
        %v6137 = vadd.f32 %v5141, %v6051
        %v6138 = vadd.f32 %v5142, %v6054
        %v6139 = vadd.f32 %v5143, %v6059
        %v6140 = vadd.f32 %v5144, %v6062
        %v6141 = vadd.f32 %v5145, %v6067
        %v6142 = vadd.f32 %v5146, %v6070
        %v6143 = vadd.f32 %v5147, %v6075
        %v6144 = vadd.f32 %v5148, %v6078
        %s6145 = scalar_lea.vmem [#allocation8], 256
        %v6146 = vld [vmem:[%s6145] sm:$0xf]
        %v6147 = vld [vmem:[%s6145 + $0x4] sm:$0xf]
        %v6148 = vld [vmem:[%s6145 + $0x8] sm:$0xf]
        %v6149 = vld [vmem:[%s6145 + $0xc] sm:$0xf]
        %v6150 = vld [vmem:[%s6145 + $0x10] sm:$0xf]
        %v6151 = vld [vmem:[%s6145 + $0x14] sm:$0xf]
        %v6152 = vld [vmem:[%s6145 + $0x18] sm:$0xf]
        %v6153 = vld [vmem:[%s6145 + $0x1c] sm:$0xf]
        %v6154 = vld [vmem:[%s6145 + $0x20] sm:$0xf]
        %v6155 = vld [vmem:[%s6145 + $0x24] sm:$0xf]
        %v6156 = vld [vmem:[%s6145 + $0x28] sm:$0xf]
        %v6157 = vld [vmem:[%s6145 + $0x2c] sm:$0xf]
        %v6158 = vld [vmem:[%s6145 + $0x30] sm:$0xf]
        %v6159 = vld [vmem:[%s6145 + $0x34] sm:$0xf]
        %v6160 = vld [vmem:[%s6145 + $0x38] sm:$0xf]
        %v6161 = vld [vmem:[%s6145 + $0x3c] sm:$0xf]
        %v6178 = vunpack.c.l.b16 %v6146
        %v6179 = vunpack.c.l.b16 %v6147
        %v6180 = vunpack.c.l.b16 %v6148
        %v6181 = vunpack.c.l.b16 %v6149
        %v6182 = vunpack.c.l.b16 %v6150
        %v6183 = vunpack.c.l.b16 %v6151
        %v6184 = vunpack.c.l.b16 %v6152
        %v6185 = vunpack.c.l.b16 %v6153
        %v6186 = vunpack.c.l.b16 %v6154
        %v6187 = vunpack.c.l.b16 %v6155
        %v6188 = vunpack.c.l.b16 %v6156
        %v6189 = vunpack.c.l.b16 %v6157
        %v6190 = vunpack.c.l.b16 %v6158
        %v6191 = vunpack.c.l.b16 %v6159
        %v6192 = vunpack.c.l.b16 %v6160
        %v6193 = vunpack.c.l.b16 %v6161
        %v6194 = vpack.c.b16 %v6179, %v6178
        %v6195 = vpack.c.b16 %v6181, %v6180
        %v6196 = vpack.c.b16 %v6183, %v6182
        %v6197 = vpack.c.b16 %v6185, %v6184
        %v6198 = vpack.c.b16 %v6187, %v6186
        %v6199 = vpack.c.b16 %v6189, %v6188
        %v6200 = vpack.c.b16 %v6191, %v6190
        %v6201 = vpack.c.b16 %v6193, %v6192
        %6210 = vmatprep.subr.bf16.mxu0 0
        %6211 = vmatpush1.bf16.msra.mxu0 %v6194
        %6212 = vmatprep.subr.bf16.mxu0 0
        %6213 = vmatpush1.bf16.msra.mxu0 %v6195
        %6214 = vmatprep.subr.bf16.mxu0 0
        %6215 = vmatpush1.bf16.msra.mxu0 %v6196
        %6216 = vmatprep.subr.bf16.mxu0 0
        %6217 = vmatpush1.bf16.msra.mxu0 %v6197
        %6218 = vmatprep.subr.bf16.mxu0 0
        %6219 = vmatpush1.bf16.msra.mxu0 %v6198
        %6220 = vmatprep.subr.bf16.mxu0 0
        %6221 = vmatpush1.bf16.msra.mxu0 %v6199
        %6222 = vmatprep.subr.bf16.mxu0 0
        %6223 = vmatpush1.bf16.msra.mxu0 %v6200
        %6224 = vmatprep.subr.bf16.mxu0 0
        %6225 = vmatpush1.bf16.msra.mxu0 %v6201
        %6226 = vmatprep.subr.bf16.mxu0 0
        %6227 = vmatpush1.bf16.msra.mxu0 0
        %6228 = vmatprep.subr.bf16.mxu0 0
        %6229 = vmatpush1.bf16.msra.mxu0 0
        %6230 = vmatprep.subr.bf16.mxu0 0
        %6231 = vmatpush1.bf16.msra.mxu0 0
        %6232 = vmatprep.subr.bf16.mxu0 0
        %6233 = vmatpush1.bf16.msra.mxu0 0
        %6234 = vmatprep.subr.bf16.mxu0 0
        %6235 = vmatpush1.bf16.msra.mxu0 0
        %6236 = vmatprep.subr.bf16.mxu0 0
        %6237 = vmatpush1.bf16.msra.mxu0 0
        %6238 = vmatprep.subr.bf16.mxu0 0
        %6239 = vmatpush1.bf16.msra.mxu0 0
        %6240 = vmatprep.subr.bf16.mxu0 0
        %6241 = vmatpush1.bf16.msra.mxu0 0
        %6242 = vmatprep.mubr.bf16.mxu0 0
        %6243 = vmatmul.mubr.bf16.gmra.mrb[0].mxu0 %v5695
        %v6244 = vpop.f32.mrb[0].mxu0
        %v6245 = vadd.f32 0.0, %v6244
        %v6246 = vpop.f32.mrb[0].mxu0
        %v6247 = vpop.f32.mrb[0].mxu0
        %v6248 = vadd.f32 0.0, %v6247
        %v6249 = vpop.f32.mrb[0].mxu0
        %6250 = vmatprep.mubr.bf16.mxu0 0
        %6251 = vmatmul.mubr.bf16.gmra.mrb[0].mxu0 %v5696
        %v6252 = vpop.f32.mrb[0].mxu0
        %v6253 = vadd.f32 0.0, %v6252
        %v6254 = vpop.f32.mrb[0].mxu0
        %v6255 = vpop.f32.mrb[0].mxu0
        %v6256 = vadd.f32 0.0, %v6255
        %v6257 = vpop.f32.mrb[0].mxu0
        %6258 = vmatprep.mubr.bf16.mxu0 0
        %6259 = vmatmul.mubr.bf16.gmra.mrb[0].mxu0 %v5697
        %v6260 = vpop.f32.mrb[0].mxu0
        %v6261 = vadd.f32 0.0, %v6260
        %v6262 = vpop.f32.mrb[0].mxu0
        %v6263 = vpop.f32.mrb[0].mxu0
        %v6264 = vadd.f32 0.0, %v6263
        %v6265 = vpop.f32.mrb[0].mxu0
        %6266 = vmatprep.mubr.bf16.mxu0 0
        %6267 = vmatmul.mubr.bf16.gmra.mrb[0].mxu0 %v5698
        %v6268 = vpop.f32.mrb[0].mxu0
        %v6269 = vadd.f32 0.0, %v6268
        %v6270 = vpop.f32.mrb[0].mxu0
        %v6271 = vpop.f32.mrb[0].mxu0
        %v6272 = vadd.f32 0.0, %v6271
        %v6273 = vpop.f32.mrb[0].mxu0
        %6274 = vmatprep.mubr.bf16.mxu0 0
        %6275 = vmatmul.mubr.bf16.gmra.mrb[0].mxu0 %v5699
        %v6276 = vpop.f32.mrb[0].mxu0
        %v6277 = vadd.f32 0.0, %v6276
        %v6278 = vpop.f32.mrb[0].mxu0
        %v6279 = vpop.f32.mrb[0].mxu0
        %v6280 = vadd.f32 0.0, %v6279
        %v6281 = vpop.f32.mrb[0].mxu0
        %6282 = vmatprep.mubr.bf16.mxu0 0
        %6283 = vmatmul.mubr.bf16.gmra.mrb[0].mxu0 %v5700
        %v6284 = vpop.f32.mrb[0].mxu0
        %v6285 = vadd.f32 0.0, %v6284
        %v6286 = vpop.f32.mrb[0].mxu0
        %v6287 = vpop.f32.mrb[0].mxu0
        %v6288 = vadd.f32 0.0, %v6287
        %v6289 = vpop.f32.mrb[0].mxu0
        %6290 = vmatprep.mubr.bf16.mxu0 0
        %6291 = vmatmul.mubr.bf16.gmra.mrb[0].mxu0 %v5701
        %v6292 = vpop.f32.mrb[0].mxu0
        %v6293 = vadd.f32 0.0, %v6292
        %v6294 = vpop.f32.mrb[0].mxu0
        %v6295 = vpop.f32.mrb[0].mxu0
        %v6296 = vadd.f32 0.0, %v6295
        %v6297 = vpop.f32.mrb[0].mxu0
        %6298 = vmatprep.mubr.bf16.mxu0 0
        %6299 = vmatmul.mubr.bf16.gmra.mrb[0].mxu0 %v5702
        %v6300 = vpop.f32.mrb[0].mxu0
        %v6301 = vadd.f32 0.0, %v6300
        %v6302 = vpop.f32.mrb[0].mxu0
        %v6303 = vpop.f32.mrb[0].mxu0
        %v6304 = vadd.f32 0.0, %v6303
        %v6305 = vpop.f32.mrb[0].mxu0
        %6306 = vmatprep.mubr.bf16.mxu0 0
        %6307 = vmatmul.mubr.bf16.gmra.mrb[0].mxu0 %v5703
        %v6308 = vpop.f32.mrb[0].mxu0
        %v6309 = vadd.f32 0.0, %v6308
        %v6310 = vpop.f32.mrb[0].mxu0
        %v6311 = vpop.f32.mrb[0].mxu0
        %v6312 = vadd.f32 0.0, %v6311
        %v6313 = vpop.f32.mrb[0].mxu0
        %6314 = vmatprep.mubr.bf16.mxu0 0
        %6315 = vmatmul.mubr.bf16.gmra.mrb[0].mxu0 %v5704
        %v6316 = vpop.f32.mrb[0].mxu0
        %v6317 = vadd.f32 0.0, %v6316
        %v6318 = vpop.f32.mrb[0].mxu0
        %v6319 = vpop.f32.mrb[0].mxu0
        %v6320 = vadd.f32 0.0, %v6319
        %v6321 = vpop.f32.mrb[0].mxu0
        %6322 = vmatprep.mubr.bf16.mxu0 0
        %6323 = vmatmul.mubr.bf16.gmra.mrb[0].mxu0 %v5705
        %v6324 = vpop.f32.mrb[0].mxu0
        %v6325 = vadd.f32 0.0, %v6324
        %v6326 = vpop.f32.mrb[0].mxu0
        %v6327 = vpop.f32.mrb[0].mxu0
        %v6328 = vadd.f32 0.0, %v6327
        %v6329 = vpop.f32.mrb[0].mxu0
        %6330 = vmatprep.mubr.bf16.mxu0 0
        %6331 = vmatmul.mubr.bf16.gmra.mrb[0].mxu0 %v5706
        %v6332 = vpop.f32.mrb[0].mxu0
        %v6333 = vadd.f32 0.0, %v6332
        %v6334 = vpop.f32.mrb[0].mxu0
        %v6335 = vpop.f32.mrb[0].mxu0
        %v6336 = vadd.f32 0.0, %v6335
        %v6337 = vpop.f32.mrb[0].mxu0
        %6338 = vmatprep.mubr.bf16.mxu0 0
        %6339 = vmatmul.mubr.bf16.gmra.mrb[0].mxu0 %v5707
        %v6340 = vpop.f32.mrb[0].mxu0
        %v6341 = vadd.f32 0.0, %v6340
        %v6342 = vpop.f32.mrb[0].mxu0
        %v6343 = vpop.f32.mrb[0].mxu0
        %v6344 = vadd.f32 0.0, %v6343
        %v6345 = vpop.f32.mrb[0].mxu0
        %6346 = vmatprep.mubr.bf16.mxu0 0
        %6347 = vmatmul.mubr.bf16.gmra.mrb[0].mxu0 %v5708
        %v6348 = vpop.f32.mrb[0].mxu0
        %v6349 = vadd.f32 0.0, %v6348
        %v6350 = vpop.f32.mrb[0].mxu0
        %v6351 = vpop.f32.mrb[0].mxu0
        %v6352 = vadd.f32 0.0, %v6351
        %v6353 = vpop.f32.mrb[0].mxu0
        %6354 = vmatprep.mubr.bf16.mxu0 0
        %6355 = vmatmul.mubr.bf16.gmra.mrb[0].mxu0 %v5709
        %v6356 = vpop.f32.mrb[0].mxu0
        %v6357 = vadd.f32 0.0, %v6356
        %v6358 = vpop.f32.mrb[0].mxu0
        %v6359 = vpop.f32.mrb[0].mxu0
        %v6360 = vadd.f32 0.0, %v6359
        %v6361 = vpop.f32.mrb[0].mxu0
        %6362 = vmatprep.mubr.bf16.mxu0 0
        %6363 = vmatmul.mubr.bf16.gmra.mrb[0].mxu0 %v5710
        %v6364 = vpop.f32.mrb[0].mxu0
        %v6365 = vadd.f32 0.0, %v6364
        %v6366 = vpop.f32.mrb[0].mxu0
        %v6367 = vpop.f32.mrb[0].mxu0
        %v6368 = vadd.f32 0.0, %v6367
        %v6369 = vpop.f32.mrb[0].mxu0
        %6370 = vmatprep.mubr.bf16.mxu0 0
        %6371 = vmatmul.mubr.bf16.gmra.mrb[0].mxu0 %v5711
        %v6372 = vpop.f32.mrb[0].mxu0
        %v6373 = vadd.f32 0.0, %v6372
        %v6374 = vpop.f32.mrb[0].mxu0
        %v6375 = vpop.f32.mrb[0].mxu0
        %v6376 = vadd.f32 0.0, %v6375
        %v6377 = vpop.f32.mrb[0].mxu0
        %6378 = vmatprep.mubr.bf16.mxu0 0
        %6379 = vmatmul.mubr.bf16.gmra.mrb[0].mxu0 %v5712
        %v6380 = vpop.f32.mrb[0].mxu0
        %v6381 = vadd.f32 0.0, %v6380
        %v6382 = vpop.f32.mrb[0].mxu0
        %v6383 = vpop.f32.mrb[0].mxu0
        %v6384 = vadd.f32 0.0, %v6383
        %v6385 = vpop.f32.mrb[0].mxu0
        %6386 = vmatprep.mubr.bf16.mxu0 0
        %6387 = vmatmul.mubr.bf16.gmra.mrb[0].mxu0 %v5713
        %v6388 = vpop.f32.mrb[0].mxu0
        %v6389 = vadd.f32 0.0, %v6388
        %v6390 = vpop.f32.mrb[0].mxu0
        %v6391 = vpop.f32.mrb[0].mxu0
        %v6392 = vadd.f32 0.0, %v6391
        %v6393 = vpop.f32.mrb[0].mxu0
        %6394 = vmatprep.mubr.bf16.mxu0 0
        %6395 = vmatmul.mubr.bf16.gmra.mrb[0].mxu0 %v5714
        %v6396 = vpop.f32.mrb[0].mxu0
        %v6397 = vadd.f32 0.0, %v6396
        %v6398 = vpop.f32.mrb[0].mxu0
        %v6399 = vpop.f32.mrb[0].mxu0
        %v6400 = vadd.f32 0.0, %v6399
        %v6401 = vpop.f32.mrb[0].mxu0
        %6402 = vmatprep.mubr.bf16.mxu0 0
        %6403 = vmatmul.mubr.bf16.gmra.mrb[0].mxu0 %v5715
        %v6404 = vpop.f32.mrb[0].mxu0
        %v6405 = vadd.f32 0.0, %v6404
        %v6406 = vpop.f32.mrb[0].mxu0
        %v6407 = vpop.f32.mrb[0].mxu0
        %v6408 = vadd.f32 0.0, %v6407
        %v6409 = vpop.f32.mrb[0].mxu0
        %6410 = vmatprep.mubr.bf16.mxu0 0
        %6411 = vmatmul.mubr.bf16.gmra.mrb[0].mxu0 %v5716
        %v6412 = vpop.f32.mrb[0].mxu0
        %v6413 = vadd.f32 0.0, %v6412
        %v6414 = vpop.f32.mrb[0].mxu0
        %v6415 = vpop.f32.mrb[0].mxu0
        %v6416 = vadd.f32 0.0, %v6415
        %v6417 = vpop.f32.mrb[0].mxu0
        %6418 = vmatprep.mubr.bf16.mxu0 0
        %6419 = vmatmul.mubr.bf16.gmra.mrb[0].mxu0 %v5717
        %v6420 = vpop.f32.mrb[0].mxu0
        %v6421 = vadd.f32 0.0, %v6420
        %v6422 = vpop.f32.mrb[0].mxu0
        %v6423 = vpop.f32.mrb[0].mxu0
        %v6424 = vadd.f32 0.0, %v6423
        %v6425 = vpop.f32.mrb[0].mxu0
        %6426 = vmatprep.mubr.bf16.mxu0 0
        %6427 = vmatmul.mubr.bf16.gmra.mrb[0].mxu0 %v5718
        %v6428 = vpop.f32.mrb[0].mxu0
        %v6429 = vadd.f32 0.0, %v6428
        %v6430 = vpop.f32.mrb[0].mxu0
        %v6431 = vpop.f32.mrb[0].mxu0
        %v6432 = vadd.f32 0.0, %v6431
        %v6433 = vpop.f32.mrb[0].mxu0
        %6434 = vmatprep.mubr.bf16.mxu0 0
        %6435 = vmatmul.mubr.bf16.gmra.mrb[0].mxu0 %v5719
        %v6436 = vpop.f32.mrb[0].mxu0
        %v6437 = vadd.f32 0.0, %v6436
        %v6438 = vpop.f32.mrb[0].mxu0
        %v6439 = vpop.f32.mrb[0].mxu0
        %v6440 = vadd.f32 0.0, %v6439
        %v6441 = vpop.f32.mrb[0].mxu0
        %6442 = vmatprep.mubr.bf16.mxu0 0
        %6443 = vmatmul.mubr.bf16.gmra.mrb[0].mxu0 %v5720
        %v6444 = vpop.f32.mrb[0].mxu0
        %v6445 = vadd.f32 0.0, %v6444
        %v6446 = vpop.f32.mrb[0].mxu0
        %v6447 = vpop.f32.mrb[0].mxu0
        %v6448 = vadd.f32 0.0, %v6447
        %v6449 = vpop.f32.mrb[0].mxu0
        %6450 = vmatprep.mubr.bf16.mxu0 0
        %6451 = vmatmul.mubr.bf16.gmra.mrb[0].mxu0 %v5721
        %v6452 = vpop.f32.mrb[0].mxu0
        %v6453 = vadd.f32 0.0, %v6452
        %v6454 = vpop.f32.mrb[0].mxu0
        %v6455 = vpop.f32.mrb[0].mxu0
        %v6456 = vadd.f32 0.0, %v6455
        %v6457 = vpop.f32.mrb[0].mxu0
        %6458 = vmatprep.mubr.bf16.mxu0 0
        %6459 = vmatmul.mubr.bf16.gmra.mrb[0].mxu0 %v5722
        %v6460 = vpop.f32.mrb[0].mxu0
        %v6461 = vadd.f32 0.0, %v6460
        %v6462 = vpop.f32.mrb[0].mxu0
        %v6463 = vpop.f32.mrb[0].mxu0
        %v6464 = vadd.f32 0.0, %v6463
        %v6465 = vpop.f32.mrb[0].mxu0
        %6466 = vmatprep.mubr.bf16.mxu0 0
        %6467 = vmatmul.mubr.bf16.gmra.mrb[0].mxu0 %v5723
        %v6468 = vpop.f32.mrb[0].mxu0
        %v6469 = vadd.f32 0.0, %v6468
        %v6470 = vpop.f32.mrb[0].mxu0
        %v6471 = vpop.f32.mrb[0].mxu0
        %v6472 = vadd.f32 0.0, %v6471
        %v6473 = vpop.f32.mrb[0].mxu0
        %6474 = vmatprep.mubr.bf16.mxu0 0
        %6475 = vmatmul.mubr.bf16.gmra.mrb[0].mxu0 %v5724
        %v6476 = vpop.f32.mrb[0].mxu0
        %v6477 = vadd.f32 0.0, %v6476
        %v6478 = vpop.f32.mrb[0].mxu0
        %v6479 = vpop.f32.mrb[0].mxu0
        %v6480 = vadd.f32 0.0, %v6479
        %v6481 = vpop.f32.mrb[0].mxu0
        %6482 = vmatprep.mubr.bf16.mxu0 0
        %6483 = vmatmul.mubr.bf16.gmra.mrb[0].mxu0 %v5725
        %v6484 = vpop.f32.mrb[0].mxu0
        %v6485 = vadd.f32 0.0, %v6484
        %v6486 = vpop.f32.mrb[0].mxu0
        %v6487 = vpop.f32.mrb[0].mxu0
        %v6488 = vadd.f32 0.0, %v6487
        %v6489 = vpop.f32.mrb[0].mxu0
        %6490 = vmatprep.mubr.bf16.mxu0 0
        %6491 = vmatmul.mubr.bf16.gmra.mrb[0].mxu0 %v5726
        %v6492 = vpop.f32.mrb[0].mxu0
        %v6493 = vadd.f32 0.0, %v6492
        %v6494 = vpop.f32.mrb[0].mxu0
        %v6495 = vpop.f32.mrb[0].mxu0
        %v6496 = vadd.f32 0.0, %v6495
        %v6497 = vpop.f32.mrb[0].mxu0
        %6498 = vdwg.mxu0
        %v6499 = vadd.f32 %v5503, %v6245
        %v6500 = vadd.f32 %v5504, %v6248
        %v6501 = vadd.f32 %v5505, %v6253
        %v6502 = vadd.f32 %v5506, %v6256
        %v6503 = vadd.f32 %v5507, %v6261
        %v6504 = vadd.f32 %v5508, %v6264
        %v6505 = vadd.f32 %v5509, %v6269
        %v6506 = vadd.f32 %v5510, %v6272
        %v6507 = vadd.f32 %v5511, %v6277
        %v6508 = vadd.f32 %v5512, %v6280
        %v6509 = vadd.f32 %v5513, %v6285
        %v6510 = vadd.f32 %v5514, %v6288
        %v6511 = vadd.f32 %v5515, %v6293
        %v6512 = vadd.f32 %v5516, %v6296
        %v6513 = vadd.f32 %v5517, %v6301
        %v6514 = vadd.f32 %v5518, %v6304
        %v6515 = vadd.f32 %v5519, %v6309
        %v6516 = vadd.f32 %v5520, %v6312
        %v6517 = vadd.f32 %v5521, %v6317
        %v6518 = vadd.f32 %v5522, %v6320
        %v6519 = vadd.f32 %v5523, %v6325
        %v6520 = vadd.f32 %v5524, %v6328
        %v6521 = vadd.f32 %v5525, %v6333
        %v6522 = vadd.f32 %v5526, %v6336
        %v6523 = vadd.f32 %v5527, %v6341
        %v6524 = vadd.f32 %v5528, %v6344
        %v6525 = vadd.f32 %v5529, %v6349
        %v6526 = vadd.f32 %v5530, %v6352
        %v6527 = vadd.f32 %v5531, %v6357
        %v6528 = vadd.f32 %v5532, %v6360
        %v6529 = vadd.f32 %v5533, %v6365
        %v6530 = vadd.f32 %v5534, %v6368
        %v6531 = vadd.f32 %v5535, %v6373
        %v6532 = vadd.f32 %v5536, %v6376
        %v6533 = vadd.f32 %v5537, %v6381
        %v6534 = vadd.f32 %v5538, %v6384
        %v6535 = vadd.f32 %v5539, %v6389
        %v6536 = vadd.f32 %v5540, %v6392
        %v6537 = vadd.f32 %v5541, %v6397
        %v6538 = vadd.f32 %v5542, %v6400
        %v6539 = vadd.f32 %v5543, %v6405
        %v6540 = vadd.f32 %v5544, %v6408
        %v6541 = vadd.f32 %v5545, %v6413
        %v6542 = vadd.f32 %v5546, %v6416
        %v6543 = vadd.f32 %v5547, %v6421
        %v6544 = vadd.f32 %v5548, %v6424
        %v6545 = vadd.f32 %v5549, %v6429
        %v6546 = vadd.f32 %v5550, %v6432
        %v6547 = vadd.f32 %v5551, %v6437
        %v6548 = vadd.f32 %v5552, %v6440
        %v6549 = vadd.f32 %v5553, %v6445
        %v6550 = vadd.f32 %v5554, %v6448
        %v6551 = vadd.f32 %v5555, %v6453
        %v6552 = vadd.f32 %v5556, %v6456
        %v6553 = vadd.f32 %v5557, %v6461
        %v6554 = vadd.f32 %v5558, %v6464
        %v6555 = vadd.f32 %v5559, %v6469
        %v6556 = vadd.f32 %v5560, %v6472
        %v6557 = vadd.f32 %v5561, %v6477
        %v6558 = vadd.f32 %v5562, %v6480
        %v6559 = vadd.f32 %v5563, %v6485
        %v6560 = vadd.f32 %v5564, %v6488
        %v6561 = vadd.f32 %v5565, %v6493
        %v6562 = vadd.f32 %v5566, %v6496
        %v6563 = vrot.slane %v5693, 1
        %v6564 = vrot.slane %v5692, 1
        %v6565 = vrot.slane %v5691, 1
        %v6566 = vrot.slane %v5690, 1
        %v6567 = vrot.slane %v5689, 1
        %v6568 = vrot.slane %v5688, 1
        %v6569 = vrot.slane %v5687, 1
        %v6570 = vrot.slane %v5686, 1
        %v6571 = vrot.slane %v5685, 1
        %v6572 = vrot.slane %v5684, 1
        %v6573 = vrot.slane %v5683, 1
        %v6574 = vrot.slane %v5682, 1
        %v6575 = vrot.slane %v5681, 1
        %v6576 = vrot.slane %v5680, 1
        %v6577 = vrot.slane %v5679, 1
        %v6578 = vrot.slane %v5678, 1
        %v6579 = vrot.slane %v5677, 1
        %v6580 = vrot.slane %v5676, 1
        %v6581 = vrot.slane %v5675, 1
        %v6582 = vrot.slane %v5674, 1
        %v6583 = vrot.slane %v5673, 1
        %v6584 = vrot.slane %v5672, 1
        %v6585 = vrot.slane %v5671, 1
        %v6586 = vrot.slane %v5670, 1
        %v6587 = vrot.slane %v5669, 1
        %v6588 = vrot.slane %v5668, 1
        %v6589 = vrot.slane %v5667, 1
        %v6590 = vrot.slane %v5666, 1
        %v6591 = vrot.slane %v5665, 1
        %v6592 = vrot.slane %v5664, 1
        %v6593 = vrot.slane %v5663, 1
        %v6594 = vrot.slane %v5662, 1
        %v6595 = vrot.slane %v5661, 1
        %v6596 = vrot.slane %v5660, 1
        %v6597 = vrot.slane %v5659, 1
        %v6598 = vrot.slane %v5658, 1
        %v6599 = vrot.slane %v5657, 1
        %v6600 = vrot.slane %v5656, 1
        %v6601 = vrot.slane %v5655, 1
        %v6602 = vrot.slane %v5654, 1
        %v6603 = vrot.slane %v5653, 1
        %v6604 = vrot.slane %v5652, 1
        %v6605 = vrot.slane %v5651, 1
        %v6606 = vrot.slane %v5650, 1
        %v6607 = vrot.slane %v5649, 1
        %v6608 = vrot.slane %v5648, 1
        %v6609 = vrot.slane %v5647, 1
        %v6610 = vrot.slane %v5646, 1
        %v6611 = vrot.slane %v5645, 1
        %v6612 = vrot.slane %v5644, 1
        %v6613 = vrot.slane %v5643, 1
        %v6614 = vrot.slane %v5642, 1
        %v6615 = vrot.slane %v5641, 1
        %v6616 = vrot.slane %v5640, 1
        %v6617 = vrot.slane %v5639, 1
        %v6618 = vrot.slane %v5638, 1
        %v6619 = vrot.slane %v5637, 1
        %v6620 = vrot.slane %v5636, 1
        %v6621 = vrot.slane %v5635, 1
        %v6622 = vrot.slane %v5634, 1
        %v6623 = vrot.slane %v5633, 1
        %v6624 = vrot.slane %v5632, 1
        %v6625 = vrot.slane %v5631, 1
        %v6626 = vrot.slane %v5694, 1
        %v6627 = vsel %vm569, %v6625, %v6626
        %v6628 = vsel %vm569, %v6624, %v6625
        %v6629 = vsel %vm569, %v6623, %v6624
        %v6630 = vsel %vm569, %v6622, %v6623
        %v6631 = vsel %vm569, %v6621, %v6622
        %v6632 = vsel %vm569, %v6620, %v6621
        %v6633 = vsel %vm569, %v6619, %v6620
        %v6634 = vsel %vm569, %v6618, %v6619
        %v6635 = vsel %vm569, %v6617, %v6618
        %v6636 = vsel %vm569, %v6616, %v6617
        %v6637 = vsel %vm569, %v6615, %v6616
        %v6638 = vsel %vm569, %v6614, %v6615
        %v6639 = vsel %vm569, %v6613, %v6614
        %v6640 = vsel %vm569, %v6612, %v6613
        %v6641 = vsel %vm569, %v6611, %v6612
        %v6642 = vsel %vm569, %v6610, %v6611
        %v6643 = vsel %vm569, %v6609, %v6610
        %v6644 = vsel %vm569, %v6608, %v6609
        %v6645 = vsel %vm569, %v6607, %v6608
        %v6646 = vsel %vm569, %v6606, %v6607
        %v6647 = vsel %vm569, %v6605, %v6606
        %v6648 = vsel %vm569, %v6604, %v6605
        %v6649 = vsel %vm569, %v6603, %v6604
        %v6650 = vsel %vm569, %v6602, %v6603
        %v6651 = vsel %vm569, %v6601, %v6602
        %v6652 = vsel %vm569, %v6600, %v6601
        %v6653 = vsel %vm569, %v6599, %v6600
        %v6654 = vsel %vm569, %v6598, %v6599
        %v6655 = vsel %vm569, %v6597, %v6598
        %v6656 = vsel %vm569, %v6596, %v6597
        %v6657 = vsel %vm569, %v6595, %v6596
        %v6658 = vsel %vm569, %v6594, %v6595
        %v6659 = vsel %vm569, %v6593, %v6594
        %v6660 = vsel %vm569, %v6592, %v6593
        %v6661 = vsel %vm569, %v6591, %v6592
        %v6662 = vsel %vm569, %v6590, %v6591
        %v6663 = vsel %vm569, %v6589, %v6590
        %v6664 = vsel %vm569, %v6588, %v6589
        %v6665 = vsel %vm569, %v6587, %v6588
        %v6666 = vsel %vm569, %v6586, %v6587
        %v6667 = vsel %vm569, %v6585, %v6586
        %v6668 = vsel %vm569, %v6584, %v6585
        %v6669 = vsel %vm569, %v6583, %v6584
        %v6670 = vsel %vm569, %v6582, %v6583
        %v6671 = vsel %vm569, %v6581, %v6582
        %v6672 = vsel %vm569, %v6580, %v6581
        %v6673 = vsel %vm569, %v6579, %v6580
        %v6674 = vsel %vm569, %v6578, %v6579
        %v6675 = vsel %vm569, %v6577, %v6578
        %v6676 = vsel %vm569, %v6576, %v6577
        %v6677 = vsel %vm569, %v6575, %v6576
        %v6678 = vsel %vm569, %v6574, %v6575
        %v6679 = vsel %vm569, %v6573, %v6574
        %v6680 = vsel %vm569, %v6572, %v6573
        %v6681 = vsel %vm569, %v6571, %v6572
        %v6682 = vsel %vm569, %v6570, %v6571
        %v6683 = vsel %vm569, %v6569, %v6570
        %v6684 = vsel %vm569, %v6568, %v6569
        %v6685 = vsel %vm569, %v6567, %v6568
        %v6686 = vsel %vm569, %v6566, %v6567
        %v6687 = vsel %vm569, %v6565, %v6566
        %v6688 = vsel %vm569, %v6564, %v6565
        %v6689 = vsel %vm569, %v6563, %v6564
        %v6690 = vsel %vm569, %v6626, %v6563
        %v6691 = vpack.c.bf16 %v6688, %v6689
        %v6692 = vpack.c.bf16 %v6686, %v6687
        %v6693 = vpack.c.bf16 %v6684, %v6685
        %v6694 = vpack.c.bf16 %v6682, %v6683
        %v6695 = vpack.c.bf16 %v6680, %v6681
        %v6696 = vpack.c.bf16 %v6678, %v6679
        %v6697 = vpack.c.bf16 %v6676, %v6677
        %v6698 = vpack.c.bf16 %v6674, %v6675
        %v6699 = vpack.c.bf16 %v6672, %v6673
        %v6700 = vpack.c.bf16 %v6670, %v6671
        %v6701 = vpack.c.bf16 %v6668, %v6669
        %v6702 = vpack.c.bf16 %v6666, %v6667
        %v6703 = vpack.c.bf16 %v6664, %v6665
        %v6704 = vpack.c.bf16 %v6662, %v6663
        %v6705 = vpack.c.bf16 %v6660, %v6661
        %v6706 = vpack.c.bf16 %v6658, %v6659
        %v6707 = vpack.c.bf16 %v6656, %v6657
        %v6708 = vpack.c.bf16 %v6654, %v6655
        %v6709 = vpack.c.bf16 %v6652, %v6653
        %v6710 = vpack.c.bf16 %v6650, %v6651
        %v6711 = vpack.c.bf16 %v6648, %v6649
        %v6712 = vpack.c.bf16 %v6646, %v6647
        %v6713 = vpack.c.bf16 %v6644, %v6645
        %v6714 = vpack.c.bf16 %v6642, %v6643
        %v6715 = vpack.c.bf16 %v6640, %v6641
        %v6716 = vpack.c.bf16 %v6638, %v6639
        %v6717 = vpack.c.bf16 %v6636, %v6637
        %v6718 = vpack.c.bf16 %v6634, %v6635
        %v6719 = vpack.c.bf16 %v6632, %v6633
        %v6720 = vpack.c.bf16 %v6630, %v6631
        %v6721 = vpack.c.bf16 %v6628, %v6629
        %v6722 = vpack.c.bf16 %v6690, %v6627
        %s6723 = scalar_lea.vmem [#allocation8], 320
        %v6724 = vld [vmem:[%s6723] sm:$0xf]
        %v6725 = vld [vmem:[%s6723 + $0x4] sm:$0xf]
        %v6726 = vld [vmem:[%s6723 + $0x8] sm:$0xf]
        %v6727 = vld [vmem:[%s6723 + $0xc] sm:$0xf]
        %v6728 = vld [vmem:[%s6723 + $0x10] sm:$0xf]
        %v6729 = vld [vmem:[%s6723 + $0x14] sm:$0xf]
        %v6730 = vld [vmem:[%s6723 + $0x18] sm:$0xf]
        %v6731 = vld [vmem:[%s6723 + $0x1c] sm:$0xf]
        %v6732 = vld [vmem:[%s6723 + $0x20] sm:$0xf]
        %v6733 = vld [vmem:[%s6723 + $0x24] sm:$0xf]
        %v6734 = vld [vmem:[%s6723 + $0x28] sm:$0xf]
        %v6735 = vld [vmem:[%s6723 + $0x2c] sm:$0xf]
        %v6736 = vld [vmem:[%s6723 + $0x30] sm:$0xf]
        %v6737 = vld [vmem:[%s6723 + $0x34] sm:$0xf]
        %v6738 = vld [vmem:[%s6723 + $0x38] sm:$0xf]
        %v6739 = vld [vmem:[%s6723 + $0x3c] sm:$0xf]
        %v6756 = vunpack.c.l.b16 %v6724
        %v6757 = vunpack.c.l.b16 %v6725
        %v6758 = vunpack.c.l.b16 %v6726
        %v6759 = vunpack.c.l.b16 %v6727
        %v6760 = vunpack.c.l.b16 %v6728
        %v6761 = vunpack.c.l.b16 %v6729
        %v6762 = vunpack.c.l.b16 %v6730
        %v6763 = vunpack.c.l.b16 %v6731
        %v6764 = vunpack.c.l.b16 %v6732
        %v6765 = vunpack.c.l.b16 %v6733
        %v6766 = vunpack.c.l.b16 %v6734
        %v6767 = vunpack.c.l.b16 %v6735
        %v6768 = vunpack.c.l.b16 %v6736
        %v6769 = vunpack.c.l.b16 %v6737
        %v6770 = vunpack.c.l.b16 %v6738
        %v6771 = vunpack.c.l.b16 %v6739
        %v6772 = vpack.c.b16 %v6757, %v6756
        %v6773 = vpack.c.b16 %v6759, %v6758
        %v6774 = vpack.c.b16 %v6761, %v6760
        %v6775 = vpack.c.b16 %v6763, %v6762
        %v6776 = vpack.c.b16 %v6765, %v6764
        %v6777 = vpack.c.b16 %v6767, %v6766
        %v6778 = vpack.c.b16 %v6769, %v6768
        %v6779 = vpack.c.b16 %v6771, %v6770
        %6788 = vmatprep.subr.bf16.mxu0 0
        %6789 = vmatpush1.bf16.msra.mxu0 %v6772
        %6790 = vmatprep.subr.bf16.mxu0 0
        %6791 = vmatpush1.bf16.msra.mxu0 %v6773
        %6792 = vmatprep.subr.bf16.mxu0 0
        %6793 = vmatpush1.bf16.msra.mxu0 %v6774
        %6794 = vmatprep.subr.bf16.mxu0 0
        %6795 = vmatpush1.bf16.msra.mxu0 %v6775
        %6796 = vmatprep.subr.bf16.mxu0 0
        %6797 = vmatpush1.bf16.msra.mxu0 %v6776
        %6798 = vmatprep.subr.bf16.mxu0 0
        %6799 = vmatpush1.bf16.msra.mxu0 %v6777
        %6800 = vmatprep.subr.bf16.mxu0 0
        %6801 = vmatpush1.bf16.msra.mxu0 %v6778
        %6802 = vmatprep.subr.bf16.mxu0 0
        %6803 = vmatpush1.bf16.msra.mxu0 %v6779
        %6804 = vmatprep.subr.bf16.mxu0 0
        %6805 = vmatpush1.bf16.msra.mxu0 0
        %6806 = vmatprep.subr.bf16.mxu0 0
        %6807 = vmatpush1.bf16.msra.mxu0 0
        %6808 = vmatprep.subr.bf16.mxu0 0
        %6809 = vmatpush1.bf16.msra.mxu0 0
        %6810 = vmatprep.subr.bf16.mxu0 0
        %6811 = vmatpush1.bf16.msra.mxu0 0
        %6812 = vmatprep.subr.bf16.mxu0 0
        %6813 = vmatpush1.bf16.msra.mxu0 0
        %6814 = vmatprep.subr.bf16.mxu0 0
        %6815 = vmatpush1.bf16.msra.mxu0 0
        %6816 = vmatprep.subr.bf16.mxu0 0
        %6817 = vmatpush1.bf16.msra.mxu0 0
        %6818 = vmatprep.subr.bf16.mxu0 0
        %6819 = vmatpush1.bf16.msra.mxu0 0
        %6820 = vmatprep.mubr.bf16.mxu0 0
        %6821 = vmatmul.mubr.bf16.gmra.mrb[0].mxu0 %v6691
        %v6822 = vpop.f32.mrb[0].mxu0
        %v6823 = vadd.f32 0.0, %v6822
        %v6824 = vpop.f32.mrb[0].mxu0
        %v6825 = vpop.f32.mrb[0].mxu0
        %v6826 = vadd.f32 0.0, %v6825
        %v6827 = vpop.f32.mrb[0].mxu0
        %6828 = vmatprep.mubr.bf16.mxu0 0
        %6829 = vmatmul.mubr.bf16.gmra.mrb[0].mxu0 %v6692
        %v6830 = vpop.f32.mrb[0].mxu0
        %v6831 = vadd.f32 0.0, %v6830
        %v6832 = vpop.f32.mrb[0].mxu0
        %v6833 = vpop.f32.mrb[0].mxu0
        %v6834 = vadd.f32 0.0, %v6833
        %v6835 = vpop.f32.mrb[0].mxu0
        %6836 = vmatprep.mubr.bf16.mxu0 0
        %6837 = vmatmul.mubr.bf16.gmra.mrb[0].mxu0 %v6693
        %v6838 = vpop.f32.mrb[0].mxu0
        %v6839 = vadd.f32 0.0, %v6838
        %v6840 = vpop.f32.mrb[0].mxu0
        %v6841 = vpop.f32.mrb[0].mxu0
        %v6842 = vadd.f32 0.0, %v6841
        %v6843 = vpop.f32.mrb[0].mxu0
        %6844 = vmatprep.mubr.bf16.mxu0 0
        %6845 = vmatmul.mubr.bf16.gmra.mrb[0].mxu0 %v6694
        %v6846 = vpop.f32.mrb[0].mxu0
        %v6847 = vadd.f32 0.0, %v6846
        %v6848 = vpop.f32.mrb[0].mxu0
        %v6849 = vpop.f32.mrb[0].mxu0
        %v6850 = vadd.f32 0.0, %v6849
        %v6851 = vpop.f32.mrb[0].mxu0
        %6852 = vmatprep.mubr.bf16.mxu0 0
        %6853 = vmatmul.mubr.bf16.gmra.mrb[0].mxu0 %v6695
        %v6854 = vpop.f32.mrb[0].mxu0
        %v6855 = vadd.f32 0.0, %v6854
        %v6856 = vpop.f32.mrb[0].mxu0
        %v6857 = vpop.f32.mrb[0].mxu0
        %v6858 = vadd.f32 0.0, %v6857
        %v6859 = vpop.f32.mrb[0].mxu0
        %6860 = vmatprep.mubr.bf16.mxu0 0
        %6861 = vmatmul.mubr.bf16.gmra.mrb[0].mxu0 %v6696
        %v6862 = vpop.f32.mrb[0].mxu0
        %v6863 = vadd.f32 0.0, %v6862
        %v6864 = vpop.f32.mrb[0].mxu0
        %v6865 = vpop.f32.mrb[0].mxu0
        %v6866 = vadd.f32 0.0, %v6865
        %v6867 = vpop.f32.mrb[0].mxu0
        %6868 = vmatprep.mubr.bf16.mxu0 0
        %6869 = vmatmul.mubr.bf16.gmra.mrb[0].mxu0 %v6697
        %v6870 = vpop.f32.mrb[0].mxu0
        %v6871 = vadd.f32 0.0, %v6870
        %v6872 = vpop.f32.mrb[0].mxu0
        %v6873 = vpop.f32.mrb[0].mxu0
        %v6874 = vadd.f32 0.0, %v6873
        %v6875 = vpop.f32.mrb[0].mxu0
        %6876 = vmatprep.mubr.bf16.mxu0 0
        %6877 = vmatmul.mubr.bf16.gmra.mrb[0].mxu0 %v6698
        %v6878 = vpop.f32.mrb[0].mxu0
        %v6879 = vadd.f32 0.0, %v6878
        %v6880 = vpop.f32.mrb[0].mxu0
        %v6881 = vpop.f32.mrb[0].mxu0
        %v6882 = vadd.f32 0.0, %v6881
        %v6883 = vpop.f32.mrb[0].mxu0
        %6884 = vmatprep.mubr.bf16.mxu0 0
        %6885 = vmatmul.mubr.bf16.gmra.mrb[0].mxu0 %v6699
        %v6886 = vpop.f32.mrb[0].mxu0
        %v6887 = vadd.f32 0.0, %v6886
        %v6888 = vpop.f32.mrb[0].mxu0
        %v6889 = vpop.f32.mrb[0].mxu0
        %v6890 = vadd.f32 0.0, %v6889
        %v6891 = vpop.f32.mrb[0].mxu0
        %6892 = vmatprep.mubr.bf16.mxu0 0
        %6893 = vmatmul.mubr.bf16.gmra.mrb[0].mxu0 %v6700
        %v6894 = vpop.f32.mrb[0].mxu0
        %v6895 = vadd.f32 0.0, %v6894
        %v6896 = vpop.f32.mrb[0].mxu0
        %v6897 = vpop.f32.mrb[0].mxu0
        %v6898 = vadd.f32 0.0, %v6897
        %v6899 = vpop.f32.mrb[0].mxu0
        %6900 = vmatprep.mubr.bf16.mxu0 0
        %6901 = vmatmul.mubr.bf16.gmra.mrb[0].mxu0 %v6701
        %v6902 = vpop.f32.mrb[0].mxu0
        %v6903 = vadd.f32 0.0, %v6902
        %v6904 = vpop.f32.mrb[0].mxu0
        %v6905 = vpop.f32.mrb[0].mxu0
        %v6906 = vadd.f32 0.0, %v6905
        %v6907 = vpop.f32.mrb[0].mxu0
        %6908 = vmatprep.mubr.bf16.mxu0 0
        %6909 = vmatmul.mubr.bf16.gmra.mrb[0].mxu0 %v6702
        %v6910 = vpop.f32.mrb[0].mxu0
        %v6911 = vadd.f32 0.0, %v6910
        %v6912 = vpop.f32.mrb[0].mxu0
        %v6913 = vpop.f32.mrb[0].mxu0
        %v6914 = vadd.f32 0.0, %v6913
        %v6915 = vpop.f32.mrb[0].mxu0
        %6916 = vmatprep.mubr.bf16.mxu0 0
        %6917 = vmatmul.mubr.bf16.gmra.mrb[0].mxu0 %v6703
        %v6918 = vpop.f32.mrb[0].mxu0
        %v6919 = vadd.f32 0.0, %v6918
        %v6920 = vpop.f32.mrb[0].mxu0
        %v6921 = vpop.f32.mrb[0].mxu0
        %v6922 = vadd.f32 0.0, %v6921
        %v6923 = vpop.f32.mrb[0].mxu0
        %6924 = vmatprep.mubr.bf16.mxu0 0
        %6925 = vmatmul.mubr.bf16.gmra.mrb[0].mxu0 %v6704
        %v6926 = vpop.f32.mrb[0].mxu0
        %v6927 = vadd.f32 0.0, %v6926
        %v6928 = vpop.f32.mrb[0].mxu0
        %v6929 = vpop.f32.mrb[0].mxu0
        %v6930 = vadd.f32 0.0, %v6929
        %v6931 = vpop.f32.mrb[0].mxu0
        %6932 = vmatprep.mubr.bf16.mxu0 0
        %6933 = vmatmul.mubr.bf16.gmra.mrb[0].mxu0 %v6705
        %v6934 = vpop.f32.mrb[0].mxu0
        %v6935 = vadd.f32 0.0, %v6934
        %v6936 = vpop.f32.mrb[0].mxu0
        %v6937 = vpop.f32.mrb[0].mxu0
        %v6938 = vadd.f32 0.0, %v6937
        %v6939 = vpop.f32.mrb[0].mxu0
        %6940 = vmatprep.mubr.bf16.mxu0 0
        %6941 = vmatmul.mubr.bf16.gmra.mrb[0].mxu0 %v6706
        %v6942 = vpop.f32.mrb[0].mxu0
        %v6943 = vadd.f32 0.0, %v6942
        %v6944 = vpop.f32.mrb[0].mxu0
        %v6945 = vpop.f32.mrb[0].mxu0
        %v6946 = vadd.f32 0.0, %v6945
        %v6947 = vpop.f32.mrb[0].mxu0
        %6948 = vmatprep.mubr.bf16.mxu0 0
        %6949 = vmatmul.mubr.bf16.gmra.mrb[0].mxu0 %v6707
        %v6950 = vpop.f32.mrb[0].mxu0
        %v6951 = vadd.f32 0.0, %v6950
        %v6952 = vpop.f32.mrb[0].mxu0
        %v6953 = vpop.f32.mrb[0].mxu0
        %v6954 = vadd.f32 0.0, %v6953
        %v6955 = vpop.f32.mrb[0].mxu0
        %6956 = vmatprep.mubr.bf16.mxu0 0
        %6957 = vmatmul.mubr.bf16.gmra.mrb[0].mxu0 %v6708
        %v6958 = vpop.f32.mrb[0].mxu0
        %v6959 = vadd.f32 0.0, %v6958
        %v6960 = vpop.f32.mrb[0].mxu0
        %v6961 = vpop.f32.mrb[0].mxu0
        %v6962 = vadd.f32 0.0, %v6961
        %v6963 = vpop.f32.mrb[0].mxu0
        %6964 = vmatprep.mubr.bf16.mxu0 0
        %6965 = vmatmul.mubr.bf16.gmra.mrb[0].mxu0 %v6709
        %v6966 = vpop.f32.mrb[0].mxu0
        %v6967 = vadd.f32 0.0, %v6966
        %v6968 = vpop.f32.mrb[0].mxu0
        %v6969 = vpop.f32.mrb[0].mxu0
        %v6970 = vadd.f32 0.0, %v6969
        %v6971 = vpop.f32.mrb[0].mxu0
        %6972 = vmatprep.mubr.bf16.mxu0 0
        %6973 = vmatmul.mubr.bf16.gmra.mrb[0].mxu0 %v6710
        %v6974 = vpop.f32.mrb[0].mxu0
        %v6975 = vadd.f32 0.0, %v6974
        %v6976 = vpop.f32.mrb[0].mxu0
        %v6977 = vpop.f32.mrb[0].mxu0
        %v6978 = vadd.f32 0.0, %v6977
        %v6979 = vpop.f32.mrb[0].mxu0
        %6980 = vmatprep.mubr.bf16.mxu0 0
        %6981 = vmatmul.mubr.bf16.gmra.mrb[0].mxu0 %v6711
        %v6982 = vpop.f32.mrb[0].mxu0
        %v6983 = vadd.f32 0.0, %v6982
        %v6984 = vpop.f32.mrb[0].mxu0
        %v6985 = vpop.f32.mrb[0].mxu0
        %v6986 = vadd.f32 0.0, %v6985
        %v6987 = vpop.f32.mrb[0].mxu0
        %6988 = vmatprep.mubr.bf16.mxu0 0
        %6989 = vmatmul.mubr.bf16.gmra.mrb[0].mxu0 %v6712
        %v6990 = vpop.f32.mrb[0].mxu0
        %v6991 = vadd.f32 0.0, %v6990
        %v6992 = vpop.f32.mrb[0].mxu0
        %v6993 = vpop.f32.mrb[0].mxu0
        %v6994 = vadd.f32 0.0, %v6993
        %v6995 = vpop.f32.mrb[0].mxu0
        %6996 = vmatprep.mubr.bf16.mxu0 0
        %6997 = vmatmul.mubr.bf16.gmra.mrb[0].mxu0 %v6713
        %v6998 = vpop.f32.mrb[0].mxu0
        %v6999 = vadd.f32 0.0, %v6998
        %v7000 = vpop.f32.mrb[0].mxu0
        %v7001 = vpop.f32.mrb[0].mxu0
        %v7002 = vadd.f32 0.0, %v7001
        %v7003 = vpop.f32.mrb[0].mxu0
        %7004 = vmatprep.mubr.bf16.mxu0 0
        %7005 = vmatmul.mubr.bf16.gmra.mrb[0].mxu0 %v6714
        %v7006 = vpop.f32.mrb[0].mxu0
        %v7007 = vadd.f32 0.0, %v7006
        %v7008 = vpop.f32.mrb[0].mxu0
        %v7009 = vpop.f32.mrb[0].mxu0
        %v7010 = vadd.f32 0.0, %v7009
        %v7011 = vpop.f32.mrb[0].mxu0
        %7012 = vmatprep.mubr.bf16.mxu0 0
        %7013 = vmatmul.mubr.bf16.gmra.mrb[0].mxu0 %v6715
        %v7014 = vpop.f32.mrb[0].mxu0
        %v7015 = vadd.f32 0.0, %v7014
        %v7016 = vpop.f32.mrb[0].mxu0
        %v7017 = vpop.f32.mrb[0].mxu0
        %v7018 = vadd.f32 0.0, %v7017
        %v7019 = vpop.f32.mrb[0].mxu0
        %7020 = vmatprep.mubr.bf16.mxu0 0
        %7021 = vmatmul.mubr.bf16.gmra.mrb[0].mxu0 %v6716
        %v7022 = vpop.f32.mrb[0].mxu0
        %v7023 = vadd.f32 0.0, %v7022
        %v7024 = vpop.f32.mrb[0].mxu0
        %v7025 = vpop.f32.mrb[0].mxu0
        %v7026 = vadd.f32 0.0, %v7025
        %v7027 = vpop.f32.mrb[0].mxu0
        %7028 = vmatprep.mubr.bf16.mxu0 0
        %7029 = vmatmul.mubr.bf16.gmra.mrb[0].mxu0 %v6717
        %v7030 = vpop.f32.mrb[0].mxu0
        %v7031 = vadd.f32 0.0, %v7030
        %v7032 = vpop.f32.mrb[0].mxu0
        %v7033 = vpop.f32.mrb[0].mxu0
        %v7034 = vadd.f32 0.0, %v7033
        %v7035 = vpop.f32.mrb[0].mxu0
        %7036 = vmatprep.mubr.bf16.mxu0 0
        %7037 = vmatmul.mubr.bf16.gmra.mrb[0].mxu0 %v6718
        %v7038 = vpop.f32.mrb[0].mxu0
        %v7039 = vadd.f32 0.0, %v7038
        %v7040 = vpop.f32.mrb[0].mxu0
        %v7041 = vpop.f32.mrb[0].mxu0
        %v7042 = vadd.f32 0.0, %v7041
        %v7043 = vpop.f32.mrb[0].mxu0
        %7044 = vmatprep.mubr.bf16.mxu0 0
        %7045 = vmatmul.mubr.bf16.gmra.mrb[0].mxu0 %v6719
        %v7046 = vpop.f32.mrb[0].mxu0
        %v7047 = vadd.f32 0.0, %v7046
        %v7048 = vpop.f32.mrb[0].mxu0
        %v7049 = vpop.f32.mrb[0].mxu0
        %v7050 = vadd.f32 0.0, %v7049
        %v7051 = vpop.f32.mrb[0].mxu0
        %7052 = vmatprep.mubr.bf16.mxu0 0
        %7053 = vmatmul.mubr.bf16.gmra.mrb[0].mxu0 %v6720
        %v7054 = vpop.f32.mrb[0].mxu0
        %v7055 = vadd.f32 0.0, %v7054
        %v7056 = vpop.f32.mrb[0].mxu0
        %v7057 = vpop.f32.mrb[0].mxu0
        %v7058 = vadd.f32 0.0, %v7057
        %v7059 = vpop.f32.mrb[0].mxu0
        %7060 = vmatprep.mubr.bf16.mxu0 0
        %7061 = vmatmul.mubr.bf16.gmra.mrb[0].mxu0 %v6721
        %v7062 = vpop.f32.mrb[0].mxu0
        %v7063 = vadd.f32 0.0, %v7062
        %v7064 = vpop.f32.mrb[0].mxu0
        %v7065 = vpop.f32.mrb[0].mxu0
        %v7066 = vadd.f32 0.0, %v7065
        %v7067 = vpop.f32.mrb[0].mxu0
        %7068 = vmatprep.mubr.bf16.mxu0 0
        %7069 = vmatmul.mubr.bf16.gmra.mrb[0].mxu0 %v6722
        %v7070 = vpop.f32.mrb[0].mxu0
        %v7071 = vadd.f32 0.0, %v7070
        %v7072 = vpop.f32.mrb[0].mxu0
        %v7073 = vpop.f32.mrb[0].mxu0
        %v7074 = vadd.f32 0.0, %v7073
        %v7075 = vpop.f32.mrb[0].mxu0
        %7076 = vdwg.mxu0
        %v7077 = vadd.f32 %v6499, %v6823
        %v7078 = vadd.f32 %v6500, %v6826
        %v7079 = vadd.f32 %v6501, %v6831
        %v7080 = vadd.f32 %v6502, %v6834
        %v7081 = vadd.f32 %v6503, %v6839
        %v7082 = vadd.f32 %v6504, %v6842
        %v7083 = vadd.f32 %v6505, %v6847
        %v7084 = vadd.f32 %v6506, %v6850
        %v7085 = vadd.f32 %v6507, %v6855
        %v7086 = vadd.f32 %v6508, %v6858
        %v7087 = vadd.f32 %v6509, %v6863
        %v7088 = vadd.f32 %v6510, %v6866
        %v7089 = vadd.f32 %v6511, %v6871
        %v7090 = vadd.f32 %v6512, %v6874
        %v7091 = vadd.f32 %v6513, %v6879
        %v7092 = vadd.f32 %v6514, %v6882
        %v7093 = vadd.f32 %v6515, %v6887
        %v7094 = vadd.f32 %v6516, %v6890
        %v7095 = vadd.f32 %v6517, %v6895
        %v7096 = vadd.f32 %v6518, %v6898
        %v7097 = vadd.f32 %v6519, %v6903
        %v7098 = vadd.f32 %v6520, %v6906
        %v7099 = vadd.f32 %v6521, %v6911
        %v7100 = vadd.f32 %v6522, %v6914
        %v7101 = vadd.f32 %v6523, %v6919
        %v7102 = vadd.f32 %v6524, %v6922
        %v7103 = vadd.f32 %v6525, %v6927
        %v7104 = vadd.f32 %v6526, %v6930
        %v7105 = vadd.f32 %v6527, %v6935
        %v7106 = vadd.f32 %v6528, %v6938
        %v7107 = vadd.f32 %v6529, %v6943
        %v7108 = vadd.f32 %v6530, %v6946
        %v7109 = vadd.f32 %v6531, %v6951
        %v7110 = vadd.f32 %v6532, %v6954
        %v7111 = vadd.f32 %v6533, %v6959
        %v7112 = vadd.f32 %v6534, %v6962
        %v7113 = vadd.f32 %v6535, %v6967
        %v7114 = vadd.f32 %v6536, %v6970
        %v7115 = vadd.f32 %v6537, %v6975
        %v7116 = vadd.f32 %v6538, %v6978
        %v7117 = vadd.f32 %v6539, %v6983
        %v7118 = vadd.f32 %v6540, %v6986
        %v7119 = vadd.f32 %v6541, %v6991
        %v7120 = vadd.f32 %v6542, %v6994
        %v7121 = vadd.f32 %v6543, %v6999
        %v7122 = vadd.f32 %v6544, %v7002
        %v7123 = vadd.f32 %v6545, %v7007
        %v7124 = vadd.f32 %v6546, %v7010
        %v7125 = vadd.f32 %v6547, %v7015
        %v7126 = vadd.f32 %v6548, %v7018
        %v7127 = vadd.f32 %v6549, %v7023
        %v7128 = vadd.f32 %v6550, %v7026
        %v7129 = vadd.f32 %v6551, %v7031
        %v7130 = vadd.f32 %v6552, %v7034
        %v7131 = vadd.f32 %v6553, %v7039
        %v7132 = vadd.f32 %v6554, %v7042
        %v7133 = vadd.f32 %v6555, %v7047
        %v7134 = vadd.f32 %v6556, %v7050
        %v7135 = vadd.f32 %v6557, %v7055
        %v7136 = vadd.f32 %v6558, %v7058
        %v7137 = vadd.f32 %v6559, %v7063
        %v7138 = vadd.f32 %v6560, %v7066
        %v7139 = vadd.f32 %v6561, %v7071
        %v7140 = vadd.f32 %v6562, %v7074
        %v7141 = vadd.s32 %v568, 8
        %v7142 = vlaneseq
        %v7143 = vshrl.u32 %v7142, 7
        %v7144 = vsub.s32 0, %v7143
        %v7145 = vrot.slane %v422, %v7144
        %v7146 = vadd.f32 %v4667, %v7145
        %v7147 = vadd.f32 %v4668, %v7145
        %v7148 = vadd.f32 %v4669, %v7145
        %v7149 = vadd.f32 %v4670, %v7145
        %v7150 = vadd.f32 %v4671, %v7145
        %v7151 = vadd.f32 %v4672, %v7145
        %v7152 = vadd.f32 %v4673, %v7145
        %v7153 = vadd.f32 %v4674, %v7145
        %v7154 = vadd.f32 %v4675, %v7145
        %v7155 = vadd.f32 %v4676, %v7145
        %v7156 = vadd.f32 %v4677, %v7145
        %v7157 = vadd.f32 %v4678, %v7145
        %v7158 = vadd.f32 %v4679, %v7145
        %v7159 = vadd.f32 %v4680, %v7145
        %v7160 = vadd.f32 %v4681, %v7145
        %v7161 = vadd.f32 %v4682, %v7145
        %v7162 = vadd.f32 %v4683, %v7145
        %v7163 = vadd.f32 %v4684, %v7145
        %v7164 = vadd.f32 %v4685, %v7145
        %v7165 = vadd.f32 %v4686, %v7145
        %v7166 = vadd.f32 %v4687, %v7145
        %v7167 = vadd.f32 %v4688, %v7145
        %v7168 = vadd.f32 %v4689, %v7145
        %v7169 = vadd.f32 %v4690, %v7145
        %v7170 = vadd.f32 %v4691, %v7145
        %v7171 = vadd.f32 %v4692, %v7145
        %v7172 = vadd.f32 %v4693, %v7145
        %v7173 = vadd.f32 %v4694, %v7145
        %v7174 = vadd.f32 %v4695, %v7145
        %v7175 = vadd.f32 %v4696, %v7145
        %v7176 = vadd.f32 %v4697, %v7145
        %v7177 = vadd.f32 %v4698, %v7145
        %v7178 = vadd.f32 %v4699, %v7145
        %v7179 = vadd.f32 %v4700, %v7145
        %v7180 = vadd.f32 %v4701, %v7145
        %v7181 = vadd.f32 %v4702, %v7145
        %v7182 = vadd.f32 %v4703, %v7145
        %v7183 = vadd.f32 %v4704, %v7145
        %v7184 = vadd.f32 %v4705, %v7145
        %v7185 = vadd.f32 %v4706, %v7145
        %v7186 = vadd.f32 %v4707, %v7145
        %v7187 = vadd.f32 %v4708, %v7145
        %v7188 = vadd.f32 %v4709, %v7145
        %v7189 = vadd.f32 %v4710, %v7145
        %v7190 = vadd.f32 %v4711, %v7145
        %v7191 = vadd.f32 %v4712, %v7145
        %v7192 = vadd.f32 %v4713, %v7145
        %v7193 = vadd.f32 %v4714, %v7145
        %v7194 = vadd.f32 %v4715, %v7145
        %v7195 = vadd.f32 %v4716, %v7145
        %v7196 = vadd.f32 %v4717, %v7145
        %v7197 = vadd.f32 %v4718, %v7145
        %v7198 = vadd.f32 %v4719, %v7145
        %v7199 = vadd.f32 %v4720, %v7145
        %v7200 = vadd.f32 %v4721, %v7145
        %v7201 = vadd.f32 %v4722, %v7145
        %v7202 = vadd.f32 %v4723, %v7145
        %v7203 = vadd.f32 %v4724, %v7145
        %v7204 = vadd.f32 %v4725, %v7145
        %v7205 = vadd.f32 %v4726, %v7145
        %v7206 = vadd.f32 %v4727, %v7145
        %v7207 = vadd.f32 %v4728, %v7145
        %v7208 = vadd.f32 %v4729, %v7145
        %v7209 = vadd.f32 %v4730, %v7145
        %v7210 = vmax.f32 %v7146, 0.0
        %v7211 = vmax.f32 %v7147, 0.0
        %v7212 = vmax.f32 %v7148, 0.0
        %v7213 = vmax.f32 %v7149, 0.0
        %v7214 = vmax.f32 %v7150, 0.0
        %v7215 = vmax.f32 %v7151, 0.0
        %v7216 = vmax.f32 %v7152, 0.0
        %v7217 = vmax.f32 %v7153, 0.0
        %v7218 = vmax.f32 %v7154, 0.0
        %v7219 = vmax.f32 %v7155, 0.0
        %v7220 = vmax.f32 %v7156, 0.0
        %v7221 = vmax.f32 %v7157, 0.0
        %v7222 = vmax.f32 %v7158, 0.0
        %v7223 = vmax.f32 %v7159, 0.0
        %v7224 = vmax.f32 %v7160, 0.0
        %v7225 = vmax.f32 %v7161, 0.0
        %v7226 = vmax.f32 %v7162, 0.0
        %v7227 = vmax.f32 %v7163, 0.0
        %v7228 = vmax.f32 %v7164, 0.0
        %v7229 = vmax.f32 %v7165, 0.0
        %v7230 = vmax.f32 %v7166, 0.0
        %v7231 = vmax.f32 %v7167, 0.0
        %v7232 = vmax.f32 %v7168, 0.0
        %v7233 = vmax.f32 %v7169, 0.0
        %v7234 = vmax.f32 %v7170, 0.0
        %v7235 = vmax.f32 %v7171, 0.0
        %v7236 = vmax.f32 %v7172, 0.0
        %v7237 = vmax.f32 %v7173, 0.0
        %v7238 = vmax.f32 %v7174, 0.0
        %v7239 = vmax.f32 %v7175, 0.0
        %v7240 = vmax.f32 %v7176, 0.0
        %v7241 = vmax.f32 %v7177, 0.0
        %v7242 = vmax.f32 %v7178, 0.0
        %v7243 = vmax.f32 %v7179, 0.0
        %v7244 = vmax.f32 %v7180, 0.0
        %v7245 = vmax.f32 %v7181, 0.0
        %v7246 = vmax.f32 %v7182, 0.0
        %v7247 = vmax.f32 %v7183, 0.0
        %v7248 = vmax.f32 %v7184, 0.0
        %v7249 = vmax.f32 %v7185, 0.0
        %v7250 = vmax.f32 %v7186, 0.0
        %v7251 = vmax.f32 %v7187, 0.0
        %v7252 = vmax.f32 %v7188, 0.0
        %v7253 = vmax.f32 %v7189, 0.0
        %v7254 = vmax.f32 %v7190, 0.0
        %v7255 = vmax.f32 %v7191, 0.0
        %v7256 = vmax.f32 %v7192, 0.0
        %v7257 = vmax.f32 %v7193, 0.0
        %v7258 = vmax.f32 %v7194, 0.0
        %v7259 = vmax.f32 %v7195, 0.0
        %v7260 = vmax.f32 %v7196, 0.0
        %v7261 = vmax.f32 %v7197, 0.0
        %v7262 = vmax.f32 %v7198, 0.0
        %v7263 = vmax.f32 %v7199, 0.0
        %v7264 = vmax.f32 %v7200, 0.0
        %v7265 = vmax.f32 %v7201, 0.0
        %v7266 = vmax.f32 %v7202, 0.0
        %v7267 = vmax.f32 %v7203, 0.0
        %v7268 = vmax.f32 %v7204, 0.0
        %v7269 = vmax.f32 %v7205, 0.0
        %v7270 = vmax.f32 %v7206, 0.0
        %v7271 = vmax.f32 %v7207, 0.0
        %v7272 = vmax.f32 %v7208, 0.0
        %v7273 = vmax.f32 %v7209, 0.0
        %vm7274 = vcmp.lt.s32.totalorder %v568, 13
        %vm7275 = vcmp.lt.s32.totalorder %v7141, 13
        %v7276 = vsel %vm7274, 1, 0
        %v7277 = vsel %vm7275, 1, 0
        %vm7278 = vcmp.eq.s32.totalorder %v7276, 1
        %vm7279 = vcmp.eq.s32.totalorder %v7277, 1
        %v7280 = vsel %vm7278, %v7210, 0.0
        %v7281 = vsel %vm7279, %v7211, 0.0
        %v7282 = vsel %vm7278, %v7212, 0.0
        %v7283 = vsel %vm7279, %v7213, 0.0
        %v7284 = vsel %vm7278, %v7214, 0.0
        %v7285 = vsel %vm7279, %v7215, 0.0
        %v7286 = vsel %vm7278, %v7216, 0.0
        %v7287 = vsel %vm7279, %v7217, 0.0
        %v7288 = vsel %vm7278, %v7218, 0.0
        %v7289 = vsel %vm7279, %v7219, 0.0
        %v7290 = vsel %vm7278, %v7220, 0.0
        %v7291 = vsel %vm7279, %v7221, 0.0
        %v7292 = vsel %vm7278, %v7222, 0.0
        %v7293 = vsel %vm7279, %v7223, 0.0
        %v7294 = vsel %vm7278, %v7224, 0.0
        %v7295 = vsel %vm7279, %v7225, 0.0
        %v7296 = vsel %vm7278, %v7226, 0.0
        %v7297 = vsel %vm7279, %v7227, 0.0
        %v7298 = vsel %vm7278, %v7228, 0.0
        %v7299 = vsel %vm7279, %v7229, 0.0
        %v7300 = vsel %vm7278, %v7230, 0.0
        %v7301 = vsel %vm7279, %v7231, 0.0
        %v7302 = vsel %vm7278, %v7232, 0.0
        %v7303 = vsel %vm7279, %v7233, 0.0
        %v7304 = vsel %vm7278, %v7234, 0.0
        %v7305 = vsel %vm7279, %v7235, 0.0
        %v7306 = vsel %vm7278, %v7236, 0.0
        %v7307 = vsel %vm7279, %v7237, 0.0
        %v7308 = vsel %vm7278, %v7238, 0.0
        %v7309 = vsel %vm7279, %v7239, 0.0
        %v7310 = vsel %vm7278, %v7240, 0.0
        %v7311 = vsel %vm7279, %v7241, 0.0
        %v7312 = vsel %vm7278, %v7242, 0.0
        %v7313 = vsel %vm7279, %v7243, 0.0
        %v7314 = vsel %vm7278, %v7244, 0.0
        %v7315 = vsel %vm7279, %v7245, 0.0
        %v7316 = vsel %vm7278, %v7246, 0.0
        %v7317 = vsel %vm7279, %v7247, 0.0
        %v7318 = vsel %vm7278, %v7248, 0.0
        %v7319 = vsel %vm7279, %v7249, 0.0
        %v7320 = vsel %vm7278, %v7250, 0.0
        %v7321 = vsel %vm7279, %v7251, 0.0
        %v7322 = vsel %vm7278, %v7252, 0.0
        %v7323 = vsel %vm7279, %v7253, 0.0
        %v7324 = vsel %vm7278, %v7254, 0.0
        %v7325 = vsel %vm7279, %v7255, 0.0
        %v7326 = vsel %vm7278, %v7256, 0.0
        %v7327 = vsel %vm7279, %v7257, 0.0
        %v7328 = vsel %vm7278, %v7258, 0.0
        %v7329 = vsel %vm7279, %v7259, 0.0
        %v7330 = vsel %vm7278, %v7260, 0.0
        %v7331 = vsel %vm7279, %v7261, 0.0
        %v7332 = vsel %vm7278, %v7262, 0.0
        %v7333 = vsel %vm7279, %v7263, 0.0
        %v7334 = vsel %vm7278, %v7264, 0.0
        %v7335 = vsel %vm7279, %v7265, 0.0
        %v7336 = vsel %vm7278, %v7266, 0.0
        %v7337 = vsel %vm7279, %v7267, 0.0
        %v7338 = vsel %vm7278, %v7268, 0.0
        %v7339 = vsel %vm7279, %v7269, 0.0
        %v7340 = vsel %vm7278, %v7270, 0.0
        %v7341 = vsel %vm7279, %v7271, 0.0
        %v7342 = vsel %vm7278, %v7272, 0.0
        %v7343 = vsel %vm7279, %v7273, 0.0
        %v7344 = vmax.f32 %v7280, %v7281
        %v7345 = vrot.slane %v7344, 4
        %v7346 = vmax.f32 %v7344, %v7345
        %v7347 = vrot.slane %v7346, 2
        %v7348 = vmax.f32 %v7346, %v7347
        %v7349 = vrot.slane %v7348, 1
        %v7350 = vmax.f32 %v7348, %v7349
        %v7351 = vmax.f32 %v7282, %v7283
        %v7352 = vrot.slane %v7351, 4
        %v7353 = vmax.f32 %v7351, %v7352
        %v7354 = vrot.slane %v7353, 2
        %v7355 = vmax.f32 %v7353, %v7354
        %v7356 = vrot.slane %v7355, 1
        %v7357 = vmax.f32 %v7355, %v7356
        %v7358 = vmax.f32 %v7284, %v7285
        %v7359 = vrot.slane %v7358, 4
        %v7360 = vmax.f32 %v7358, %v7359
        %v7361 = vrot.slane %v7360, 2
        %v7362 = vmax.f32 %v7360, %v7361
        %v7363 = vrot.slane %v7362, 1
        %v7364 = vmax.f32 %v7362, %v7363
        %v7365 = vmax.f32 %v7286, %v7287
        %v7366 = vrot.slane %v7365, 4
        %v7367 = vmax.f32 %v7365, %v7366
        %v7368 = vrot.slane %v7367, 2
        %v7369 = vmax.f32 %v7367, %v7368
        %v7370 = vrot.slane %v7369, 1
        %v7371 = vmax.f32 %v7369, %v7370
        %v7372 = vmax.f32 %v7288, %v7289
        %v7373 = vrot.slane %v7372, 4
        %v7374 = vmax.f32 %v7372, %v7373
        %v7375 = vrot.slane %v7374, 2
        %v7376 = vmax.f32 %v7374, %v7375
        %v7377 = vrot.slane %v7376, 1
        %v7378 = vmax.f32 %v7376, %v7377
        %v7379 = vmax.f32 %v7290, %v7291
        %v7380 = vrot.slane %v7379, 4
        %v7381 = vmax.f32 %v7379, %v7380
        %v7382 = vrot.slane %v7381, 2
        %v7383 = vmax.f32 %v7381, %v7382
        %v7384 = vrot.slane %v7383, 1
        %v7385 = vmax.f32 %v7383, %v7384
        %v7386 = vmax.f32 %v7292, %v7293
        %v7387 = vrot.slane %v7386, 4
        %v7388 = vmax.f32 %v7386, %v7387
        %v7389 = vrot.slane %v7388, 2
        %v7390 = vmax.f32 %v7388, %v7389
        %v7391 = vrot.slane %v7390, 1
        %v7392 = vmax.f32 %v7390, %v7391
        %v7393 = vmax.f32 %v7294, %v7295
        %v7394 = vrot.slane %v7393, 4
        %v7395 = vmax.f32 %v7393, %v7394
        %v7396 = vrot.slane %v7395, 2
        %v7397 = vmax.f32 %v7395, %v7396
        %v7398 = vrot.slane %v7397, 1
        %v7399 = vmax.f32 %v7397, %v7398
        %v7400 = vmax.f32 %v7296, %v7297
        %v7401 = vrot.slane %v7400, 4
        %v7402 = vmax.f32 %v7400, %v7401
        %v7403 = vrot.slane %v7402, 2
        %v7404 = vmax.f32 %v7402, %v7403
        %v7405 = vrot.slane %v7404, 1
        %v7406 = vmax.f32 %v7404, %v7405
        %v7407 = vmax.f32 %v7298, %v7299
        %v7408 = vrot.slane %v7407, 4
        %v7409 = vmax.f32 %v7407, %v7408
        %v7410 = vrot.slane %v7409, 2
        %v7411 = vmax.f32 %v7409, %v7410
        %v7412 = vrot.slane %v7411, 1
        %v7413 = vmax.f32 %v7411, %v7412
        %v7414 = vmax.f32 %v7300, %v7301
        %v7415 = vrot.slane %v7414, 4
        %v7416 = vmax.f32 %v7414, %v7415
        %v7417 = vrot.slane %v7416, 2
        %v7418 = vmax.f32 %v7416, %v7417
        %v7419 = vrot.slane %v7418, 1
        %v7420 = vmax.f32 %v7418, %v7419
        %v7421 = vmax.f32 %v7302, %v7303
        %v7422 = vrot.slane %v7421, 4
        %v7423 = vmax.f32 %v7421, %v7422
        %v7424 = vrot.slane %v7423, 2
        %v7425 = vmax.f32 %v7423, %v7424
        %v7426 = vrot.slane %v7425, 1
        %v7427 = vmax.f32 %v7425, %v7426
        %v7428 = vmax.f32 %v7304, %v7305
        %v7429 = vrot.slane %v7428, 4
        %v7430 = vmax.f32 %v7428, %v7429
        %v7431 = vrot.slane %v7430, 2
        %v7432 = vmax.f32 %v7430, %v7431
        %v7433 = vrot.slane %v7432, 1
        %v7434 = vmax.f32 %v7432, %v7433
        %v7435 = vmax.f32 %v7306, %v7307
        %v7436 = vrot.slane %v7435, 4
        %v7437 = vmax.f32 %v7435, %v7436
        %v7438 = vrot.slane %v7437, 2
        %v7439 = vmax.f32 %v7437, %v7438
        %v7440 = vrot.slane %v7439, 1
        %v7441 = vmax.f32 %v7439, %v7440
        %v7442 = vmax.f32 %v7308, %v7309
        %v7443 = vrot.slane %v7442, 4
        %v7444 = vmax.f32 %v7442, %v7443
        %v7445 = vrot.slane %v7444, 2
        %v7446 = vmax.f32 %v7444, %v7445
        %v7447 = vrot.slane %v7446, 1
        %v7448 = vmax.f32 %v7446, %v7447
        %v7449 = vmax.f32 %v7310, %v7311
        %v7450 = vrot.slane %v7449, 4
        %v7451 = vmax.f32 %v7449, %v7450
        %v7452 = vrot.slane %v7451, 2
        %v7453 = vmax.f32 %v7451, %v7452
        %v7454 = vrot.slane %v7453, 1
        %v7455 = vmax.f32 %v7453, %v7454
        %v7456 = vmax.f32 %v7312, %v7313
        %v7457 = vrot.slane %v7456, 4
        %v7458 = vmax.f32 %v7456, %v7457
        %v7459 = vrot.slane %v7458, 2
        %v7460 = vmax.f32 %v7458, %v7459
        %v7461 = vrot.slane %v7460, 1
        %v7462 = vmax.f32 %v7460, %v7461
        %v7463 = vmax.f32 %v7314, %v7315
        %v7464 = vrot.slane %v7463, 4
        %v7465 = vmax.f32 %v7463, %v7464
        %v7466 = vrot.slane %v7465, 2
        %v7467 = vmax.f32 %v7465, %v7466
        %v7468 = vrot.slane %v7467, 1
        %v7469 = vmax.f32 %v7467, %v7468
        %v7470 = vmax.f32 %v7316, %v7317
        %v7471 = vrot.slane %v7470, 4
        %v7472 = vmax.f32 %v7470, %v7471
        %v7473 = vrot.slane %v7472, 2
        %v7474 = vmax.f32 %v7472, %v7473
        %v7475 = vrot.slane %v7474, 1
        %v7476 = vmax.f32 %v7474, %v7475
        %v7477 = vmax.f32 %v7318, %v7319
        %v7478 = vrot.slane %v7477, 4
        %v7479 = vmax.f32 %v7477, %v7478
        %v7480 = vrot.slane %v7479, 2
        %v7481 = vmax.f32 %v7479, %v7480
        %v7482 = vrot.slane %v7481, 1
        %v7483 = vmax.f32 %v7481, %v7482
        %v7484 = vmax.f32 %v7320, %v7321
        %v7485 = vrot.slane %v7484, 4
        %v7486 = vmax.f32 %v7484, %v7485
        %v7487 = vrot.slane %v7486, 2
        %v7488 = vmax.f32 %v7486, %v7487
        %v7489 = vrot.slane %v7488, 1
        %v7490 = vmax.f32 %v7488, %v7489
        %v7491 = vmax.f32 %v7322, %v7323
        %v7492 = vrot.slane %v7491, 4
        %v7493 = vmax.f32 %v7491, %v7492
        %v7494 = vrot.slane %v7493, 2
        %v7495 = vmax.f32 %v7493, %v7494
        %v7496 = vrot.slane %v7495, 1
        %v7497 = vmax.f32 %v7495, %v7496
        %v7498 = vmax.f32 %v7324, %v7325
        %v7499 = vrot.slane %v7498, 4
        %v7500 = vmax.f32 %v7498, %v7499
        %v7501 = vrot.slane %v7500, 2
        %v7502 = vmax.f32 %v7500, %v7501
        %v7503 = vrot.slane %v7502, 1
        %v7504 = vmax.f32 %v7502, %v7503
        %v7505 = vmax.f32 %v7326, %v7327
        %v7506 = vrot.slane %v7505, 4
        %v7507 = vmax.f32 %v7505, %v7506
        %v7508 = vrot.slane %v7507, 2
        %v7509 = vmax.f32 %v7507, %v7508
        %v7510 = vrot.slane %v7509, 1
        %v7511 = vmax.f32 %v7509, %v7510
        %v7512 = vmax.f32 %v7328, %v7329
        %v7513 = vrot.slane %v7512, 4
        %v7514 = vmax.f32 %v7512, %v7513
        %v7515 = vrot.slane %v7514, 2
        %v7516 = vmax.f32 %v7514, %v7515
        %v7517 = vrot.slane %v7516, 1
        %v7518 = vmax.f32 %v7516, %v7517
        %v7519 = vmax.f32 %v7330, %v7331
        %v7520 = vrot.slane %v7519, 4
        %v7521 = vmax.f32 %v7519, %v7520
        %v7522 = vrot.slane %v7521, 2
        %v7523 = vmax.f32 %v7521, %v7522
        %v7524 = vrot.slane %v7523, 1
        %v7525 = vmax.f32 %v7523, %v7524
        %v7526 = vmax.f32 %v7332, %v7333
        %v7527 = vrot.slane %v7526, 4
        %v7528 = vmax.f32 %v7526, %v7527
        %v7529 = vrot.slane %v7528, 2
        %v7530 = vmax.f32 %v7528, %v7529
        %v7531 = vrot.slane %v7530, 1
        %v7532 = vmax.f32 %v7530, %v7531
        %v7533 = vmax.f32 %v7334, %v7335
        %v7534 = vrot.slane %v7533, 4
        %v7535 = vmax.f32 %v7533, %v7534
        %v7536 = vrot.slane %v7535, 2
        %v7537 = vmax.f32 %v7535, %v7536
        %v7538 = vrot.slane %v7537, 1
        %v7539 = vmax.f32 %v7537, %v7538
        %v7540 = vmax.f32 %v7336, %v7337
        %v7541 = vrot.slane %v7540, 4
        %v7542 = vmax.f32 %v7540, %v7541
        %v7543 = vrot.slane %v7542, 2
        %v7544 = vmax.f32 %v7542, %v7543
        %v7545 = vrot.slane %v7544, 1
        %v7546 = vmax.f32 %v7544, %v7545
        %v7547 = vmax.f32 %v7338, %v7339
        %v7548 = vrot.slane %v7547, 4
        %v7549 = vmax.f32 %v7547, %v7548
        %v7550 = vrot.slane %v7549, 2
        %v7551 = vmax.f32 %v7549, %v7550
        %v7552 = vrot.slane %v7551, 1
        %v7553 = vmax.f32 %v7551, %v7552
        %v7554 = vmax.f32 %v7340, %v7341
        %v7555 = vrot.slane %v7554, 4
        %v7556 = vmax.f32 %v7554, %v7555
        %v7557 = vrot.slane %v7556, 2
        %v7558 = vmax.f32 %v7556, %v7557
        %v7559 = vrot.slane %v7558, 1
        %v7560 = vmax.f32 %v7558, %v7559
        %v7561 = vmax.f32 %v7342, %v7343
        %v7562 = vrot.slane %v7561, 4
        %v7563 = vmax.f32 %v7561, %v7562
        %v7564 = vrot.slane %v7563, 2
        %v7565 = vmax.f32 %v7563, %v7564
        %v7566 = vrot.slane %v7565, 1
        %v7567 = vmax.f32 %v7565, %v7566
        %v7568 = vlaneseq
        %v7569 = vshrl.u32 %v7568, 7
        %v7570 = vsub.s32 1, %v7569
        %v7571 = vrot.slane %v422, %v7570
        %v7572 = vadd.f32 %v6081, %v7571
        %v7573 = vadd.f32 %v6082, %v7571
        %v7574 = vadd.f32 %v6083, %v7571
        %v7575 = vadd.f32 %v6084, %v7571
        %v7576 = vadd.f32 %v6085, %v7571
        %v7577 = vadd.f32 %v6086, %v7571
        %v7578 = vadd.f32 %v6087, %v7571
        %v7579 = vadd.f32 %v6088, %v7571
        %v7580 = vadd.f32 %v6089, %v7571
        %v7581 = vadd.f32 %v6090, %v7571
        %v7582 = vadd.f32 %v6091, %v7571
        %v7583 = vadd.f32 %v6092, %v7571
        %v7584 = vadd.f32 %v6093, %v7571
        %v7585 = vadd.f32 %v6094, %v7571
        %v7586 = vadd.f32 %v6095, %v7571
        %v7587 = vadd.f32 %v6096, %v7571
        %v7588 = vadd.f32 %v6097, %v7571
        %v7589 = vadd.f32 %v6098, %v7571
        %v7590 = vadd.f32 %v6099, %v7571
        %v7591 = vadd.f32 %v6100, %v7571
        %v7592 = vadd.f32 %v6101, %v7571
        %v7593 = vadd.f32 %v6102, %v7571
        %v7594 = vadd.f32 %v6103, %v7571
        %v7595 = vadd.f32 %v6104, %v7571
        %v7596 = vadd.f32 %v6105, %v7571
        %v7597 = vadd.f32 %v6106, %v7571
        %v7598 = vadd.f32 %v6107, %v7571
        %v7599 = vadd.f32 %v6108, %v7571
        %v7600 = vadd.f32 %v6109, %v7571
        %v7601 = vadd.f32 %v6110, %v7571
        %v7602 = vadd.f32 %v6111, %v7571
        %v7603 = vadd.f32 %v6112, %v7571
        %v7604 = vadd.f32 %v6113, %v7571
        %v7605 = vadd.f32 %v6114, %v7571
        %v7606 = vadd.f32 %v6115, %v7571
        %v7607 = vadd.f32 %v6116, %v7571
        %v7608 = vadd.f32 %v6117, %v7571
        %v7609 = vadd.f32 %v6118, %v7571
        %v7610 = vadd.f32 %v6119, %v7571
        %v7611 = vadd.f32 %v6120, %v7571
        %v7612 = vadd.f32 %v6121, %v7571
        %v7613 = vadd.f32 %v6122, %v7571
        %v7614 = vadd.f32 %v6123, %v7571
        %v7615 = vadd.f32 %v6124, %v7571
        %v7616 = vadd.f32 %v6125, %v7571
        %v7617 = vadd.f32 %v6126, %v7571
        %v7618 = vadd.f32 %v6127, %v7571
        %v7619 = vadd.f32 %v6128, %v7571
        %v7620 = vadd.f32 %v6129, %v7571
        %v7621 = vadd.f32 %v6130, %v7571
        %v7622 = vadd.f32 %v6131, %v7571
        %v7623 = vadd.f32 %v6132, %v7571
        %v7624 = vadd.f32 %v6133, %v7571
        %v7625 = vadd.f32 %v6134, %v7571
        %v7626 = vadd.f32 %v6135, %v7571
        %v7627 = vadd.f32 %v6136, %v7571
        %v7628 = vadd.f32 %v6137, %v7571
        %v7629 = vadd.f32 %v6138, %v7571
        %v7630 = vadd.f32 %v6139, %v7571
        %v7631 = vadd.f32 %v6140, %v7571
        %v7632 = vadd.f32 %v6141, %v7571
        %v7633 = vadd.f32 %v6142, %v7571
        %v7634 = vadd.f32 %v6143, %v7571
        %v7635 = vadd.f32 %v6144, %v7571
        %v7636 = vmax.f32 %v7572, 0.0
        %v7637 = vmax.f32 %v7573, 0.0
        %v7638 = vmax.f32 %v7574, 0.0
        %v7639 = vmax.f32 %v7575, 0.0
        %v7640 = vmax.f32 %v7576, 0.0
        %v7641 = vmax.f32 %v7577, 0.0
        %v7642 = vmax.f32 %v7578, 0.0
        %v7643 = vmax.f32 %v7579, 0.0
        %v7644 = vmax.f32 %v7580, 0.0
        %v7645 = vmax.f32 %v7581, 0.0
        %v7646 = vmax.f32 %v7582, 0.0
        %v7647 = vmax.f32 %v7583, 0.0
        %v7648 = vmax.f32 %v7584, 0.0
        %v7649 = vmax.f32 %v7585, 0.0
        %v7650 = vmax.f32 %v7586, 0.0
        %v7651 = vmax.f32 %v7587, 0.0
        %v7652 = vmax.f32 %v7588, 0.0
        %v7653 = vmax.f32 %v7589, 0.0
        %v7654 = vmax.f32 %v7590, 0.0
        %v7655 = vmax.f32 %v7591, 0.0
        %v7656 = vmax.f32 %v7592, 0.0
        %v7657 = vmax.f32 %v7593, 0.0
        %v7658 = vmax.f32 %v7594, 0.0
        %v7659 = vmax.f32 %v7595, 0.0
        %v7660 = vmax.f32 %v7596, 0.0
        %v7661 = vmax.f32 %v7597, 0.0
        %v7662 = vmax.f32 %v7598, 0.0
        %v7663 = vmax.f32 %v7599, 0.0
        %v7664 = vmax.f32 %v7600, 0.0
        %v7665 = vmax.f32 %v7601, 0.0
        %v7666 = vmax.f32 %v7602, 0.0
        %v7667 = vmax.f32 %v7603, 0.0
        %v7668 = vmax.f32 %v7604, 0.0
        %v7669 = vmax.f32 %v7605, 0.0
        %v7670 = vmax.f32 %v7606, 0.0
        %v7671 = vmax.f32 %v7607, 0.0
        %v7672 = vmax.f32 %v7608, 0.0
        %v7673 = vmax.f32 %v7609, 0.0
        %v7674 = vmax.f32 %v7610, 0.0
        %v7675 = vmax.f32 %v7611, 0.0
        %v7676 = vmax.f32 %v7612, 0.0
        %v7677 = vmax.f32 %v7613, 0.0
        %v7678 = vmax.f32 %v7614, 0.0
        %v7679 = vmax.f32 %v7615, 0.0
        %v7680 = vmax.f32 %v7616, 0.0
        %v7681 = vmax.f32 %v7617, 0.0
        %v7682 = vmax.f32 %v7618, 0.0
        %v7683 = vmax.f32 %v7619, 0.0
        %v7684 = vmax.f32 %v7620, 0.0
        %v7685 = vmax.f32 %v7621, 0.0
        %v7686 = vmax.f32 %v7622, 0.0
        %v7687 = vmax.f32 %v7623, 0.0
        %v7688 = vmax.f32 %v7624, 0.0
        %v7689 = vmax.f32 %v7625, 0.0
        %v7690 = vmax.f32 %v7626, 0.0
        %v7691 = vmax.f32 %v7627, 0.0
        %v7692 = vmax.f32 %v7628, 0.0
        %v7693 = vmax.f32 %v7629, 0.0
        %v7694 = vmax.f32 %v7630, 0.0
        %v7695 = vmax.f32 %v7631, 0.0
        %v7696 = vmax.f32 %v7632, 0.0
        %v7697 = vmax.f32 %v7633, 0.0
        %v7698 = vmax.f32 %v7634, 0.0
        %v7699 = vmax.f32 %v7635, 0.0
        %vm7700 = vcmp.lt.s32.totalorder %v568, 12
        %vm7701 = vcmp.lt.s32.totalorder %v7141, 12
        %v7702 = vsel %vm7700, 1, 0
        %v7703 = vsel %vm7701, 1, 0
        %vm7704 = vcmp.eq.s32.totalorder %v7702, 1
        %vm7705 = vcmp.eq.s32.totalorder %v7703, 1
        %v7706 = vsel %vm7704, %v7636, 0.0
        %v7707 = vsel %vm7705, %v7637, 0.0
        %v7708 = vsel %vm7704, %v7638, 0.0
        %v7709 = vsel %vm7705, %v7639, 0.0
        %v7710 = vsel %vm7704, %v7640, 0.0
        %v7711 = vsel %vm7705, %v7641, 0.0
        %v7712 = vsel %vm7704, %v7642, 0.0
        %v7713 = vsel %vm7705, %v7643, 0.0
        %v7714 = vsel %vm7704, %v7644, 0.0
        %v7715 = vsel %vm7705, %v7645, 0.0
        %v7716 = vsel %vm7704, %v7646, 0.0
        %v7717 = vsel %vm7705, %v7647, 0.0
        %v7718 = vsel %vm7704, %v7648, 0.0
        %v7719 = vsel %vm7705, %v7649, 0.0
        %v7720 = vsel %vm7704, %v7650, 0.0
        %v7721 = vsel %vm7705, %v7651, 0.0
        %v7722 = vsel %vm7704, %v7652, 0.0
        %v7723 = vsel %vm7705, %v7653, 0.0
        %v7724 = vsel %vm7704, %v7654, 0.0
        %v7725 = vsel %vm7705, %v7655, 0.0
        %v7726 = vsel %vm7704, %v7656, 0.0
        %v7727 = vsel %vm7705, %v7657, 0.0
        %v7728 = vsel %vm7704, %v7658, 0.0
        %v7729 = vsel %vm7705, %v7659, 0.0
        %v7730 = vsel %vm7704, %v7660, 0.0
        %v7731 = vsel %vm7705, %v7661, 0.0
        %v7732 = vsel %vm7704, %v7662, 0.0
        %v7733 = vsel %vm7705, %v7663, 0.0
        %v7734 = vsel %vm7704, %v7664, 0.0
        %v7735 = vsel %vm7705, %v7665, 0.0
        %v7736 = vsel %vm7704, %v7666, 0.0
        %v7737 = vsel %vm7705, %v7667, 0.0
        %v7738 = vsel %vm7704, %v7668, 0.0
        %v7739 = vsel %vm7705, %v7669, 0.0
        %v7740 = vsel %vm7704, %v7670, 0.0
        %v7741 = vsel %vm7705, %v7671, 0.0
        %v7742 = vsel %vm7704, %v7672, 0.0
        %v7743 = vsel %vm7705, %v7673, 0.0
        %v7744 = vsel %vm7704, %v7674, 0.0
        %v7745 = vsel %vm7705, %v7675, 0.0
        %v7746 = vsel %vm7704, %v7676, 0.0
        %v7747 = vsel %vm7705, %v7677, 0.0
        %v7748 = vsel %vm7704, %v7678, 0.0
        %v7749 = vsel %vm7705, %v7679, 0.0
        %v7750 = vsel %vm7704, %v7680, 0.0
        %v7751 = vsel %vm7705, %v7681, 0.0
        %v7752 = vsel %vm7704, %v7682, 0.0
        %v7753 = vsel %vm7705, %v7683, 0.0
        %v7754 = vsel %vm7704, %v7684, 0.0
        %v7755 = vsel %vm7705, %v7685, 0.0
        %v7756 = vsel %vm7704, %v7686, 0.0
        %v7757 = vsel %vm7705, %v7687, 0.0
        %v7758 = vsel %vm7704, %v7688, 0.0
        %v7759 = vsel %vm7705, %v7689, 0.0
        %v7760 = vsel %vm7704, %v7690, 0.0
        %v7761 = vsel %vm7705, %v7691, 0.0
        %v7762 = vsel %vm7704, %v7692, 0.0
        %v7763 = vsel %vm7705, %v7693, 0.0
        %v7764 = vsel %vm7704, %v7694, 0.0
        %v7765 = vsel %vm7705, %v7695, 0.0
        %v7766 = vsel %vm7704, %v7696, 0.0
        %v7767 = vsel %vm7705, %v7697, 0.0
        %v7768 = vsel %vm7704, %v7698, 0.0
        %v7769 = vsel %vm7705, %v7699, 0.0
        %v7770 = vmax.f32 %v7706, %v7707
        %v7771 = vrot.slane %v7770, 4
        %v7772 = vmax.f32 %v7770, %v7771
        %v7773 = vrot.slane %v7772, 2
        %v7774 = vmax.f32 %v7772, %v7773
        %v7775 = vrot.slane %v7774, 1
        %v7776 = vmax.f32 %v7774, %v7775
        %v7777 = vmax.f32 %v7708, %v7709
        %v7778 = vrot.slane %v7777, 4
        %v7779 = vmax.f32 %v7777, %v7778
        %v7780 = vrot.slane %v7779, 2
        %v7781 = vmax.f32 %v7779, %v7780
        %v7782 = vrot.slane %v7781, 1
        %v7783 = vmax.f32 %v7781, %v7782
        %v7784 = vmax.f32 %v7710, %v7711
        %v7785 = vrot.slane %v7784, 4
        %v7786 = vmax.f32 %v7784, %v7785
        %v7787 = vrot.slane %v7786, 2
        %v7788 = vmax.f32 %v7786, %v7787
        %v7789 = vrot.slane %v7788, 1
        %v7790 = vmax.f32 %v7788, %v7789
        %v7791 = vmax.f32 %v7712, %v7713
        %v7792 = vrot.slane %v7791, 4
        %v7793 = vmax.f32 %v7791, %v7792
        %v7794 = vrot.slane %v7793, 2
        %v7795 = vmax.f32 %v7793, %v7794
        %v7796 = vrot.slane %v7795, 1
        %v7797 = vmax.f32 %v7795, %v7796
        %v7798 = vmax.f32 %v7714, %v7715
        %v7799 = vrot.slane %v7798, 4
        %v7800 = vmax.f32 %v7798, %v7799
        %v7801 = vrot.slane %v7800, 2
        %v7802 = vmax.f32 %v7800, %v7801
        %v7803 = vrot.slane %v7802, 1
        %v7804 = vmax.f32 %v7802, %v7803
        %v7805 = vmax.f32 %v7716, %v7717
        %v7806 = vrot.slane %v7805, 4
        %v7807 = vmax.f32 %v7805, %v7806
        %v7808 = vrot.slane %v7807, 2
        %v7809 = vmax.f32 %v7807, %v7808
        %v7810 = vrot.slane %v7809, 1
        %v7811 = vmax.f32 %v7809, %v7810
        %v7812 = vmax.f32 %v7718, %v7719
        %v7813 = vrot.slane %v7812, 4
        %v7814 = vmax.f32 %v7812, %v7813
        %v7815 = vrot.slane %v7814, 2
        %v7816 = vmax.f32 %v7814, %v7815
        %v7817 = vrot.slane %v7816, 1
        %v7818 = vmax.f32 %v7816, %v7817
        %v7819 = vmax.f32 %v7720, %v7721
        %v7820 = vrot.slane %v7819, 4
        %v7821 = vmax.f32 %v7819, %v7820
        %v7822 = vrot.slane %v7821, 2
        %v7823 = vmax.f32 %v7821, %v7822
        %v7824 = vrot.slane %v7823, 1
        %v7825 = vmax.f32 %v7823, %v7824
        %v7826 = vmax.f32 %v7722, %v7723
        %v7827 = vrot.slane %v7826, 4
        %v7828 = vmax.f32 %v7826, %v7827
        %v7829 = vrot.slane %v7828, 2
        %v7830 = vmax.f32 %v7828, %v7829
        %v7831 = vrot.slane %v7830, 1
        %v7832 = vmax.f32 %v7830, %v7831
        %v7833 = vmax.f32 %v7724, %v7725
        %v7834 = vrot.slane %v7833, 4
        %v7835 = vmax.f32 %v7833, %v7834
        %v7836 = vrot.slane %v7835, 2
        %v7837 = vmax.f32 %v7835, %v7836
        %v7838 = vrot.slane %v7837, 1
        %v7839 = vmax.f32 %v7837, %v7838
        %v7840 = vmax.f32 %v7726, %v7727
        %v7841 = vrot.slane %v7840, 4
        %v7842 = vmax.f32 %v7840, %v7841
        %v7843 = vrot.slane %v7842, 2
        %v7844 = vmax.f32 %v7842, %v7843
        %v7845 = vrot.slane %v7844, 1
        %v7846 = vmax.f32 %v7844, %v7845
        %v7847 = vmax.f32 %v7728, %v7729
        %v7848 = vrot.slane %v7847, 4
        %v7849 = vmax.f32 %v7847, %v7848
        %v7850 = vrot.slane %v7849, 2
        %v7851 = vmax.f32 %v7849, %v7850
        %v7852 = vrot.slane %v7851, 1
        %v7853 = vmax.f32 %v7851, %v7852
        %v7854 = vmax.f32 %v7730, %v7731
        %v7855 = vrot.slane %v7854, 4
        %v7856 = vmax.f32 %v7854, %v7855
        %v7857 = vrot.slane %v7856, 2
        %v7858 = vmax.f32 %v7856, %v7857
        %v7859 = vrot.slane %v7858, 1
        %v7860 = vmax.f32 %v7858, %v7859
        %v7861 = vmax.f32 %v7732, %v7733
        %v7862 = vrot.slane %v7861, 4
        %v7863 = vmax.f32 %v7861, %v7862
        %v7864 = vrot.slane %v7863, 2
        %v7865 = vmax.f32 %v7863, %v7864
        %v7866 = vrot.slane %v7865, 1
        %v7867 = vmax.f32 %v7865, %v7866
        %v7868 = vmax.f32 %v7734, %v7735
        %v7869 = vrot.slane %v7868, 4
        %v7870 = vmax.f32 %v7868, %v7869
        %v7871 = vrot.slane %v7870, 2
        %v7872 = vmax.f32 %v7870, %v7871
        %v7873 = vrot.slane %v7872, 1
        %v7874 = vmax.f32 %v7872, %v7873
        %v7875 = vmax.f32 %v7736, %v7737
        %v7876 = vrot.slane %v7875, 4
        %v7877 = vmax.f32 %v7875, %v7876
        %v7878 = vrot.slane %v7877, 2
        %v7879 = vmax.f32 %v7877, %v7878
        %v7880 = vrot.slane %v7879, 1
        %v7881 = vmax.f32 %v7879, %v7880
        %v7882 = vmax.f32 %v7738, %v7739
        %v7883 = vrot.slane %v7882, 4
        %v7884 = vmax.f32 %v7882, %v7883
        %v7885 = vrot.slane %v7884, 2
        %v7886 = vmax.f32 %v7884, %v7885
        %v7887 = vrot.slane %v7886, 1
        %v7888 = vmax.f32 %v7886, %v7887
        %v7889 = vmax.f32 %v7740, %v7741
        %v7890 = vrot.slane %v7889, 4
        %v7891 = vmax.f32 %v7889, %v7890
        %v7892 = vrot.slane %v7891, 2
        %v7893 = vmax.f32 %v7891, %v7892
        %v7894 = vrot.slane %v7893, 1
        %v7895 = vmax.f32 %v7893, %v7894
        %v7896 = vmax.f32 %v7742, %v7743
        %v7897 = vrot.slane %v7896, 4
        %v7898 = vmax.f32 %v7896, %v7897
        %v7899 = vrot.slane %v7898, 2
        %v7900 = vmax.f32 %v7898, %v7899
        %v7901 = vrot.slane %v7900, 1
        %v7902 = vmax.f32 %v7900, %v7901
        %v7903 = vmax.f32 %v7744, %v7745
        %v7904 = vrot.slane %v7903, 4
        %v7905 = vmax.f32 %v7903, %v7904
        %v7906 = vrot.slane %v7905, 2
        %v7907 = vmax.f32 %v7905, %v7906
        %v7908 = vrot.slane %v7907, 1
        %v7909 = vmax.f32 %v7907, %v7908
        %v7910 = vmax.f32 %v7746, %v7747
        %v7911 = vrot.slane %v7910, 4
        %v7912 = vmax.f32 %v7910, %v7911
        %v7913 = vrot.slane %v7912, 2
        %v7914 = vmax.f32 %v7912, %v7913
        %v7915 = vrot.slane %v7914, 1
        %v7916 = vmax.f32 %v7914, %v7915
        %v7917 = vmax.f32 %v7748, %v7749
        %v7918 = vrot.slane %v7917, 4
        %v7919 = vmax.f32 %v7917, %v7918
        %v7920 = vrot.slane %v7919, 2
        %v7921 = vmax.f32 %v7919, %v7920
        %v7922 = vrot.slane %v7921, 1
        %v7923 = vmax.f32 %v7921, %v7922
        %v7924 = vmax.f32 %v7750, %v7751
        %v7925 = vrot.slane %v7924, 4
        %v7926 = vmax.f32 %v7924, %v7925
        %v7927 = vrot.slane %v7926, 2
        %v7928 = vmax.f32 %v7926, %v7927
        %v7929 = vrot.slane %v7928, 1
        %v7930 = vmax.f32 %v7928, %v7929
        %v7931 = vmax.f32 %v7752, %v7753
        %v7932 = vrot.slane %v7931, 4
        %v7933 = vmax.f32 %v7931, %v7932
        %v7934 = vrot.slane %v7933, 2
        %v7935 = vmax.f32 %v7933, %v7934
        %v7936 = vrot.slane %v7935, 1
        %v7937 = vmax.f32 %v7935, %v7936
        %v7938 = vmax.f32 %v7754, %v7755
        %v7939 = vrot.slane %v7938, 4
        %v7940 = vmax.f32 %v7938, %v7939
        %v7941 = vrot.slane %v7940, 2
        %v7942 = vmax.f32 %v7940, %v7941
        %v7943 = vrot.slane %v7942, 1
        %v7944 = vmax.f32 %v7942, %v7943
        %v7945 = vmax.f32 %v7756, %v7757
        %v7946 = vrot.slane %v7945, 4
        %v7947 = vmax.f32 %v7945, %v7946
        %v7948 = vrot.slane %v7947, 2
        %v7949 = vmax.f32 %v7947, %v7948
        %v7950 = vrot.slane %v7949, 1
        %v7951 = vmax.f32 %v7949, %v7950
        %v7952 = vmax.f32 %v7758, %v7759
        %v7953 = vrot.slane %v7952, 4
        %v7954 = vmax.f32 %v7952, %v7953
        %v7955 = vrot.slane %v7954, 2
        %v7956 = vmax.f32 %v7954, %v7955
        %v7957 = vrot.slane %v7956, 1
        %v7958 = vmax.f32 %v7956, %v7957
        %v7959 = vmax.f32 %v7760, %v7761
        %v7960 = vrot.slane %v7959, 4
        %v7961 = vmax.f32 %v7959, %v7960
        %v7962 = vrot.slane %v7961, 2
        %v7963 = vmax.f32 %v7961, %v7962
        %v7964 = vrot.slane %v7963, 1
        %v7965 = vmax.f32 %v7963, %v7964
        %v7966 = vmax.f32 %v7762, %v7763
        %v7967 = vrot.slane %v7966, 4
        %v7968 = vmax.f32 %v7966, %v7967
        %v7969 = vrot.slane %v7968, 2
        %v7970 = vmax.f32 %v7968, %v7969
        %v7971 = vrot.slane %v7970, 1
        %v7972 = vmax.f32 %v7970, %v7971
        %v7973 = vmax.f32 %v7764, %v7765
        %v7974 = vrot.slane %v7973, 4
        %v7975 = vmax.f32 %v7973, %v7974
        %v7976 = vrot.slane %v7975, 2
        %v7977 = vmax.f32 %v7975, %v7976
        %v7978 = vrot.slane %v7977, 1
        %v7979 = vmax.f32 %v7977, %v7978
        %v7980 = vmax.f32 %v7766, %v7767
        %v7981 = vrot.slane %v7980, 4
        %v7982 = vmax.f32 %v7980, %v7981
        %v7983 = vrot.slane %v7982, 2
        %v7984 = vmax.f32 %v7982, %v7983
        %v7985 = vrot.slane %v7984, 1
        %v7986 = vmax.f32 %v7984, %v7985
        %v7987 = vmax.f32 %v7768, %v7769
        %v7988 = vrot.slane %v7987, 4
        %v7989 = vmax.f32 %v7987, %v7988
        %v7990 = vrot.slane %v7989, 2
        %v7991 = vmax.f32 %v7989, %v7990
        %v7992 = vrot.slane %v7991, 1
        %v7993 = vmax.f32 %v7991, %v7992
        %v7994 = vlaneseq
        %v7995 = vshrl.u32 %v7994, 7
        %v7996 = vsub.s32 2, %v7995
        %v7997 = vrot.slane %v422, %v7996
        %v7998 = vadd.f32 %v7077, %v7997
        %v7999 = vadd.f32 %v7078, %v7997
        %v8000 = vadd.f32 %v7079, %v7997
        %v8001 = vadd.f32 %v7080, %v7997
        %v8002 = vadd.f32 %v7081, %v7997
        %v8003 = vadd.f32 %v7082, %v7997
        %v8004 = vadd.f32 %v7083, %v7997
        %v8005 = vadd.f32 %v7084, %v7997
        %v8006 = vadd.f32 %v7085, %v7997
        %v8007 = vadd.f32 %v7086, %v7997
        %v8008 = vadd.f32 %v7087, %v7997
        %v8009 = vadd.f32 %v7088, %v7997
        %v8010 = vadd.f32 %v7089, %v7997
        %v8011 = vadd.f32 %v7090, %v7997
        %v8012 = vadd.f32 %v7091, %v7997
        %v8013 = vadd.f32 %v7092, %v7997
        %v8014 = vadd.f32 %v7093, %v7997
        %v8015 = vadd.f32 %v7094, %v7997
        %v8016 = vadd.f32 %v7095, %v7997
        %v8017 = vadd.f32 %v7096, %v7997
        %v8018 = vadd.f32 %v7097, %v7997
        %v8019 = vadd.f32 %v7098, %v7997
        %v8020 = vadd.f32 %v7099, %v7997
        %v8021 = vadd.f32 %v7100, %v7997
        %v8022 = vadd.f32 %v7101, %v7997
        %v8023 = vadd.f32 %v7102, %v7997
        %v8024 = vadd.f32 %v7103, %v7997
        %v8025 = vadd.f32 %v7104, %v7997
        %v8026 = vadd.f32 %v7105, %v7997
        %v8027 = vadd.f32 %v7106, %v7997
        %v8028 = vadd.f32 %v7107, %v7997
        %v8029 = vadd.f32 %v7108, %v7997
        %v8030 = vadd.f32 %v7109, %v7997
        %v8031 = vadd.f32 %v7110, %v7997
        %v8032 = vadd.f32 %v7111, %v7997
        %v8033 = vadd.f32 %v7112, %v7997
        %v8034 = vadd.f32 %v7113, %v7997
        %v8035 = vadd.f32 %v7114, %v7997
        %v8036 = vadd.f32 %v7115, %v7997
        %v8037 = vadd.f32 %v7116, %v7997
        %v8038 = vadd.f32 %v7117, %v7997
        %v8039 = vadd.f32 %v7118, %v7997
        %v8040 = vadd.f32 %v7119, %v7997
        %v8041 = vadd.f32 %v7120, %v7997
        %v8042 = vadd.f32 %v7121, %v7997
        %v8043 = vadd.f32 %v7122, %v7997
        %v8044 = vadd.f32 %v7123, %v7997
        %v8045 = vadd.f32 %v7124, %v7997
        %v8046 = vadd.f32 %v7125, %v7997
        %v8047 = vadd.f32 %v7126, %v7997
        %v8048 = vadd.f32 %v7127, %v7997
        %v8049 = vadd.f32 %v7128, %v7997
        %v8050 = vadd.f32 %v7129, %v7997
        %v8051 = vadd.f32 %v7130, %v7997
        %v8052 = vadd.f32 %v7131, %v7997
        %v8053 = vadd.f32 %v7132, %v7997
        %v8054 = vadd.f32 %v7133, %v7997
        %v8055 = vadd.f32 %v7134, %v7997
        %v8056 = vadd.f32 %v7135, %v7997
        %v8057 = vadd.f32 %v7136, %v7997
        %v8058 = vadd.f32 %v7137, %v7997
        %v8059 = vadd.f32 %v7138, %v7997
        %v8060 = vadd.f32 %v7139, %v7997
        %v8061 = vadd.f32 %v7140, %v7997
        %v8062 = vmax.f32 %v7998, 0.0
        %v8063 = vmax.f32 %v7999, 0.0
        %v8064 = vmax.f32 %v8000, 0.0
        %v8065 = vmax.f32 %v8001, 0.0
        %v8066 = vmax.f32 %v8002, 0.0
        %v8067 = vmax.f32 %v8003, 0.0
        %v8068 = vmax.f32 %v8004, 0.0
        %v8069 = vmax.f32 %v8005, 0.0
        %v8070 = vmax.f32 %v8006, 0.0
        %v8071 = vmax.f32 %v8007, 0.0
        %v8072 = vmax.f32 %v8008, 0.0
        %v8073 = vmax.f32 %v8009, 0.0
        %v8074 = vmax.f32 %v8010, 0.0
        %v8075 = vmax.f32 %v8011, 0.0
        %v8076 = vmax.f32 %v8012, 0.0
        %v8077 = vmax.f32 %v8013, 0.0
        %v8078 = vmax.f32 %v8014, 0.0
        %v8079 = vmax.f32 %v8015, 0.0
        %v8080 = vmax.f32 %v8016, 0.0
        %v8081 = vmax.f32 %v8017, 0.0
        %v8082 = vmax.f32 %v8018, 0.0
        %v8083 = vmax.f32 %v8019, 0.0
        %v8084 = vmax.f32 %v8020, 0.0
        %v8085 = vmax.f32 %v8021, 0.0
        %v8086 = vmax.f32 %v8022, 0.0
        %v8087 = vmax.f32 %v8023, 0.0
        %v8088 = vmax.f32 %v8024, 0.0
        %v8089 = vmax.f32 %v8025, 0.0
        %v8090 = vmax.f32 %v8026, 0.0
        %v8091 = vmax.f32 %v8027, 0.0
        %v8092 = vmax.f32 %v8028, 0.0
        %v8093 = vmax.f32 %v8029, 0.0
        %v8094 = vmax.f32 %v8030, 0.0
        %v8095 = vmax.f32 %v8031, 0.0
        %v8096 = vmax.f32 %v8032, 0.0
        %v8097 = vmax.f32 %v8033, 0.0
        %v8098 = vmax.f32 %v8034, 0.0
        %v8099 = vmax.f32 %v8035, 0.0
        %v8100 = vmax.f32 %v8036, 0.0
        %v8101 = vmax.f32 %v8037, 0.0
        %v8102 = vmax.f32 %v8038, 0.0
        %v8103 = vmax.f32 %v8039, 0.0
        %v8104 = vmax.f32 %v8040, 0.0
        %v8105 = vmax.f32 %v8041, 0.0
        %v8106 = vmax.f32 %v8042, 0.0
        %v8107 = vmax.f32 %v8043, 0.0
        %v8108 = vmax.f32 %v8044, 0.0
        %v8109 = vmax.f32 %v8045, 0.0
        %v8110 = vmax.f32 %v8046, 0.0
        %v8111 = vmax.f32 %v8047, 0.0
        %v8112 = vmax.f32 %v8048, 0.0
        %v8113 = vmax.f32 %v8049, 0.0
        %v8114 = vmax.f32 %v8050, 0.0
        %v8115 = vmax.f32 %v8051, 0.0
        %v8116 = vmax.f32 %v8052, 0.0
        %v8117 = vmax.f32 %v8053, 0.0
        %v8118 = vmax.f32 %v8054, 0.0
        %v8119 = vmax.f32 %v8055, 0.0
        %v8120 = vmax.f32 %v8056, 0.0
        %v8121 = vmax.f32 %v8057, 0.0
        %v8122 = vmax.f32 %v8058, 0.0
        %v8123 = vmax.f32 %v8059, 0.0
        %v8124 = vmax.f32 %v8060, 0.0
        %v8125 = vmax.f32 %v8061, 0.0
        %vm8126 = vcmp.lt.s32.totalorder %v568, 11
        %vm8127 = vcmp.lt.s32.totalorder %v7141, 11
        %v8128 = vsel %vm8126, 1, 0
        %v8129 = vsel %vm8127, 1, 0
        %vm8130 = vcmp.eq.s32.totalorder %v8128, 1
        %vm8131 = vcmp.eq.s32.totalorder %v8129, 1
        %v8132 = vsel %vm8130, %v8062, 0.0
        %v8133 = vsel %vm8131, %v8063, 0.0
        %v8134 = vsel %vm8130, %v8064, 0.0
        %v8135 = vsel %vm8131, %v8065, 0.0
        %v8136 = vsel %vm8130, %v8066, 0.0
        %v8137 = vsel %vm8131, %v8067, 0.0
        %v8138 = vsel %vm8130, %v8068, 0.0
        %v8139 = vsel %vm8131, %v8069, 0.0
        %v8140 = vsel %vm8130, %v8070, 0.0
        %v8141 = vsel %vm8131, %v8071, 0.0
        %v8142 = vsel %vm8130, %v8072, 0.0
        %v8143 = vsel %vm8131, %v8073, 0.0
        %v8144 = vsel %vm8130, %v8074, 0.0
        %v8145 = vsel %vm8131, %v8075, 0.0
        %v8146 = vsel %vm8130, %v8076, 0.0
        %v8147 = vsel %vm8131, %v8077, 0.0
        %v8148 = vsel %vm8130, %v8078, 0.0
        %v8149 = vsel %vm8131, %v8079, 0.0
        %v8150 = vsel %vm8130, %v8080, 0.0
        %v8151 = vsel %vm8131, %v8081, 0.0
        %v8152 = vsel %vm8130, %v8082, 0.0
        %v8153 = vsel %vm8131, %v8083, 0.0
        %v8154 = vsel %vm8130, %v8084, 0.0
        %v8155 = vsel %vm8131, %v8085, 0.0
        %v8156 = vsel %vm8130, %v8086, 0.0
        %v8157 = vsel %vm8131, %v8087, 0.0
        %v8158 = vsel %vm8130, %v8088, 0.0
        %v8159 = vsel %vm8131, %v8089, 0.0
        %v8160 = vsel %vm8130, %v8090, 0.0
        %v8161 = vsel %vm8131, %v8091, 0.0
        %v8162 = vsel %vm8130, %v8092, 0.0
        %v8163 = vsel %vm8131, %v8093, 0.0
        %v8164 = vsel %vm8130, %v8094, 0.0
        %v8165 = vsel %vm8131, %v8095, 0.0
        %v8166 = vsel %vm8130, %v8096, 0.0
        %v8167 = vsel %vm8131, %v8097, 0.0
        %v8168 = vsel %vm8130, %v8098, 0.0
        %v8169 = vsel %vm8131, %v8099, 0.0
        %v8170 = vsel %vm8130, %v8100, 0.0
        %v8171 = vsel %vm8131, %v8101, 0.0
        %v8172 = vsel %vm8130, %v8102, 0.0
        %v8173 = vsel %vm8131, %v8103, 0.0
        %v8174 = vsel %vm8130, %v8104, 0.0
        %v8175 = vsel %vm8131, %v8105, 0.0
        %v8176 = vsel %vm8130, %v8106, 0.0
        %v8177 = vsel %vm8131, %v8107, 0.0
        %v8178 = vsel %vm8130, %v8108, 0.0
        %v8179 = vsel %vm8131, %v8109, 0.0
        %v8180 = vsel %vm8130, %v8110, 0.0
        %v8181 = vsel %vm8131, %v8111, 0.0
        %v8182 = vsel %vm8130, %v8112, 0.0
        %v8183 = vsel %vm8131, %v8113, 0.0
        %v8184 = vsel %vm8130, %v8114, 0.0
        %v8185 = vsel %vm8131, %v8115, 0.0
        %v8186 = vsel %vm8130, %v8116, 0.0
        %v8187 = vsel %vm8131, %v8117, 0.0
        %v8188 = vsel %vm8130, %v8118, 0.0
        %v8189 = vsel %vm8131, %v8119, 0.0
        %v8190 = vsel %vm8130, %v8120, 0.0
        %v8191 = vsel %vm8131, %v8121, 0.0
        %v8192 = vsel %vm8130, %v8122, 0.0
        %v8193 = vsel %vm8131, %v8123, 0.0
        %v8194 = vsel %vm8130, %v8124, 0.0
        %v8195 = vsel %vm8131, %v8125, 0.0
        %v8196 = vmax.f32 %v8132, %v8133
        %v8197 = vrot.slane %v8196, 4
        %v8198 = vmax.f32 %v8196, %v8197
        %v8199 = vrot.slane %v8198, 2
        %v8200 = vmax.f32 %v8198, %v8199
        %v8201 = vrot.slane %v8200, 1
        %v8202 = vmax.f32 %v8200, %v8201
        %v8203 = vmax.f32 %v8134, %v8135
        %v8204 = vrot.slane %v8203, 4
        %v8205 = vmax.f32 %v8203, %v8204
        %v8206 = vrot.slane %v8205, 2
        %v8207 = vmax.f32 %v8205, %v8206
        %v8208 = vrot.slane %v8207, 1
        %v8209 = vmax.f32 %v8207, %v8208
        %v8210 = vmax.f32 %v8136, %v8137
        %v8211 = vrot.slane %v8210, 4
        %v8212 = vmax.f32 %v8210, %v8211
        %v8213 = vrot.slane %v8212, 2
        %v8214 = vmax.f32 %v8212, %v8213
        %v8215 = vrot.slane %v8214, 1
        %v8216 = vmax.f32 %v8214, %v8215
        %v8217 = vmax.f32 %v8138, %v8139
        %v8218 = vrot.slane %v8217, 4
        %v8219 = vmax.f32 %v8217, %v8218
        %v8220 = vrot.slane %v8219, 2
        %v8221 = vmax.f32 %v8219, %v8220
        %v8222 = vrot.slane %v8221, 1
        %v8223 = vmax.f32 %v8221, %v8222
        %v8224 = vmax.f32 %v8140, %v8141
        %v8225 = vrot.slane %v8224, 4
        %v8226 = vmax.f32 %v8224, %v8225
        %v8227 = vrot.slane %v8226, 2
        %v8228 = vmax.f32 %v8226, %v8227
        %v8229 = vrot.slane %v8228, 1
        %v8230 = vmax.f32 %v8228, %v8229
        %v8231 = vmax.f32 %v8142, %v8143
        %v8232 = vrot.slane %v8231, 4
        %v8233 = vmax.f32 %v8231, %v8232
        %v8234 = vrot.slane %v8233, 2
        %v8235 = vmax.f32 %v8233, %v8234
        %v8236 = vrot.slane %v8235, 1
        %v8237 = vmax.f32 %v8235, %v8236
        %v8238 = vmax.f32 %v8144, %v8145
        %v8239 = vrot.slane %v8238, 4
        %v8240 = vmax.f32 %v8238, %v8239
        %v8241 = vrot.slane %v8240, 2
        %v8242 = vmax.f32 %v8240, %v8241
        %v8243 = vrot.slane %v8242, 1
        %v8244 = vmax.f32 %v8242, %v8243
        %v8245 = vmax.f32 %v8146, %v8147
        %v8246 = vrot.slane %v8245, 4
        %v8247 = vmax.f32 %v8245, %v8246
        %v8248 = vrot.slane %v8247, 2
        %v8249 = vmax.f32 %v8247, %v8248
        %v8250 = vrot.slane %v8249, 1
        %v8251 = vmax.f32 %v8249, %v8250
        %v8252 = vmax.f32 %v8148, %v8149
        %v8253 = vrot.slane %v8252, 4
        %v8254 = vmax.f32 %v8252, %v8253
        %v8255 = vrot.slane %v8254, 2
        %v8256 = vmax.f32 %v8254, %v8255
        %v8257 = vrot.slane %v8256, 1
        %v8258 = vmax.f32 %v8256, %v8257
        %v8259 = vmax.f32 %v8150, %v8151
        %v8260 = vrot.slane %v8259, 4
        %v8261 = vmax.f32 %v8259, %v8260
        %v8262 = vrot.slane %v8261, 2
        %v8263 = vmax.f32 %v8261, %v8262
        %v8264 = vrot.slane %v8263, 1
        %v8265 = vmax.f32 %v8263, %v8264
        %v8266 = vmax.f32 %v8152, %v8153
        %v8267 = vrot.slane %v8266, 4
        %v8268 = vmax.f32 %v8266, %v8267
        %v8269 = vrot.slane %v8268, 2
        %v8270 = vmax.f32 %v8268, %v8269
        %v8271 = vrot.slane %v8270, 1
        %v8272 = vmax.f32 %v8270, %v8271
        %v8273 = vmax.f32 %v8154, %v8155
        %v8274 = vrot.slane %v8273, 4
        %v8275 = vmax.f32 %v8273, %v8274
        %v8276 = vrot.slane %v8275, 2
        %v8277 = vmax.f32 %v8275, %v8276
        %v8278 = vrot.slane %v8277, 1
        %v8279 = vmax.f32 %v8277, %v8278
        %v8280 = vmax.f32 %v8156, %v8157
        %v8281 = vrot.slane %v8280, 4
        %v8282 = vmax.f32 %v8280, %v8281
        %v8283 = vrot.slane %v8282, 2
        %v8284 = vmax.f32 %v8282, %v8283
        %v8285 = vrot.slane %v8284, 1
        %v8286 = vmax.f32 %v8284, %v8285
        %v8287 = vmax.f32 %v8158, %v8159
        %v8288 = vrot.slane %v8287, 4
        %v8289 = vmax.f32 %v8287, %v8288
        %v8290 = vrot.slane %v8289, 2
        %v8291 = vmax.f32 %v8289, %v8290
        %v8292 = vrot.slane %v8291, 1
        %v8293 = vmax.f32 %v8291, %v8292
        %v8294 = vmax.f32 %v8160, %v8161
        %v8295 = vrot.slane %v8294, 4
        %v8296 = vmax.f32 %v8294, %v8295
        %v8297 = vrot.slane %v8296, 2
        %v8298 = vmax.f32 %v8296, %v8297
        %v8299 = vrot.slane %v8298, 1
        %v8300 = vmax.f32 %v8298, %v8299
        %v8301 = vmax.f32 %v8162, %v8163
        %v8302 = vrot.slane %v8301, 4
        %v8303 = vmax.f32 %v8301, %v8302
        %v8304 = vrot.slane %v8303, 2
        %v8305 = vmax.f32 %v8303, %v8304
        %v8306 = vrot.slane %v8305, 1
        %v8307 = vmax.f32 %v8305, %v8306
        %v8308 = vmax.f32 %v8164, %v8165
        %v8309 = vrot.slane %v8308, 4
        %v8310 = vmax.f32 %v8308, %v8309
        %v8311 = vrot.slane %v8310, 2
        %v8312 = vmax.f32 %v8310, %v8311
        %v8313 = vrot.slane %v8312, 1
        %v8314 = vmax.f32 %v8312, %v8313
        %v8315 = vmax.f32 %v8166, %v8167
        %v8316 = vrot.slane %v8315, 4
        %v8317 = vmax.f32 %v8315, %v8316
        %v8318 = vrot.slane %v8317, 2
        %v8319 = vmax.f32 %v8317, %v8318
        %v8320 = vrot.slane %v8319, 1
        %v8321 = vmax.f32 %v8319, %v8320
        %v8322 = vmax.f32 %v8168, %v8169
        %v8323 = vrot.slane %v8322, 4
        %v8324 = vmax.f32 %v8322, %v8323
        %v8325 = vrot.slane %v8324, 2
        %v8326 = vmax.f32 %v8324, %v8325
        %v8327 = vrot.slane %v8326, 1
        %v8328 = vmax.f32 %v8326, %v8327
        %v8329 = vmax.f32 %v8170, %v8171
        %v8330 = vrot.slane %v8329, 4
        %v8331 = vmax.f32 %v8329, %v8330
        %v8332 = vrot.slane %v8331, 2
        %v8333 = vmax.f32 %v8331, %v8332
        %v8334 = vrot.slane %v8333, 1
        %v8335 = vmax.f32 %v8333, %v8334
        %v8336 = vmax.f32 %v8172, %v8173
        %v8337 = vrot.slane %v8336, 4
        %v8338 = vmax.f32 %v8336, %v8337
        %v8339 = vrot.slane %v8338, 2
        %v8340 = vmax.f32 %v8338, %v8339
        %v8341 = vrot.slane %v8340, 1
        %v8342 = vmax.f32 %v8340, %v8341
        %v8343 = vmax.f32 %v8174, %v8175
        %v8344 = vrot.slane %v8343, 4
        %v8345 = vmax.f32 %v8343, %v8344
        %v8346 = vrot.slane %v8345, 2
        %v8347 = vmax.f32 %v8345, %v8346
        %v8348 = vrot.slane %v8347, 1
        %v8349 = vmax.f32 %v8347, %v8348
        %v8350 = vmax.f32 %v8176, %v8177
        %v8351 = vrot.slane %v8350, 4
        %v8352 = vmax.f32 %v8350, %v8351
        %v8353 = vrot.slane %v8352, 2
        %v8354 = vmax.f32 %v8352, %v8353
        %v8355 = vrot.slane %v8354, 1
        %v8356 = vmax.f32 %v8354, %v8355
        %v8357 = vmax.f32 %v8178, %v8179
        %v8358 = vrot.slane %v8357, 4
        %v8359 = vmax.f32 %v8357, %v8358
        %v8360 = vrot.slane %v8359, 2
        %v8361 = vmax.f32 %v8359, %v8360
        %v8362 = vrot.slane %v8361, 1
        %v8363 = vmax.f32 %v8361, %v8362
        %v8364 = vmax.f32 %v8180, %v8181
        %v8365 = vrot.slane %v8364, 4
        %v8366 = vmax.f32 %v8364, %v8365
        %v8367 = vrot.slane %v8366, 2
        %v8368 = vmax.f32 %v8366, %v8367
        %v8369 = vrot.slane %v8368, 1
        %v8370 = vmax.f32 %v8368, %v8369
        %v8371 = vmax.f32 %v8182, %v8183
        %v8372 = vrot.slane %v8371, 4
        %v8373 = vmax.f32 %v8371, %v8372
        %v8374 = vrot.slane %v8373, 2
        %v8375 = vmax.f32 %v8373, %v8374
        %v8376 = vrot.slane %v8375, 1
        %v8377 = vmax.f32 %v8375, %v8376
        %v8378 = vmax.f32 %v8184, %v8185
        %v8379 = vrot.slane %v8378, 4
        %v8380 = vmax.f32 %v8378, %v8379
        %v8381 = vrot.slane %v8380, 2
        %v8382 = vmax.f32 %v8380, %v8381
        %v8383 = vrot.slane %v8382, 1
        %v8384 = vmax.f32 %v8382, %v8383
        %v8385 = vmax.f32 %v8186, %v8187
        %v8386 = vrot.slane %v8385, 4
        %v8387 = vmax.f32 %v8385, %v8386
        %v8388 = vrot.slane %v8387, 2
        %v8389 = vmax.f32 %v8387, %v8388
        %v8390 = vrot.slane %v8389, 1
        %v8391 = vmax.f32 %v8389, %v8390
        %v8392 = vmax.f32 %v8188, %v8189
        %v8393 = vrot.slane %v8392, 4
        %v8394 = vmax.f32 %v8392, %v8393
        %v8395 = vrot.slane %v8394, 2
        %v8396 = vmax.f32 %v8394, %v8395
        %v8397 = vrot.slane %v8396, 1
        %v8398 = vmax.f32 %v8396, %v8397
        %v8399 = vmax.f32 %v8190, %v8191
        %v8400 = vrot.slane %v8399, 4
        %v8401 = vmax.f32 %v8399, %v8400
        %v8402 = vrot.slane %v8401, 2
        %v8403 = vmax.f32 %v8401, %v8402
        %v8404 = vrot.slane %v8403, 1
        %v8405 = vmax.f32 %v8403, %v8404
        %v8406 = vmax.f32 %v8192, %v8193
        %v8407 = vrot.slane %v8406, 4
        %v8408 = vmax.f32 %v8406, %v8407
        %v8409 = vrot.slane %v8408, 2
        %v8410 = vmax.f32 %v8408, %v8409
        %v8411 = vrot.slane %v8410, 1
        %v8412 = vmax.f32 %v8410, %v8411
        %v8413 = vmax.f32 %v8194, %v8195
        %v8414 = vrot.slane %v8413, 4
        %v8415 = vmax.f32 %v8413, %v8414
        %v8416 = vrot.slane %v8415, 2
        %v8417 = vmax.f32 %v8415, %v8416
        %v8418 = vrot.slane %v8417, 1
        %v8419 = vmax.f32 %v8417, %v8418
        %vm8452 = vcmask 1041409
        %v8453 = vsel %vm8452, %v7357, %v7350
        %vm8454 = vcmask 1042434
        %v8455 = vsel %vm8454, %v7364, %v8453
        %vm8456 = vcmask 1043459
        %v8457 = vsel %vm8456, %v7371, %v8455
        %vm8458 = vcmask 1044484
        %v8459 = vsel %vm8458, %v7378, %v8457
        %vm8460 = vcmask 1045509
        %v8461 = vsel %vm8460, %v7385, %v8459
        %vm8462 = vcmask 1046534
        %v8463 = vsel %vm8462, %v7392, %v8461
        %vm8464 = vcmask 1047559
        %v8465 = vsel %vm8464, %v7399, %v8463
        %v8466 = vsel %vm8452, %v7413, %v7406
        %v8467 = vsel %vm8454, %v7420, %v8466
        %v8468 = vsel %vm8456, %v7427, %v8467
        %v8469 = vsel %vm8458, %v7434, %v8468
        %v8470 = vsel %vm8460, %v7441, %v8469
        %v8471 = vsel %vm8462, %v7448, %v8470
        %v8472 = vsel %vm8464, %v7455, %v8471
        %v8473 = vsel %vm8452, %v7469, %v7462
        %v8474 = vsel %vm8454, %v7476, %v8473
        %v8475 = vsel %vm8456, %v7483, %v8474
        %v8476 = vsel %vm8458, %v7490, %v8475
        %v8477 = vsel %vm8460, %v7497, %v8476
        %v8478 = vsel %vm8462, %v7504, %v8477
        %v8479 = vsel %vm8464, %v7511, %v8478
        %v8480 = vsel %vm8452, %v7525, %v7518
        %v8481 = vsel %vm8454, %v7532, %v8480
        %v8482 = vsel %vm8456, %v7539, %v8481
        %v8483 = vsel %vm8458, %v7546, %v8482
        %v8484 = vsel %vm8460, %v7553, %v8483
        %v8485 = vsel %vm8462, %v7560, %v8484
        %v8486 = vsel %vm8464, %v7567, %v8485
        %v8523 = vsel %vm8452, %v7783, %v7776
        %v8524 = vsel %vm8454, %v7790, %v8523
        %v8525 = vsel %vm8456, %v7797, %v8524
        %v8526 = vsel %vm8458, %v7804, %v8525
        %v8527 = vsel %vm8460, %v7811, %v8526
        %v8528 = vsel %vm8462, %v7818, %v8527
        %v8529 = vsel %vm8464, %v7825, %v8528
        %v8530 = vsel %vm8452, %v7839, %v7832
        %v8531 = vsel %vm8454, %v7846, %v8530
        %v8532 = vsel %vm8456, %v7853, %v8531
        %v8533 = vsel %vm8458, %v7860, %v8532
        %v8534 = vsel %vm8460, %v7867, %v8533
        %v8535 = vsel %vm8462, %v7874, %v8534
        %v8536 = vsel %vm8464, %v7881, %v8535
        %v8537 = vsel %vm8452, %v7895, %v7888
        %v8538 = vsel %vm8454, %v7902, %v8537
        %v8539 = vsel %vm8456, %v7909, %v8538
        %v8540 = vsel %vm8458, %v7916, %v8539
        %v8541 = vsel %vm8460, %v7923, %v8540
        %v8542 = vsel %vm8462, %v7930, %v8541
        %v8543 = vsel %vm8464, %v7937, %v8542
        %v8544 = vsel %vm8452, %v7951, %v7944
        %v8545 = vsel %vm8454, %v7958, %v8544
        %v8546 = vsel %vm8456, %v7965, %v8545
        %v8547 = vsel %vm8458, %v7972, %v8546
        %v8548 = vsel %vm8460, %v7979, %v8547
        %v8549 = vsel %vm8462, %v7986, %v8548
        %v8550 = vsel %vm8464, %v7993, %v8549
        %v8587 = vsel %vm8452, %v8209, %v8202
        %v8588 = vsel %vm8454, %v8216, %v8587
        %v8589 = vsel %vm8456, %v8223, %v8588
        %v8590 = vsel %vm8458, %v8230, %v8589
        %v8591 = vsel %vm8460, %v8237, %v8590
        %v8592 = vsel %vm8462, %v8244, %v8591
        %v8593 = vsel %vm8464, %v8251, %v8592
        %v8594 = vsel %vm8452, %v8265, %v8258
        %v8595 = vsel %vm8454, %v8272, %v8594
        %v8596 = vsel %vm8456, %v8279, %v8595
        %v8597 = vsel %vm8458, %v8286, %v8596
        %v8598 = vsel %vm8460, %v8293, %v8597
        %v8599 = vsel %vm8462, %v8300, %v8598
        %v8600 = vsel %vm8464, %v8307, %v8599
        %v8601 = vsel %vm8452, %v8321, %v8314
        %v8602 = vsel %vm8454, %v8328, %v8601
        %v8603 = vsel %vm8456, %v8335, %v8602
        %v8604 = vsel %vm8458, %v8342, %v8603
        %v8605 = vsel %vm8460, %v8349, %v8604
        %v8606 = vsel %vm8462, %v8356, %v8605
        %v8607 = vsel %vm8464, %v8363, %v8606
        %v8608 = vsel %vm8452, %v8377, %v8370
        %v8609 = vsel %vm8454, %v8384, %v8608
        %v8610 = vsel %vm8456, %v8391, %v8609
        %v8611 = vsel %vm8458, %v8398, %v8610
        %v8612 = vsel %vm8460, %v8405, %v8611
        %v8613 = vsel %vm8462, %v8412, %v8612
        %v8614 = vsel %vm8464, %v8419, %v8613
        %v8619 = vld [vmem:[#allocation10] sm:$0xff]
        %v8620 = vld [vmem:[#allocation10 + $0x8] sm:$0xff]
        %v8621 = vld [vmem:[#allocation10 + $0x10] sm:$0xff]
        %v8622 = vld [vmem:[#allocation10 + $0x18] sm:$0xff]
        %v8623 = vld [vmem:[#allocation10 + $0x20] sm:$0xff]
        %v8624 = vld [vmem:[#allocation10 + $0x28] sm:$0xff]
        %v8625 = vld [vmem:[#allocation10 + $0x30] sm:$0xff]
        %v8626 = vld [vmem:[#allocation10 + $0x38] sm:$0xff]
        %v8627 = vld [vmem:[#allocation10 + $0x40] sm:$0xff]
        %v8628 = vld [vmem:[#allocation10 + $0x48] sm:$0xff]
        %v8629 = vld [vmem:[#allocation10 + $0x50] sm:$0xff]
        %v8630 = vld [vmem:[#allocation10 + $0x58] sm:$0xff]
        %v8631 = vld [vmem:[#allocation10 + $0x60] sm:$0xff]
        %v8632 = vld [vmem:[#allocation10 + $0x68] sm:$0xff]
        %v8633 = vld [vmem:[#allocation10 + $0x70] sm:$0xff]
        %v8634 = vld [vmem:[#allocation10 + $0x78] sm:$0xff]
        %v8635 = vld [vmem:[#allocation10 + $0x80] sm:$0xff]
        %v8636 = vld [vmem:[#allocation10 + $0x88] sm:$0xff]
        %v8637 = vld [vmem:[#allocation10 + $0x90] sm:$0xff]
        %v8638 = vld [vmem:[#allocation10 + $0x98] sm:$0xff]
        %v8639 = vld [vmem:[#allocation10 + $0xa0] sm:$0xff]
        %v8640 = vld [vmem:[#allocation10 + $0xa8] sm:$0xff]
        %v8641 = vld [vmem:[#allocation10 + $0xb0] sm:$0xff]
        %v8642 = vld [vmem:[#allocation10 + $0xb8] sm:$0xff]
        %v8643 = vld [vmem:[#allocation10 + $0xc0] sm:$0xff]
        %v8644 = vld [vmem:[#allocation10 + $0xc8] sm:$0xff]
        %v8645 = vld [vmem:[#allocation10 + $0xd0] sm:$0xff]
        %v8646 = vld [vmem:[#allocation10 + $0xd8] sm:$0xff]
        %v8647 = vld [vmem:[#allocation10 + $0xe0] sm:$0xff]
        %v8648 = vld [vmem:[#allocation10 + $0xe8] sm:$0xff]
        %v8649 = vld [vmem:[#allocation10 + $0xf0] sm:$0xff]
        %v8650 = vld [vmem:[#allocation10 + $0xf8] sm:$0xff]
        %v8651 = vld [vmem:[#allocation10 + $0x100] sm:$0xff]
        %v8652 = vld [vmem:[#allocation10 + $0x108] sm:$0xff]
        %v8653 = vld [vmem:[#allocation10 + $0x110] sm:$0xff]
        %v8654 = vld [vmem:[#allocation10 + $0x118] sm:$0xff]
        %v8655 = vld [vmem:[#allocation10 + $0x120] sm:$0xff]
        %v8656 = vld [vmem:[#allocation10 + $0x128] sm:$0xff]
        %v8657 = vld [vmem:[#allocation10 + $0x130] sm:$0xff]
        %v8658 = vld [vmem:[#allocation10 + $0x138] sm:$0xff]
        %v8659 = vld [vmem:[#allocation10 + $0x140] sm:$0xff]
        %v8660 = vld [vmem:[#allocation10 + $0x148] sm:$0xff]
        %v8661 = vld [vmem:[#allocation10 + $0x150] sm:$0xff]
        %v8662 = vld [vmem:[#allocation10 + $0x158] sm:$0xff]
        %v8663 = vld [vmem:[#allocation10 + $0x160] sm:$0xff]
        %v8664 = vld [vmem:[#allocation10 + $0x168] sm:$0xff]
        %v8665 = vld [vmem:[#allocation10 + $0x170] sm:$0xff]
        %v8666 = vld [vmem:[#allocation10 + $0x178] sm:$0xff]
        %v8667 = vld [vmem:[%s6] sm:$0x1]
        %v8669 = vlaneseq
        %v8670 = vshrl.u32 %v8669, 7
        %v8671 = vsub.s32 0, %v8670
        %v8672 = vrot.slane %v8667, %v8671
        %8674 = vmatprep.subr.mxu0 0.0
        %8675 = vmatpush1.msra.mxu0 %v8619
        %8676 = vmatprep.subr.mxu0 0.0
        %8677 = vmatpush1.msra.mxu0 %v8620
        %8678 = vmatprep.subr.mxu0 0.0
        %8679 = vmatpush1.msra.mxu0 %v8621
        %8680 = vmatprep.subr.mxu0 0.0
        %8681 = vmatpush1.msra.mxu0 %v8622
        %8682 = vmatprep.subr.mxu0 0.0
        %8683 = vmatpush1.msra.mxu0 %v8623
        %8684 = vmatprep.subr.mxu0 0.0
        %8685 = vmatpush1.msra.mxu0 %v8624
        %8686 = vmatprep.subr.mxu0 0.0
        %8687 = vmatpush1.msra.mxu0 %v8625
        %8688 = vmatprep.subr.mxu0 0.0
        %8689 = vmatpush1.msra.mxu0 %v8626
        %8690 = vmatprep.subr.mxu0 0.0
        %8691 = vmatpush1.msra.mxu0 %v8627
        %8692 = vmatprep.subr.mxu0 0.0
        %8693 = vmatpush1.msra.mxu0 %v8628
        %8694 = vmatprep.subr.mxu0 0.0
        %8695 = vmatpush1.msra.mxu0 %v8629
        %8696 = vmatprep.subr.mxu0 0.0
        %8697 = vmatpush1.msra.mxu0 %v8630
        %8698 = vmatprep.subr.mxu0 0.0
        %8699 = vmatpush1.msra.mxu0 %v8631
        %8700 = vmatprep.subr.mxu0 0.0
        %8701 = vmatpush1.msra.mxu0 %v8632
        %8702 = vmatprep.subr.mxu0 0.0
        %8703 = vmatpush1.msra.mxu0 %v8633
        %8704 = vmatprep.subr.mxu0 0.0
        %8705 = vmatpush1.msra.mxu0 %v8634
        %8706 = vmatprep.subr.mxu0 0.0
        %8707 = vmatpush1.msra.mxu0 %v8635
        %8708 = vmatprep.subr.mxu0 0.0
        %8709 = vmatpush1.msra.mxu0 %v8636
        %8710 = vmatprep.subr.mxu0 0.0
        %8711 = vmatpush1.msra.mxu0 %v8637
        %8712 = vmatprep.subr.mxu0 0.0
        %8713 = vmatpush1.msra.mxu0 %v8638
        %8714 = vmatprep.subr.mxu0 0.0
        %8715 = vmatpush1.msra.mxu0 %v8639
        %8716 = vmatprep.subr.mxu0 0.0
        %8717 = vmatpush1.msra.mxu0 %v8640
        %8718 = vmatprep.subr.mxu0 0.0
        %8719 = vmatpush1.msra.mxu0 %v8641
        %8720 = vmatprep.subr.mxu0 0.0
        %8721 = vmatpush1.msra.mxu0 %v8642
        %8722 = vmatprep.subr.mxu0 0.0
        %8723 = vmatpush1.msra.mxu0 %v8643
        %8724 = vmatprep.subr.mxu0 0.0
        %8725 = vmatpush1.msra.mxu0 %v8644
        %8726 = vmatprep.subr.mxu0 0.0
        %8727 = vmatpush1.msra.mxu0 %v8645
        %8728 = vmatprep.subr.mxu0 0.0
        %8729 = vmatpush1.msra.mxu0 %v8646
        %8730 = vmatprep.subr.mxu0 0.0
        %8731 = vmatpush1.msra.mxu0 %v8647
        %8732 = vmatprep.subr.mxu0 0.0
        %8733 = vmatpush1.msra.mxu0 %v8648
        %8734 = vmatprep.subr.mxu0 0.0
        %8735 = vmatpush1.msra.mxu0 %v8649
        %8736 = vmatprep.subr.mxu0 0.0
        %8737 = vmatpush1.msra.mxu0 %v8650
        %8738 = vmatprep.mubr.f32.mxu0 %v8529
        %8739 = vmatmul.mubr.f32.gmra.mrb[0].mxu0 %v8465
        %v8740 = vpop.f32.mrb[0].mxu0
        %v8741 = vadd.f32 %v8672, %v8740
        %v8742 = vpop.f32.mrb[0].mxu0
        %8743 = vmatprep.mubr.f32.mxu0 %v8536
        %8744 = vmatmul.mubr.f32.gmra.mrb[0].mxu0 %v8472
        %v8745 = vpop.f32.mrb[0].mxu0
        %v8746 = vadd.f32 %v8672, %v8745
        %v8747 = vpop.f32.mrb[0].mxu0
        %8748 = vmatprep.mubr.f32.mxu0 %v8543
        %8749 = vmatmul.mubr.f32.gmra.mrb[0].mxu0 %v8479
        %v8750 = vpop.f32.mrb[0].mxu0
        %v8751 = vadd.f32 %v8672, %v8750
        %v8752 = vpop.f32.mrb[0].mxu0
        %8753 = vmatprep.mubr.f32.mxu0 %v8550
        %8754 = vmatmul.mubr.f32.gmra.mrb[0].mxu0 %v8486
        %v8755 = vpop.f32.mrb[0].mxu0
        %v8756 = vadd.f32 %v8672, %v8755
        %v8757 = vpop.f32.mrb[0].mxu0
        %8758 = vdwg.mxu0
        %8759 = vmatprep.subr.mxu0 0.0
        %8760 = vmatpush1.msra.mxu0 %v8651
        %8761 = vmatprep.subr.mxu0 0.0
        %8762 = vmatpush1.msra.mxu0 %v8652
        %8763 = vmatprep.subr.mxu0 0.0
        %8764 = vmatpush1.msra.mxu0 %v8653
        %8765 = vmatprep.subr.mxu0 0.0
        %8766 = vmatpush1.msra.mxu0 %v8654
        %8767 = vmatprep.subr.mxu0 0.0
        %8768 = vmatpush1.msra.mxu0 %v8655
        %8769 = vmatprep.subr.mxu0 0.0
        %8770 = vmatpush1.msra.mxu0 %v8656
        %8771 = vmatprep.subr.mxu0 0.0
        %8772 = vmatpush1.msra.mxu0 %v8657
        %8773 = vmatprep.subr.mxu0 0.0
        %8774 = vmatpush1.msra.mxu0 %v8658
        %8775 = vmatprep.subr.mxu0 0.0
        %8776 = vmatpush1.msra.mxu0 %v8659
        %8777 = vmatprep.subr.mxu0 0.0
        %8778 = vmatpush1.msra.mxu0 %v8660
        %8779 = vmatprep.subr.mxu0 0.0
        %8780 = vmatpush1.msra.mxu0 %v8661
        %8781 = vmatprep.subr.mxu0 0.0
        %8782 = vmatpush1.msra.mxu0 %v8662
        %8783 = vmatprep.subr.mxu0 0.0
        %8784 = vmatpush1.msra.mxu0 %v8663
        %8785 = vmatprep.subr.mxu0 0.0
        %8786 = vmatpush1.msra.mxu0 %v8664
        %8787 = vmatprep.subr.mxu0 0.0
        %8788 = vmatpush1.msra.mxu0 %v8665
        %8789 = vmatprep.subr.mxu0 0.0
        %8790 = vmatpush1.msra.mxu0 %v8666
        %8791 = vmatprep.subr.mxu0 0.0
        %8792 = vmatpush1.msra.mxu0 0.0
        %8793 = vmatprep.subr.mxu0 0.0
        %8794 = vmatpush1.msra.mxu0 0.0
        %8795 = vmatprep.subr.mxu0 0.0
        %8796 = vmatpush1.msra.mxu0 0.0
        %8797 = vmatprep.subr.mxu0 0.0
        %8798 = vmatpush1.msra.mxu0 0.0
        %8799 = vmatprep.subr.mxu0 0.0
        %8800 = vmatpush1.msra.mxu0 0.0
        %8801 = vmatprep.subr.mxu0 0.0
        %8802 = vmatpush1.msra.mxu0 0.0
        %8803 = vmatprep.subr.mxu0 0.0
        %8804 = vmatpush1.msra.mxu0 0.0
        %8805 = vmatprep.subr.mxu0 0.0
        %8806 = vmatpush1.msra.mxu0 0.0
        %8807 = vmatprep.subr.mxu0 0.0
        %8808 = vmatpush1.msra.mxu0 0.0
        %8809 = vmatprep.subr.mxu0 0.0
        %8810 = vmatpush1.msra.mxu0 0.0
        %8811 = vmatprep.subr.mxu0 0.0
        %8812 = vmatpush1.msra.mxu0 0.0
        %8813 = vmatprep.subr.mxu0 0.0
        %8814 = vmatpush1.msra.mxu0 0.0
        %8815 = vmatprep.subr.mxu0 0.0
        %8816 = vmatpush1.msra.mxu0 0.0
        %8817 = vmatprep.subr.mxu0 0.0
        %8818 = vmatpush1.msra.mxu0 0.0
        %8819 = vmatprep.subr.mxu0 0.0
        %8820 = vmatpush1.msra.mxu0 0.0
        %8821 = vmatprep.subr.mxu0 0.0
        %8822 = vmatpush1.msra.mxu0 0.0
        %8823 = vmatprep.mubr.f32.mxu0 0.0
        %8824 = vmatmul.mubr.f32.gmra.mrb[0].mxu0 %v8593
        %v8825 = vpop.f32.mrb[0].mxu0
        %v8826 = vadd.f32 %v8741, %v8825
        %v8827 = vpop.f32.mrb[0].mxu0
        %8828 = vmatprep.mubr.f32.mxu0 0.0
        %8829 = vmatmul.mubr.f32.gmra.mrb[0].mxu0 %v8600
        %v8830 = vpop.f32.mrb[0].mxu0
        %v8831 = vadd.f32 %v8746, %v8830
        %v8832 = vpop.f32.mrb[0].mxu0
        %8833 = vmatprep.mubr.f32.mxu0 0.0
        %8834 = vmatmul.mubr.f32.gmra.mrb[0].mxu0 %v8607
        %v8835 = vpop.f32.mrb[0].mxu0
        %v8836 = vadd.f32 %v8751, %v8835
        %v8837 = vpop.f32.mrb[0].mxu0
        %8838 = vmatprep.mubr.f32.mxu0 0.0
        %8839 = vmatmul.mubr.f32.gmra.mrb[0].mxu0 %v8614
        %v8840 = vpop.f32.mrb[0].mxu0
        %v8841 = vadd.f32 %v8756, %v8840
        %v8842 = vpop.f32.mrb[0].mxu0
        %8843 = vdwg.mxu0
        %8844 = vst [vmem:[%s354] sm:$0xff] %v8826
        %8845 = vst [vmem:[%s354 + $0x8] sm:$0xff] %v8831
        %8846 = vst [vmem:[%s354 + $0x10] sm:$0xff] %v8836
        %8847 = vst [vmem:[%s354 + $0x18] sm:$0xff] %v8841
        %s8848 = sand.u32 %s186, 1
        %s8849 = scalar_lea.sflag [#allocation4], %s8848
        %s8850 = sand.u32 %s186, 1
        %s8851 = smul.addr %s8850, 32
        %s8852 = scalar_lea.vmem [#allocation11], %s8851
        // Predicated region
        $region69: #{tpu_custom_call.1} parent=47 // pred_check
          %p8853 = pneg %p196
        $region70: #{tpu_custom_call.1} parent=47 // pred_check_branch
          %8855 = sbr.rel (%p8853) target = $region72
        $region71: #{tpu_custom_call.1} parent=47 // pred_region
          %s8856 = smul.u32 4, %s26
          %s8858 = ssub.s32 512, 512
          %8859 = vsyncadd %s8849, %s8858
          %s8860 = smul.addr %s8856, 128
          %s8861 = scalar_lea.hbm %s7, %s8860
          %s8862 = sshll.u32 %s8852, 4
          %s8863 = int_to_ptr.vmem [resolvable:$true] %s8862
          %8868 = dma.vmem_to_hbm [thread:$0]  %s8863, 512, %s8861, %s8849, 128, 128, 8
        $region72: #{tpu_custom_call.1} parent=47 // pred_fallthru
          _
      $region48: #{tpu_custom_call.1} parent=5 // pred_fallthru
        _
      %p8869 = scmp.le.s32.totalorder 2, %s21
      // Predicated region
      $region73: #{tpu_custom_call.1} parent=5 // pred_check
        %p8870 = pneg %p8869
      $region74: #{tpu_custom_call.1} parent=5 // pred_check_branch
        %8872 = sbr.rel (%p8870) target = $region76
      $region75: #{tpu_custom_call.1} parent=5 // pred_region
        %s8873 = ssub.s32 %s21, 2
        // Predicated region
        $region77: #{tpu_custom_call.1} parent=75 // pred_check
          %p8874 = pneg %p202
        $region78: #{tpu_custom_call.1} parent=75 // pred_check_branch
          %8876 = sbr.rel (%p8874) target = $region80
        $region79: #{tpu_custom_call.1} parent=75 // pred_region
          %s8877 = sand.u32 %s187, 1
          %s8878 = scalar_lea.sflag [#allocation4], %s8877
          %s8879 = sand.u32 %s187, 1
          %s8880 = smul.addr %s8879, 32
          %s8881 = scalar_lea.vmem [#allocation11], %s8880
          %8882 = dma.done %s8878, 512
        $region80: #{tpu_custom_call.1} parent=75 // pred_fallthru
          _
      $region76: #{tpu_custom_call.1} parent=5 // pred_fallthru
        _
    $region6: #{tpu_custom_call.1} parent=1 // loop_footer
      %s25 = sadd.s32 1, %s21
    $region7: #{tpu_custom_call.1} parent=1 // loop_footer_branch
      %20 = sbr.rel target = $region3
    $region8: #{tpu_custom_call.1} parent=1 // loop_exit
      _
    %8883 = vsyncpa [#allocation3], 1
    %s8884 = scalar_lea.sflag [#allocation3], 1
    %8885 = vsyncpa %s8884, 1
    %8886 = vsyncpa [#allocation6], 1
    %8887 = vsyncpa [#allocation9], 1
    %8888 = vsyncpa [#allocation4], 1
    %s8889 = scalar_lea.sflag [#allocation4], 1
    %8890 = vsyncpa %s8889, 1

</llo_original>
